<compile_context>
chip_gen: v6e
topology: v6e:2x2x1
jax: 0.10.0
libtpu: 0.0.40
codegen_flags: <defaults>
</compile_context>

<pallas_src>
import math

import jax
import jax.numpy as jnp
from jax import lax
from jax.experimental import pallas as pl
from jax.experimental.pallas import tpu as pltpu


_ROW_TILE = 128              # gram rows produced per MXU call / per fused elementwise tile
_EPS_SQRT = 784.0 * 1e-10    # reference eps (1e-10) folded through the dropped /28^2 scale


# ----------------------------------------------------------------------------
# Pallas kernel: bilinear pooling head, one batch element per grid step.
#
# Reference math (per batch):
#   G  = (f @ f^T) / 28^2                       (512, 512)
#   h  = sign(G) * sqrt(|G| + 1e-10)
#   hn = h / max(||h||_2, 1e-12)                (L2 over all 512*512 elems)
#   y  = sigmoid(W @ hn_flat + b)               (3,)
#
# The uniform 1/784 scale cancels under the L2 normalization, so we compute
#   h' = sign(G') * sqrt(|G'| + 784e-10)   with  G' = f @ f^T  (== 28 * h)
# which normalizes to the identical vector.  Because normalize is a uniform scale,
#   W @ hn_flat = (W . h') / ||h'||,
# so the norm and the three fc dot products are all accumulated in one fused pass
# over 128-row gram tiles -- neither G nor h is materialized in full.
# ----------------------------------------------------------------------------
def _bcnn_head_kernel(f_ref, w_ref, b_ref, o_ref):
    # f_ref: (1, 512, Np) bf16   w_ref: (3, 512, 512) bf16
    # b_ref: (1, 128) f32        o_ref: (1, 1, 128) f32
    fb = f_ref[0]                                   # (512, Np) bf16
    c = fb.shape[0]

    norm_sq = jnp.float32(0.0)
    s = [jnp.float32(0.0), jnp.float32(0.0), jnp.float32(0.0)]
    sign_mask = jnp.uint32(0x80000000)

    for r in range(c // _ROW_TILE):                 # 4 static row tiles of 128
        lo = r * _ROW_TILE

        # (128, 512) gram tile: bf16 operands, f32 accumulation on the MXU.
        # Zero-padded spatial columns contribute nothing, so this matches f @ f^T.
        g = lax.dot_general(
            fb[lo:lo + _ROW_TILE, :], fb,
            dimension_numbers=(((1,), (1,)), ((), ())),
            preferred_element_type=jnp.float32,
        )

        is_zero = g == 0.0                          # shared mask (torch.sign(0) == 0)
        ape = jnp.abs(g) + _EPS_SQRT                # |g| + eps  (== h^2 where g != 0)

        # Norm path: h*h == |g|+eps for g != 0, 0 otherwise.  Avoids squaring the
        # sqrt result and keeps the norm independent of the EUP sqrt latency.
        norm_sq = norm_sq + jnp.sum(jnp.where(is_zero, 0.0, ape))

        # Signed sqrt via sign-bit transfer (cheaper than sign()*sqrt on the VPU).
        mag = jnp.sqrt(ape)
        signed = pltpu.bitcast(
            pltpu.bitcast(mag, jnp.uint32)
            | (pltpu.bitcast(g, jnp.uint32) & sign_mask),
            jnp.float32,
        )
        h = jnp.where(is_zero, 0.0, signed)

        # Stream the 3 fc dot products off the same tile (static tiny class loop).
        for k in range(3):
            wk = w_ref[k, lo:lo + _ROW_TILE, :].astype(jnp.float32)   # bf16 -> f32
            s[k] = s[k] + jnp.sum(h * wk)

    inv = 1.0 / jnp.maximum(jnp.sqrt(norm_sq), 1e-12)

    lane = lax.broadcasted_iota(jnp.int32, (1, 128), 1)
    raw = jnp.where(lane == 0, s[0],
          jnp.where(lane == 1, s[1],
          jnp.where(lane == 2, s[2], 0.0)))
    logits = raw * inv + b_ref[...]                 # bias zero-padded past lane 2
    o_ref[0] = jax.nn.sigmoid(logits)               # lanes >= 3 sliced off by the wrapper


def bcnn_head(feats, fc_w_bf16, fc_b_padded):
    """feats: (B, 512, N) float -> (B, 3) float32."""
    B, C, N = feats.shape
    assert C == 512
    Np = ((N + 127) // 128) * 128
    feats = feats.astype(jnp.bfloat16)              # bf16 MXU operands + half the DMA bytes
    if Np != N:
        feats = jnp.pad(feats, ((0, 0), (0, 0), (0, Np - N)))

    out = pl.pallas_call(
        _bcnn_head_kernel,
        out_shape=jax.ShapeDtypeStruct((B, 1, 128), jnp.float32),
        grid_spec=pltpu.PrefetchScalarGridSpec(
            num_scalar_prefetch=0,
            grid=(B,),
            in_specs=[
                pl.BlockSpec((1, C, Np), lambda b: (b, 0, 0)),   # per-batch features (bf16)
                pl.BlockSpec((3, C, C), lambda b: (0, 0, 0)),    # fc weight, grid-invariant (bf16)
                pl.BlockSpec((1, 128), lambda b: (0, 0)),        # fc bias, lane padded (f32)
            ],
            out_specs=pl.BlockSpec((1, 1, 128), lambda b: (b, 0, 0)),
        ),
        compiler_params=pltpu.CompilerParams(
            dimension_semantics=("parallel",)),
    )(feats, fc_w_bf16, fc_b_padded)
    return out[:, 0, :3]


# ----------------------------------------------------------------------------
# ResNet18 feature extractor (plain JAX glue, deterministic random weights,
# inference-mode batch norm).
# ----------------------------------------------------------------------------
def _conv2d(x, w, stride, padding):
    return lax.conv_general_dilated(
        x, w,
        window_strides=(stride, stride),
        padding=[(padding, padding), (padding, padding)],
        dimension_numbers=("NCHW", "OIHW", "NCHW"),
    )


def _batchnorm(x, bn, eps=1e-5):
    scale, bias, mean, var = bn
    inv = scale / jnp.sqrt(var + eps)
    return x * inv[None, :, None, None] + (bias - mean * inv)[None, :, None, None]


def _maxpool(x, ksize=3, stride=2, pad=1):
    return lax.reduce_window(
        x, -jnp.inf, lax.max,
        window_dimensions=(1, 1, ksize, ksize),
        window_strides=(1, 1, stride, stride),
        padding=[(0, 0), (0, 0), (pad, pad), (pad, pad)],
    )


def _basic_block(x, bp):
    stride = bp["stride"]
    identity = x
    out = _conv2d(x, bp["conv1"], stride, 1)
    out = jax.nn.relu(_batchnorm(out, bp["bn1"]))
    out = _conv2d(out, bp["conv2"], 1, 1)
    out = _batchnorm(out, bp["bn2"])
    if "down_conv" in bp:
        identity = _batchnorm(_conv2d(x, bp["down_conv"], stride, 0), bp["down_bn"])
    return jax.nn.relu(out + identity)


def backbone(x, params):
    out = _conv2d(x, params["conv1"], 2, 3)
    out = jax.nn.relu(_batchnorm(out, params["bn1"]))
    out = _maxpool(out)
    for blocks in params["layers"]:
        for bp in blocks:
            out = _basic_block(out, bp)
    return out  # (B, 512, H, W)


def bcnn_forward(x, params):
    f = backbone(x, params)                       # (B, 512, H, W)
    B, C, H, W = f.shape
    feats = f.reshape(B, C, H * W)                # x.view(B, 512, H*H)
    return bcnn_head(feats, params["fc_w"], params["fc_b_padded"])


# ----------------------------------------------------------------------------
# Deterministic parameter initialization (shapes match torchvision resnet18 + fc)
# ----------------------------------------------------------------------------
def init_params(key):
    keys = iter(jax.random.split(key, 64))

    def conv_init(out_c, in_c, k):
        fan_in = in_c * k * k
        return jax.random.normal(next(keys), (out_c, in_c, k, k), jnp.float32) / math.sqrt(fan_in)

    def bn_init(c):
        return (jnp.ones((c,), jnp.float32), jnp.zeros((c,), jnp.float32),
                jnp.zeros((c,), jnp.float32), jnp.ones((c,), jnp.float32))

    params = {"conv1": conv_init(64, 3, 7), "bn1": bn_init(64)}

    layer_cfg = [(64, 64, 1), (64, 128, 2), (128, 256, 2), (256, 512, 2)]
    layers = []
    for in_c, out_c, first_stride in layer_cfg:
        blocks = []
        for bi in range(2):
            s = first_stride if bi == 0 else 1
            ic = in_c if bi == 0 else out_c
            bp = {
                "conv1": conv_init(out_c, ic, 3), "bn1": bn_init(out_c),
                "conv2": conv_init(out_c, out_c, 3), "bn2": bn_init(out_c),
                "stride": s,
            }
            if s != 1 or ic != out_c:
                bp["down_conv"] = conv_init(out_c, ic, 1)
                bp["down_bn"] = bn_init(out_c)
            blocks.append(bp)
        layers.append(blocks)
    params["layers"] = layers

    # nn.Linear(512**2, 3): weight (3, 512*512), bias (3,)
    fc_w = jax.random.normal(next(keys), (3, 512 * 512), jnp.float32) / math.sqrt(512 * 512)
    fc_b = jax.random.normal(next(keys), (3,), jnp.float32) * 0.01
    # Stored as bf16 (halves VMEM / DMA for the grid-invariant resident weight block);
    # products are upcast to f32 inside the kernel, so compute precision stays f32.
    params["fc_w"] = fc_w.reshape(3, 512, 512).astype(jnp.bfloat16)
    params["fc_b_padded"] = jnp.zeros((1, 128), jnp.float32).at[0, :3].set(fc_b)
    return params


if __name__ == "__main__":
    key = jax.random.PRNGKey(0)
    pkey, xkey = jax.random.split(key)
    params = init_params(pkey)

    # Small NCHW input (2, 3, 64, 64) -> backbone features (2, 512, 2, 2)
    x = jax.random.normal(xkey, (2, 3, 64, 64), jnp.float32)

    fwd = jax.jit(lambda inp: bcnn_forward(inp, params))
    out = fwd(x)
    jax.block_until_ready(out)

    assert out.shape == (2, 3), out.shape
    assert bool(jnp.all(jnp.isfinite(out)))
    print("KERNEL_OK")
</pallas_src>

<mosaic_0001>
module attributes {stable_mosaic.version = 11 : i64} {
  func.func @_bcnn_head_kernel(%arg0: i32, %arg1: memref<1x512x128xbf16, #tpu.memory_space<vmem>>, %arg2: memref<3x512x512xbf16, #tpu.memory_space<vmem>>, %arg3: memref<1x128xf32, #tpu.memory_space<vmem>>, %arg4: memref<1x1x128xf32, #tpu.memory_space<vmem>>) attributes {dimension_semantics = [#tpu.dimension_semantics<parallel>], iteration_bounds = array<i64: 2>, scalar_prefetch = 0 : i64, scratch_operands = 0 : i64, tpu.core_type = #tpu.core_type<tc>, window_params = [{transform_indices = @transform_0, window_bounds = array<i64: 1, 512, 128>}, {pipeline_mode = #tpu.pipeline_mode<synchronous>, transform_indices = @transform_1, window_bounds = array<i64: 3, 512, 512>}, {pipeline_mode = #tpu.pipeline_mode<synchronous>, transform_indices = @transform_2, window_bounds = array<i64: 1, 128>}, {transform_indices = @transform_3, window_bounds = array<i64: 1, 1, 128>}]} {
    %c0 = arith.constant 0 : index
    %c0_0 = arith.constant 0 : index
    %c0_1 = arith.constant 0 : index
    %0 = vector.load %arg1[%c0, %c0_0, %c0_1] : memref<1x512x128xbf16, #tpu.memory_space<vmem>>, vector<1x512x128xbf16>
    %1 = vector.shape_cast %0 : vector<1x512x128xbf16> to vector<512x128xbf16>
    %2 = vector.extract_strided_slice %1 {offsets = [0, 0], sizes = [128, 128], strides = [1, 1]} : vector<512x128xbf16> to vector<128x128xbf16>
    %cst = arith.constant dense<0.000000e+00> : vector<128x512xf32>
    %3 = tpu.matmul %2, %1, %cst {dimension_numbers = #tpu.dot_dimension_numbers<[1], [1], [0], [0], [0, 0, 1, 0], [], []>} : vector<128x128xbf16>, vector<512x128xbf16>, vector<128x512xf32> -> vector<128x512xf32>
    %cst_2 = arith.constant 0.000000e+00 : f32
    %4 = vector.broadcast %cst_2 : f32 to vector<128x512xf32>
    %5 = arith.cmpf oeq, %3, %4 : vector<128x512xf32>
    %6 = math.absf %3 : vector<128x512xf32>
    %cst_3 = arith.constant 7.83999993E-8 : f32
    %7 = vector.broadcast %cst_3 : f32 to vector<128x512xf32>
    %8 = arith.addf %6, %7 : vector<128x512xf32>
    %cst_4 = arith.constant 0.000000e+00 : f32
    %9 = vector.broadcast %cst_4 : f32 to vector<128x512xf32>
    %10 = arith.select %5, %9, %8 : vector<128x512xi1>, vector<128x512xf32>
    %11 = vector.shape_cast %10 : vector<128x512xf32> to vector<1x128x512xf32>
    %cst_5 = arith.constant dense<0.000000e+00> : vector<1xf32>
    %12 = vector.multi_reduction <add>, %11, %cst_5 [1, 2] : vector<1x128x512xf32> to vector<1xf32>
    %13 = vector.shape_cast %12 : vector<1xf32> to vector<1x1x1xf32>
    %14 = vector.extract %13[0, 0, 0] : f32 from vector<1x1x1xf32>
    %cst_6 = arith.constant 0.000000e+00 : f32
    %15 = arith.addf %cst_6, %14 : f32
    %16 = math.sqrt %8 : vector<128x512xf32>
    %17 = tpu.bitcast %16 : vector<128x512xf32> -> vector<128x512xi32>
    %18 = tpu.bitcast %3 : vector<128x512xf32> -> vector<128x512xi32>
    %c-2147483648_i32 = arith.constant -2147483648 : i32
    %19 = vector.broadcast %c-2147483648_i32 : i32 to vector<128x512xi32>
    %20 = arith.andi %18, %19 : vector<128x512xi32>
    %21 = arith.ori %17, %20 : vector<128x512xi32>
    %22 = tpu.bitcast %21 : vector<128x512xi32> -> vector<128x512xf32>
    %cst_7 = arith.constant 0.000000e+00 : f32
    %23 = vector.broadcast %cst_7 : f32 to vector<128x512xf32>
    %24 = arith.select %5, %23, %22 : vector<128x512xi1>, vector<128x512xf32>
    %c0_8 = arith.constant 0 : index
    %c0_9 = arith.constant 0 : index
    %c0_10 = arith.constant 0 : index
    %25 = vector.load %arg2[%c0_8, %c0_9, %c0_10] : memref<3x512x512xbf16, #tpu.memory_space<vmem>>, vector<1x128x512xbf16>
    %26 = vector.shape_cast %25 : vector<1x128x512xbf16> to vector<128x512xbf16>
    %27 = arith.extf %26 : vector<128x512xbf16> to vector<128x512xf32>
    %28 = arith.mulf %24, %27 : vector<128x512xf32>
    %29 = vector.shape_cast %28 : vector<128x512xf32> to vector<1x128x512xf32>
    %cst_11 = arith.constant dense<0.000000e+00> : vector<1xf32>
    %30 = vector.multi_reduction <add>, %29, %cst_11 [1, 2] : vector<1x128x512xf32> to vector<1xf32>
    %31 = vector.shape_cast %30 : vector<1xf32> to vector<1x1x1xf32>
    %32 = vector.extract %31[0, 0, 0] : f32 from vector<1x1x1xf32>
    %cst_12 = arith.constant 0.000000e+00 : f32
    %33 = arith.addf %cst_12, %32 : f32
    %c1 = arith.constant 1 : index
    %c0_13 = arith.constant 0 : index
    %c0_14 = arith.constant 0 : index
    %34 = vector.load %arg2[%c1, %c0_13, %c0_14] : memref<3x512x512xbf16, #tpu.memory_space<vmem>>, vector<1x128x512xbf16>
    %35 = vector.shape_cast %34 : vector<1x128x512xbf16> to vector<128x512xbf16>
    %36 = arith.extf %35 : vector<128x512xbf16> to vector<128x512xf32>
    %37 = arith.mulf %24, %36 : vector<128x512xf32>
    %38 = vector.shape_cast %37 : vector<128x512xf32> to vector<1x128x512xf32>
    %cst_15 = arith.constant dense<0.000000e+00> : vector<1xf32>
    %39 = vector.multi_reduction <add>, %38, %cst_15 [1, 2] : vector<1x128x512xf32> to vector<1xf32>
    %40 = vector.shape_cast %39 : vector<1xf32> to vector<1x1x1xf32>
    %41 = vector.extract %40[0, 0, 0] : f32 from vector<1x1x1xf32>
    %cst_16 = arith.constant 0.000000e+00 : f32
    %42 = arith.addf %cst_16, %41 : f32
    %c2 = arith.constant 2 : index
    %c0_17 = arith.constant 0 : index
    %c0_18 = arith.constant 0 : index
    %43 = vector.load %arg2[%c2, %c0_17, %c0_18] : memref<3x512x512xbf16, #tpu.memory_space<vmem>>, vector<1x128x512xbf16>
    %44 = vector.shape_cast %43 : vector<1x128x512xbf16> to vector<128x512xbf16>
    %45 = arith.extf %44 : vector<128x512xbf16> to vector<128x512xf32>
    %46 = arith.mulf %24, %45 : vector<128x512xf32>
    %47 = vector.shape_cast %46 : vector<128x512xf32> to vector<1x128x512xf32>
    %cst_19 = arith.constant dense<0.000000e+00> : vector<1xf32>
    %48 = vector.multi_reduction <add>, %47, %cst_19 [1, 2] : vector<1x128x512xf32> to vector<1xf32>
    %49 = vector.shape_cast %48 : vector<1xf32> to vector<1x1x1xf32>
    %50 = vector.extract %49[0, 0, 0] : f32 from vector<1x1x1xf32>
    %cst_20 = arith.constant 0.000000e+00 : f32
    %51 = arith.addf %cst_20, %50 : f32
    %52 = vector.extract_strided_slice %1 {offsets = [128, 0], sizes = [128, 128], strides = [1, 1]} : vector<512x128xbf16> to vector<128x128xbf16>
    %cst_21 = arith.constant dense<0.000000e+00> : vector<128x512xf32>
    %53 = tpu.matmul %52, %1, %cst_21 {dimension_numbers = #tpu.dot_dimension_numbers<[1], [1], [0], [0], [0, 0, 1, 0], [], []>} : vector<128x128xbf16>, vector<512x128xbf16>, vector<128x512xf32> -> vector<128x512xf32>
    %cst_22 = arith.constant 0.000000e+00 : f32
    %54 = vector.broadcast %cst_22 : f32 to vector<128x512xf32>
    %55 = arith.cmpf oeq, %53, %54 : vector<128x512xf32>
    %56 = math.absf %53 : vector<128x512xf32>
    %cst_23 = arith.constant 7.83999993E-8 : f32
    %57 = vector.broadcast %cst_23 : f32 to vector<128x512xf32>
    %58 = arith.addf %56, %57 : vector<128x512xf32>
    %cst_24 = arith.constant 0.000000e+00 : f32
    %59 = vector.broadcast %cst_24 : f32 to vector<128x512xf32>
    %60 = arith.select %55, %59, %58 : vector<128x512xi1>, vector<128x512xf32>
    %61 = vector.shape_cast %60 : vector<128x512xf32> to vector<1x128x512xf32>
    %cst_25 = arith.constant dense<0.000000e+00> : vector<1xf32>
    %62 = vector.multi_reduction <add>, %61, %cst_25 [1, 2] : vector<1x128x512xf32> to vector<1xf32>
    %63 = vector.shape_cast %62 : vector<1xf32> to vector<1x1x1xf32>
    %64 = vector.extract %63[0, 0, 0] : f32 from vector<1x1x1xf32>
    %65 = arith.addf %15, %64 : f32
    %66 = math.sqrt %58 : vector<128x512xf32>
    %67 = tpu.bitcast %66 : vector<128x512xf32> -> vector<128x512xi32>
    %68 = tpu.bitcast %53 : vector<128x512xf32> -> vector<128x512xi32>
    %c-2147483648_i32_26 = arith.constant -2147483648 : i32
    %69 = vector.broadcast %c-2147483648_i32_26 : i32 to vector<128x512xi32>
    %70 = arith.andi %68, %69 : vector<128x512xi32>
    %71 = arith.ori %67, %70 : vector<128x512xi32>
    %72 = tpu.bitcast %71 : vector<128x512xi32> -> vector<128x512xf32>
    %cst_27 = arith.constant 0.000000e+00 : f32
    %73 = vector.broadcast %cst_27 : f32 to vector<128x512xf32>
    %74 = arith.select %55, %73, %72 : vector<128x512xi1>, vector<128x512xf32>
    %c0_28 = arith.constant 0 : index
    %c128 = arith.constant 128 : index
    %c0_29 = arith.constant 0 : index
    %75 = vector.load %arg2[%c0_28, %c128, %c0_29] : memref<3x512x512xbf16, #tpu.memory_space<vmem>>, vector<1x128x512xbf16>
    %76 = vector.shape_cast %75 : vector<1x128x512xbf16> to vector<128x512xbf16>
    %77 = arith.extf %76 : vector<128x512xbf16> to vector<128x512xf32>
    %78 = arith.mulf %74, %77 : vector<128x512xf32>
    %79 = vector.shape_cast %78 : vector<128x512xf32> to vector<1x128x512xf32>
    %cst_30 = arith.constant dense<0.000000e+00> : vector<1xf32>
    %80 = vector.multi_reduction <add>, %79, %cst_30 [1, 2] : vector<1x128x512xf32> to vector<1xf32>
    %81 = vector.shape_cast %80 : vector<1xf32> to vector<1x1x1xf32>
    %82 = vector.extract %81[0, 0, 0] : f32 from vector<1x1x1xf32>
    %83 = arith.addf %33, %82 : f32
    %c1_31 = arith.constant 1 : index
    %c128_32 = arith.constant 128 : index
    %c0_33 = arith.constant 0 : index
    %84 = vector.load %arg2[%c1_31, %c128_32, %c0_33] : memref<3x512x512xbf16, #tpu.memory_space<vmem>>, vector<1x128x512xbf16>
    %85 = vector.shape_cast %84 : vector<1x128x512xbf16> to vector<128x512xbf16>
    %86 = arith.extf %85 : vector<128x512xbf16> to vector<128x512xf32>
    %87 = arith.mulf %74, %86 : vector<128x512xf32>
    %88 = vector.shape_cast %87 : vector<128x512xf32> to vector<1x128x512xf32>
    %cst_34 = arith.constant dense<0.000000e+00> : vector<1xf32>
    %89 = vector.multi_reduction <add>, %88, %cst_34 [1, 2] : vector<1x128x512xf32> to vector<1xf32>
    %90 = vector.shape_cast %89 : vector<1xf32> to vector<1x1x1xf32>
    %91 = vector.extract %90[0, 0, 0] : f32 from vector<1x1x1xf32>
    %92 = arith.addf %42, %91 : f32
    %c2_35 = arith.constant 2 : index
    %c128_36 = arith.constant 128 : index
    %c0_37 = arith.constant 0 : index
    %93 = vector.load %arg2[%c2_35, %c128_36, %c0_37] : memref<3x512x512xbf16, #tpu.memory_space<vmem>>, vector<1x128x512xbf16>
    %94 = vector.shape_cast %93 : vector<1x128x512xbf16> to vector<128x512xbf16>
    %95 = arith.extf %94 : vector<128x512xbf16> to vector<128x512xf32>
    %96 = arith.mulf %74, %95 : vector<128x512xf32>
    %97 = vector.shape_cast %96 : vector<128x512xf32> to vector<1x128x512xf32>
    %cst_38 = arith.constant dense<0.000000e+00> : vector<1xf32>
    %98 = vector.multi_reduction <add>, %97, %cst_38 [1, 2] : vector<1x128x512xf32> to vector<1xf32>
    %99 = vector.shape_cast %98 : vector<1xf32> to vector<1x1x1xf32>
    %100 = vector.extract %99[0, 0, 0] : f32 from vector<1x1x1xf32>
    %101 = arith.addf %51, %100 : f32
    %102 = vector.extract_strided_slice %1 {offsets = [256, 0], sizes = [128, 128], strides = [1, 1]} : vector<512x128xbf16> to vector<128x128xbf16>
    %cst_39 = arith.constant dense<0.000000e+00> : vector<128x512xf32>
    %103 = tpu.matmul %102, %1, %cst_39 {dimension_numbers = #tpu.dot_dimension_numbers<[1], [1], [0], [0], [0, 0, 1, 0], [], []>} : vector<128x128xbf16>, vector<512x128xbf16>, vector<128x512xf32> -> vector<128x512xf32>
    %cst_40 = arith.constant 0.000000e+00 : f32
    %104 = vector.broadcast %cst_40 : f32 to vector<128x512xf32>
    %105 = arith.cmpf oeq, %103, %104 : vector<128x512xf32>
    %106 = math.absf %103 : vector<128x512xf32>
    %cst_41 = arith.constant 7.83999993E-8 : f32
    %107 = vector.broadcast %cst_41 : f32 to vector<128x512xf32>
    %108 = arith.addf %106, %107 : vector<128x512xf32>
    %cst_42 = arith.constant 0.000000e+00 : f32
    %109 = vector.broadcast %cst_42 : f32 to vector<128x512xf32>
    %110 = arith.select %105, %109, %108 : vector<128x512xi1>, vector<128x512xf32>
    %111 = vector.shape_cast %110 : vector<128x512xf32> to vector<1x128x512xf32>
    %cst_43 = arith.constant dense<0.000000e+00> : vector<1xf32>
    %112 = vector.multi_reduction <add>, %111, %cst_43 [1, 2] : vector<1x128x512xf32> to vector<1xf32>
    %113 = vector.shape_cast %112 : vector<1xf32> to vector<1x1x1xf32>
    %114 = vector.extract %113[0, 0, 0] : f32 from vector<1x1x1xf32>
    %115 = arith.addf %65, %114 : f32
    %116 = math.sqrt %108 : vector<128x512xf32>
    %117 = tpu.bitcast %116 : vector<128x512xf32> -> vector<128x512xi32>
    %118 = tpu.bitcast %103 : vector<128x512xf32> -> vector<128x512xi32>
    %c-2147483648_i32_44 = arith.constant -2147483648 : i32
    %119 = vector.broadcast %c-2147483648_i32_44 : i32 to vector<128x512xi32>
    %120 = arith.andi %118, %119 : vector<128x512xi32>
    %121 = arith.ori %117, %120 : vector<128x512xi32>
    %122 = tpu.bitcast %121 : vector<128x512xi32> -> vector<128x512xf32>
    %cst_45 = arith.constant 0.000000e+00 : f32
    %123 = vector.broadcast %cst_45 : f32 to vector<128x512xf32>
    %124 = arith.select %105, %123, %122 : vector<128x512xi1>, vector<128x512xf32>
    %c0_46 = arith.constant 0 : index
    %c256 = arith.constant 256 : index
    %c0_47 = arith.constant 0 : index
    %125 = vector.load %arg2[%c0_46, %c256, %c0_47] : memref<3x512x512xbf16, #tpu.memory_space<vmem>>, vector<1x128x512xbf16>
    %126 = vector.shape_cast %125 : vector<1x128x512xbf16> to vector<128x512xbf16>
    %127 = arith.extf %126 : vector<128x512xbf16> to vector<128x512xf32>
    %128 = arith.mulf %124, %127 : vector<128x512xf32>
    %129 = vector.shape_cast %128 : vector<128x512xf32> to vector<1x128x512xf32>
    %cst_48 = arith.constant dense<0.000000e+00> : vector<1xf32>
    %130 = vector.multi_reduction <add>, %129, %cst_48 [1, 2] : vector<1x128x512xf32> to vector<1xf32>
    %131 = vector.shape_cast %130 : vector<1xf32> to vector<1x1x1xf32>
    %132 = vector.extract %131[0, 0, 0] : f32 from vector<1x1x1xf32>
    %133 = arith.addf %83, %132 : f32
    %c1_49 = arith.constant 1 : index
    %c256_50 = arith.constant 256 : index
    %c0_51 = arith.constant 0 : index
    %134 = vector.load %arg2[%c1_49, %c256_50, %c0_51] : memref<3x512x512xbf16, #tpu.memory_space<vmem>>, vector<1x128x512xbf16>
    %135 = vector.shape_cast %134 : vector<1x128x512xbf16> to vector<128x512xbf16>
    %136 = arith.extf %135 : vector<128x512xbf16> to vector<128x512xf32>
    %137 = arith.mulf %124, %136 : vector<128x512xf32>
    %138 = vector.shape_cast %137 : vector<128x512xf32> to vector<1x128x512xf32>
    %cst_52 = arith.constant dense<0.000000e+00> : vector<1xf32>
    %139 = vector.multi_reduction <add>, %138, %cst_52 [1, 2] : vector<1x128x512xf32> to vector<1xf32>
    %140 = vector.shape_cast %139 : vector<1xf32> to vector<1x1x1xf32>
    %141 = vector.extract %140[0, 0, 0] : f32 from vector<1x1x1xf32>
    %142 = arith.addf %92, %141 : f32
    %c2_53 = arith.constant 2 : index
    %c256_54 = arith.constant 256 : index
    %c0_55 = arith.constant 0 : index
    %143 = vector.load %arg2[%c2_53, %c256_54, %c0_55] : memref<3x512x512xbf16, #tpu.memory_space<vmem>>, vector<1x128x512xbf16>
    %144 = vector.shape_cast %143 : vector<1x128x512xbf16> to vector<128x512xbf16>
    %145 = arith.extf %144 : vector<128x512xbf16> to vector<128x512xf32>
    %146 = arith.mulf %124, %145 : vector<128x512xf32>
    %147 = vector.shape_cast %146 : vector<128x512xf32> to vector<1x128x512xf32>
    %cst_56 = arith.constant dense<0.000000e+00> : vector<1xf32>
    %148 = vector.multi_reduction <add>, %147, %cst_56 [1, 2] : vector<1x128x512xf32> to vector<1xf32>
    %149 = vector.shape_cast %148 : vector<1xf32> to vector<1x1x1xf32>
    %150 = vector.extract %149[0, 0, 0] : f32 from vector<1x1x1xf32>
    %151 = arith.addf %101, %150 : f32
    %152 = vector.extract_strided_slice %1 {offsets = [384, 0], sizes = [128, 128], strides = [1, 1]} : vector<512x128xbf16> to vector<128x128xbf16>
    %cst_57 = arith.constant dense<0.000000e+00> : vector<128x512xf32>
    %153 = tpu.matmul %152, %1, %cst_57 {dimension_numbers = #tpu.dot_dimension_numbers<[1], [1], [0], [0], [0, 0, 1, 0], [], []>} : vector<128x128xbf16>, vector<512x128xbf16>, vector<128x512xf32> -> vector<128x512xf32>
    %cst_58 = arith.constant 0.000000e+00 : f32
    %154 = vector.broadcast %cst_58 : f32 to vector<128x512xf32>
    %155 = arith.cmpf oeq, %153, %154 : vector<128x512xf32>
    %156 = math.absf %153 : vector<128x512xf32>
    %cst_59 = arith.constant 7.83999993E-8 : f32
    %157 = vector.broadcast %cst_59 : f32 to vector<128x512xf32>
    %158 = arith.addf %156, %157 : vector<128x512xf32>
    %cst_60 = arith.constant 0.000000e+00 : f32
    %159 = vector.broadcast %cst_60 : f32 to vector<128x512xf32>
    %160 = arith.select %155, %159, %158 : vector<128x512xi1>, vector<128x512xf32>
    %161 = vector.shape_cast %160 : vector<128x512xf32> to vector<1x128x512xf32>
    %cst_61 = arith.constant dense<0.000000e+00> : vector<1xf32>
    %162 = vector.multi_reduction <add>, %161, %cst_61 [1, 2] : vector<1x128x512xf32> to vector<1xf32>
    %163 = vector.shape_cast %162 : vector<1xf32> to vector<1x1x1xf32>
    %164 = vector.extract %163[0, 0, 0] : f32 from vector<1x1x1xf32>
    %165 = arith.addf %115, %164 : f32
    %166 = math.sqrt %158 : vector<128x512xf32>
    %167 = tpu.bitcast %166 : vector<128x512xf32> -> vector<128x512xi32>
    %168 = tpu.bitcast %153 : vector<128x512xf32> -> vector<128x512xi32>
    %c-2147483648_i32_62 = arith.constant -2147483648 : i32
    %169 = vector.broadcast %c-2147483648_i32_62 : i32 to vector<128x512xi32>
    %170 = arith.andi %168, %169 : vector<128x512xi32>
    %171 = arith.ori %167, %170 : vector<128x512xi32>
    %172 = tpu.bitcast %171 : vector<128x512xi32> -> vector<128x512xf32>
    %cst_63 = arith.constant 0.000000e+00 : f32
    %173 = vector.broadcast %cst_63 : f32 to vector<128x512xf32>
    %174 = arith.select %155, %173, %172 : vector<128x512xi1>, vector<128x512xf32>
    %c0_64 = arith.constant 0 : index
    %c384 = arith.constant 384 : index
    %c0_65 = arith.constant 0 : index
    %175 = vector.load %arg2[%c0_64, %c384, %c0_65] : memref<3x512x512xbf16, #tpu.memory_space<vmem>>, vector<1x128x512xbf16>
    %176 = vector.shape_cast %175 : vector<1x128x512xbf16> to vector<128x512xbf16>
    %177 = arith.extf %176 : vector<128x512xbf16> to vector<128x512xf32>
    %178 = arith.mulf %174, %177 : vector<128x512xf32>
    %179 = vector.shape_cast %178 : vector<128x512xf32> to vector<1x128x512xf32>
    %cst_66 = arith.constant dense<0.000000e+00> : vector<1xf32>
    %180 = vector.multi_reduction <add>, %179, %cst_66 [1, 2] : vector<1x128x512xf32> to vector<1xf32>
    %181 = vector.shape_cast %180 : vector<1xf32> to vector<1x1x1xf32>
    %182 = vector.extract %181[0, 0, 0] : f32 from vector<1x1x1xf32>
    %183 = arith.addf %133, %182 : f32
    %c1_67 = arith.constant 1 : index
    %c384_68 = arith.constant 384 : index
    %c0_69 = arith.constant 0 : index
    %184 = vector.load %arg2[%c1_67, %c384_68, %c0_69] : memref<3x512x512xbf16, #tpu.memory_space<vmem>>, vector<1x128x512xbf16>
    %185 = vector.shape_cast %184 : vector<1x128x512xbf16> to vector<128x512xbf16>
    %186 = arith.extf %185 : vector<128x512xbf16> to vector<128x512xf32>
    %187 = arith.mulf %174, %186 : vector<128x512xf32>
    %188 = vector.shape_cast %187 : vector<128x512xf32> to vector<1x128x512xf32>
    %cst_70 = arith.constant dense<0.000000e+00> : vector<1xf32>
    %189 = vector.multi_reduction <add>, %188, %cst_70 [1, 2] : vector<1x128x512xf32> to vector<1xf32>
    %190 = vector.shape_cast %189 : vector<1xf32> to vector<1x1x1xf32>
    %191 = vector.extract %190[0, 0, 0] : f32 from vector<1x1x1xf32>
    %192 = arith.addf %142, %191 : f32
    %c2_71 = arith.constant 2 : index
    %c384_72 = arith.constant 384 : index
    %c0_73 = arith.constant 0 : index
    %193 = vector.load %arg2[%c2_71, %c384_72, %c0_73] : memref<3x512x512xbf16, #tpu.memory_space<vmem>>, vector<1x128x512xbf16>
    %194 = vector.shape_cast %193 : vector<1x128x512xbf16> to vector<128x512xbf16>
    %195 = arith.extf %194 : vector<128x512xbf16> to vector<128x512xf32>
    %196 = arith.mulf %174, %195 : vector<128x512xf32>
    %197 = vector.shape_cast %196 : vector<128x512xf32> to vector<1x128x512xf32>
    %cst_74 = arith.constant dense<0.000000e+00> : vector<1xf32>
    %198 = vector.multi_reduction <add>, %197, %cst_74 [1, 2] : vector<1x128x512xf32> to vector<1xf32>
    %199 = vector.shape_cast %198 : vector<1xf32> to vector<1x1x1xf32>
    %200 = vector.extract %199[0, 0, 0] : f32 from vector<1x1x1xf32>
    %201 = arith.addf %151, %200 : f32
    %202 = math.sqrt %165 : f32
    %cst_75 = arith.constant 9.99999996E-13 : f32
    %203 = arith.maximumf %202, %cst_75 : f32
    %cst_76 = arith.constant 1.000000e+00 : f32
    %204 = arith.divf %cst_76, %203 : f32
    %205 = tpu.iota {dimensions = array<i32: 1>} : vector<1x128xi32>
    %c0_i32 = arith.constant 0 : i32
    %206 = vector.broadcast %c0_i32 : i32 to vector<1x128xi32>
    %207 = arith.cmpi eq, %205, %206 : vector<1x128xi32>
    %c1_i32 = arith.constant 1 : i32
    %208 = vector.broadcast %c1_i32 : i32 to vector<1x128xi32>
    %209 = arith.cmpi eq, %205, %208 : vector<1x128xi32>
    %c2_i32 = arith.constant 2 : i32
    %210 = vector.broadcast %c2_i32 : i32 to vector<1x128xi32>
    %211 = arith.cmpi eq, %205, %210 : vector<1x128xi32>
    %cst_77 = arith.constant 0.000000e+00 : f32
    %212 = vector.broadcast %201 : f32 to vector<1x128xf32>
    %213 = vector.broadcast %cst_77 : f32 to vector<1x128xf32>
    %214 = arith.select %211, %212, %213 : vector<1x128xi1>, vector<1x128xf32>
    %215 = vector.broadcast %192 : f32 to vector<1x128xf32>
    %216 = arith.select %209, %215, %214 : vector<1x128xi1>, vector<1x128xf32>
    %217 = vector.broadcast %183 : f32 to vector<1x128xf32>
    %218 = arith.select %207, %217, %216 : vector<1x128xi1>, vector<1x128xf32>
    %219 = vector.broadcast %204 : f32 to vector<1x128xf32>
    %220 = arith.mulf %218, %219 : vector<1x128xf32>
    %c0_78 = arith.constant 0 : index
    %c0_79 = arith.constant 0 : index
    %221 = vector.load %arg3[%c0_78, %c0_79] : memref<1x128xf32, #tpu.memory_space<vmem>>, vector<1x128xf32>
    %222 = arith.addf %220, %221 : vector<1x128xf32>
    %223 = arith.negf %222 : vector<1x128xf32>
    %224 = math.exp %223 : vector<1x128xf32>
    %cst_80 = arith.constant 1.000000e+00 : f32
    %225 = vector.broadcast %cst_80 : f32 to vector<1x128xf32>
    %226 = arith.addf %225, %224 : vector<1x128xf32>
    %227 = arith.divf %225, %226 : vector<1x128xf32>
    %c0_81 = arith.constant 0 : index
    %c0_82 = arith.constant 0 : index
    %c0_83 = arith.constant 0 : index
    %228 = vector.load %arg4[%c0_81, %c0_82, %c0_83] : memref<1x1x128xf32, #tpu.memory_space<vmem>>, vector<1x1x128xf32>
    %229 = vector.shape_cast %228 : vector<1x1x128xf32> to vector<1x128xf32>
    %230 = vector.shape_cast %227 : vector<1x128xf32> to vector<1x1x128xf32>
    tpu.vector_store %arg4[%c0_81, %c0_82, %c0_83], %230 {strides = array<i32>} : memref<1x1x128xf32, #tpu.memory_space<vmem>>, vector<1x1x128xf32>,
    return
  }
  func.func @transform_0(%arg0: i32) -> (i32, i32, i32) {
    %c0_i32 = arith.constant 0 : i32
    %c0_i32_0 = arith.constant 0 : i32
    %c0_i32_1 = arith.constant 0 : i32
    return %arg0, %c0_i32, %c0_i32_0 : i32, i32, i32
  }
  func.func @transform_1(%arg0: i32) -> (i32, i32, i32) {
    %c0_i32 = arith.constant 0 : i32
    %c0_i32_0 = arith.constant 0 : i32
    %c0_i32_1 = arith.constant 0 : i32
    %c0_i32_2 = arith.constant 0 : i32
    return %c0_i32, %c0_i32_0, %c0_i32_1 : i32, i32, i32
  }
  func.func @transform_2(%arg0: i32) -> (i32, i32) {
    %c0_i32 = arith.constant 0 : i32
    %c0_i32_0 = arith.constant 0 : i32
    %c0_i32_1 = arith.constant 0 : i32
    return %c0_i32, %c0_i32_0 : i32, i32
  }
  func.func @transform_3(%arg0: i32) -> (i32, i32, i32) {
    %c0_i32 = arith.constant 0 : i32
    %c0_i32_0 = arith.constant 0 : i32
    %c0_i32_1 = arith.constant 0 : i32
    return %arg0, %c0_i32, %c0_i32_0 : i32, i32, i32
  }
}

</mosaic_0001>

<llo_original>
// kernel: _lambda_.1
$region0: #{_lambda_.1}
  #allocation0 [shape = 'u32[]', space=smem, size = 0x4, offset = 0x4, fixed_abs, tag = 'smem constant byte address 0x4 - core index']
  #allocation1 [shape = 'u32[144,128]{1,0:T(1,128)}', space=vmem, size = 0x12000, scoped, tag = 'internal scratch']
  %s0 = inlined_call_operand.vmem [shape: bf16[2,512,128], index: 0, kind: input, shape index: {}]
  %s1 = inlined_call_operand.vmem [shape: bf16[3,512,512], index: 1, kind: input, shape index: {}]
  %s2 = inlined_call_operand.vmem [shape: f32[1,128], index: 2, kind: input, shape index: {}]
  %s3 = inlined_call_operand.hbm [shape: f32[2,1,128], index: 3, kind: output, shape index: {}]
  %s4 = sld [smem:[#allocation0]]
  $region45: #{_lambda_.1} parent=0
    _
  %s6 = ssub.s32 1, %s4
  %s7 = scalar_select 0, %s6, %s4
  $region1: #{_lambda_.1} parent=0
    #allocation2 [shape = 'u8[1024]{0}', space=vmem, size = 0x400, scoped, tag = 'output window, operand 0']
    #allocation3 [shape = 's32[2]{0}', space=sflag, size = 0x8, scoped, tag = 'scoped memory for _lambda_.1']
    %8 = vsyncpa [#allocation3], 0
    %s9 = scalar_lea.sflag [#allocation3], 1
    %10 = vsyncpa %s9, 0
    loop: start=0, step=1, limit=4
    $region2: #{_lambda_.1} parent=1 // loop_pre_header
      _
    $region3: #{_lambda_.1} parent=1 // loop_header
      %s12 = sphi 0, %s16
      %p13 = scmp.ge.s32.totalorder %s12, 4
      %s22 = sphi 0, %s24
      %s25 = sphi 0, %s22
      %s26 = sphi 0, %s25
      %s42 = sphi 0, %s26
      %s46 = sphi 0, %s46
      %s48 = sphi 0, %s46
      %s49 = sphi 0, %s48
      %s63 = sphi 0, %s49
      %s67 = sphi 0, %s67
      %s69 = sphi 0, %s67
      %s70 = sphi 0, %s69
      %s84 = sphi 0, %s70
      %s90 = sphi 0, %s92
      %s93 = sphi 0, %s90
      %s94 = sphi 0, %s93
      %s110 = sphi 0, %s94
    $region4: #{_lambda_.1} parent=1 // loop_header_branch
      %15 = sbr.rel (%p13) target = $region8
    $region5: #{_lambda_.1} parent=1 // loop_body
      %s17 = ssub.s32 %s12, 1
      %s18 = ssub.s32 %s12, 2
      %s19 = sadd.s32 %s12, 1
      %s20 = ssub.s32 %s12, %s19
      %p21 = scmp.eq.s32.totalorder %s20, 0
      %s23 = sadd.s32 %s22, 1
      %s24 = scalar_select %p21, %s22, %s23
      %p27 = pneg %p21
      %p28 = scmp.eq.s32.totalorder %s12, 1
      %p29 = por %p27, %p28
      %p30 = scmp.ne.s32.totalorder %s22, %s25
      %p31 = scmp.eq.s32.totalorder %s12, 0
      %p32 = por %p30, %p31
      %p33 = scmp.ne.s32.totalorder %s22, %s25
      %p34 = scmp.eq.s32.totalorder %s17, 1
      %p35 = por %p33, %p34
      %p36 = scmp.ne.s32.totalorder %s25, %s26
      %p37 = scmp.eq.s32.totalorder %s17, 0
      %p38 = por %p36, %p37
      %p39 = scmp.ne.s32.totalorder %s25, %s26
      %p40 = scmp.eq.s32.totalorder %s18, 1
      %p41 = por %p39, %p40
      %p43 = scmp.ne.s32.totalorder %s26, %s42
      %p44 = scmp.eq.s32.totalorder %s18, 0
      %p45 = por %p43, %p44
      %s47 = sadd.s32 %s46, 1
      %p50 = scmp.eq.s32.totalorder %s12, 1
      %p51 = scmp.ne.s32.totalorder %s46, %s48
      %p52 = scmp.eq.s32.totalorder %s12, 0
      %p53 = por %p51, %p52
      %p54 = scmp.ne.s32.totalorder %s46, %s48
      %p55 = scmp.eq.s32.totalorder %s17, 1
      %p56 = por %p54, %p55
      %p57 = scmp.ne.s32.totalorder %s48, %s49
      %p58 = scmp.eq.s32.totalorder %s17, 0
      %p59 = por %p57, %p58
      %p60 = scmp.ne.s32.totalorder %s48, %s49
      %p61 = scmp.eq.s32.totalorder %s18, 1
      %p62 = por %p60, %p61
      %p64 = scmp.ne.s32.totalorder %s49, %s63
      %p65 = scmp.eq.s32.totalorder %s18, 0
      %p66 = por %p64, %p65
      %s68 = sadd.s32 %s67, 1
      %p71 = scmp.eq.s32.totalorder %s12, 1
      %p72 = scmp.ne.s32.totalorder %s67, %s69
      %p73 = scmp.eq.s32.totalorder %s12, 0
      %p74 = por %p72, %p73
      %p75 = scmp.ne.s32.totalorder %s67, %s69
      %p76 = scmp.eq.s32.totalorder %s17, 1
      %p77 = por %p75, %p76
      %p78 = scmp.ne.s32.totalorder %s69, %s70
      %p79 = scmp.eq.s32.totalorder %s17, 0
      %p80 = por %p78, %p79
      %p81 = scmp.ne.s32.totalorder %s69, %s70
      %p82 = scmp.eq.s32.totalorder %s18, 1
      %p83 = por %p81, %p82
      %p85 = scmp.ne.s32.totalorder %s70, %s84
      %p86 = scmp.eq.s32.totalorder %s18, 0
      %p87 = por %p85, %p86
      %s88 = ssub.s32 %s12, %s19
      %p89 = scmp.eq.s32.totalorder %s88, 0
      %s91 = sadd.s32 %s90, 1
      %s92 = scalar_select %p89, %s90, %s91
      %p95 = pneg %p89
      %p96 = scmp.eq.s32.totalorder %s12, 1
      %p97 = por %p95, %p96
      %p98 = scmp.ne.s32.totalorder %s90, %s93
      %p99 = scmp.eq.s32.totalorder %s12, 0
      %p100 = por %p98, %p99
      %p101 = scmp.ne.s32.totalorder %s90, %s93
      %p102 = scmp.eq.s32.totalorder %s17, 1
      %p103 = por %p101, %p102
      %p104 = scmp.ne.s32.totalorder %s93, %s94
      %p105 = scmp.eq.s32.totalorder %s17, 0
      %p106 = por %p104, %p105
      %p107 = scmp.ne.s32.totalorder %s93, %s94
      %p108 = scmp.eq.s32.totalorder %s18, 1
      %p109 = por %p107, %p108
      %p111 = scmp.ne.s32.totalorder %s94, %s110
      %p112 = scmp.eq.s32.totalorder %s18, 0
      %p113 = por %p111, %p112
      %p114 = scmp.le.s32.totalorder 1, %s12
      %p115 = scmp.lt.s32.totalorder %s12, 3
      %p116 = pnand %p114, %p115
      %p117 = pneg %p116
      // Predicated region
      $region9: #{_lambda_.1} parent=5 // pred_check
        _
      $region10: #{_lambda_.1} parent=5 // pred_check_branch
        %119 = sbr.rel (%p116) target = $region12
      $region11: #{_lambda_.1} parent=5 // pred_region
        %s120 = ssub.s32 %s12, 1
        // Predicated region
        $region13: #{_lambda_.1} parent=11 // pred_check
          %p121 = pneg %p59
        $region14: #{_lambda_.1} parent=11 // pred_check_branch
          %123 = sbr.rel (%p121) target = $region16
        $region15: #{_lambda_.1} parent=11 // pred_region
          _
        $region16: #{_lambda_.1} parent=11 // pred_fallthru
          _
        // Predicated region
        $region17: #{_lambda_.1} parent=11 // pred_check
          %p124 = pneg %p80
        $region18: #{_lambda_.1} parent=11 // pred_check_branch
          %126 = sbr.rel (%p124) target = $region20
        $region19: #{_lambda_.1} parent=11 // pred_region
          _
        $region20: #{_lambda_.1} parent=11 // pred_fallthru
          _
      $region12: #{_lambda_.1} parent=5 // pred_fallthru
        _
      %p127 = scmp.lt.s32.totalorder %s12, 2
      // Predicated region
      $region21: #{_lambda_.1} parent=5 // pred_check
        %p128 = pneg %p127
      $region22: #{_lambda_.1} parent=5 // pred_check_branch
        %130 = sbr.rel (%p128) target = $region24
      $region23: #{_lambda_.1} parent=5 // pred_region
        // Predicated region
        $region25: #{_lambda_.1} parent=23 // pred_check
          %p131 = pneg %p32
        $region26: #{_lambda_.1} parent=23 // pred_check_branch
          %133 = sbr.rel (%p131) target = $region28
        $region27: #{_lambda_.1} parent=23 // pred_region
          %p134 = scmp.lt.s32.totalorder %s12, 1
          %s135 = scalar_select %p134, %s12, 1
          %s136 = smul.addr %s135, 64
          %s137 = smul.addr %s136, 4
          %s138 = scalar_lea.vmem %s0, %s137
        $region28: #{_lambda_.1} parent=23 // pred_fallthru
          _
      $region24: #{_lambda_.1} parent=5 // pred_fallthru
        _
      %p139 = scmp.le.s32.totalorder 1, %s12
      %p140 = scmp.lt.s32.totalorder %s12, 3
      %p141 = pnand %p139, %p140
      %p142 = pneg %p141
      // Predicated region
      $region29: #{_lambda_.1} parent=5 // pred_check
        _
      $region30: #{_lambda_.1} parent=5 // pred_check_branch
        %144 = sbr.rel (%p141) target = $region32
      $region31: #{_lambda_.1} parent=5 // pred_region
        %s145 = ssub.s32 %s12, 1
        %p146 = scmp.lt.s32.totalorder %s17, 1
        %s147 = scalar_select %p146, %s17, 1
        %s148 = smul.addr %s147, 64
        %s149 = smul.addr %s148, 4
        %s150 = scalar_lea.vmem %s0, %s149
        %p151 = pneg %p38
        %p152 = pneg %p35
        %p153 = pneg %p59
        %p154 = pneg %p56
        %p155 = pneg %p80
        %p156 = pneg %p77
        %p157 = pneg %p106
        %p158 = pneg %p103
        %s159 = sand.u32 %s93, 1
        %s160 = scalar_lea.sflag [#allocation3], %s159
        %s161 = sand.u32 %s93, 1
        %s162 = scalar_lea.vmem [#allocation2], %s161
        %p163 = scmp.lt.s32.totalorder %s17, 1
        %s164 = scalar_select %p163, %s17, 1
        %s165 = smul.addr %s164, 64
        %s166 = smul.addr %s165, 4
        %s167 = scalar_lea.vmem %s0, %s166
        %v169 = vld [vmem:[%s167] sm:$0xf]
        %v170 = vld [vmem:[%s167 + $0x4] sm:$0xf]
        %v171 = vld [vmem:[%s167 + $0x8] sm:$0xf]
        %v172 = vld [vmem:[%s167 + $0xc] sm:$0xf]
        %v173 = vld [vmem:[%s167 + $0x10] sm:$0xf]
        %v174 = vld [vmem:[%s167 + $0x14] sm:$0xf]
        %v175 = vld [vmem:[%s167 + $0x18] sm:$0xf]
        %v176 = vld [vmem:[%s167 + $0x1c] sm:$0xf]
        %v177 = vld [vmem:[%s167 + $0x20] sm:$0xf]
        %v178 = vld [vmem:[%s167 + $0x24] sm:$0xf]
        %v179 = vld [vmem:[%s167 + $0x28] sm:$0xf]
        %v180 = vld [vmem:[%s167 + $0x2c] sm:$0xf]
        %v181 = vld [vmem:[%s167 + $0x30] sm:$0xf]
        %v182 = vld [vmem:[%s167 + $0x34] sm:$0xf]
        %v183 = vld [vmem:[%s167 + $0x38] sm:$0xf]
        %v184 = vld [vmem:[%s167 + $0x3c] sm:$0xf]
        %v185 = vld [vmem:[%s167 + $0x40] sm:$0xf]
        %v186 = vld [vmem:[%s167 + $0x44] sm:$0xf]
        %v187 = vld [vmem:[%s167 + $0x48] sm:$0xf]
        %v188 = vld [vmem:[%s167 + $0x4c] sm:$0xf]
        %v189 = vld [vmem:[%s167 + $0x50] sm:$0xf]
        %v190 = vld [vmem:[%s167 + $0x54] sm:$0xf]
        %v191 = vld [vmem:[%s167 + $0x58] sm:$0xf]
        %v192 = vld [vmem:[%s167 + $0x5c] sm:$0xf]
        %v193 = vld [vmem:[%s167 + $0x60] sm:$0xf]
        %v194 = vld [vmem:[%s167 + $0x64] sm:$0xf]
        %v195 = vld [vmem:[%s167 + $0x68] sm:$0xf]
        %v196 = vld [vmem:[%s167 + $0x6c] sm:$0xf]
        %v197 = vld [vmem:[%s167 + $0x70] sm:$0xf]
        %v198 = vld [vmem:[%s167 + $0x74] sm:$0xf]
        %v199 = vld [vmem:[%s167 + $0x78] sm:$0xf]
        %v200 = vld [vmem:[%s167 + $0x7c] sm:$0xf]
        %v201 = vld [vmem:[%s167 + $0x80] sm:$0xf]
        %v202 = vld [vmem:[%s167 + $0x84] sm:$0xf]
        %v203 = vld [vmem:[%s167 + $0x88] sm:$0xf]
        %v204 = vld [vmem:[%s167 + $0x8c] sm:$0xf]
        %v205 = vld [vmem:[%s167 + $0x90] sm:$0xf]
        %v206 = vld [vmem:[%s167 + $0x94] sm:$0xf]
        %v207 = vld [vmem:[%s167 + $0x98] sm:$0xf]
        %v208 = vld [vmem:[%s167 + $0x9c] sm:$0xf]
        %v209 = vld [vmem:[%s167 + $0xa0] sm:$0xf]
        %v210 = vld [vmem:[%s167 + $0xa4] sm:$0xf]
        %v211 = vld [vmem:[%s167 + $0xa8] sm:$0xf]
        %v212 = vld [vmem:[%s167 + $0xac] sm:$0xf]
        %v213 = vld [vmem:[%s167 + $0xb0] sm:$0xf]
        %v214 = vld [vmem:[%s167 + $0xb4] sm:$0xf]
        %v215 = vld [vmem:[%s167 + $0xb8] sm:$0xf]
        %v216 = vld [vmem:[%s167 + $0xbc] sm:$0xf]
        %v217 = vld [vmem:[%s167 + $0xc0] sm:$0xf]
        %v218 = vld [vmem:[%s167 + $0xc4] sm:$0xf]
        %v219 = vld [vmem:[%s167 + $0xc8] sm:$0xf]
        %v220 = vld [vmem:[%s167 + $0xcc] sm:$0xf]
        %v221 = vld [vmem:[%s167 + $0xd0] sm:$0xf]
        %v222 = vld [vmem:[%s167 + $0xd4] sm:$0xf]
        %v223 = vld [vmem:[%s167 + $0xd8] sm:$0xf]
        %v224 = vld [vmem:[%s167 + $0xdc] sm:$0xf]
        %v225 = vld [vmem:[%s167 + $0xe0] sm:$0xf]
        %v226 = vld [vmem:[%s167 + $0xe4] sm:$0xf]
        %v227 = vld [vmem:[%s167 + $0xe8] sm:$0xf]
        %v228 = vld [vmem:[%s167 + $0xec] sm:$0xf]
        %v229 = vld [vmem:[%s167 + $0xf0] sm:$0xf]
        %v230 = vld [vmem:[%s167 + $0xf4] sm:$0xf]
        %v231 = vld [vmem:[%s167 + $0xf8] sm:$0xf]
        %v232 = vld [vmem:[%s167 + $0xfc] sm:$0xf]
        %v249 = vunpack.c.l.b16 %v169
        %v250 = vunpack.c.l.b16 %v170
        %v251 = vunpack.c.l.b16 %v171
        %v252 = vunpack.c.l.b16 %v172
        %v253 = vunpack.c.l.b16 %v173
        %v254 = vunpack.c.l.b16 %v174
        %v255 = vunpack.c.l.b16 %v175
        %v256 = vunpack.c.l.b16 %v176
        %v257 = vunpack.c.l.b16 %v177
        %v258 = vunpack.c.l.b16 %v178
        %v259 = vunpack.c.l.b16 %v179
        %v260 = vunpack.c.l.b16 %v180
        %v261 = vunpack.c.l.b16 %v181
        %v262 = vunpack.c.l.b16 %v182
        %v263 = vunpack.c.l.b16 %v183
        %v264 = vunpack.c.l.b16 %v184
        %v265 = vpack.c.b16 %v250, %v249
        %v266 = vpack.c.b16 %v252, %v251
        %v267 = vpack.c.b16 %v254, %v253
        %v268 = vpack.c.b16 %v256, %v255
        %v269 = vpack.c.b16 %v258, %v257
        %v270 = vpack.c.b16 %v260, %v259
        %v271 = vpack.c.b16 %v262, %v261
        %v272 = vpack.c.b16 %v264, %v263
        %v329 = vunpack.c.l.b16 %v185
        %v330 = vunpack.c.l.b16 %v186
        %v331 = vunpack.c.l.b16 %v187
        %v332 = vunpack.c.l.b16 %v188
        %v333 = vunpack.c.l.b16 %v189
        %v334 = vunpack.c.l.b16 %v190
        %v335 = vunpack.c.l.b16 %v191
        %v336 = vunpack.c.l.b16 %v192
        %v337 = vunpack.c.l.b16 %v193
        %v338 = vunpack.c.l.b16 %v194
        %v339 = vunpack.c.l.b16 %v195
        %v340 = vunpack.c.l.b16 %v196
        %v341 = vunpack.c.l.b16 %v197
        %v342 = vunpack.c.l.b16 %v198
        %v343 = vunpack.c.l.b16 %v199
        %v344 = vunpack.c.l.b16 %v200
        %v345 = vunpack.c.l.b16 %v201
        %v346 = vunpack.c.l.b16 %v202
        %v347 = vunpack.c.l.b16 %v203
        %v348 = vunpack.c.l.b16 %v204
        %v349 = vunpack.c.l.b16 %v205
        %v350 = vunpack.c.l.b16 %v206
        %v351 = vunpack.c.l.b16 %v207
        %v352 = vunpack.c.l.b16 %v208
        %v353 = vunpack.c.l.b16 %v209
        %v354 = vunpack.c.l.b16 %v210
        %v355 = vunpack.c.l.b16 %v211
        %v356 = vunpack.c.l.b16 %v212
        %v357 = vunpack.c.l.b16 %v213
        %v358 = vunpack.c.l.b16 %v214
        %v359 = vunpack.c.l.b16 %v215
        %v360 = vunpack.c.l.b16 %v216
        %v361 = vunpack.c.l.b16 %v217
        %v362 = vunpack.c.l.b16 %v218
        %v363 = vunpack.c.l.b16 %v219
        %v364 = vunpack.c.l.b16 %v220
        %v365 = vunpack.c.l.b16 %v221
        %v366 = vunpack.c.l.b16 %v222
        %v367 = vunpack.c.l.b16 %v223
        %v368 = vunpack.c.l.b16 %v224
        %v369 = vunpack.c.l.b16 %v225
        %v370 = vunpack.c.l.b16 %v226
        %v371 = vunpack.c.l.b16 %v227
        %v372 = vunpack.c.l.b16 %v228
        %v373 = vunpack.c.l.b16 %v229
        %v374 = vunpack.c.l.b16 %v230
        %v375 = vunpack.c.l.b16 %v231
        %v376 = vunpack.c.l.b16 %v232
        %v377 = vpack.c.b16 %v330, %v329
        %v378 = vpack.c.b16 %v332, %v331
        %v379 = vpack.c.b16 %v334, %v333
        %v380 = vpack.c.b16 %v336, %v335
        %v381 = vpack.c.b16 %v338, %v337
        %v382 = vpack.c.b16 %v340, %v339
        %v383 = vpack.c.b16 %v342, %v341
        %v384 = vpack.c.b16 %v344, %v343
        %v385 = vpack.c.b16 %v346, %v345
        %v386 = vpack.c.b16 %v348, %v347
        %v387 = vpack.c.b16 %v350, %v349
        %v388 = vpack.c.b16 %v352, %v351
        %v389 = vpack.c.b16 %v354, %v353
        %v390 = vpack.c.b16 %v356, %v355
        %v391 = vpack.c.b16 %v358, %v357
        %v392 = vpack.c.b16 %v360, %v359
        %v393 = vpack.c.b16 %v362, %v361
        %v394 = vpack.c.b16 %v364, %v363
        %v395 = vpack.c.b16 %v366, %v365
        %v396 = vpack.c.b16 %v368, %v367
        %v397 = vpack.c.b16 %v370, %v369
        %v398 = vpack.c.b16 %v372, %v371
        %v399 = vpack.c.b16 %v374, %v373
        %v400 = vpack.c.b16 %v376, %v375
        %425 = vmatprep.subr.bf16.mxu0 0
        %426 = vmatpush1.bf16.xpose.msra.mxu0 %v272
        %427 = vmatprep.subr.bf16.mxu0 0
        %428 = vmatpush1.bf16.xpose.msra.mxu0 %v271
        %429 = vmatprep.subr.bf16.mxu0 0
        %430 = vmatpush1.bf16.xpose.msra.mxu0 %v270
        %431 = vmatprep.subr.bf16.mxu0 0
        %432 = vmatpush1.bf16.xpose.msra.mxu0 %v269
        %433 = vmatprep.subr.bf16.mxu0 0
        %434 = vmatpush1.bf16.xpose.msra.mxu0 %v268
        %435 = vmatprep.subr.bf16.mxu0 0
        %436 = vmatpush1.bf16.xpose.msra.mxu0 %v267
        %437 = vmatprep.subr.bf16.mxu0 0
        %438 = vmatpush1.bf16.xpose.msra.mxu0 %v266
        %439 = vmatprep.subr.bf16.mxu0 0
        %440 = vmatpush1.bf16.xpose.msra.mxu0 %v265
        %441 = vmatprep.subr.bf16.mxu0 0
        %442 = vmatpush2.bf16.xpose.msra.mxu0 %v384
        %443 = vmatprep.subr.bf16.mxu0 0
        %444 = vmatpush2.bf16.xpose.msra.mxu0 %v383
        %445 = vmatprep.subr.bf16.mxu0 0
        %446 = vmatpush2.bf16.xpose.msra.mxu0 %v382
        %447 = vmatprep.subr.bf16.mxu0 0
        %448 = vmatpush2.bf16.xpose.msra.mxu0 %v381
        %449 = vmatprep.subr.bf16.mxu0 0
        %450 = vmatpush2.bf16.xpose.msra.mxu0 %v380
        %451 = vmatprep.subr.bf16.mxu0 0
        %452 = vmatpush2.bf16.xpose.msra.mxu0 %v379
        %453 = vmatprep.subr.bf16.mxu0 0
        %454 = vmatpush2.bf16.xpose.msra.mxu0 %v378
        %455 = vmatprep.subr.bf16.mxu0 0
        %456 = vmatpush2.bf16.xpose.msra.mxu0 %v377
        %457 = vmatprep.mubr.bf16.mxu0 0
        %458 = vmatmul.mubr.bf16.gmra.mxu0 %v265
        %v459 = vpop.f32.mrf.mxu0
        %v460 = vadd.f32 0.0, %v459
        %v461 = vpop.f32.mrf.mxu0
        %v462 = vadd.f32 0.0, %v461
        %v463 = vpop.f32.mrf.mxu0
        %v464 = vadd.f32 0.0, %v463
        %v465 = vpop.f32.mrf.mxu0
        %v466 = vadd.f32 0.0, %v465
        %467 = vmatprep.mubr.bf16.mxu0 0
        %468 = vmatmul.mubr.bf16.gmra.mxu0 %v266
        %v469 = vpop.f32.mrf.mxu0
        %v470 = vadd.f32 0.0, %v469
        %v471 = vpop.f32.mrf.mxu0
        %v472 = vadd.f32 0.0, %v471
        %v473 = vpop.f32.mrf.mxu0
        %v474 = vadd.f32 0.0, %v473
        %v475 = vpop.f32.mrf.mxu0
        %v476 = vadd.f32 0.0, %v475
        %477 = vmatprep.mubr.bf16.mxu0 0
        %478 = vmatmul.mubr.bf16.gmra.mxu0 %v267
        %v479 = vpop.f32.mrf.mxu0
        %v480 = vadd.f32 0.0, %v479
        %v481 = vpop.f32.mrf.mxu0
        %v482 = vadd.f32 0.0, %v481
        %v483 = vpop.f32.mrf.mxu0
        %v484 = vadd.f32 0.0, %v483
        %v485 = vpop.f32.mrf.mxu0
        %v486 = vadd.f32 0.0, %v485
        %487 = vmatprep.mubr.bf16.mxu0 0
        %488 = vmatmul.mubr.bf16.gmra.mxu0 %v268
        %v489 = vpop.f32.mrf.mxu0
        %v490 = vadd.f32 0.0, %v489
        %v491 = vpop.f32.mrf.mxu0
        %v492 = vadd.f32 0.0, %v491
        %v493 = vpop.f32.mrf.mxu0
        %v494 = vadd.f32 0.0, %v493
        %v495 = vpop.f32.mrf.mxu0
        %v496 = vadd.f32 0.0, %v495
        %497 = vmatprep.mubr.bf16.mxu0 0
        %498 = vmatmul.mubr.bf16.gmra.mxu0 %v269
        %v499 = vpop.f32.mrf.mxu0
        %v500 = vadd.f32 0.0, %v499
        %v501 = vpop.f32.mrf.mxu0
        %v502 = vadd.f32 0.0, %v501
        %v503 = vpop.f32.mrf.mxu0
        %v504 = vadd.f32 0.0, %v503
        %v505 = vpop.f32.mrf.mxu0
        %v506 = vadd.f32 0.0, %v505
        %507 = vmatprep.mubr.bf16.mxu0 0
        %508 = vmatmul.mubr.bf16.gmra.mxu0 %v270
        %v509 = vpop.f32.mrf.mxu0
        %v510 = vadd.f32 0.0, %v509
        %v511 = vpop.f32.mrf.mxu0
        %v512 = vadd.f32 0.0, %v511
        %v513 = vpop.f32.mrf.mxu0
        %v514 = vadd.f32 0.0, %v513
        %v515 = vpop.f32.mrf.mxu0
        %v516 = vadd.f32 0.0, %v515
        %517 = vmatprep.mubr.bf16.mxu0 0
        %518 = vmatmul.mubr.bf16.gmra.mxu0 %v271
        %v519 = vpop.f32.mrf.mxu0
        %v520 = vadd.f32 0.0, %v519
        %v521 = vpop.f32.mrf.mxu0
        %v522 = vadd.f32 0.0, %v521
        %v523 = vpop.f32.mrf.mxu0
        %v524 = vadd.f32 0.0, %v523
        %v525 = vpop.f32.mrf.mxu0
        %v526 = vadd.f32 0.0, %v525
        %527 = vmatprep.mubr.bf16.mxu0 0
        %528 = vmatmul.mubr.bf16.gmra.mxu0 %v272
        %v529 = vpop.f32.mrf.mxu0
        %v530 = vadd.f32 0.0, %v529
        %v531 = vpop.f32.mrf.mxu0
        %v532 = vadd.f32 0.0, %v531
        %v533 = vpop.f32.mrf.mxu0
        %v534 = vadd.f32 0.0, %v533
        %v535 = vpop.f32.mrf.mxu0
        %v536 = vadd.f32 0.0, %v535
        %537 = vdwg.mxu0
        %538 = vmatprep.subr.bf16.mxu0 0
        %539 = vmatpush1.bf16.xpose.msra.mxu0 %v392
        %540 = vmatprep.subr.bf16.mxu0 0
        %541 = vmatpush1.bf16.xpose.msra.mxu0 %v391
        %542 = vmatprep.subr.bf16.mxu0 0
        %543 = vmatpush1.bf16.xpose.msra.mxu0 %v390
        %544 = vmatprep.subr.bf16.mxu0 0
        %545 = vmatpush1.bf16.xpose.msra.mxu0 %v389
        %546 = vmatprep.subr.bf16.mxu0 0
        %547 = vmatpush1.bf16.xpose.msra.mxu0 %v388
        %548 = vmatprep.subr.bf16.mxu0 0
        %549 = vmatpush1.bf16.xpose.msra.mxu0 %v387
        %550 = vmatprep.subr.bf16.mxu0 0
        %551 = vmatpush1.bf16.xpose.msra.mxu0 %v386
        %552 = vmatprep.subr.bf16.mxu0 0
        %553 = vmatpush1.bf16.xpose.msra.mxu0 %v385
        %554 = vmatprep.subr.bf16.mxu0 0
        %555 = vmatpush2.bf16.xpose.msra.mxu0 %v400
        %556 = vmatprep.subr.bf16.mxu0 0
        %557 = vmatpush2.bf16.xpose.msra.mxu0 %v399
        %558 = vmatprep.subr.bf16.mxu0 0
        %559 = vmatpush2.bf16.xpose.msra.mxu0 %v398
        %560 = vmatprep.subr.bf16.mxu0 0
        %561 = vmatpush2.bf16.xpose.msra.mxu0 %v397
        %562 = vmatprep.subr.bf16.mxu0 0
        %563 = vmatpush2.bf16.xpose.msra.mxu0 %v396
        %564 = vmatprep.subr.bf16.mxu0 0
        %565 = vmatpush2.bf16.xpose.msra.mxu0 %v395
        %566 = vmatprep.subr.bf16.mxu0 0
        %567 = vmatpush2.bf16.xpose.msra.mxu0 %v394
        %568 = vmatprep.subr.bf16.mxu0 0
        %569 = vmatpush2.bf16.xpose.msra.mxu0 %v393
        %570 = vmatprep.mubr.bf16.mxu0 0
        %571 = vmatmul.mubr.bf16.gmra.mxu0 %v265
        %v572 = vpop.f32.mrf.mxu0
        %v573 = vadd.f32 0.0, %v572
        %v574 = vpop.f32.mrf.mxu0
        %v575 = vadd.f32 0.0, %v574
        %v576 = vpop.f32.mrf.mxu0
        %v577 = vadd.f32 0.0, %v576
        %v578 = vpop.f32.mrf.mxu0
        %v579 = vadd.f32 0.0, %v578
        %580 = vmatprep.mubr.bf16.mxu0 0
        %581 = vmatmul.mubr.bf16.gmra.mxu0 %v266
        %v582 = vpop.f32.mrf.mxu0
        %v583 = vadd.f32 0.0, %v582
        %v584 = vpop.f32.mrf.mxu0
        %v585 = vadd.f32 0.0, %v584
        %v586 = vpop.f32.mrf.mxu0
        %v587 = vadd.f32 0.0, %v586
        %v588 = vpop.f32.mrf.mxu0
        %v589 = vadd.f32 0.0, %v588
        %590 = vmatprep.mubr.bf16.mxu0 0
        %591 = vmatmul.mubr.bf16.gmra.mxu0 %v267
        %v592 = vpop.f32.mrf.mxu0
        %v593 = vadd.f32 0.0, %v592
        %v594 = vpop.f32.mrf.mxu0
        %v595 = vadd.f32 0.0, %v594
        %v596 = vpop.f32.mrf.mxu0
        %v597 = vadd.f32 0.0, %v596
        %v598 = vpop.f32.mrf.mxu0
        %v599 = vadd.f32 0.0, %v598
        %600 = vmatprep.mubr.bf16.mxu0 0
        %601 = vmatmul.mubr.bf16.gmra.mxu0 %v268
        %v602 = vpop.f32.mrf.mxu0
        %v603 = vadd.f32 0.0, %v602
        %v604 = vpop.f32.mrf.mxu0
        %v605 = vadd.f32 0.0, %v604
        %v606 = vpop.f32.mrf.mxu0
        %v607 = vadd.f32 0.0, %v606
        %v608 = vpop.f32.mrf.mxu0
        %v609 = vadd.f32 0.0, %v608
        %610 = vmatprep.mubr.bf16.mxu0 0
        %611 = vmatmul.mubr.bf16.gmra.mxu0 %v269
        %v612 = vpop.f32.mrf.mxu0
        %v613 = vadd.f32 0.0, %v612
        %v614 = vpop.f32.mrf.mxu0
        %v615 = vadd.f32 0.0, %v614
        %v616 = vpop.f32.mrf.mxu0
        %v617 = vadd.f32 0.0, %v616
        %v618 = vpop.f32.mrf.mxu0
        %v619 = vadd.f32 0.0, %v618
        %620 = vmatprep.mubr.bf16.mxu0 0
        %621 = vmatmul.mubr.bf16.gmra.mxu0 %v270
        %v622 = vpop.f32.mrf.mxu0
        %v623 = vadd.f32 0.0, %v622
        %v624 = vpop.f32.mrf.mxu0
        %v625 = vadd.f32 0.0, %v624
        %v626 = vpop.f32.mrf.mxu0
        %v627 = vadd.f32 0.0, %v626
        %v628 = vpop.f32.mrf.mxu0
        %v629 = vadd.f32 0.0, %v628
        %630 = vmatprep.mubr.bf16.mxu0 0
        %631 = vmatmul.mubr.bf16.gmra.mxu0 %v271
        %v632 = vpop.f32.mrf.mxu0
        %v633 = vadd.f32 0.0, %v632
        %v634 = vpop.f32.mrf.mxu0
        %v635 = vadd.f32 0.0, %v634
        %v636 = vpop.f32.mrf.mxu0
        %v637 = vadd.f32 0.0, %v636
        %v638 = vpop.f32.mrf.mxu0
        %v639 = vadd.f32 0.0, %v638
        %640 = vmatprep.mubr.bf16.mxu0 0
        %641 = vmatmul.mubr.bf16.gmra.mxu0 %v272
        %v642 = vpop.f32.mrf.mxu0
        %v643 = vadd.f32 0.0, %v642
        %v644 = vpop.f32.mrf.mxu0
        %v645 = vadd.f32 0.0, %v644
        %v646 = vpop.f32.mrf.mxu0
        %v647 = vadd.f32 0.0, %v646
        %v648 = vpop.f32.mrf.mxu0
        %v649 = vadd.f32 0.0, %v648
        %650 = vdwg.mxu0
        %vm651 = vcmp.eq.f32.partialorder %v460, 0.0
        %vm652 = vcmp.eq.f32.partialorder %v462, 0.0
        %vm653 = vcmp.eq.f32.partialorder %v573, 0.0
        %vm654 = vcmp.eq.f32.partialorder %v575, 0.0
        %vm655 = vcmp.eq.f32.partialorder %v464, 0.0
        %vm656 = vcmp.eq.f32.partialorder %v466, 0.0
        %vm657 = vcmp.eq.f32.partialorder %v577, 0.0
        %vm658 = vcmp.eq.f32.partialorder %v579, 0.0
        %vm659 = vcmp.eq.f32.partialorder %v470, 0.0
        %vm660 = vcmp.eq.f32.partialorder %v472, 0.0
        %vm661 = vcmp.eq.f32.partialorder %v583, 0.0
        %vm662 = vcmp.eq.f32.partialorder %v585, 0.0
        %vm663 = vcmp.eq.f32.partialorder %v474, 0.0
        %vm664 = vcmp.eq.f32.partialorder %v476, 0.0
        %vm665 = vcmp.eq.f32.partialorder %v587, 0.0
        %vm666 = vcmp.eq.f32.partialorder %v589, 0.0
        %vm667 = vcmp.eq.f32.partialorder %v480, 0.0
        %vm668 = vcmp.eq.f32.partialorder %v482, 0.0
        %vm669 = vcmp.eq.f32.partialorder %v593, 0.0
        %vm670 = vcmp.eq.f32.partialorder %v595, 0.0
        %vm671 = vcmp.eq.f32.partialorder %v484, 0.0
        %vm672 = vcmp.eq.f32.partialorder %v486, 0.0
        %vm673 = vcmp.eq.f32.partialorder %v597, 0.0
        %vm674 = vcmp.eq.f32.partialorder %v599, 0.0
        %vm675 = vcmp.eq.f32.partialorder %v490, 0.0
        %vm676 = vcmp.eq.f32.partialorder %v492, 0.0
        %vm677 = vcmp.eq.f32.partialorder %v603, 0.0
        %vm678 = vcmp.eq.f32.partialorder %v605, 0.0
        %vm679 = vcmp.eq.f32.partialorder %v494, 0.0
        %vm680 = vcmp.eq.f32.partialorder %v496, 0.0
        %vm681 = vcmp.eq.f32.partialorder %v607, 0.0
        %vm682 = vcmp.eq.f32.partialorder %v609, 0.0
        %vm683 = vcmp.eq.f32.partialorder %v500, 0.0
        %vm684 = vcmp.eq.f32.partialorder %v502, 0.0
        %vm685 = vcmp.eq.f32.partialorder %v613, 0.0
        %vm686 = vcmp.eq.f32.partialorder %v615, 0.0
        %vm687 = vcmp.eq.f32.partialorder %v504, 0.0
        %vm688 = vcmp.eq.f32.partialorder %v506, 0.0
        %vm689 = vcmp.eq.f32.partialorder %v617, 0.0
        %vm690 = vcmp.eq.f32.partialorder %v619, 0.0
        %vm691 = vcmp.eq.f32.partialorder %v510, 0.0
        %vm692 = vcmp.eq.f32.partialorder %v512, 0.0
        %vm693 = vcmp.eq.f32.partialorder %v623, 0.0
        %vm694 = vcmp.eq.f32.partialorder %v625, 0.0
        %vm695 = vcmp.eq.f32.partialorder %v514, 0.0
        %vm696 = vcmp.eq.f32.partialorder %v516, 0.0
        %vm697 = vcmp.eq.f32.partialorder %v627, 0.0
        %vm698 = vcmp.eq.f32.partialorder %v629, 0.0
        %vm699 = vcmp.eq.f32.partialorder %v520, 0.0
        %vm700 = vcmp.eq.f32.partialorder %v522, 0.0
        %vm701 = vcmp.eq.f32.partialorder %v633, 0.0
        %vm702 = vcmp.eq.f32.partialorder %v635, 0.0
        %vm703 = vcmp.eq.f32.partialorder %v524, 0.0
        %vm704 = vcmp.eq.f32.partialorder %v526, 0.0
        %vm705 = vcmp.eq.f32.partialorder %v637, 0.0
        %vm706 = vcmp.eq.f32.partialorder %v639, 0.0
        %vm707 = vcmp.eq.f32.partialorder %v530, 0.0
        %vm708 = vcmp.eq.f32.partialorder %v532, 0.0
        %vm709 = vcmp.eq.f32.partialorder %v643, 0.0
        %vm710 = vcmp.eq.f32.partialorder %v645, 0.0
        %vm711 = vcmp.eq.f32.partialorder %v534, 0.0
        %vm712 = vcmp.eq.f32.partialorder %v536, 0.0
        %vm713 = vcmp.eq.f32.partialorder %v647, 0.0
        %vm714 = vcmp.eq.f32.partialorder %v649, 0.0
        %v715 = vand.u32 2147483647, %v460
        %v716 = vand.u32 2147483647, %v462
        %v717 = vand.u32 2147483647, %v573
        %v718 = vand.u32 2147483647, %v575
        %v719 = vand.u32 2147483647, %v464
        %v720 = vand.u32 2147483647, %v466
        %v721 = vand.u32 2147483647, %v577
        %v722 = vand.u32 2147483647, %v579
        %v723 = vand.u32 2147483647, %v470
        %v724 = vand.u32 2147483647, %v472
        %v725 = vand.u32 2147483647, %v583
        %v726 = vand.u32 2147483647, %v585
        %v727 = vand.u32 2147483647, %v474
        %v728 = vand.u32 2147483647, %v476
        %v729 = vand.u32 2147483647, %v587
        %v730 = vand.u32 2147483647, %v589
        %v731 = vand.u32 2147483647, %v480
        %v732 = vand.u32 2147483647, %v482
        %v733 = vand.u32 2147483647, %v593
        %v734 = vand.u32 2147483647, %v595
        %v735 = vand.u32 2147483647, %v484
        %v736 = vand.u32 2147483647, %v486
        %v737 = vand.u32 2147483647, %v597
        %v738 = vand.u32 2147483647, %v599
        %v739 = vand.u32 2147483647, %v490
        %v740 = vand.u32 2147483647, %v492
        %v741 = vand.u32 2147483647, %v603
        %v742 = vand.u32 2147483647, %v605
        %v743 = vand.u32 2147483647, %v494
        %v744 = vand.u32 2147483647, %v496
        %v745 = vand.u32 2147483647, %v607
        %v746 = vand.u32 2147483647, %v609
        %v747 = vand.u32 2147483647, %v500
        %v748 = vand.u32 2147483647, %v502
        %v749 = vand.u32 2147483647, %v613
        %v750 = vand.u32 2147483647, %v615
        %v751 = vand.u32 2147483647, %v504
        %v752 = vand.u32 2147483647, %v506
        %v753 = vand.u32 2147483647, %v617
        %v754 = vand.u32 2147483647, %v619
        %v755 = vand.u32 2147483647, %v510
        %v756 = vand.u32 2147483647, %v512
        %v757 = vand.u32 2147483647, %v623
        %v758 = vand.u32 2147483647, %v625
        %v759 = vand.u32 2147483647, %v514
        %v760 = vand.u32 2147483647, %v516
        %v761 = vand.u32 2147483647, %v627
        %v762 = vand.u32 2147483647, %v629
        %v763 = vand.u32 2147483647, %v520
        %v764 = vand.u32 2147483647, %v522
        %v765 = vand.u32 2147483647, %v633
        %v766 = vand.u32 2147483647, %v635
        %v767 = vand.u32 2147483647, %v524
        %v768 = vand.u32 2147483647, %v526
        %v769 = vand.u32 2147483647, %v637
        %v770 = vand.u32 2147483647, %v639
        %v771 = vand.u32 2147483647, %v530
        %v772 = vand.u32 2147483647, %v532
        %v773 = vand.u32 2147483647, %v643
        %v774 = vand.u32 2147483647, %v645
        %v775 = vand.u32 2147483647, %v534
        %v776 = vand.u32 2147483647, %v536
        %v777 = vand.u32 2147483647, %v647
        %v778 = vand.u32 2147483647, %v649
        %v779 = vadd.f32 %v715, 7.84e-08
        %v780 = vadd.f32 %v716, 7.84e-08
        %v781 = vadd.f32 %v717, 7.84e-08
        %v782 = vadd.f32 %v718, 7.84e-08
        %v783 = vadd.f32 %v719, 7.84e-08
        %v784 = vadd.f32 %v720, 7.84e-08
        %v785 = vadd.f32 %v721, 7.84e-08
        %v786 = vadd.f32 %v722, 7.84e-08
        %v787 = vadd.f32 %v723, 7.84e-08
        %v788 = vadd.f32 %v724, 7.84e-08
        %v789 = vadd.f32 %v725, 7.84e-08
        %v790 = vadd.f32 %v726, 7.84e-08
        %v791 = vadd.f32 %v727, 7.84e-08
        %v792 = vadd.f32 %v728, 7.84e-08
        %v793 = vadd.f32 %v729, 7.84e-08
        %v794 = vadd.f32 %v730, 7.84e-08
        %v795 = vadd.f32 %v731, 7.84e-08
        %v796 = vadd.f32 %v732, 7.84e-08
        %v797 = vadd.f32 %v733, 7.84e-08
        %v798 = vadd.f32 %v734, 7.84e-08
        %v799 = vadd.f32 %v735, 7.84e-08
        %v800 = vadd.f32 %v736, 7.84e-08
        %v801 = vadd.f32 %v737, 7.84e-08
        %v802 = vadd.f32 %v738, 7.84e-08
        %v803 = vadd.f32 %v739, 7.84e-08
        %v804 = vadd.f32 %v740, 7.84e-08
        %v805 = vadd.f32 %v741, 7.84e-08
        %v806 = vadd.f32 %v742, 7.84e-08
        %v807 = vadd.f32 %v743, 7.84e-08
        %v808 = vadd.f32 %v744, 7.84e-08
        %v809 = vadd.f32 %v745, 7.84e-08
        %v810 = vadd.f32 %v746, 7.84e-08
        %v811 = vadd.f32 %v747, 7.84e-08
        %v812 = vadd.f32 %v748, 7.84e-08
        %v813 = vadd.f32 %v749, 7.84e-08
        %v814 = vadd.f32 %v750, 7.84e-08
        %v815 = vadd.f32 %v751, 7.84e-08
        %v816 = vadd.f32 %v752, 7.84e-08
        %v817 = vadd.f32 %v753, 7.84e-08
        %v818 = vadd.f32 %v754, 7.84e-08
        %v819 = vadd.f32 %v755, 7.84e-08
        %v820 = vadd.f32 %v756, 7.84e-08
        %v821 = vadd.f32 %v757, 7.84e-08
        %v822 = vadd.f32 %v758, 7.84e-08
        %v823 = vadd.f32 %v759, 7.84e-08
        %v824 = vadd.f32 %v760, 7.84e-08
        %v825 = vadd.f32 %v761, 7.84e-08
        %v826 = vadd.f32 %v762, 7.84e-08
        %v827 = vadd.f32 %v763, 7.84e-08
        %v828 = vadd.f32 %v764, 7.84e-08
        %v829 = vadd.f32 %v765, 7.84e-08
        %v830 = vadd.f32 %v766, 7.84e-08
        %v831 = vadd.f32 %v767, 7.84e-08
        %v832 = vadd.f32 %v768, 7.84e-08
        %v833 = vadd.f32 %v769, 7.84e-08
        %v834 = vadd.f32 %v770, 7.84e-08
        %v835 = vadd.f32 %v771, 7.84e-08
        %v836 = vadd.f32 %v772, 7.84e-08
        %v837 = vadd.f32 %v773, 7.84e-08
        %v838 = vadd.f32 %v774, 7.84e-08
        %v839 = vadd.f32 %v775, 7.84e-08
        %v840 = vadd.f32 %v776, 7.84e-08
        %v841 = vadd.f32 %v777, 7.84e-08
        %v842 = vadd.f32 %v778, 7.84e-08
        %v843 = vsel %vm651, 0.0, %v779
        %v844 = vsel %vm652, 0.0, %v780
        %v845 = vsel %vm653, 0.0, %v781
        %v846 = vsel %vm654, 0.0, %v782
        %v847 = vsel %vm655, 0.0, %v783
        %v848 = vsel %vm656, 0.0, %v784
        %v849 = vsel %vm657, 0.0, %v785
        %v850 = vsel %vm658, 0.0, %v786
        %v851 = vsel %vm659, 0.0, %v787
        %v852 = vsel %vm660, 0.0, %v788
        %v853 = vsel %vm661, 0.0, %v789
        %v854 = vsel %vm662, 0.0, %v790
        %v855 = vsel %vm663, 0.0, %v791
        %v856 = vsel %vm664, 0.0, %v792
        %v857 = vsel %vm665, 0.0, %v793
        %v858 = vsel %vm666, 0.0, %v794
        %v859 = vsel %vm667, 0.0, %v795
        %v860 = vsel %vm668, 0.0, %v796
        %v861 = vsel %vm669, 0.0, %v797
        %v862 = vsel %vm670, 0.0, %v798
        %v863 = vsel %vm671, 0.0, %v799
        %v864 = vsel %vm672, 0.0, %v800
        %v865 = vsel %vm673, 0.0, %v801
        %v866 = vsel %vm674, 0.0, %v802
        %v867 = vsel %vm675, 0.0, %v803
        %v868 = vsel %vm676, 0.0, %v804
        %v869 = vsel %vm677, 0.0, %v805
        %v870 = vsel %vm678, 0.0, %v806
        %v871 = vsel %vm679, 0.0, %v807
        %v872 = vsel %vm680, 0.0, %v808
        %v873 = vsel %vm681, 0.0, %v809
        %v874 = vsel %vm682, 0.0, %v810
        %v875 = vsel %vm683, 0.0, %v811
        %v876 = vsel %vm684, 0.0, %v812
        %v877 = vsel %vm685, 0.0, %v813
        %v878 = vsel %vm686, 0.0, %v814
        %v879 = vsel %vm687, 0.0, %v815
        %v880 = vsel %vm688, 0.0, %v816
        %v881 = vsel %vm689, 0.0, %v817
        %v882 = vsel %vm690, 0.0, %v818
        %v883 = vsel %vm691, 0.0, %v819
        %v884 = vsel %vm692, 0.0, %v820
        %v885 = vsel %vm693, 0.0, %v821
        %v886 = vsel %vm694, 0.0, %v822
        %v887 = vsel %vm695, 0.0, %v823
        %v888 = vsel %vm696, 0.0, %v824
        %v889 = vsel %vm697, 0.0, %v825
        %v890 = vsel %vm698, 0.0, %v826
        %v891 = vsel %vm699, 0.0, %v827
        %v892 = vsel %vm700, 0.0, %v828
        %v893 = vsel %vm701, 0.0, %v829
        %v894 = vsel %vm702, 0.0, %v830
        %v895 = vsel %vm703, 0.0, %v831
        %v896 = vsel %vm704, 0.0, %v832
        %v897 = vsel %vm705, 0.0, %v833
        %v898 = vsel %vm706, 0.0, %v834
        %v899 = vsel %vm707, 0.0, %v835
        %v900 = vsel %vm708, 0.0, %v836
        %v901 = vsel %vm709, 0.0, %v837
        %v902 = vsel %vm710, 0.0, %v838
        %v903 = vsel %vm711, 0.0, %v839
        %v904 = vsel %vm712, 0.0, %v840
        %v905 = vsel %vm713, 0.0, %v841
        %v906 = vsel %vm714, 0.0, %v842
        %v907 = vadd.f32 %v843, %v844
        %v908 = vadd.f32 %v907, %v845
        %v909 = vadd.f32 %v908, %v846
        %v910 = vadd.f32 %v909, %v847
        %v911 = vadd.f32 %v910, %v848
        %v912 = vadd.f32 %v911, %v849
        %v913 = vadd.f32 %v912, %v850
        %v914 = vadd.f32 %v913, %v851
        %v915 = vadd.f32 %v914, %v852
        %v916 = vadd.f32 %v915, %v853
        %v917 = vadd.f32 %v916, %v854
        %v918 = vadd.f32 %v917, %v855
        %v919 = vadd.f32 %v918, %v856
        %v920 = vadd.f32 %v919, %v857
        %v921 = vadd.f32 %v920, %v858
        %v922 = vadd.f32 %v921, %v859
        %v923 = vadd.f32 %v922, %v860
        %v924 = vadd.f32 %v923, %v861
        %v925 = vadd.f32 %v924, %v862
        %v926 = vadd.f32 %v925, %v863
        %v927 = vadd.f32 %v926, %v864
        %v928 = vadd.f32 %v927, %v865
        %v929 = vadd.f32 %v928, %v866
        %v930 = vadd.f32 %v929, %v867
        %v931 = vadd.f32 %v930, %v868
        %v932 = vadd.f32 %v931, %v869
        %v933 = vadd.f32 %v932, %v870
        %v934 = vadd.f32 %v933, %v871
        %v935 = vadd.f32 %v934, %v872
        %v936 = vadd.f32 %v935, %v873
        %v937 = vadd.f32 %v936, %v874
        %v938 = vadd.f32 %v937, %v875
        %v939 = vadd.f32 %v938, %v876
        %v940 = vadd.f32 %v939, %v877
        %v941 = vadd.f32 %v940, %v878
        %v942 = vadd.f32 %v941, %v879
        %v943 = vadd.f32 %v942, %v880
        %v944 = vadd.f32 %v943, %v881
        %v945 = vadd.f32 %v944, %v882
        %v946 = vadd.f32 %v945, %v883
        %v947 = vadd.f32 %v946, %v884
        %v948 = vadd.f32 %v947, %v885
        %v949 = vadd.f32 %v948, %v886
        %v950 = vadd.f32 %v949, %v887
        %v951 = vadd.f32 %v950, %v888
        %v952 = vadd.f32 %v951, %v889
        %v953 = vadd.f32 %v952, %v890
        %v954 = vadd.f32 %v953, %v891
        %v955 = vadd.f32 %v954, %v892
        %v956 = vadd.f32 %v955, %v893
        %v957 = vadd.f32 %v956, %v894
        %v958 = vadd.f32 %v957, %v895
        %v959 = vadd.f32 %v958, %v896
        %v960 = vadd.f32 %v959, %v897
        %v961 = vadd.f32 %v960, %v898
        %v962 = vadd.f32 %v961, %v899
        %v963 = vadd.f32 %v962, %v900
        %v964 = vadd.f32 %v963, %v901
        %v965 = vadd.f32 %v964, %v902
        %v966 = vadd.f32 %v965, %v903
        %v967 = vadd.f32 %v966, %v904
        %v968 = vadd.f32 %v967, %v905
        %v969 = vadd.f32 %v968, %v906
        %970 = vadd.xlane.f32.xlu0 %v969
        %v971 = vpop.xlane.xlu0 %970
        %v972 = vrot.slane %v971, 4
        %v973 = vadd.f32 %v971, %v972
        %v974 = vrot.slane %v973, 2
        %v975 = vadd.f32 %v973, %v974
        %v976 = vrot.slane %v975, 1
        %v977 = vadd.f32 %v975, %v976
        %s978 = vtos %v977
        %s979 = sadd.f32 %s978, 0.0
        %v980 = vrsqrt.pop %v779
        %v981 = vmul.f32 %v779, %v980
        %vm982 = vcmp.eq.f32.partialorder %v779, inf
        %v983 = vsel %vm982, %v779, %v981
        %vm984 = vcmp.eq.f32.partialorder %v779, 0.0
        %v985 = vand.u32 %v779, 2147483648
        %v986 = vsel %vm984, %v985, %v983
        %v987 = vrsqrt.pop %v780
        %v988 = vmul.f32 %v780, %v987
        %vm989 = vcmp.eq.f32.partialorder %v780, inf
        %v990 = vsel %vm989, %v780, %v988
        %vm991 = vcmp.eq.f32.partialorder %v780, 0.0
        %v992 = vand.u32 %v780, 2147483648
        %v993 = vsel %vm991, %v992, %v990
        %v994 = vrsqrt.pop %v781
        %v995 = vmul.f32 %v781, %v994
        %vm996 = vcmp.eq.f32.partialorder %v781, inf
        %v997 = vsel %vm996, %v781, %v995
        %vm998 = vcmp.eq.f32.partialorder %v781, 0.0
        %v999 = vand.u32 %v781, 2147483648
        %v1000 = vsel %vm998, %v999, %v997
        %v1001 = vrsqrt.pop %v782
        %v1002 = vmul.f32 %v782, %v1001
        %vm1003 = vcmp.eq.f32.partialorder %v782, inf
        %v1004 = vsel %vm1003, %v782, %v1002
        %vm1005 = vcmp.eq.f32.partialorder %v782, 0.0
        %v1006 = vand.u32 %v782, 2147483648
        %v1007 = vsel %vm1005, %v1006, %v1004
        %v1008 = vrsqrt.pop %v783
        %v1009 = vmul.f32 %v783, %v1008
        %vm1010 = vcmp.eq.f32.partialorder %v783, inf
        %v1011 = vsel %vm1010, %v783, %v1009
        %vm1012 = vcmp.eq.f32.partialorder %v783, 0.0
        %v1013 = vand.u32 %v783, 2147483648
        %v1014 = vsel %vm1012, %v1013, %v1011
        %v1015 = vrsqrt.pop %v784
        %v1016 = vmul.f32 %v784, %v1015
        %vm1017 = vcmp.eq.f32.partialorder %v784, inf
        %v1018 = vsel %vm1017, %v784, %v1016
        %vm1019 = vcmp.eq.f32.partialorder %v784, 0.0
        %v1020 = vand.u32 %v784, 2147483648
        %v1021 = vsel %vm1019, %v1020, %v1018
        %v1022 = vrsqrt.pop %v785
        %v1023 = vmul.f32 %v785, %v1022
        %vm1024 = vcmp.eq.f32.partialorder %v785, inf
        %v1025 = vsel %vm1024, %v785, %v1023
        %vm1026 = vcmp.eq.f32.partialorder %v785, 0.0
        %v1027 = vand.u32 %v785, 2147483648
        %v1028 = vsel %vm1026, %v1027, %v1025
        %v1029 = vrsqrt.pop %v786
        %v1030 = vmul.f32 %v786, %v1029
        %vm1031 = vcmp.eq.f32.partialorder %v786, inf
        %v1032 = vsel %vm1031, %v786, %v1030
        %vm1033 = vcmp.eq.f32.partialorder %v786, 0.0
        %v1034 = vand.u32 %v786, 2147483648
        %v1035 = vsel %vm1033, %v1034, %v1032
        %v1036 = vrsqrt.pop %v787
        %v1037 = vmul.f32 %v787, %v1036
        %vm1038 = vcmp.eq.f32.partialorder %v787, inf
        %v1039 = vsel %vm1038, %v787, %v1037
        %vm1040 = vcmp.eq.f32.partialorder %v787, 0.0
        %v1041 = vand.u32 %v787, 2147483648
        %v1042 = vsel %vm1040, %v1041, %v1039
        %v1043 = vrsqrt.pop %v788
        %v1044 = vmul.f32 %v788, %v1043
        %vm1045 = vcmp.eq.f32.partialorder %v788, inf
        %v1046 = vsel %vm1045, %v788, %v1044
        %vm1047 = vcmp.eq.f32.partialorder %v788, 0.0
        %v1048 = vand.u32 %v788, 2147483648
        %v1049 = vsel %vm1047, %v1048, %v1046
        %v1050 = vrsqrt.pop %v789
        %v1051 = vmul.f32 %v789, %v1050
        %vm1052 = vcmp.eq.f32.partialorder %v789, inf
        %v1053 = vsel %vm1052, %v789, %v1051
        %vm1054 = vcmp.eq.f32.partialorder %v789, 0.0
        %v1055 = vand.u32 %v789, 2147483648
        %v1056 = vsel %vm1054, %v1055, %v1053
        %v1057 = vrsqrt.pop %v790
        %v1058 = vmul.f32 %v790, %v1057
        %vm1059 = vcmp.eq.f32.partialorder %v790, inf
        %v1060 = vsel %vm1059, %v790, %v1058
        %vm1061 = vcmp.eq.f32.partialorder %v790, 0.0
        %v1062 = vand.u32 %v790, 2147483648
        %v1063 = vsel %vm1061, %v1062, %v1060
        %v1064 = vrsqrt.pop %v791
        %v1065 = vmul.f32 %v791, %v1064
        %vm1066 = vcmp.eq.f32.partialorder %v791, inf
        %v1067 = vsel %vm1066, %v791, %v1065
        %vm1068 = vcmp.eq.f32.partialorder %v791, 0.0
        %v1069 = vand.u32 %v791, 2147483648
        %v1070 = vsel %vm1068, %v1069, %v1067
        %v1071 = vrsqrt.pop %v792
        %v1072 = vmul.f32 %v792, %v1071
        %vm1073 = vcmp.eq.f32.partialorder %v792, inf
        %v1074 = vsel %vm1073, %v792, %v1072
        %vm1075 = vcmp.eq.f32.partialorder %v792, 0.0
        %v1076 = vand.u32 %v792, 2147483648
        %v1077 = vsel %vm1075, %v1076, %v1074
        %v1078 = vrsqrt.pop %v793
        %v1079 = vmul.f32 %v793, %v1078
        %vm1080 = vcmp.eq.f32.partialorder %v793, inf
        %v1081 = vsel %vm1080, %v793, %v1079
        %vm1082 = vcmp.eq.f32.partialorder %v793, 0.0
        %v1083 = vand.u32 %v793, 2147483648
        %v1084 = vsel %vm1082, %v1083, %v1081
        %v1085 = vrsqrt.pop %v794
        %v1086 = vmul.f32 %v794, %v1085
        %vm1087 = vcmp.eq.f32.partialorder %v794, inf
        %v1088 = vsel %vm1087, %v794, %v1086
        %vm1089 = vcmp.eq.f32.partialorder %v794, 0.0
        %v1090 = vand.u32 %v794, 2147483648
        %v1091 = vsel %vm1089, %v1090, %v1088
        %v1092 = vrsqrt.pop %v795
        %v1093 = vmul.f32 %v795, %v1092
        %vm1094 = vcmp.eq.f32.partialorder %v795, inf
        %v1095 = vsel %vm1094, %v795, %v1093
        %vm1096 = vcmp.eq.f32.partialorder %v795, 0.0
        %v1097 = vand.u32 %v795, 2147483648
        %v1098 = vsel %vm1096, %v1097, %v1095
        %v1099 = vrsqrt.pop %v796
        %v1100 = vmul.f32 %v796, %v1099
        %vm1101 = vcmp.eq.f32.partialorder %v796, inf
        %v1102 = vsel %vm1101, %v796, %v1100
        %vm1103 = vcmp.eq.f32.partialorder %v796, 0.0
        %v1104 = vand.u32 %v796, 2147483648
        %v1105 = vsel %vm1103, %v1104, %v1102
        %v1106 = vrsqrt.pop %v797
        %v1107 = vmul.f32 %v797, %v1106
        %vm1108 = vcmp.eq.f32.partialorder %v797, inf
        %v1109 = vsel %vm1108, %v797, %v1107
        %vm1110 = vcmp.eq.f32.partialorder %v797, 0.0
        %v1111 = vand.u32 %v797, 2147483648
        %v1112 = vsel %vm1110, %v1111, %v1109
        %v1113 = vrsqrt.pop %v798
        %v1114 = vmul.f32 %v798, %v1113
        %vm1115 = vcmp.eq.f32.partialorder %v798, inf
        %v1116 = vsel %vm1115, %v798, %v1114
        %vm1117 = vcmp.eq.f32.partialorder %v798, 0.0
        %v1118 = vand.u32 %v798, 2147483648
        %v1119 = vsel %vm1117, %v1118, %v1116
        %v1120 = vrsqrt.pop %v799
        %v1121 = vmul.f32 %v799, %v1120
        %vm1122 = vcmp.eq.f32.partialorder %v799, inf
        %v1123 = vsel %vm1122, %v799, %v1121
        %vm1124 = vcmp.eq.f32.partialorder %v799, 0.0
        %v1125 = vand.u32 %v799, 2147483648
        %v1126 = vsel %vm1124, %v1125, %v1123
        %v1127 = vrsqrt.pop %v800
        %v1128 = vmul.f32 %v800, %v1127
        %vm1129 = vcmp.eq.f32.partialorder %v800, inf
        %v1130 = vsel %vm1129, %v800, %v1128
        %vm1131 = vcmp.eq.f32.partialorder %v800, 0.0
        %v1132 = vand.u32 %v800, 2147483648
        %v1133 = vsel %vm1131, %v1132, %v1130
        %v1134 = vrsqrt.pop %v801
        %v1135 = vmul.f32 %v801, %v1134
        %vm1136 = vcmp.eq.f32.partialorder %v801, inf
        %v1137 = vsel %vm1136, %v801, %v1135
        %vm1138 = vcmp.eq.f32.partialorder %v801, 0.0
        %v1139 = vand.u32 %v801, 2147483648
        %v1140 = vsel %vm1138, %v1139, %v1137
        %v1141 = vrsqrt.pop %v802
        %v1142 = vmul.f32 %v802, %v1141
        %vm1143 = vcmp.eq.f32.partialorder %v802, inf
        %v1144 = vsel %vm1143, %v802, %v1142
        %vm1145 = vcmp.eq.f32.partialorder %v802, 0.0
        %v1146 = vand.u32 %v802, 2147483648
        %v1147 = vsel %vm1145, %v1146, %v1144
        %v1148 = vrsqrt.pop %v803
        %v1149 = vmul.f32 %v803, %v1148
        %vm1150 = vcmp.eq.f32.partialorder %v803, inf
        %v1151 = vsel %vm1150, %v803, %v1149
        %vm1152 = vcmp.eq.f32.partialorder %v803, 0.0
        %v1153 = vand.u32 %v803, 2147483648
        %v1154 = vsel %vm1152, %v1153, %v1151
        %v1155 = vrsqrt.pop %v804
        %v1156 = vmul.f32 %v804, %v1155
        %vm1157 = vcmp.eq.f32.partialorder %v804, inf
        %v1158 = vsel %vm1157, %v804, %v1156
        %vm1159 = vcmp.eq.f32.partialorder %v804, 0.0
        %v1160 = vand.u32 %v804, 2147483648
        %v1161 = vsel %vm1159, %v1160, %v1158
        %v1162 = vrsqrt.pop %v805
        %v1163 = vmul.f32 %v805, %v1162
        %vm1164 = vcmp.eq.f32.partialorder %v805, inf
        %v1165 = vsel %vm1164, %v805, %v1163
        %vm1166 = vcmp.eq.f32.partialorder %v805, 0.0
        %v1167 = vand.u32 %v805, 2147483648
        %v1168 = vsel %vm1166, %v1167, %v1165
        %v1169 = vrsqrt.pop %v806
        %v1170 = vmul.f32 %v806, %v1169
        %vm1171 = vcmp.eq.f32.partialorder %v806, inf
        %v1172 = vsel %vm1171, %v806, %v1170
        %vm1173 = vcmp.eq.f32.partialorder %v806, 0.0
        %v1174 = vand.u32 %v806, 2147483648
        %v1175 = vsel %vm1173, %v1174, %v1172
        %v1176 = vrsqrt.pop %v807
        %v1177 = vmul.f32 %v807, %v1176
        %vm1178 = vcmp.eq.f32.partialorder %v807, inf
        %v1179 = vsel %vm1178, %v807, %v1177
        %vm1180 = vcmp.eq.f32.partialorder %v807, 0.0
        %v1181 = vand.u32 %v807, 2147483648
        %v1182 = vsel %vm1180, %v1181, %v1179
        %v1183 = vrsqrt.pop %v808
        %v1184 = vmul.f32 %v808, %v1183
        %vm1185 = vcmp.eq.f32.partialorder %v808, inf
        %v1186 = vsel %vm1185, %v808, %v1184
        %vm1187 = vcmp.eq.f32.partialorder %v808, 0.0
        %v1188 = vand.u32 %v808, 2147483648
        %v1189 = vsel %vm1187, %v1188, %v1186
        %v1190 = vrsqrt.pop %v809
        %v1191 = vmul.f32 %v809, %v1190
        %vm1192 = vcmp.eq.f32.partialorder %v809, inf
        %v1193 = vsel %vm1192, %v809, %v1191
        %vm1194 = vcmp.eq.f32.partialorder %v809, 0.0
        %v1195 = vand.u32 %v809, 2147483648
        %v1196 = vsel %vm1194, %v1195, %v1193
        %v1197 = vrsqrt.pop %v810
        %v1198 = vmul.f32 %v810, %v1197
        %vm1199 = vcmp.eq.f32.partialorder %v810, inf
        %v1200 = vsel %vm1199, %v810, %v1198
        %vm1201 = vcmp.eq.f32.partialorder %v810, 0.0
        %v1202 = vand.u32 %v810, 2147483648
        %v1203 = vsel %vm1201, %v1202, %v1200
        %v1204 = vrsqrt.pop %v811
        %v1205 = vmul.f32 %v811, %v1204
        %vm1206 = vcmp.eq.f32.partialorder %v811, inf
        %v1207 = vsel %vm1206, %v811, %v1205
        %vm1208 = vcmp.eq.f32.partialorder %v811, 0.0
        %v1209 = vand.u32 %v811, 2147483648
        %v1210 = vsel %vm1208, %v1209, %v1207
        %v1211 = vrsqrt.pop %v812
        %v1212 = vmul.f32 %v812, %v1211
        %vm1213 = vcmp.eq.f32.partialorder %v812, inf
        %v1214 = vsel %vm1213, %v812, %v1212
        %vm1215 = vcmp.eq.f32.partialorder %v812, 0.0
        %v1216 = vand.u32 %v812, 2147483648
        %v1217 = vsel %vm1215, %v1216, %v1214
        %v1218 = vrsqrt.pop %v813
        %v1219 = vmul.f32 %v813, %v1218
        %vm1220 = vcmp.eq.f32.partialorder %v813, inf
        %v1221 = vsel %vm1220, %v813, %v1219
        %vm1222 = vcmp.eq.f32.partialorder %v813, 0.0
        %v1223 = vand.u32 %v813, 2147483648
        %v1224 = vsel %vm1222, %v1223, %v1221
        %v1225 = vrsqrt.pop %v814
        %v1226 = vmul.f32 %v814, %v1225
        %vm1227 = vcmp.eq.f32.partialorder %v814, inf
        %v1228 = vsel %vm1227, %v814, %v1226
        %vm1229 = vcmp.eq.f32.partialorder %v814, 0.0
        %v1230 = vand.u32 %v814, 2147483648
        %v1231 = vsel %vm1229, %v1230, %v1228
        %v1232 = vrsqrt.pop %v815
        %v1233 = vmul.f32 %v815, %v1232
        %vm1234 = vcmp.eq.f32.partialorder %v815, inf
        %v1235 = vsel %vm1234, %v815, %v1233
        %vm1236 = vcmp.eq.f32.partialorder %v815, 0.0
        %v1237 = vand.u32 %v815, 2147483648
        %v1238 = vsel %vm1236, %v1237, %v1235
        %v1239 = vrsqrt.pop %v816
        %v1240 = vmul.f32 %v816, %v1239
        %vm1241 = vcmp.eq.f32.partialorder %v816, inf
        %v1242 = vsel %vm1241, %v816, %v1240
        %vm1243 = vcmp.eq.f32.partialorder %v816, 0.0
        %v1244 = vand.u32 %v816, 2147483648
        %v1245 = vsel %vm1243, %v1244, %v1242
        %v1246 = vrsqrt.pop %v817
        %v1247 = vmul.f32 %v817, %v1246
        %vm1248 = vcmp.eq.f32.partialorder %v817, inf
        %v1249 = vsel %vm1248, %v817, %v1247
        %vm1250 = vcmp.eq.f32.partialorder %v817, 0.0
        %v1251 = vand.u32 %v817, 2147483648
        %v1252 = vsel %vm1250, %v1251, %v1249
        %v1253 = vrsqrt.pop %v818
        %v1254 = vmul.f32 %v818, %v1253
        %vm1255 = vcmp.eq.f32.partialorder %v818, inf
        %v1256 = vsel %vm1255, %v818, %v1254
        %vm1257 = vcmp.eq.f32.partialorder %v818, 0.0
        %v1258 = vand.u32 %v818, 2147483648
        %v1259 = vsel %vm1257, %v1258, %v1256
        %v1260 = vrsqrt.pop %v819
        %v1261 = vmul.f32 %v819, %v1260
        %vm1262 = vcmp.eq.f32.partialorder %v819, inf
        %v1263 = vsel %vm1262, %v819, %v1261
        %vm1264 = vcmp.eq.f32.partialorder %v819, 0.0
        %v1265 = vand.u32 %v819, 2147483648
        %v1266 = vsel %vm1264, %v1265, %v1263
        %v1267 = vrsqrt.pop %v820
        %v1268 = vmul.f32 %v820, %v1267
        %vm1269 = vcmp.eq.f32.partialorder %v820, inf
        %v1270 = vsel %vm1269, %v820, %v1268
        %vm1271 = vcmp.eq.f32.partialorder %v820, 0.0
        %v1272 = vand.u32 %v820, 2147483648
        %v1273 = vsel %vm1271, %v1272, %v1270
        %v1274 = vrsqrt.pop %v821
        %v1275 = vmul.f32 %v821, %v1274
        %vm1276 = vcmp.eq.f32.partialorder %v821, inf
        %v1277 = vsel %vm1276, %v821, %v1275
        %vm1278 = vcmp.eq.f32.partialorder %v821, 0.0
        %v1279 = vand.u32 %v821, 2147483648
        %v1280 = vsel %vm1278, %v1279, %v1277
        %v1281 = vrsqrt.pop %v822
        %v1282 = vmul.f32 %v822, %v1281
        %vm1283 = vcmp.eq.f32.partialorder %v822, inf
        %v1284 = vsel %vm1283, %v822, %v1282
        %vm1285 = vcmp.eq.f32.partialorder %v822, 0.0
        %v1286 = vand.u32 %v822, 2147483648
        %v1287 = vsel %vm1285, %v1286, %v1284
        %v1288 = vrsqrt.pop %v823
        %v1289 = vmul.f32 %v823, %v1288
        %vm1290 = vcmp.eq.f32.partialorder %v823, inf
        %v1291 = vsel %vm1290, %v823, %v1289
        %vm1292 = vcmp.eq.f32.partialorder %v823, 0.0
        %v1293 = vand.u32 %v823, 2147483648
        %v1294 = vsel %vm1292, %v1293, %v1291
        %v1295 = vrsqrt.pop %v824
        %v1296 = vmul.f32 %v824, %v1295
        %vm1297 = vcmp.eq.f32.partialorder %v824, inf
        %v1298 = vsel %vm1297, %v824, %v1296
        %vm1299 = vcmp.eq.f32.partialorder %v824, 0.0
        %v1300 = vand.u32 %v824, 2147483648
        %v1301 = vsel %vm1299, %v1300, %v1298
        %v1302 = vrsqrt.pop %v825
        %v1303 = vmul.f32 %v825, %v1302
        %vm1304 = vcmp.eq.f32.partialorder %v825, inf
        %v1305 = vsel %vm1304, %v825, %v1303
        %vm1306 = vcmp.eq.f32.partialorder %v825, 0.0
        %v1307 = vand.u32 %v825, 2147483648
        %v1308 = vsel %vm1306, %v1307, %v1305
        %v1309 = vrsqrt.pop %v826
        %v1310 = vmul.f32 %v826, %v1309
        %vm1311 = vcmp.eq.f32.partialorder %v826, inf
        %v1312 = vsel %vm1311, %v826, %v1310
        %vm1313 = vcmp.eq.f32.partialorder %v826, 0.0
        %v1314 = vand.u32 %v826, 2147483648
        %v1315 = vsel %vm1313, %v1314, %v1312
        %v1316 = vrsqrt.pop %v827
        %v1317 = vmul.f32 %v827, %v1316
        %vm1318 = vcmp.eq.f32.partialorder %v827, inf
        %v1319 = vsel %vm1318, %v827, %v1317
        %vm1320 = vcmp.eq.f32.partialorder %v827, 0.0
        %v1321 = vand.u32 %v827, 2147483648
        %v1322 = vsel %vm1320, %v1321, %v1319
        %v1323 = vrsqrt.pop %v828
        %v1324 = vmul.f32 %v828, %v1323
        %vm1325 = vcmp.eq.f32.partialorder %v828, inf
        %v1326 = vsel %vm1325, %v828, %v1324
        %vm1327 = vcmp.eq.f32.partialorder %v828, 0.0
        %v1328 = vand.u32 %v828, 2147483648
        %v1329 = vsel %vm1327, %v1328, %v1326
        %v1330 = vrsqrt.pop %v829
        %v1331 = vmul.f32 %v829, %v1330
        %vm1332 = vcmp.eq.f32.partialorder %v829, inf
        %v1333 = vsel %vm1332, %v829, %v1331
        %vm1334 = vcmp.eq.f32.partialorder %v829, 0.0
        %v1335 = vand.u32 %v829, 2147483648
        %v1336 = vsel %vm1334, %v1335, %v1333
        %v1337 = vrsqrt.pop %v830
        %v1338 = vmul.f32 %v830, %v1337
        %vm1339 = vcmp.eq.f32.partialorder %v830, inf
        %v1340 = vsel %vm1339, %v830, %v1338
        %vm1341 = vcmp.eq.f32.partialorder %v830, 0.0
        %v1342 = vand.u32 %v830, 2147483648
        %v1343 = vsel %vm1341, %v1342, %v1340
        %v1344 = vrsqrt.pop %v831
        %v1345 = vmul.f32 %v831, %v1344
        %vm1346 = vcmp.eq.f32.partialorder %v831, inf
        %v1347 = vsel %vm1346, %v831, %v1345
        %vm1348 = vcmp.eq.f32.partialorder %v831, 0.0
        %v1349 = vand.u32 %v831, 2147483648
        %v1350 = vsel %vm1348, %v1349, %v1347
        %v1351 = vrsqrt.pop %v832
        %v1352 = vmul.f32 %v832, %v1351
        %vm1353 = vcmp.eq.f32.partialorder %v832, inf
        %v1354 = vsel %vm1353, %v832, %v1352
        %vm1355 = vcmp.eq.f32.partialorder %v832, 0.0
        %v1356 = vand.u32 %v832, 2147483648
        %v1357 = vsel %vm1355, %v1356, %v1354
        %v1358 = vrsqrt.pop %v833
        %v1359 = vmul.f32 %v833, %v1358
        %vm1360 = vcmp.eq.f32.partialorder %v833, inf
        %v1361 = vsel %vm1360, %v833, %v1359
        %vm1362 = vcmp.eq.f32.partialorder %v833, 0.0
        %v1363 = vand.u32 %v833, 2147483648
        %v1364 = vsel %vm1362, %v1363, %v1361
        %v1365 = vrsqrt.pop %v834
        %v1366 = vmul.f32 %v834, %v1365
        %vm1367 = vcmp.eq.f32.partialorder %v834, inf
        %v1368 = vsel %vm1367, %v834, %v1366
        %vm1369 = vcmp.eq.f32.partialorder %v834, 0.0
        %v1370 = vand.u32 %v834, 2147483648
        %v1371 = vsel %vm1369, %v1370, %v1368
        %v1372 = vrsqrt.pop %v835
        %v1373 = vmul.f32 %v835, %v1372
        %vm1374 = vcmp.eq.f32.partialorder %v835, inf
        %v1375 = vsel %vm1374, %v835, %v1373
        %vm1376 = vcmp.eq.f32.partialorder %v835, 0.0
        %v1377 = vand.u32 %v835, 2147483648
        %v1378 = vsel %vm1376, %v1377, %v1375
        %v1379 = vrsqrt.pop %v836
        %v1380 = vmul.f32 %v836, %v1379
        %vm1381 = vcmp.eq.f32.partialorder %v836, inf
        %v1382 = vsel %vm1381, %v836, %v1380
        %vm1383 = vcmp.eq.f32.partialorder %v836, 0.0
        %v1384 = vand.u32 %v836, 2147483648
        %v1385 = vsel %vm1383, %v1384, %v1382
        %v1386 = vrsqrt.pop %v837
        %v1387 = vmul.f32 %v837, %v1386
        %vm1388 = vcmp.eq.f32.partialorder %v837, inf
        %v1389 = vsel %vm1388, %v837, %v1387
        %vm1390 = vcmp.eq.f32.partialorder %v837, 0.0
        %v1391 = vand.u32 %v837, 2147483648
        %v1392 = vsel %vm1390, %v1391, %v1389
        %v1393 = vrsqrt.pop %v838
        %v1394 = vmul.f32 %v838, %v1393
        %vm1395 = vcmp.eq.f32.partialorder %v838, inf
        %v1396 = vsel %vm1395, %v838, %v1394
        %vm1397 = vcmp.eq.f32.partialorder %v838, 0.0
        %v1398 = vand.u32 %v838, 2147483648
        %v1399 = vsel %vm1397, %v1398, %v1396
        %v1400 = vrsqrt.pop %v839
        %v1401 = vmul.f32 %v839, %v1400
        %vm1402 = vcmp.eq.f32.partialorder %v839, inf
        %v1403 = vsel %vm1402, %v839, %v1401
        %vm1404 = vcmp.eq.f32.partialorder %v839, 0.0
        %v1405 = vand.u32 %v839, 2147483648
        %v1406 = vsel %vm1404, %v1405, %v1403
        %v1407 = vrsqrt.pop %v840
        %v1408 = vmul.f32 %v840, %v1407
        %vm1409 = vcmp.eq.f32.partialorder %v840, inf
        %v1410 = vsel %vm1409, %v840, %v1408
        %vm1411 = vcmp.eq.f32.partialorder %v840, 0.0
        %v1412 = vand.u32 %v840, 2147483648
        %v1413 = vsel %vm1411, %v1412, %v1410
        %v1414 = vrsqrt.pop %v841
        %v1415 = vmul.f32 %v841, %v1414
        %vm1416 = vcmp.eq.f32.partialorder %v841, inf
        %v1417 = vsel %vm1416, %v841, %v1415
        %vm1418 = vcmp.eq.f32.partialorder %v841, 0.0
        %v1419 = vand.u32 %v841, 2147483648
        %v1420 = vsel %vm1418, %v1419, %v1417
        %v1421 = vrsqrt.pop %v842
        %v1422 = vmul.f32 %v842, %v1421
        %vm1423 = vcmp.eq.f32.partialorder %v842, inf
        %v1424 = vsel %vm1423, %v842, %v1422
        %vm1425 = vcmp.eq.f32.partialorder %v842, 0.0
        %v1426 = vand.u32 %v842, 2147483648
        %v1427 = vsel %vm1425, %v1426, %v1424
        %v1556 = vand.u32 %v460, 2147483648
        %v1557 = vand.u32 %v462, 2147483648
        %v1558 = vand.u32 %v573, 2147483648
        %v1559 = vand.u32 %v575, 2147483648
        %v1560 = vand.u32 %v464, 2147483648
        %v1561 = vand.u32 %v466, 2147483648
        %v1562 = vand.u32 %v577, 2147483648
        %v1563 = vand.u32 %v579, 2147483648
        %v1564 = vand.u32 %v470, 2147483648
        %v1565 = vand.u32 %v472, 2147483648
        %v1566 = vand.u32 %v583, 2147483648
        %v1567 = vand.u32 %v585, 2147483648
        %v1568 = vand.u32 %v474, 2147483648
        %v1569 = vand.u32 %v476, 2147483648
        %v1570 = vand.u32 %v587, 2147483648
        %v1571 = vand.u32 %v589, 2147483648
        %v1572 = vand.u32 %v480, 2147483648
        %v1573 = vand.u32 %v482, 2147483648
        %v1574 = vand.u32 %v593, 2147483648
        %v1575 = vand.u32 %v595, 2147483648
        %v1576 = vand.u32 %v484, 2147483648
        %v1577 = vand.u32 %v486, 2147483648
        %v1578 = vand.u32 %v597, 2147483648
        %v1579 = vand.u32 %v599, 2147483648
        %v1580 = vand.u32 %v490, 2147483648
        %v1581 = vand.u32 %v492, 2147483648
        %v1582 = vand.u32 %v603, 2147483648
        %v1583 = vand.u32 %v605, 2147483648
        %v1584 = vand.u32 %v494, 2147483648
        %v1585 = vand.u32 %v496, 2147483648
        %v1586 = vand.u32 %v607, 2147483648
        %v1587 = vand.u32 %v609, 2147483648
        %v1588 = vand.u32 %v500, 2147483648
        %v1589 = vand.u32 %v502, 2147483648
        %v1590 = vand.u32 %v613, 2147483648
        %v1591 = vand.u32 %v615, 2147483648
        %v1592 = vand.u32 %v504, 2147483648
        %v1593 = vand.u32 %v506, 2147483648
        %v1594 = vand.u32 %v617, 2147483648
        %v1595 = vand.u32 %v619, 2147483648
        %v1596 = vand.u32 %v510, 2147483648
        %v1597 = vand.u32 %v512, 2147483648
        %v1598 = vand.u32 %v623, 2147483648
        %v1599 = vand.u32 %v625, 2147483648
        %v1600 = vand.u32 %v514, 2147483648
        %v1601 = vand.u32 %v516, 2147483648
        %v1602 = vand.u32 %v627, 2147483648
        %v1603 = vand.u32 %v629, 2147483648
        %v1604 = vand.u32 %v520, 2147483648
        %v1605 = vand.u32 %v522, 2147483648
        %v1606 = vand.u32 %v633, 2147483648
        %v1607 = vand.u32 %v635, 2147483648
        %v1608 = vand.u32 %v524, 2147483648
        %v1609 = vand.u32 %v526, 2147483648
        %v1610 = vand.u32 %v637, 2147483648
        %v1611 = vand.u32 %v639, 2147483648
        %v1612 = vand.u32 %v530, 2147483648
        %v1613 = vand.u32 %v532, 2147483648
        %v1614 = vand.u32 %v643, 2147483648
        %v1615 = vand.u32 %v645, 2147483648
        %v1616 = vand.u32 %v534, 2147483648
        %v1617 = vand.u32 %v536, 2147483648
        %v1618 = vand.u32 %v647, 2147483648
        %v1619 = vand.u32 %v649, 2147483648
        %v1620 = vor.u32 %v986, %v1556
        %v1621 = vor.u32 %v993, %v1557
        %v1622 = vor.u32 %v1000, %v1558
        %v1623 = vor.u32 %v1007, %v1559
        %v1624 = vor.u32 %v1014, %v1560
        %v1625 = vor.u32 %v1021, %v1561
        %v1626 = vor.u32 %v1028, %v1562
        %v1627 = vor.u32 %v1035, %v1563
        %v1628 = vor.u32 %v1042, %v1564
        %v1629 = vor.u32 %v1049, %v1565
        %v1630 = vor.u32 %v1056, %v1566
        %v1631 = vor.u32 %v1063, %v1567
        %v1632 = vor.u32 %v1070, %v1568
        %v1633 = vor.u32 %v1077, %v1569
        %v1634 = vor.u32 %v1084, %v1570
        %v1635 = vor.u32 %v1091, %v1571
        %v1636 = vor.u32 %v1098, %v1572
        %v1637 = vor.u32 %v1105, %v1573
        %v1638 = vor.u32 %v1112, %v1574
        %v1639 = vor.u32 %v1119, %v1575
        %v1640 = vor.u32 %v1126, %v1576
        %v1641 = vor.u32 %v1133, %v1577
        %v1642 = vor.u32 %v1140, %v1578
        %v1643 = vor.u32 %v1147, %v1579
        %v1644 = vor.u32 %v1154, %v1580
        %v1645 = vor.u32 %v1161, %v1581
        %v1646 = vor.u32 %v1168, %v1582
        %v1647 = vor.u32 %v1175, %v1583
        %v1648 = vor.u32 %v1182, %v1584
        %v1649 = vor.u32 %v1189, %v1585
        %v1650 = vor.u32 %v1196, %v1586
        %v1651 = vor.u32 %v1203, %v1587
        %v1652 = vor.u32 %v1210, %v1588
        %v1653 = vor.u32 %v1217, %v1589
        %v1654 = vor.u32 %v1224, %v1590
        %v1655 = vor.u32 %v1231, %v1591
        %v1656 = vor.u32 %v1238, %v1592
        %v1657 = vor.u32 %v1245, %v1593
        %v1658 = vor.u32 %v1252, %v1594
        %v1659 = vor.u32 %v1259, %v1595
        %v1660 = vor.u32 %v1266, %v1596
        %v1661 = vor.u32 %v1273, %v1597
        %v1662 = vor.u32 %v1280, %v1598
        %v1663 = vor.u32 %v1287, %v1599
        %v1664 = vor.u32 %v1294, %v1600
        %v1665 = vor.u32 %v1301, %v1601
        %v1666 = vor.u32 %v1308, %v1602
        %v1667 = vor.u32 %v1315, %v1603
        %v1668 = vor.u32 %v1322, %v1604
        %v1669 = vor.u32 %v1329, %v1605
        %v1670 = vor.u32 %v1336, %v1606
        %v1671 = vor.u32 %v1343, %v1607
        %v1672 = vor.u32 %v1350, %v1608
        %v1673 = vor.u32 %v1357, %v1609
        %v1674 = vor.u32 %v1364, %v1610
        %v1675 = vor.u32 %v1371, %v1611
        %v1676 = vor.u32 %v1378, %v1612
        %v1677 = vor.u32 %v1385, %v1613
        %v1678 = vor.u32 %v1392, %v1614
        %v1679 = vor.u32 %v1399, %v1615
        %v1680 = vor.u32 %v1406, %v1616
        %v1681 = vor.u32 %v1413, %v1617
        %v1682 = vor.u32 %v1420, %v1618
        %v1683 = vor.u32 %v1427, %v1619
        %v1748 = vsel %vm651, 0.0, %v1620
        %v1749 = vsel %vm652, 0.0, %v1621
        %v1750 = vsel %vm653, 0.0, %v1622
        %v1751 = vsel %vm654, 0.0, %v1623
        %v1752 = vsel %vm655, 0.0, %v1624
        %v1753 = vsel %vm656, 0.0, %v1625
        %v1754 = vsel %vm657, 0.0, %v1626
        %v1755 = vsel %vm658, 0.0, %v1627
        %v1756 = vsel %vm659, 0.0, %v1628
        %v1757 = vsel %vm660, 0.0, %v1629
        %v1758 = vsel %vm661, 0.0, %v1630
        %v1759 = vsel %vm662, 0.0, %v1631
        %v1760 = vsel %vm663, 0.0, %v1632
        %v1761 = vsel %vm664, 0.0, %v1633
        %v1762 = vsel %vm665, 0.0, %v1634
        %v1763 = vsel %vm666, 0.0, %v1635
        %v1764 = vsel %vm667, 0.0, %v1636
        %v1765 = vsel %vm668, 0.0, %v1637
        %v1766 = vsel %vm669, 0.0, %v1638
        %v1767 = vsel %vm670, 0.0, %v1639
        %v1768 = vsel %vm671, 0.0, %v1640
        %v1769 = vsel %vm672, 0.0, %v1641
        %v1770 = vsel %vm673, 0.0, %v1642
        %v1771 = vsel %vm674, 0.0, %v1643
        %v1772 = vsel %vm675, 0.0, %v1644
        %v1773 = vsel %vm676, 0.0, %v1645
        %v1774 = vsel %vm677, 0.0, %v1646
        %v1775 = vsel %vm678, 0.0, %v1647
        %v1776 = vsel %vm679, 0.0, %v1648
        %v1777 = vsel %vm680, 0.0, %v1649
        %v1778 = vsel %vm681, 0.0, %v1650
        %v1779 = vsel %vm682, 0.0, %v1651
        %v1780 = vsel %vm683, 0.0, %v1652
        %v1781 = vsel %vm684, 0.0, %v1653
        %v1782 = vsel %vm685, 0.0, %v1654
        %v1783 = vsel %vm686, 0.0, %v1655
        %v1784 = vsel %vm687, 0.0, %v1656
        %v1785 = vsel %vm688, 0.0, %v1657
        %v1786 = vsel %vm689, 0.0, %v1658
        %v1787 = vsel %vm690, 0.0, %v1659
        %v1788 = vsel %vm691, 0.0, %v1660
        %v1789 = vsel %vm692, 0.0, %v1661
        %v1790 = vsel %vm693, 0.0, %v1662
        %v1791 = vsel %vm694, 0.0, %v1663
        %v1792 = vsel %vm695, 0.0, %v1664
        %v1793 = vsel %vm696, 0.0, %v1665
        %v1794 = vsel %vm697, 0.0, %v1666
        %v1795 = vsel %vm698, 0.0, %v1667
        %v1796 = vsel %vm699, 0.0, %v1668
        %v1797 = vsel %vm700, 0.0, %v1669
        %v1798 = vsel %vm701, 0.0, %v1670
        %v1799 = vsel %vm702, 0.0, %v1671
        %v1800 = vsel %vm703, 0.0, %v1672
        %v1801 = vsel %vm704, 0.0, %v1673
        %v1802 = vsel %vm705, 0.0, %v1674
        %v1803 = vsel %vm706, 0.0, %v1675
        %v1804 = vsel %vm707, 0.0, %v1676
        %v1805 = vsel %vm708, 0.0, %v1677
        %v1806 = vsel %vm709, 0.0, %v1678
        %v1807 = vsel %vm710, 0.0, %v1679
        %v1808 = vsel %vm711, 0.0, %v1680
        %v1809 = vsel %vm712, 0.0, %v1681
        %v1810 = vsel %vm713, 0.0, %v1682
        %v1811 = vsel %vm714, 0.0, %v1683
        %v1812 = vld [vmem:[%s1] sm:$0xff]
        %v1813 = vld [vmem:[%s1 + $0x8] sm:$0xff]
        %v1814 = vld [vmem:[%s1 + $0x10] sm:$0xff]
        %v1815 = vld [vmem:[%s1 + $0x18] sm:$0xff]
        %v1816 = vld [vmem:[%s1 + $0x20] sm:$0xff]
        %v1817 = vld [vmem:[%s1 + $0x28] sm:$0xff]
        %v1818 = vld [vmem:[%s1 + $0x30] sm:$0xff]
        %v1819 = vld [vmem:[%s1 + $0x38] sm:$0xff]
        %v1820 = vld [vmem:[%s1 + $0x40] sm:$0xff]
        %v1821 = vld [vmem:[%s1 + $0x48] sm:$0xff]
        %v1822 = vld [vmem:[%s1 + $0x50] sm:$0xff]
        %v1823 = vld [vmem:[%s1 + $0x58] sm:$0xff]
        %v1824 = vld [vmem:[%s1 + $0x60] sm:$0xff]
        %v1825 = vld [vmem:[%s1 + $0x68] sm:$0xff]
        %v1826 = vld [vmem:[%s1 + $0x70] sm:$0xff]
        %v1827 = vld [vmem:[%s1 + $0x78] sm:$0xff]
        %v1828 = vld [vmem:[%s1 + $0x80] sm:$0xff]
        %v1829 = vld [vmem:[%s1 + $0x88] sm:$0xff]
        %v1830 = vld [vmem:[%s1 + $0x90] sm:$0xff]
        %v1831 = vld [vmem:[%s1 + $0x98] sm:$0xff]
        %v1832 = vld [vmem:[%s1 + $0xa0] sm:$0xff]
        %v1833 = vld [vmem:[%s1 + $0xa8] sm:$0xff]
        %v1834 = vld [vmem:[%s1 + $0xb0] sm:$0xff]
        %v1835 = vld [vmem:[%s1 + $0xb8] sm:$0xff]
        %v1836 = vld [vmem:[%s1 + $0xc0] sm:$0xff]
        %v1837 = vld [vmem:[%s1 + $0xc8] sm:$0xff]
        %v1838 = vld [vmem:[%s1 + $0xd0] sm:$0xff]
        %v1839 = vld [vmem:[%s1 + $0xd8] sm:$0xff]
        %v1840 = vld [vmem:[%s1 + $0xe0] sm:$0xff]
        %v1841 = vld [vmem:[%s1 + $0xe8] sm:$0xff]
        %v1842 = vld [vmem:[%s1 + $0xf0] sm:$0xff]
        %v1843 = vld [vmem:[%s1 + $0xf8] sm:$0xff]
        %v1844 = vunpack.c.l.bf16 %v1812
        %v1845 = vunpack.c.h.bf16 %v1812
        %v1846 = vunpack.c.l.bf16 %v1813
        %v1847 = vunpack.c.h.bf16 %v1813
        %v1848 = vunpack.c.l.bf16 %v1814
        %v1849 = vunpack.c.h.bf16 %v1814
        %v1850 = vunpack.c.l.bf16 %v1815
        %v1851 = vunpack.c.h.bf16 %v1815
        %v1852 = vunpack.c.l.bf16 %v1816
        %v1853 = vunpack.c.h.bf16 %v1816
        %v1854 = vunpack.c.l.bf16 %v1817
        %v1855 = vunpack.c.h.bf16 %v1817
        %v1856 = vunpack.c.l.bf16 %v1818
        %v1857 = vunpack.c.h.bf16 %v1818
        %v1858 = vunpack.c.l.bf16 %v1819
        %v1859 = vunpack.c.h.bf16 %v1819
        %v1860 = vunpack.c.l.bf16 %v1820
        %v1861 = vunpack.c.h.bf16 %v1820
        %v1862 = vunpack.c.l.bf16 %v1821
        %v1863 = vunpack.c.h.bf16 %v1821
        %v1864 = vunpack.c.l.bf16 %v1822
        %v1865 = vunpack.c.h.bf16 %v1822
        %v1866 = vunpack.c.l.bf16 %v1823
        %v1867 = vunpack.c.h.bf16 %v1823
        %v1868 = vunpack.c.l.bf16 %v1824
        %v1869 = vunpack.c.h.bf16 %v1824
        %v1870 = vunpack.c.l.bf16 %v1825
        %v1871 = vunpack.c.h.bf16 %v1825
        %v1872 = vunpack.c.l.bf16 %v1826
        %v1873 = vunpack.c.h.bf16 %v1826
        %v1874 = vunpack.c.l.bf16 %v1827
        %v1875 = vunpack.c.h.bf16 %v1827
        %v1876 = vunpack.c.l.bf16 %v1828
        %v1877 = vunpack.c.h.bf16 %v1828
        %v1878 = vunpack.c.l.bf16 %v1829
        %v1879 = vunpack.c.h.bf16 %v1829
        %v1880 = vunpack.c.l.bf16 %v1830
        %v1881 = vunpack.c.h.bf16 %v1830
        %v1882 = vunpack.c.l.bf16 %v1831
        %v1883 = vunpack.c.h.bf16 %v1831
        %v1884 = vunpack.c.l.bf16 %v1832
        %v1885 = vunpack.c.h.bf16 %v1832
        %v1886 = vunpack.c.l.bf16 %v1833
        %v1887 = vunpack.c.h.bf16 %v1833
        %v1888 = vunpack.c.l.bf16 %v1834
        %v1889 = vunpack.c.h.bf16 %v1834
        %v1890 = vunpack.c.l.bf16 %v1835
        %v1891 = vunpack.c.h.bf16 %v1835
        %v1892 = vunpack.c.l.bf16 %v1836
        %v1893 = vunpack.c.h.bf16 %v1836
        %v1894 = vunpack.c.l.bf16 %v1837
        %v1895 = vunpack.c.h.bf16 %v1837
        %v1896 = vunpack.c.l.bf16 %v1838
        %v1897 = vunpack.c.h.bf16 %v1838
        %v1898 = vunpack.c.l.bf16 %v1839
        %v1899 = vunpack.c.h.bf16 %v1839
        %v1900 = vunpack.c.l.bf16 %v1840
        %v1901 = vunpack.c.h.bf16 %v1840
        %v1902 = vunpack.c.l.bf16 %v1841
        %v1903 = vunpack.c.h.bf16 %v1841
        %v1904 = vunpack.c.l.bf16 %v1842
        %v1905 = vunpack.c.h.bf16 %v1842
        %v1906 = vunpack.c.l.bf16 %v1843
        %v1907 = vunpack.c.h.bf16 %v1843
        %v1908 = vmul.f32 %v1748, %v1844
        %v1909 = vmul.f32 %v1749, %v1845
        %v1910 = vmul.f32 %v1750, %v1846
        %v1911 = vmul.f32 %v1751, %v1847
        %v1912 = vmul.f32 %v1752, %v1848
        %v1913 = vmul.f32 %v1753, %v1849
        %v1914 = vmul.f32 %v1754, %v1850
        %v1915 = vmul.f32 %v1755, %v1851
        %v1916 = vmul.f32 %v1756, %v1852
        %v1917 = vmul.f32 %v1757, %v1853
        %v1918 = vmul.f32 %v1758, %v1854
        %v1919 = vmul.f32 %v1759, %v1855
        %v1920 = vmul.f32 %v1760, %v1856
        %v1921 = vmul.f32 %v1761, %v1857
        %v1922 = vmul.f32 %v1762, %v1858
        %v1923 = vmul.f32 %v1763, %v1859
        %v1924 = vmul.f32 %v1764, %v1860
        %v1925 = vmul.f32 %v1765, %v1861
        %v1926 = vmul.f32 %v1766, %v1862
        %v1927 = vmul.f32 %v1767, %v1863
        %v1928 = vmul.f32 %v1768, %v1864
        %v1929 = vmul.f32 %v1769, %v1865
        %v1930 = vmul.f32 %v1770, %v1866
        %v1931 = vmul.f32 %v1771, %v1867
        %v1932 = vmul.f32 %v1772, %v1868
        %v1933 = vmul.f32 %v1773, %v1869
        %v1934 = vmul.f32 %v1774, %v1870
        %v1935 = vmul.f32 %v1775, %v1871
        %v1936 = vmul.f32 %v1776, %v1872
        %v1937 = vmul.f32 %v1777, %v1873
        %v1938 = vmul.f32 %v1778, %v1874
        %v1939 = vmul.f32 %v1779, %v1875
        %v1940 = vmul.f32 %v1780, %v1876
        %v1941 = vmul.f32 %v1781, %v1877
        %v1942 = vmul.f32 %v1782, %v1878
        %v1943 = vmul.f32 %v1783, %v1879
        %v1944 = vmul.f32 %v1784, %v1880
        %v1945 = vmul.f32 %v1785, %v1881
        %v1946 = vmul.f32 %v1786, %v1882
        %v1947 = vmul.f32 %v1787, %v1883
        %v1948 = vmul.f32 %v1788, %v1884
        %v1949 = vmul.f32 %v1789, %v1885
        %v1950 = vmul.f32 %v1790, %v1886
        %v1951 = vmul.f32 %v1791, %v1887
        %v1952 = vmul.f32 %v1792, %v1888
        %v1953 = vmul.f32 %v1793, %v1889
        %v1954 = vmul.f32 %v1794, %v1890
        %v1955 = vmul.f32 %v1795, %v1891
        %v1956 = vmul.f32 %v1796, %v1892
        %v1957 = vmul.f32 %v1797, %v1893
        %v1958 = vmul.f32 %v1798, %v1894
        %v1959 = vmul.f32 %v1799, %v1895
        %v1960 = vmul.f32 %v1800, %v1896
        %v1961 = vmul.f32 %v1801, %v1897
        %v1962 = vmul.f32 %v1802, %v1898
        %v1963 = vmul.f32 %v1803, %v1899
        %v1964 = vmul.f32 %v1804, %v1900
        %v1965 = vmul.f32 %v1805, %v1901
        %v1966 = vmul.f32 %v1806, %v1902
        %v1967 = vmul.f32 %v1807, %v1903
        %v1968 = vmul.f32 %v1808, %v1904
        %v1969 = vmul.f32 %v1809, %v1905
        %v1970 = vmul.f32 %v1810, %v1906
        %v1971 = vmul.f32 %v1811, %v1907
        %v1972 = vadd.f32 %v1908, %v1909
        %v1973 = vadd.f32 %v1972, %v1910
        %v1974 = vadd.f32 %v1973, %v1911
        %v1975 = vadd.f32 %v1974, %v1912
        %v1976 = vadd.f32 %v1975, %v1913
        %v1977 = vadd.f32 %v1976, %v1914
        %v1978 = vadd.f32 %v1977, %v1915
        %v1979 = vadd.f32 %v1978, %v1916
        %v1980 = vadd.f32 %v1979, %v1917
        %v1981 = vadd.f32 %v1980, %v1918
        %v1982 = vadd.f32 %v1981, %v1919
        %v1983 = vadd.f32 %v1982, %v1920
        %v1984 = vadd.f32 %v1983, %v1921
        %v1985 = vadd.f32 %v1984, %v1922
        %v1986 = vadd.f32 %v1985, %v1923
        %v1987 = vadd.f32 %v1986, %v1924
        %v1988 = vadd.f32 %v1987, %v1925
        %v1989 = vadd.f32 %v1988, %v1926
        %v1990 = vadd.f32 %v1989, %v1927
        %v1991 = vadd.f32 %v1990, %v1928
        %v1992 = vadd.f32 %v1991, %v1929
        %v1993 = vadd.f32 %v1992, %v1930
        %v1994 = vadd.f32 %v1993, %v1931
        %v1995 = vadd.f32 %v1994, %v1932
        %v1996 = vadd.f32 %v1995, %v1933
        %v1997 = vadd.f32 %v1996, %v1934
        %v1998 = vadd.f32 %v1997, %v1935
        %v1999 = vadd.f32 %v1998, %v1936
        %v2000 = vadd.f32 %v1999, %v1937
        %v2001 = vadd.f32 %v2000, %v1938
        %v2002 = vadd.f32 %v2001, %v1939
        %v2003 = vadd.f32 %v2002, %v1940
        %v2004 = vadd.f32 %v2003, %v1941
        %v2005 = vadd.f32 %v2004, %v1942
        %v2006 = vadd.f32 %v2005, %v1943
        %v2007 = vadd.f32 %v2006, %v1944
        %v2008 = vadd.f32 %v2007, %v1945
        %v2009 = vadd.f32 %v2008, %v1946
        %v2010 = vadd.f32 %v2009, %v1947
        %v2011 = vadd.f32 %v2010, %v1948
        %v2012 = vadd.f32 %v2011, %v1949
        %v2013 = vadd.f32 %v2012, %v1950
        %v2014 = vadd.f32 %v2013, %v1951
        %v2015 = vadd.f32 %v2014, %v1952
        %v2016 = vadd.f32 %v2015, %v1953
        %v2017 = vadd.f32 %v2016, %v1954
        %v2018 = vadd.f32 %v2017, %v1955
        %v2019 = vadd.f32 %v2018, %v1956
        %v2020 = vadd.f32 %v2019, %v1957
        %v2021 = vadd.f32 %v2020, %v1958
        %v2022 = vadd.f32 %v2021, %v1959
        %v2023 = vadd.f32 %v2022, %v1960
        %v2024 = vadd.f32 %v2023, %v1961
        %v2025 = vadd.f32 %v2024, %v1962
        %v2026 = vadd.f32 %v2025, %v1963
        %v2027 = vadd.f32 %v2026, %v1964
        %v2028 = vadd.f32 %v2027, %v1965
        %v2029 = vadd.f32 %v2028, %v1966
        %v2030 = vadd.f32 %v2029, %v1967
        %v2031 = vadd.f32 %v2030, %v1968
        %v2032 = vadd.f32 %v2031, %v1969
        %v2033 = vadd.f32 %v2032, %v1970
        %v2034 = vadd.f32 %v2033, %v1971
        %2035 = vadd.xlane.f32.xlu0 %v2034
        %v2036 = vpop.xlane.xlu0 %2035
        %v2037 = vrot.slane %v2036, 4
        %v2038 = vadd.f32 %v2036, %v2037
        %v2039 = vrot.slane %v2038, 2
        %v2040 = vadd.f32 %v2038, %v2039
        %v2041 = vrot.slane %v2040, 1
        %v2042 = vadd.f32 %v2040, %v2041
        %s2043 = vtos %v2042
        %s2044 = sadd.f32 %s2043, 0.0
        %s2045 = scalar_lea.vmem %s1, 1024
        %v2046 = vld [vmem:[%s2045] sm:$0xff]
        %v2047 = vld [vmem:[%s2045 + $0x8] sm:$0xff]
        %v2048 = vld [vmem:[%s2045 + $0x10] sm:$0xff]
        %v2049 = vld [vmem:[%s2045 + $0x18] sm:$0xff]
        %v2050 = vld [vmem:[%s2045 + $0x20] sm:$0xff]
        %v2051 = vld [vmem:[%s2045 + $0x28] sm:$0xff]
        %v2052 = vld [vmem:[%s2045 + $0x30] sm:$0xff]
        %v2053 = vld [vmem:[%s2045 + $0x38] sm:$0xff]
        %v2054 = vld [vmem:[%s2045 + $0x40] sm:$0xff]
        %v2055 = vld [vmem:[%s2045 + $0x48] sm:$0xff]
        %v2056 = vld [vmem:[%s2045 + $0x50] sm:$0xff]
        %v2057 = vld [vmem:[%s2045 + $0x58] sm:$0xff]
        %v2058 = vld [vmem:[%s2045 + $0x60] sm:$0xff]
        %v2059 = vld [vmem:[%s2045 + $0x68] sm:$0xff]
        %v2060 = vld [vmem:[%s2045 + $0x70] sm:$0xff]
        %v2061 = vld [vmem:[%s2045 + $0x78] sm:$0xff]
        %v2062 = vld [vmem:[%s2045 + $0x80] sm:$0xff]
        %v2063 = vld [vmem:[%s2045 + $0x88] sm:$0xff]
        %v2064 = vld [vmem:[%s2045 + $0x90] sm:$0xff]
        %v2065 = vld [vmem:[%s2045 + $0x98] sm:$0xff]
        %v2066 = vld [vmem:[%s2045 + $0xa0] sm:$0xff]
        %v2067 = vld [vmem:[%s2045 + $0xa8] sm:$0xff]
        %v2068 = vld [vmem:[%s2045 + $0xb0] sm:$0xff]
        %v2069 = vld [vmem:[%s2045 + $0xb8] sm:$0xff]
        %v2070 = vld [vmem:[%s2045 + $0xc0] sm:$0xff]
        %v2071 = vld [vmem:[%s2045 + $0xc8] sm:$0xff]
        %v2072 = vld [vmem:[%s2045 + $0xd0] sm:$0xff]
        %v2073 = vld [vmem:[%s2045 + $0xd8] sm:$0xff]
        %v2074 = vld [vmem:[%s2045 + $0xe0] sm:$0xff]
        %v2075 = vld [vmem:[%s2045 + $0xe8] sm:$0xff]
        %v2076 = vld [vmem:[%s2045 + $0xf0] sm:$0xff]
        %v2077 = vld [vmem:[%s2045 + $0xf8] sm:$0xff]
        %v2078 = vunpack.c.l.bf16 %v2046
        %v2079 = vunpack.c.h.bf16 %v2046
        %v2080 = vunpack.c.l.bf16 %v2047
        %v2081 = vunpack.c.h.bf16 %v2047
        %v2082 = vunpack.c.l.bf16 %v2048
        %v2083 = vunpack.c.h.bf16 %v2048
        %v2084 = vunpack.c.l.bf16 %v2049
        %v2085 = vunpack.c.h.bf16 %v2049
        %v2086 = vunpack.c.l.bf16 %v2050
        %v2087 = vunpack.c.h.bf16 %v2050
        %v2088 = vunpack.c.l.bf16 %v2051
        %v2089 = vunpack.c.h.bf16 %v2051
        %v2090 = vunpack.c.l.bf16 %v2052
        %v2091 = vunpack.c.h.bf16 %v2052
        %v2092 = vunpack.c.l.bf16 %v2053
        %v2093 = vunpack.c.h.bf16 %v2053
        %v2094 = vunpack.c.l.bf16 %v2054
        %v2095 = vunpack.c.h.bf16 %v2054
        %v2096 = vunpack.c.l.bf16 %v2055
        %v2097 = vunpack.c.h.bf16 %v2055
        %v2098 = vunpack.c.l.bf16 %v2056
        %v2099 = vunpack.c.h.bf16 %v2056
        %v2100 = vunpack.c.l.bf16 %v2057
        %v2101 = vunpack.c.h.bf16 %v2057
        %v2102 = vunpack.c.l.bf16 %v2058
        %v2103 = vunpack.c.h.bf16 %v2058
        %v2104 = vunpack.c.l.bf16 %v2059
        %v2105 = vunpack.c.h.bf16 %v2059
        %v2106 = vunpack.c.l.bf16 %v2060
        %v2107 = vunpack.c.h.bf16 %v2060
        %v2108 = vunpack.c.l.bf16 %v2061
        %v2109 = vunpack.c.h.bf16 %v2061
        %v2110 = vunpack.c.l.bf16 %v2062
        %v2111 = vunpack.c.h.bf16 %v2062
        %v2112 = vunpack.c.l.bf16 %v2063
        %v2113 = vunpack.c.h.bf16 %v2063
        %v2114 = vunpack.c.l.bf16 %v2064
        %v2115 = vunpack.c.h.bf16 %v2064
        %v2116 = vunpack.c.l.bf16 %v2065
        %v2117 = vunpack.c.h.bf16 %v2065
        %v2118 = vunpack.c.l.bf16 %v2066
        %v2119 = vunpack.c.h.bf16 %v2066
        %v2120 = vunpack.c.l.bf16 %v2067
        %v2121 = vunpack.c.h.bf16 %v2067
        %v2122 = vunpack.c.l.bf16 %v2068
        %v2123 = vunpack.c.h.bf16 %v2068
        %v2124 = vunpack.c.l.bf16 %v2069
        %v2125 = vunpack.c.h.bf16 %v2069
        %v2126 = vunpack.c.l.bf16 %v2070
        %v2127 = vunpack.c.h.bf16 %v2070
        %v2128 = vunpack.c.l.bf16 %v2071
        %v2129 = vunpack.c.h.bf16 %v2071
        %v2130 = vunpack.c.l.bf16 %v2072
        %v2131 = vunpack.c.h.bf16 %v2072
        %v2132 = vunpack.c.l.bf16 %v2073
        %v2133 = vunpack.c.h.bf16 %v2073
        %v2134 = vunpack.c.l.bf16 %v2074
        %v2135 = vunpack.c.h.bf16 %v2074
        %v2136 = vunpack.c.l.bf16 %v2075
        %v2137 = vunpack.c.h.bf16 %v2075
        %v2138 = vunpack.c.l.bf16 %v2076
        %v2139 = vunpack.c.h.bf16 %v2076
        %v2140 = vunpack.c.l.bf16 %v2077
        %v2141 = vunpack.c.h.bf16 %v2077
        %v2142 = vmul.f32 %v1748, %v2078
        %v2143 = vmul.f32 %v1749, %v2079
        %v2144 = vmul.f32 %v1750, %v2080
        %v2145 = vmul.f32 %v1751, %v2081
        %v2146 = vmul.f32 %v1752, %v2082
        %v2147 = vmul.f32 %v1753, %v2083
        %v2148 = vmul.f32 %v1754, %v2084
        %v2149 = vmul.f32 %v1755, %v2085
        %v2150 = vmul.f32 %v1756, %v2086
        %v2151 = vmul.f32 %v1757, %v2087
        %v2152 = vmul.f32 %v1758, %v2088
        %v2153 = vmul.f32 %v1759, %v2089
        %v2154 = vmul.f32 %v1760, %v2090
        %v2155 = vmul.f32 %v1761, %v2091
        %v2156 = vmul.f32 %v1762, %v2092
        %v2157 = vmul.f32 %v1763, %v2093
        %v2158 = vmul.f32 %v1764, %v2094
        %v2159 = vmul.f32 %v1765, %v2095
        %v2160 = vmul.f32 %v1766, %v2096
        %v2161 = vmul.f32 %v1767, %v2097
        %v2162 = vmul.f32 %v1768, %v2098
        %v2163 = vmul.f32 %v1769, %v2099
        %v2164 = vmul.f32 %v1770, %v2100
        %v2165 = vmul.f32 %v1771, %v2101
        %v2166 = vmul.f32 %v1772, %v2102
        %v2167 = vmul.f32 %v1773, %v2103
        %v2168 = vmul.f32 %v1774, %v2104
        %v2169 = vmul.f32 %v1775, %v2105
        %v2170 = vmul.f32 %v1776, %v2106
        %v2171 = vmul.f32 %v1777, %v2107
        %v2172 = vmul.f32 %v1778, %v2108
        %v2173 = vmul.f32 %v1779, %v2109
        %v2174 = vmul.f32 %v1780, %v2110
        %v2175 = vmul.f32 %v1781, %v2111
        %v2176 = vmul.f32 %v1782, %v2112
        %v2177 = vmul.f32 %v1783, %v2113
        %v2178 = vmul.f32 %v1784, %v2114
        %v2179 = vmul.f32 %v1785, %v2115
        %v2180 = vmul.f32 %v1786, %v2116
        %v2181 = vmul.f32 %v1787, %v2117
        %v2182 = vmul.f32 %v1788, %v2118
        %v2183 = vmul.f32 %v1789, %v2119
        %v2184 = vmul.f32 %v1790, %v2120
        %v2185 = vmul.f32 %v1791, %v2121
        %v2186 = vmul.f32 %v1792, %v2122
        %v2187 = vmul.f32 %v1793, %v2123
        %v2188 = vmul.f32 %v1794, %v2124
        %v2189 = vmul.f32 %v1795, %v2125
        %v2190 = vmul.f32 %v1796, %v2126
        %v2191 = vmul.f32 %v1797, %v2127
        %v2192 = vmul.f32 %v1798, %v2128
        %v2193 = vmul.f32 %v1799, %v2129
        %v2194 = vmul.f32 %v1800, %v2130
        %v2195 = vmul.f32 %v1801, %v2131
        %v2196 = vmul.f32 %v1802, %v2132
        %v2197 = vmul.f32 %v1803, %v2133
        %v2198 = vmul.f32 %v1804, %v2134
        %v2199 = vmul.f32 %v1805, %v2135
        %v2200 = vmul.f32 %v1806, %v2136
        %v2201 = vmul.f32 %v1807, %v2137
        %v2202 = vmul.f32 %v1808, %v2138
        %v2203 = vmul.f32 %v1809, %v2139
        %v2204 = vmul.f32 %v1810, %v2140
        %v2205 = vmul.f32 %v1811, %v2141
        %v2206 = vadd.f32 %v2142, %v2143
        %v2207 = vadd.f32 %v2206, %v2144
        %v2208 = vadd.f32 %v2207, %v2145
        %v2209 = vadd.f32 %v2208, %v2146
        %v2210 = vadd.f32 %v2209, %v2147
        %v2211 = vadd.f32 %v2210, %v2148
        %v2212 = vadd.f32 %v2211, %v2149
        %v2213 = vadd.f32 %v2212, %v2150
        %v2214 = vadd.f32 %v2213, %v2151
        %v2215 = vadd.f32 %v2214, %v2152
        %v2216 = vadd.f32 %v2215, %v2153
        %v2217 = vadd.f32 %v2216, %v2154
        %v2218 = vadd.f32 %v2217, %v2155
        %v2219 = vadd.f32 %v2218, %v2156
        %v2220 = vadd.f32 %v2219, %v2157
        %v2221 = vadd.f32 %v2220, %v2158
        %v2222 = vadd.f32 %v2221, %v2159
        %v2223 = vadd.f32 %v2222, %v2160
        %v2224 = vadd.f32 %v2223, %v2161
        %v2225 = vadd.f32 %v2224, %v2162
        %v2226 = vadd.f32 %v2225, %v2163
        %v2227 = vadd.f32 %v2226, %v2164
        %v2228 = vadd.f32 %v2227, %v2165
        %v2229 = vadd.f32 %v2228, %v2166
        %v2230 = vadd.f32 %v2229, %v2167
        %v2231 = vadd.f32 %v2230, %v2168
        %v2232 = vadd.f32 %v2231, %v2169
        %v2233 = vadd.f32 %v2232, %v2170
        %v2234 = vadd.f32 %v2233, %v2171
        %v2235 = vadd.f32 %v2234, %v2172
        %v2236 = vadd.f32 %v2235, %v2173
        %v2237 = vadd.f32 %v2236, %v2174
        %v2238 = vadd.f32 %v2237, %v2175
        %v2239 = vadd.f32 %v2238, %v2176
        %v2240 = vadd.f32 %v2239, %v2177
        %v2241 = vadd.f32 %v2240, %v2178
        %v2242 = vadd.f32 %v2241, %v2179
        %v2243 = vadd.f32 %v2242, %v2180
        %v2244 = vadd.f32 %v2243, %v2181
        %v2245 = vadd.f32 %v2244, %v2182
        %v2246 = vadd.f32 %v2245, %v2183
        %v2247 = vadd.f32 %v2246, %v2184
        %v2248 = vadd.f32 %v2247, %v2185
        %v2249 = vadd.f32 %v2248, %v2186
        %v2250 = vadd.f32 %v2249, %v2187
        %v2251 = vadd.f32 %v2250, %v2188
        %v2252 = vadd.f32 %v2251, %v2189
        %v2253 = vadd.f32 %v2252, %v2190
        %v2254 = vadd.f32 %v2253, %v2191
        %v2255 = vadd.f32 %v2254, %v2192
        %v2256 = vadd.f32 %v2255, %v2193
        %v2257 = vadd.f32 %v2256, %v2194
        %v2258 = vadd.f32 %v2257, %v2195
        %v2259 = vadd.f32 %v2258, %v2196
        %v2260 = vadd.f32 %v2259, %v2197
        %v2261 = vadd.f32 %v2260, %v2198
        %v2262 = vadd.f32 %v2261, %v2199
        %v2263 = vadd.f32 %v2262, %v2200
        %v2264 = vadd.f32 %v2263, %v2201
        %v2265 = vadd.f32 %v2264, %v2202
        %v2266 = vadd.f32 %v2265, %v2203
        %v2267 = vadd.f32 %v2266, %v2204
        %v2268 = vadd.f32 %v2267, %v2205
        %2269 = vadd.xlane.f32.xlu0 %v2268
        %v2270 = vpop.xlane.xlu0 %2269
        %v2271 = vrot.slane %v2270, 4
        %v2272 = vadd.f32 %v2270, %v2271
        %v2273 = vrot.slane %v2272, 2
        %v2274 = vadd.f32 %v2272, %v2273
        %v2275 = vrot.slane %v2274, 1
        %v2276 = vadd.f32 %v2274, %v2275
        %s2277 = vtos %v2276
        %s2278 = sadd.f32 %s2277, 0.0
        %s2279 = scalar_lea.vmem %s1, 2048
        %v2280 = vld [vmem:[%s2279] sm:$0xff]
        %v2281 = vld [vmem:[%s2279 + $0x8] sm:$0xff]
        %v2282 = vld [vmem:[%s2279 + $0x10] sm:$0xff]
        %v2283 = vld [vmem:[%s2279 + $0x18] sm:$0xff]
        %v2284 = vld [vmem:[%s2279 + $0x20] sm:$0xff]
        %v2285 = vld [vmem:[%s2279 + $0x28] sm:$0xff]
        %v2286 = vld [vmem:[%s2279 + $0x30] sm:$0xff]
        %v2287 = vld [vmem:[%s2279 + $0x38] sm:$0xff]
        %v2288 = vld [vmem:[%s2279 + $0x40] sm:$0xff]
        %v2289 = vld [vmem:[%s2279 + $0x48] sm:$0xff]
        %v2290 = vld [vmem:[%s2279 + $0x50] sm:$0xff]
        %v2291 = vld [vmem:[%s2279 + $0x58] sm:$0xff]
        %v2292 = vld [vmem:[%s2279 + $0x60] sm:$0xff]
        %v2293 = vld [vmem:[%s2279 + $0x68] sm:$0xff]
        %v2294 = vld [vmem:[%s2279 + $0x70] sm:$0xff]
        %v2295 = vld [vmem:[%s2279 + $0x78] sm:$0xff]
        %v2296 = vld [vmem:[%s2279 + $0x80] sm:$0xff]
        %v2297 = vld [vmem:[%s2279 + $0x88] sm:$0xff]
        %v2298 = vld [vmem:[%s2279 + $0x90] sm:$0xff]
        %v2299 = vld [vmem:[%s2279 + $0x98] sm:$0xff]
        %v2300 = vld [vmem:[%s2279 + $0xa0] sm:$0xff]
        %v2301 = vld [vmem:[%s2279 + $0xa8] sm:$0xff]
        %v2302 = vld [vmem:[%s2279 + $0xb0] sm:$0xff]
        %v2303 = vld [vmem:[%s2279 + $0xb8] sm:$0xff]
        %v2304 = vld [vmem:[%s2279 + $0xc0] sm:$0xff]
        %v2305 = vld [vmem:[%s2279 + $0xc8] sm:$0xff]
        %v2306 = vld [vmem:[%s2279 + $0xd0] sm:$0xff]
        %v2307 = vld [vmem:[%s2279 + $0xd8] sm:$0xff]
        %v2308 = vld [vmem:[%s2279 + $0xe0] sm:$0xff]
        %v2309 = vld [vmem:[%s2279 + $0xe8] sm:$0xff]
        %v2310 = vld [vmem:[%s2279 + $0xf0] sm:$0xff]
        %v2311 = vld [vmem:[%s2279 + $0xf8] sm:$0xff]
        %v2312 = vunpack.c.l.bf16 %v2280
        %v2313 = vunpack.c.h.bf16 %v2280
        %v2314 = vunpack.c.l.bf16 %v2281
        %v2315 = vunpack.c.h.bf16 %v2281
        %v2316 = vunpack.c.l.bf16 %v2282
        %v2317 = vunpack.c.h.bf16 %v2282
        %v2318 = vunpack.c.l.bf16 %v2283
        %v2319 = vunpack.c.h.bf16 %v2283
        %v2320 = vunpack.c.l.bf16 %v2284
        %v2321 = vunpack.c.h.bf16 %v2284
        %v2322 = vunpack.c.l.bf16 %v2285
        %v2323 = vunpack.c.h.bf16 %v2285
        %v2324 = vunpack.c.l.bf16 %v2286
        %v2325 = vunpack.c.h.bf16 %v2286
        %v2326 = vunpack.c.l.bf16 %v2287
        %v2327 = vunpack.c.h.bf16 %v2287
        %v2328 = vunpack.c.l.bf16 %v2288
        %v2329 = vunpack.c.h.bf16 %v2288
        %v2330 = vunpack.c.l.bf16 %v2289
        %v2331 = vunpack.c.h.bf16 %v2289
        %v2332 = vunpack.c.l.bf16 %v2290
        %v2333 = vunpack.c.h.bf16 %v2290
        %v2334 = vunpack.c.l.bf16 %v2291
        %v2335 = vunpack.c.h.bf16 %v2291
        %v2336 = vunpack.c.l.bf16 %v2292
        %v2337 = vunpack.c.h.bf16 %v2292
        %v2338 = vunpack.c.l.bf16 %v2293
        %v2339 = vunpack.c.h.bf16 %v2293
        %v2340 = vunpack.c.l.bf16 %v2294
        %v2341 = vunpack.c.h.bf16 %v2294
        %v2342 = vunpack.c.l.bf16 %v2295
        %v2343 = vunpack.c.h.bf16 %v2295
        %v2344 = vunpack.c.l.bf16 %v2296
        %v2345 = vunpack.c.h.bf16 %v2296
        %v2346 = vunpack.c.l.bf16 %v2297
        %v2347 = vunpack.c.h.bf16 %v2297
        %v2348 = vunpack.c.l.bf16 %v2298
        %v2349 = vunpack.c.h.bf16 %v2298
        %v2350 = vunpack.c.l.bf16 %v2299
        %v2351 = vunpack.c.h.bf16 %v2299
        %v2352 = vunpack.c.l.bf16 %v2300
        %v2353 = vunpack.c.h.bf16 %v2300
        %v2354 = vunpack.c.l.bf16 %v2301
        %v2355 = vunpack.c.h.bf16 %v2301
        %v2356 = vunpack.c.l.bf16 %v2302
        %v2357 = vunpack.c.h.bf16 %v2302
        %v2358 = vunpack.c.l.bf16 %v2303
        %v2359 = vunpack.c.h.bf16 %v2303
        %v2360 = vunpack.c.l.bf16 %v2304
        %v2361 = vunpack.c.h.bf16 %v2304
        %v2362 = vunpack.c.l.bf16 %v2305
        %v2363 = vunpack.c.h.bf16 %v2305
        %v2364 = vunpack.c.l.bf16 %v2306
        %v2365 = vunpack.c.h.bf16 %v2306
        %v2366 = vunpack.c.l.bf16 %v2307
        %v2367 = vunpack.c.h.bf16 %v2307
        %v2368 = vunpack.c.l.bf16 %v2308
        %v2369 = vunpack.c.h.bf16 %v2308
        %v2370 = vunpack.c.l.bf16 %v2309
        %v2371 = vunpack.c.h.bf16 %v2309
        %v2372 = vunpack.c.l.bf16 %v2310
        %v2373 = vunpack.c.h.bf16 %v2310
        %v2374 = vunpack.c.l.bf16 %v2311
        %v2375 = vunpack.c.h.bf16 %v2311
        %v2376 = vmul.f32 %v1748, %v2312
        %v2377 = vmul.f32 %v1749, %v2313
        %v2378 = vmul.f32 %v1750, %v2314
        %v2379 = vmul.f32 %v1751, %v2315
        %v2380 = vmul.f32 %v1752, %v2316
        %v2381 = vmul.f32 %v1753, %v2317
        %v2382 = vmul.f32 %v1754, %v2318
        %v2383 = vmul.f32 %v1755, %v2319
        %v2384 = vmul.f32 %v1756, %v2320
        %v2385 = vmul.f32 %v1757, %v2321
        %v2386 = vmul.f32 %v1758, %v2322
        %v2387 = vmul.f32 %v1759, %v2323
        %v2388 = vmul.f32 %v1760, %v2324
        %v2389 = vmul.f32 %v1761, %v2325
        %v2390 = vmul.f32 %v1762, %v2326
        %v2391 = vmul.f32 %v1763, %v2327
        %v2392 = vmul.f32 %v1764, %v2328
        %v2393 = vmul.f32 %v1765, %v2329
        %v2394 = vmul.f32 %v1766, %v2330
        %v2395 = vmul.f32 %v1767, %v2331
        %v2396 = vmul.f32 %v1768, %v2332
        %v2397 = vmul.f32 %v1769, %v2333
        %v2398 = vmul.f32 %v1770, %v2334
        %v2399 = vmul.f32 %v1771, %v2335
        %v2400 = vmul.f32 %v1772, %v2336
        %v2401 = vmul.f32 %v1773, %v2337
        %v2402 = vmul.f32 %v1774, %v2338
        %v2403 = vmul.f32 %v1775, %v2339
        %v2404 = vmul.f32 %v1776, %v2340
        %v2405 = vmul.f32 %v1777, %v2341
        %v2406 = vmul.f32 %v1778, %v2342
        %v2407 = vmul.f32 %v1779, %v2343
        %v2408 = vmul.f32 %v1780, %v2344
        %v2409 = vmul.f32 %v1781, %v2345
        %v2410 = vmul.f32 %v1782, %v2346
        %v2411 = vmul.f32 %v1783, %v2347
        %v2412 = vmul.f32 %v1784, %v2348
        %v2413 = vmul.f32 %v1785, %v2349
        %v2414 = vmul.f32 %v1786, %v2350
        %v2415 = vmul.f32 %v1787, %v2351
        %v2416 = vmul.f32 %v1788, %v2352
        %v2417 = vmul.f32 %v1789, %v2353
        %v2418 = vmul.f32 %v1790, %v2354
        %v2419 = vmul.f32 %v1791, %v2355
        %v2420 = vmul.f32 %v1792, %v2356
        %v2421 = vmul.f32 %v1793, %v2357
        %v2422 = vmul.f32 %v1794, %v2358
        %v2423 = vmul.f32 %v1795, %v2359
        %v2424 = vmul.f32 %v1796, %v2360
        %v2425 = vmul.f32 %v1797, %v2361
        %v2426 = vmul.f32 %v1798, %v2362
        %v2427 = vmul.f32 %v1799, %v2363
        %v2428 = vmul.f32 %v1800, %v2364
        %v2429 = vmul.f32 %v1801, %v2365
        %v2430 = vmul.f32 %v1802, %v2366
        %v2431 = vmul.f32 %v1803, %v2367
        %v2432 = vmul.f32 %v1804, %v2368
        %v2433 = vmul.f32 %v1805, %v2369
        %v2434 = vmul.f32 %v1806, %v2370
        %v2435 = vmul.f32 %v1807, %v2371
        %v2436 = vmul.f32 %v1808, %v2372
        %v2437 = vmul.f32 %v1809, %v2373
        %v2438 = vmul.f32 %v1810, %v2374
        %v2439 = vmul.f32 %v1811, %v2375
        %v2440 = vadd.f32 %v2376, %v2377
        %v2441 = vadd.f32 %v2440, %v2378
        %v2442 = vadd.f32 %v2441, %v2379
        %v2443 = vadd.f32 %v2442, %v2380
        %v2444 = vadd.f32 %v2443, %v2381
        %v2445 = vadd.f32 %v2444, %v2382
        %v2446 = vadd.f32 %v2445, %v2383
        %v2447 = vadd.f32 %v2446, %v2384
        %v2448 = vadd.f32 %v2447, %v2385
        %v2449 = vadd.f32 %v2448, %v2386
        %v2450 = vadd.f32 %v2449, %v2387
        %v2451 = vadd.f32 %v2450, %v2388
        %v2452 = vadd.f32 %v2451, %v2389
        %v2453 = vadd.f32 %v2452, %v2390
        %v2454 = vadd.f32 %v2453, %v2391
        %v2455 = vadd.f32 %v2454, %v2392
        %v2456 = vadd.f32 %v2455, %v2393
        %v2457 = vadd.f32 %v2456, %v2394
        %v2458 = vadd.f32 %v2457, %v2395
        %v2459 = vadd.f32 %v2458, %v2396
        %v2460 = vadd.f32 %v2459, %v2397
        %v2461 = vadd.f32 %v2460, %v2398
        %v2462 = vadd.f32 %v2461, %v2399
        %v2463 = vadd.f32 %v2462, %v2400
        %v2464 = vadd.f32 %v2463, %v2401
        %v2465 = vadd.f32 %v2464, %v2402
        %v2466 = vadd.f32 %v2465, %v2403
        %v2467 = vadd.f32 %v2466, %v2404
        %v2468 = vadd.f32 %v2467, %v2405
        %v2469 = vadd.f32 %v2468, %v2406
        %v2470 = vadd.f32 %v2469, %v2407
        %v2471 = vadd.f32 %v2470, %v2408
        %v2472 = vadd.f32 %v2471, %v2409
        %v2473 = vadd.f32 %v2472, %v2410
        %v2474 = vadd.f32 %v2473, %v2411
        %v2475 = vadd.f32 %v2474, %v2412
        %v2476 = vadd.f32 %v2475, %v2413
        %v2477 = vadd.f32 %v2476, %v2414
        %v2478 = vadd.f32 %v2477, %v2415
        %v2479 = vadd.f32 %v2478, %v2416
        %v2480 = vadd.f32 %v2479, %v2417
        %v2481 = vadd.f32 %v2480, %v2418
        %v2482 = vadd.f32 %v2481, %v2419
        %v2483 = vadd.f32 %v2482, %v2420
        %v2484 = vadd.f32 %v2483, %v2421
        %v2485 = vadd.f32 %v2484, %v2422
        %v2486 = vadd.f32 %v2485, %v2423
        %v2487 = vadd.f32 %v2486, %v2424
        %v2488 = vadd.f32 %v2487, %v2425
        %v2489 = vadd.f32 %v2488, %v2426
        %v2490 = vadd.f32 %v2489, %v2427
        %v2491 = vadd.f32 %v2490, %v2428
        %v2492 = vadd.f32 %v2491, %v2429
        %v2493 = vadd.f32 %v2492, %v2430
        %v2494 = vadd.f32 %v2493, %v2431
        %v2495 = vadd.f32 %v2494, %v2432
        %v2496 = vadd.f32 %v2495, %v2433
        %v2497 = vadd.f32 %v2496, %v2434
        %v2498 = vadd.f32 %v2497, %v2435
        %v2499 = vadd.f32 %v2498, %v2436
        %v2500 = vadd.f32 %v2499, %v2437
        %v2501 = vadd.f32 %v2500, %v2438
        %v2502 = vadd.f32 %v2501, %v2439
        %2503 = vadd.xlane.f32.xlu0 %v2502
        %v2504 = vpop.xlane.xlu0 %2503
        %v2505 = vrot.slane %v2504, 4
        %v2506 = vadd.f32 %v2504, %v2505
        %v2507 = vrot.slane %v2506, 2
        %v2508 = vadd.f32 %v2506, %v2507
        %v2509 = vrot.slane %v2508, 1
        %v2510 = vadd.f32 %v2508, %v2509
        %s2511 = vtos %v2510
        %s2512 = sadd.f32 %s2511, 0.0
        %2513 = vmatprep.subr.bf16.mxu0 0
        %2514 = vmatpush1.bf16.xpose.msra.mxu0 %v272
        %2515 = vmatprep.subr.bf16.mxu0 0
        %2516 = vmatpush1.bf16.xpose.msra.mxu0 %v271
        %2517 = vmatprep.subr.bf16.mxu0 0
        %2518 = vmatpush1.bf16.xpose.msra.mxu0 %v270
        %2519 = vmatprep.subr.bf16.mxu0 0
        %2520 = vmatpush1.bf16.xpose.msra.mxu0 %v269
        %2521 = vmatprep.subr.bf16.mxu0 0
        %2522 = vmatpush1.bf16.xpose.msra.mxu0 %v268
        %2523 = vmatprep.subr.bf16.mxu0 0
        %2524 = vmatpush1.bf16.xpose.msra.mxu0 %v267
        %2525 = vmatprep.subr.bf16.mxu0 0
        %2526 = vmatpush1.bf16.xpose.msra.mxu0 %v266
        %2527 = vmatprep.subr.bf16.mxu0 0
        %2528 = vmatpush1.bf16.xpose.msra.mxu0 %v265
        %2529 = vmatprep.subr.bf16.mxu0 0
        %2530 = vmatpush2.bf16.xpose.msra.mxu0 %v384
        %2531 = vmatprep.subr.bf16.mxu0 0
        %2532 = vmatpush2.bf16.xpose.msra.mxu0 %v383
        %2533 = vmatprep.subr.bf16.mxu0 0
        %2534 = vmatpush2.bf16.xpose.msra.mxu0 %v382
        %2535 = vmatprep.subr.bf16.mxu0 0
        %2536 = vmatpush2.bf16.xpose.msra.mxu0 %v381
        %2537 = vmatprep.subr.bf16.mxu0 0
        %2538 = vmatpush2.bf16.xpose.msra.mxu0 %v380
        %2539 = vmatprep.subr.bf16.mxu0 0
        %2540 = vmatpush2.bf16.xpose.msra.mxu0 %v379
        %2541 = vmatprep.subr.bf16.mxu0 0
        %2542 = vmatpush2.bf16.xpose.msra.mxu0 %v378
        %2543 = vmatprep.subr.bf16.mxu0 0
        %2544 = vmatpush2.bf16.xpose.msra.mxu0 %v377
        %2545 = vmatprep.mubr.bf16.mxu0 0
        %2546 = vmatmul.mubr.bf16.gmra.mxu0 %v377
        %v2547 = vpop.f32.mrf.mxu0
        %v2548 = vadd.f32 0.0, %v2547
        %v2549 = vpop.f32.mrf.mxu0
        %v2550 = vadd.f32 0.0, %v2549
        %v2551 = vpop.f32.mrf.mxu0
        %v2552 = vadd.f32 0.0, %v2551
        %v2553 = vpop.f32.mrf.mxu0
        %v2554 = vadd.f32 0.0, %v2553
        %2555 = vmatprep.mubr.bf16.mxu0 0
        %2556 = vmatmul.mubr.bf16.gmra.mxu0 %v378
        %v2557 = vpop.f32.mrf.mxu0
        %v2558 = vadd.f32 0.0, %v2557
        %v2559 = vpop.f32.mrf.mxu0
        %v2560 = vadd.f32 0.0, %v2559
        %v2561 = vpop.f32.mrf.mxu0
        %v2562 = vadd.f32 0.0, %v2561
        %v2563 = vpop.f32.mrf.mxu0
        %v2564 = vadd.f32 0.0, %v2563
        %2565 = vmatprep.mubr.bf16.mxu0 0
        %2566 = vmatmul.mubr.bf16.gmra.mxu0 %v379
        %v2567 = vpop.f32.mrf.mxu0
        %v2568 = vadd.f32 0.0, %v2567
        %v2569 = vpop.f32.mrf.mxu0
        %v2570 = vadd.f32 0.0, %v2569
        %v2571 = vpop.f32.mrf.mxu0
        %v2572 = vadd.f32 0.0, %v2571
        %v2573 = vpop.f32.mrf.mxu0
        %v2574 = vadd.f32 0.0, %v2573
        %2575 = vmatprep.mubr.bf16.mxu0 0
        %2576 = vmatmul.mubr.bf16.gmra.mxu0 %v380
        %v2577 = vpop.f32.mrf.mxu0
        %v2578 = vadd.f32 0.0, %v2577
        %v2579 = vpop.f32.mrf.mxu0
        %v2580 = vadd.f32 0.0, %v2579
        %v2581 = vpop.f32.mrf.mxu0
        %v2582 = vadd.f32 0.0, %v2581
        %v2583 = vpop.f32.mrf.mxu0
        %v2584 = vadd.f32 0.0, %v2583
        %2585 = vmatprep.mubr.bf16.mxu0 0
        %2586 = vmatmul.mubr.bf16.gmra.mxu0 %v381
        %v2587 = vpop.f32.mrf.mxu0
        %v2588 = vadd.f32 0.0, %v2587
        %v2589 = vpop.f32.mrf.mxu0
        %v2590 = vadd.f32 0.0, %v2589
        %v2591 = vpop.f32.mrf.mxu0
        %v2592 = vadd.f32 0.0, %v2591
        %v2593 = vpop.f32.mrf.mxu0
        %v2594 = vadd.f32 0.0, %v2593
        %2595 = vmatprep.mubr.bf16.mxu0 0
        %2596 = vmatmul.mubr.bf16.gmra.mxu0 %v382
        %v2597 = vpop.f32.mrf.mxu0
        %v2598 = vadd.f32 0.0, %v2597
        %v2599 = vpop.f32.mrf.mxu0
        %v2600 = vadd.f32 0.0, %v2599
        %v2601 = vpop.f32.mrf.mxu0
        %v2602 = vadd.f32 0.0, %v2601
        %v2603 = vpop.f32.mrf.mxu0
        %v2604 = vadd.f32 0.0, %v2603
        %2605 = vmatprep.mubr.bf16.mxu0 0
        %2606 = vmatmul.mubr.bf16.gmra.mxu0 %v383
        %v2607 = vpop.f32.mrf.mxu0
        %v2608 = vadd.f32 0.0, %v2607
        %v2609 = vpop.f32.mrf.mxu0
        %v2610 = vadd.f32 0.0, %v2609
        %v2611 = vpop.f32.mrf.mxu0
        %v2612 = vadd.f32 0.0, %v2611
        %v2613 = vpop.f32.mrf.mxu0
        %v2614 = vadd.f32 0.0, %v2613
        %2615 = vmatprep.mubr.bf16.mxu0 0
        %2616 = vmatmul.mubr.bf16.gmra.mxu0 %v384
        %v2617 = vpop.f32.mrf.mxu0
        %v2618 = vadd.f32 0.0, %v2617
        %v2619 = vpop.f32.mrf.mxu0
        %v2620 = vadd.f32 0.0, %v2619
        %v2621 = vpop.f32.mrf.mxu0
        %v2622 = vadd.f32 0.0, %v2621
        %v2623 = vpop.f32.mrf.mxu0
        %v2624 = vadd.f32 0.0, %v2623
        %2625 = vdwg.mxu0
        %2626 = vmatprep.subr.bf16.mxu0 0
        %2627 = vmatpush1.bf16.xpose.msra.mxu0 %v392
        %2628 = vmatprep.subr.bf16.mxu0 0
        %2629 = vmatpush1.bf16.xpose.msra.mxu0 %v391
        %2630 = vmatprep.subr.bf16.mxu0 0
        %2631 = vmatpush1.bf16.xpose.msra.mxu0 %v390
        %2632 = vmatprep.subr.bf16.mxu0 0
        %2633 = vmatpush1.bf16.xpose.msra.mxu0 %v389
        %2634 = vmatprep.subr.bf16.mxu0 0
        %2635 = vmatpush1.bf16.xpose.msra.mxu0 %v388
        %2636 = vmatprep.subr.bf16.mxu0 0
        %2637 = vmatpush1.bf16.xpose.msra.mxu0 %v387
        %2638 = vmatprep.subr.bf16.mxu0 0
        %2639 = vmatpush1.bf16.xpose.msra.mxu0 %v386
        %2640 = vmatprep.subr.bf16.mxu0 0
        %2641 = vmatpush1.bf16.xpose.msra.mxu0 %v385
        %2642 = vmatprep.subr.bf16.mxu0 0
        %2643 = vmatpush2.bf16.xpose.msra.mxu0 %v400
        %2644 = vmatprep.subr.bf16.mxu0 0
        %2645 = vmatpush2.bf16.xpose.msra.mxu0 %v399
        %2646 = vmatprep.subr.bf16.mxu0 0
        %2647 = vmatpush2.bf16.xpose.msra.mxu0 %v398
        %2648 = vmatprep.subr.bf16.mxu0 0
        %2649 = vmatpush2.bf16.xpose.msra.mxu0 %v397
        %2650 = vmatprep.subr.bf16.mxu0 0
        %2651 = vmatpush2.bf16.xpose.msra.mxu0 %v396
        %2652 = vmatprep.subr.bf16.mxu0 0
        %2653 = vmatpush2.bf16.xpose.msra.mxu0 %v395
        %2654 = vmatprep.subr.bf16.mxu0 0
        %2655 = vmatpush2.bf16.xpose.msra.mxu0 %v394
        %2656 = vmatprep.subr.bf16.mxu0 0
        %2657 = vmatpush2.bf16.xpose.msra.mxu0 %v393
        %2658 = vmatprep.mubr.bf16.mxu0 0
        %2659 = vmatmul.mubr.bf16.gmra.mxu0 %v377
        %v2660 = vpop.f32.mrf.mxu0
        %v2661 = vadd.f32 0.0, %v2660
        %v2662 = vpop.f32.mrf.mxu0
        %v2663 = vadd.f32 0.0, %v2662
        %v2664 = vpop.f32.mrf.mxu0
        %v2665 = vadd.f32 0.0, %v2664
        %v2666 = vpop.f32.mrf.mxu0
        %v2667 = vadd.f32 0.0, %v2666
        %2668 = vmatprep.mubr.bf16.mxu0 0
        %2669 = vmatmul.mubr.bf16.gmra.mxu0 %v378
        %v2670 = vpop.f32.mrf.mxu0
        %v2671 = vadd.f32 0.0, %v2670
        %v2672 = vpop.f32.mrf.mxu0
        %v2673 = vadd.f32 0.0, %v2672
        %v2674 = vpop.f32.mrf.mxu0
        %v2675 = vadd.f32 0.0, %v2674
        %v2676 = vpop.f32.mrf.mxu0
        %v2677 = vadd.f32 0.0, %v2676
        %2678 = vmatprep.mubr.bf16.mxu0 0
        %2679 = vmatmul.mubr.bf16.gmra.mxu0 %v379
        %v2680 = vpop.f32.mrf.mxu0
        %v2681 = vadd.f32 0.0, %v2680
        %v2682 = vpop.f32.mrf.mxu0
        %v2683 = vadd.f32 0.0, %v2682
        %v2684 = vpop.f32.mrf.mxu0
        %v2685 = vadd.f32 0.0, %v2684
        %v2686 = vpop.f32.mrf.mxu0
        %v2687 = vadd.f32 0.0, %v2686
        %2688 = vmatprep.mubr.bf16.mxu0 0
        %2689 = vmatmul.mubr.bf16.gmra.mxu0 %v380
        %v2690 = vpop.f32.mrf.mxu0
        %v2691 = vadd.f32 0.0, %v2690
        %v2692 = vpop.f32.mrf.mxu0
        %v2693 = vadd.f32 0.0, %v2692
        %v2694 = vpop.f32.mrf.mxu0
        %v2695 = vadd.f32 0.0, %v2694
        %v2696 = vpop.f32.mrf.mxu0
        %v2697 = vadd.f32 0.0, %v2696
        %2698 = vmatprep.mubr.bf16.mxu0 0
        %2699 = vmatmul.mubr.bf16.gmra.mxu0 %v381
        %v2700 = vpop.f32.mrf.mxu0
        %v2701 = vadd.f32 0.0, %v2700
        %v2702 = vpop.f32.mrf.mxu0
        %v2703 = vadd.f32 0.0, %v2702
        %v2704 = vpop.f32.mrf.mxu0
        %v2705 = vadd.f32 0.0, %v2704
        %v2706 = vpop.f32.mrf.mxu0
        %v2707 = vadd.f32 0.0, %v2706
        %2708 = vmatprep.mubr.bf16.mxu0 0
        %2709 = vmatmul.mubr.bf16.gmra.mxu0 %v382
        %v2710 = vpop.f32.mrf.mxu0
        %v2711 = vadd.f32 0.0, %v2710
        %v2712 = vpop.f32.mrf.mxu0
        %v2713 = vadd.f32 0.0, %v2712
        %v2714 = vpop.f32.mrf.mxu0
        %v2715 = vadd.f32 0.0, %v2714
        %v2716 = vpop.f32.mrf.mxu0
        %v2717 = vadd.f32 0.0, %v2716
        %2718 = vmatprep.mubr.bf16.mxu0 0
        %2719 = vmatmul.mubr.bf16.gmra.mxu0 %v383
        %v2720 = vpop.f32.mrf.mxu0
        %v2721 = vadd.f32 0.0, %v2720
        %v2722 = vpop.f32.mrf.mxu0
        %v2723 = vadd.f32 0.0, %v2722
        %v2724 = vpop.f32.mrf.mxu0
        %v2725 = vadd.f32 0.0, %v2724
        %v2726 = vpop.f32.mrf.mxu0
        %v2727 = vadd.f32 0.0, %v2726
        %2728 = vmatprep.mubr.bf16.mxu0 0
        %2729 = vmatmul.mubr.bf16.gmra.mxu0 %v384
        %v2730 = vpop.f32.mrf.mxu0
        %v2731 = vadd.f32 0.0, %v2730
        %v2732 = vpop.f32.mrf.mxu0
        %v2733 = vadd.f32 0.0, %v2732
        %v2734 = vpop.f32.mrf.mxu0
        %v2735 = vadd.f32 0.0, %v2734
        %v2736 = vpop.f32.mrf.mxu0
        %v2737 = vadd.f32 0.0, %v2736
        %2738 = vdwg.mxu0
        %vm2739 = vcmp.eq.f32.partialorder %v2548, 0.0
        %vm2740 = vcmp.eq.f32.partialorder %v2550, 0.0
        %vm2741 = vcmp.eq.f32.partialorder %v2661, 0.0
        %vm2742 = vcmp.eq.f32.partialorder %v2663, 0.0
        %vm2743 = vcmp.eq.f32.partialorder %v2552, 0.0
        %vm2744 = vcmp.eq.f32.partialorder %v2554, 0.0
        %vm2745 = vcmp.eq.f32.partialorder %v2665, 0.0
        %vm2746 = vcmp.eq.f32.partialorder %v2667, 0.0
        %vm2747 = vcmp.eq.f32.partialorder %v2558, 0.0
        %vm2748 = vcmp.eq.f32.partialorder %v2560, 0.0
        %vm2749 = vcmp.eq.f32.partialorder %v2671, 0.0
        %vm2750 = vcmp.eq.f32.partialorder %v2673, 0.0
        %vm2751 = vcmp.eq.f32.partialorder %v2562, 0.0
        %vm2752 = vcmp.eq.f32.partialorder %v2564, 0.0
        %vm2753 = vcmp.eq.f32.partialorder %v2675, 0.0
        %vm2754 = vcmp.eq.f32.partialorder %v2677, 0.0
        %vm2755 = vcmp.eq.f32.partialorder %v2568, 0.0
        %vm2756 = vcmp.eq.f32.partialorder %v2570, 0.0
        %vm2757 = vcmp.eq.f32.partialorder %v2681, 0.0
        %vm2758 = vcmp.eq.f32.partialorder %v2683, 0.0
        %vm2759 = vcmp.eq.f32.partialorder %v2572, 0.0
        %vm2760 = vcmp.eq.f32.partialorder %v2574, 0.0
        %vm2761 = vcmp.eq.f32.partialorder %v2685, 0.0
        %vm2762 = vcmp.eq.f32.partialorder %v2687, 0.0
        %vm2763 = vcmp.eq.f32.partialorder %v2578, 0.0
        %vm2764 = vcmp.eq.f32.partialorder %v2580, 0.0
        %vm2765 = vcmp.eq.f32.partialorder %v2691, 0.0
        %vm2766 = vcmp.eq.f32.partialorder %v2693, 0.0
        %vm2767 = vcmp.eq.f32.partialorder %v2582, 0.0
        %vm2768 = vcmp.eq.f32.partialorder %v2584, 0.0
        %vm2769 = vcmp.eq.f32.partialorder %v2695, 0.0
        %vm2770 = vcmp.eq.f32.partialorder %v2697, 0.0
        %vm2771 = vcmp.eq.f32.partialorder %v2588, 0.0
        %vm2772 = vcmp.eq.f32.partialorder %v2590, 0.0
        %vm2773 = vcmp.eq.f32.partialorder %v2701, 0.0
        %vm2774 = vcmp.eq.f32.partialorder %v2703, 0.0
        %vm2775 = vcmp.eq.f32.partialorder %v2592, 0.0
        %vm2776 = vcmp.eq.f32.partialorder %v2594, 0.0
        %vm2777 = vcmp.eq.f32.partialorder %v2705, 0.0
        %vm2778 = vcmp.eq.f32.partialorder %v2707, 0.0
        %vm2779 = vcmp.eq.f32.partialorder %v2598, 0.0
        %vm2780 = vcmp.eq.f32.partialorder %v2600, 0.0
        %vm2781 = vcmp.eq.f32.partialorder %v2711, 0.0
        %vm2782 = vcmp.eq.f32.partialorder %v2713, 0.0
        %vm2783 = vcmp.eq.f32.partialorder %v2602, 0.0
        %vm2784 = vcmp.eq.f32.partialorder %v2604, 0.0
        %vm2785 = vcmp.eq.f32.partialorder %v2715, 0.0
        %vm2786 = vcmp.eq.f32.partialorder %v2717, 0.0
        %vm2787 = vcmp.eq.f32.partialorder %v2608, 0.0
        %vm2788 = vcmp.eq.f32.partialorder %v2610, 0.0
        %vm2789 = vcmp.eq.f32.partialorder %v2721, 0.0
        %vm2790 = vcmp.eq.f32.partialorder %v2723, 0.0
        %vm2791 = vcmp.eq.f32.partialorder %v2612, 0.0
        %vm2792 = vcmp.eq.f32.partialorder %v2614, 0.0
        %vm2793 = vcmp.eq.f32.partialorder %v2725, 0.0
        %vm2794 = vcmp.eq.f32.partialorder %v2727, 0.0
        %vm2795 = vcmp.eq.f32.partialorder %v2618, 0.0
        %vm2796 = vcmp.eq.f32.partialorder %v2620, 0.0
        %vm2797 = vcmp.eq.f32.partialorder %v2731, 0.0
        %vm2798 = vcmp.eq.f32.partialorder %v2733, 0.0
        %vm2799 = vcmp.eq.f32.partialorder %v2622, 0.0
        %vm2800 = vcmp.eq.f32.partialorder %v2624, 0.0
        %vm2801 = vcmp.eq.f32.partialorder %v2735, 0.0
        %vm2802 = vcmp.eq.f32.partialorder %v2737, 0.0
        %v2803 = vand.u32 2147483647, %v2548
        %v2804 = vand.u32 2147483647, %v2550
        %v2805 = vand.u32 2147483647, %v2661
        %v2806 = vand.u32 2147483647, %v2663
        %v2807 = vand.u32 2147483647, %v2552
        %v2808 = vand.u32 2147483647, %v2554
        %v2809 = vand.u32 2147483647, %v2665
        %v2810 = vand.u32 2147483647, %v2667
        %v2811 = vand.u32 2147483647, %v2558
        %v2812 = vand.u32 2147483647, %v2560
        %v2813 = vand.u32 2147483647, %v2671
        %v2814 = vand.u32 2147483647, %v2673
        %v2815 = vand.u32 2147483647, %v2562
        %v2816 = vand.u32 2147483647, %v2564
        %v2817 = vand.u32 2147483647, %v2675
        %v2818 = vand.u32 2147483647, %v2677
        %v2819 = vand.u32 2147483647, %v2568
        %v2820 = vand.u32 2147483647, %v2570
        %v2821 = vand.u32 2147483647, %v2681
        %v2822 = vand.u32 2147483647, %v2683
        %v2823 = vand.u32 2147483647, %v2572
        %v2824 = vand.u32 2147483647, %v2574
        %v2825 = vand.u32 2147483647, %v2685
        %v2826 = vand.u32 2147483647, %v2687
        %v2827 = vand.u32 2147483647, %v2578
        %v2828 = vand.u32 2147483647, %v2580
        %v2829 = vand.u32 2147483647, %v2691
        %v2830 = vand.u32 2147483647, %v2693
        %v2831 = vand.u32 2147483647, %v2582
        %v2832 = vand.u32 2147483647, %v2584
        %v2833 = vand.u32 2147483647, %v2695
        %v2834 = vand.u32 2147483647, %v2697
        %v2835 = vand.u32 2147483647, %v2588
        %v2836 = vand.u32 2147483647, %v2590
        %v2837 = vand.u32 2147483647, %v2701
        %v2838 = vand.u32 2147483647, %v2703
        %v2839 = vand.u32 2147483647, %v2592
        %v2840 = vand.u32 2147483647, %v2594
        %v2841 = vand.u32 2147483647, %v2705
        %v2842 = vand.u32 2147483647, %v2707
        %v2843 = vand.u32 2147483647, %v2598
        %v2844 = vand.u32 2147483647, %v2600
        %v2845 = vand.u32 2147483647, %v2711
        %v2846 = vand.u32 2147483647, %v2713
        %v2847 = vand.u32 2147483647, %v2602
        %v2848 = vand.u32 2147483647, %v2604
        %v2849 = vand.u32 2147483647, %v2715
        %v2850 = vand.u32 2147483647, %v2717
        %v2851 = vand.u32 2147483647, %v2608
        %v2852 = vand.u32 2147483647, %v2610
        %v2853 = vand.u32 2147483647, %v2721
        %v2854 = vand.u32 2147483647, %v2723
        %v2855 = vand.u32 2147483647, %v2612
        %v2856 = vand.u32 2147483647, %v2614
        %v2857 = vand.u32 2147483647, %v2725
        %v2858 = vand.u32 2147483647, %v2727
        %v2859 = vand.u32 2147483647, %v2618
        %v2860 = vand.u32 2147483647, %v2620
        %v2861 = vand.u32 2147483647, %v2731
        %v2862 = vand.u32 2147483647, %v2733
        %v2863 = vand.u32 2147483647, %v2622
        %v2864 = vand.u32 2147483647, %v2624
        %v2865 = vand.u32 2147483647, %v2735
        %v2866 = vand.u32 2147483647, %v2737
        %v2867 = vadd.f32 %v2803, 7.84e-08
        %v2868 = vadd.f32 %v2804, 7.84e-08
        %v2869 = vadd.f32 %v2805, 7.84e-08
        %v2870 = vadd.f32 %v2806, 7.84e-08
        %v2871 = vadd.f32 %v2807, 7.84e-08
        %v2872 = vadd.f32 %v2808, 7.84e-08
        %v2873 = vadd.f32 %v2809, 7.84e-08
        %v2874 = vadd.f32 %v2810, 7.84e-08
        %v2875 = vadd.f32 %v2811, 7.84e-08
        %v2876 = vadd.f32 %v2812, 7.84e-08
        %v2877 = vadd.f32 %v2813, 7.84e-08
        %v2878 = vadd.f32 %v2814, 7.84e-08
        %v2879 = vadd.f32 %v2815, 7.84e-08
        %v2880 = vadd.f32 %v2816, 7.84e-08
        %v2881 = vadd.f32 %v2817, 7.84e-08
        %v2882 = vadd.f32 %v2818, 7.84e-08
        %v2883 = vadd.f32 %v2819, 7.84e-08
        %v2884 = vadd.f32 %v2820, 7.84e-08
        %v2885 = vadd.f32 %v2821, 7.84e-08
        %v2886 = vadd.f32 %v2822, 7.84e-08
        %v2887 = vadd.f32 %v2823, 7.84e-08
        %v2888 = vadd.f32 %v2824, 7.84e-08
        %v2889 = vadd.f32 %v2825, 7.84e-08
        %v2890 = vadd.f32 %v2826, 7.84e-08
        %v2891 = vadd.f32 %v2827, 7.84e-08
        %v2892 = vadd.f32 %v2828, 7.84e-08
        %v2893 = vadd.f32 %v2829, 7.84e-08
        %v2894 = vadd.f32 %v2830, 7.84e-08
        %v2895 = vadd.f32 %v2831, 7.84e-08
        %v2896 = vadd.f32 %v2832, 7.84e-08
        %v2897 = vadd.f32 %v2833, 7.84e-08
        %v2898 = vadd.f32 %v2834, 7.84e-08
        %v2899 = vadd.f32 %v2835, 7.84e-08
        %v2900 = vadd.f32 %v2836, 7.84e-08
        %v2901 = vadd.f32 %v2837, 7.84e-08
        %v2902 = vadd.f32 %v2838, 7.84e-08
        %v2903 = vadd.f32 %v2839, 7.84e-08
        %v2904 = vadd.f32 %v2840, 7.84e-08
        %v2905 = vadd.f32 %v2841, 7.84e-08
        %v2906 = vadd.f32 %v2842, 7.84e-08
        %v2907 = vadd.f32 %v2843, 7.84e-08
        %v2908 = vadd.f32 %v2844, 7.84e-08
        %v2909 = vadd.f32 %v2845, 7.84e-08
        %v2910 = vadd.f32 %v2846, 7.84e-08
        %v2911 = vadd.f32 %v2847, 7.84e-08
        %v2912 = vadd.f32 %v2848, 7.84e-08
        %v2913 = vadd.f32 %v2849, 7.84e-08
        %v2914 = vadd.f32 %v2850, 7.84e-08
        %v2915 = vadd.f32 %v2851, 7.84e-08
        %v2916 = vadd.f32 %v2852, 7.84e-08
        %v2917 = vadd.f32 %v2853, 7.84e-08
        %v2918 = vadd.f32 %v2854, 7.84e-08
        %v2919 = vadd.f32 %v2855, 7.84e-08
        %v2920 = vadd.f32 %v2856, 7.84e-08
        %v2921 = vadd.f32 %v2857, 7.84e-08
        %v2922 = vadd.f32 %v2858, 7.84e-08
        %v2923 = vadd.f32 %v2859, 7.84e-08
        %v2924 = vadd.f32 %v2860, 7.84e-08
        %v2925 = vadd.f32 %v2861, 7.84e-08
        %v2926 = vadd.f32 %v2862, 7.84e-08
        %v2927 = vadd.f32 %v2863, 7.84e-08
        %v2928 = vadd.f32 %v2864, 7.84e-08
        %v2929 = vadd.f32 %v2865, 7.84e-08
        %v2930 = vadd.f32 %v2866, 7.84e-08
        %v2931 = vsel %vm2739, 0.0, %v2867
        %v2932 = vsel %vm2740, 0.0, %v2868
        %v2933 = vsel %vm2741, 0.0, %v2869
        %v2934 = vsel %vm2742, 0.0, %v2870
        %v2935 = vsel %vm2743, 0.0, %v2871
        %v2936 = vsel %vm2744, 0.0, %v2872
        %v2937 = vsel %vm2745, 0.0, %v2873
        %v2938 = vsel %vm2746, 0.0, %v2874
        %v2939 = vsel %vm2747, 0.0, %v2875
        %v2940 = vsel %vm2748, 0.0, %v2876
        %v2941 = vsel %vm2749, 0.0, %v2877
        %v2942 = vsel %vm2750, 0.0, %v2878
        %v2943 = vsel %vm2751, 0.0, %v2879
        %v2944 = vsel %vm2752, 0.0, %v2880
        %v2945 = vsel %vm2753, 0.0, %v2881
        %v2946 = vsel %vm2754, 0.0, %v2882
        %v2947 = vsel %vm2755, 0.0, %v2883
        %v2948 = vsel %vm2756, 0.0, %v2884
        %v2949 = vsel %vm2757, 0.0, %v2885
        %v2950 = vsel %vm2758, 0.0, %v2886
        %v2951 = vsel %vm2759, 0.0, %v2887
        %v2952 = vsel %vm2760, 0.0, %v2888
        %v2953 = vsel %vm2761, 0.0, %v2889
        %v2954 = vsel %vm2762, 0.0, %v2890
        %v2955 = vsel %vm2763, 0.0, %v2891
        %v2956 = vsel %vm2764, 0.0, %v2892
        %v2957 = vsel %vm2765, 0.0, %v2893
        %v2958 = vsel %vm2766, 0.0, %v2894
        %v2959 = vsel %vm2767, 0.0, %v2895
        %v2960 = vsel %vm2768, 0.0, %v2896
        %v2961 = vsel %vm2769, 0.0, %v2897
        %v2962 = vsel %vm2770, 0.0, %v2898
        %v2963 = vsel %vm2771, 0.0, %v2899
        %v2964 = vsel %vm2772, 0.0, %v2900
        %v2965 = vsel %vm2773, 0.0, %v2901
        %v2966 = vsel %vm2774, 0.0, %v2902
        %v2967 = vsel %vm2775, 0.0, %v2903
        %v2968 = vsel %vm2776, 0.0, %v2904
        %v2969 = vsel %vm2777, 0.0, %v2905
        %v2970 = vsel %vm2778, 0.0, %v2906
        %v2971 = vsel %vm2779, 0.0, %v2907
        %v2972 = vsel %vm2780, 0.0, %v2908
        %v2973 = vsel %vm2781, 0.0, %v2909
        %v2974 = vsel %vm2782, 0.0, %v2910
        %v2975 = vsel %vm2783, 0.0, %v2911
        %v2976 = vsel %vm2784, 0.0, %v2912
        %v2977 = vsel %vm2785, 0.0, %v2913
        %v2978 = vsel %vm2786, 0.0, %v2914
        %v2979 = vsel %vm2787, 0.0, %v2915
        %v2980 = vsel %vm2788, 0.0, %v2916
        %v2981 = vsel %vm2789, 0.0, %v2917
        %v2982 = vsel %vm2790, 0.0, %v2918
        %v2983 = vsel %vm2791, 0.0, %v2919
        %v2984 = vsel %vm2792, 0.0, %v2920
        %v2985 = vsel %vm2793, 0.0, %v2921
        %v2986 = vsel %vm2794, 0.0, %v2922
        %v2987 = vsel %vm2795, 0.0, %v2923
        %v2988 = vsel %vm2796, 0.0, %v2924
        %v2989 = vsel %vm2797, 0.0, %v2925
        %v2990 = vsel %vm2798, 0.0, %v2926
        %v2991 = vsel %vm2799, 0.0, %v2927
        %v2992 = vsel %vm2800, 0.0, %v2928
        %v2993 = vsel %vm2801, 0.0, %v2929
        %v2994 = vsel %vm2802, 0.0, %v2930
        %v2995 = vadd.f32 %v2931, %v2932
        %v2996 = vadd.f32 %v2995, %v2933
        %v2997 = vadd.f32 %v2996, %v2934
        %v2998 = vadd.f32 %v2997, %v2935
        %v2999 = vadd.f32 %v2998, %v2936
        %v3000 = vadd.f32 %v2999, %v2937
        %v3001 = vadd.f32 %v3000, %v2938
        %v3002 = vadd.f32 %v3001, %v2939
        %v3003 = vadd.f32 %v3002, %v2940
        %v3004 = vadd.f32 %v3003, %v2941
        %v3005 = vadd.f32 %v3004, %v2942
        %v3006 = vadd.f32 %v3005, %v2943
        %v3007 = vadd.f32 %v3006, %v2944
        %v3008 = vadd.f32 %v3007, %v2945
        %v3009 = vadd.f32 %v3008, %v2946
        %v3010 = vadd.f32 %v3009, %v2947
        %v3011 = vadd.f32 %v3010, %v2948
        %v3012 = vadd.f32 %v3011, %v2949
        %v3013 = vadd.f32 %v3012, %v2950
        %v3014 = vadd.f32 %v3013, %v2951
        %v3015 = vadd.f32 %v3014, %v2952
        %v3016 = vadd.f32 %v3015, %v2953
        %v3017 = vadd.f32 %v3016, %v2954
        %v3018 = vadd.f32 %v3017, %v2955
        %v3019 = vadd.f32 %v3018, %v2956
        %v3020 = vadd.f32 %v3019, %v2957
        %v3021 = vadd.f32 %v3020, %v2958
        %v3022 = vadd.f32 %v3021, %v2959
        %v3023 = vadd.f32 %v3022, %v2960
        %v3024 = vadd.f32 %v3023, %v2961
        %v3025 = vadd.f32 %v3024, %v2962
        %v3026 = vadd.f32 %v3025, %v2963
        %v3027 = vadd.f32 %v3026, %v2964
        %v3028 = vadd.f32 %v3027, %v2965
        %v3029 = vadd.f32 %v3028, %v2966
        %v3030 = vadd.f32 %v3029, %v2967
        %v3031 = vadd.f32 %v3030, %v2968
        %v3032 = vadd.f32 %v3031, %v2969
        %v3033 = vadd.f32 %v3032, %v2970
        %v3034 = vadd.f32 %v3033, %v2971
        %v3035 = vadd.f32 %v3034, %v2972
        %v3036 = vadd.f32 %v3035, %v2973
        %v3037 = vadd.f32 %v3036, %v2974
        %v3038 = vadd.f32 %v3037, %v2975
        %v3039 = vadd.f32 %v3038, %v2976
        %v3040 = vadd.f32 %v3039, %v2977
        %v3041 = vadd.f32 %v3040, %v2978
        %v3042 = vadd.f32 %v3041, %v2979
        %v3043 = vadd.f32 %v3042, %v2980
        %v3044 = vadd.f32 %v3043, %v2981
        %v3045 = vadd.f32 %v3044, %v2982
        %v3046 = vadd.f32 %v3045, %v2983
        %v3047 = vadd.f32 %v3046, %v2984
        %v3048 = vadd.f32 %v3047, %v2985
        %v3049 = vadd.f32 %v3048, %v2986
        %v3050 = vadd.f32 %v3049, %v2987
        %v3051 = vadd.f32 %v3050, %v2988
        %v3052 = vadd.f32 %v3051, %v2989
        %v3053 = vadd.f32 %v3052, %v2990
        %v3054 = vadd.f32 %v3053, %v2991
        %v3055 = vadd.f32 %v3054, %v2992
        %v3056 = vadd.f32 %v3055, %v2993
        %v3057 = vadd.f32 %v3056, %v2994
        %3058 = vadd.xlane.f32.xlu0 %v3057
        %v3059 = vpop.xlane.xlu0 %3058
        %v3060 = vrot.slane %v3059, 4
        %v3061 = vadd.f32 %v3059, %v3060
        %v3062 = vrot.slane %v3061, 2
        %v3063 = vadd.f32 %v3061, %v3062
        %v3064 = vrot.slane %v3063, 1
        %v3065 = vadd.f32 %v3063, %v3064
        %s3066 = vtos %v3065
        %s3067 = sadd.f32 %s979, %s3066
        %v3068 = vrsqrt.pop %v2867
        %v3069 = vmul.f32 %v2867, %v3068
        %vm3070 = vcmp.eq.f32.partialorder %v2867, inf
        %v3071 = vsel %vm3070, %v2867, %v3069
        %vm3072 = vcmp.eq.f32.partialorder %v2867, 0.0
        %v3073 = vand.u32 %v2867, 2147483648
        %v3074 = vsel %vm3072, %v3073, %v3071
        %v3075 = vrsqrt.pop %v2868
        %v3076 = vmul.f32 %v2868, %v3075
        %vm3077 = vcmp.eq.f32.partialorder %v2868, inf
        %v3078 = vsel %vm3077, %v2868, %v3076
        %vm3079 = vcmp.eq.f32.partialorder %v2868, 0.0
        %v3080 = vand.u32 %v2868, 2147483648
        %v3081 = vsel %vm3079, %v3080, %v3078
        %v3082 = vrsqrt.pop %v2869
        %v3083 = vmul.f32 %v2869, %v3082
        %vm3084 = vcmp.eq.f32.partialorder %v2869, inf
        %v3085 = vsel %vm3084, %v2869, %v3083
        %vm3086 = vcmp.eq.f32.partialorder %v2869, 0.0
        %v3087 = vand.u32 %v2869, 2147483648
        %v3088 = vsel %vm3086, %v3087, %v3085
        %v3089 = vrsqrt.pop %v2870
        %v3090 = vmul.f32 %v2870, %v3089
        %vm3091 = vcmp.eq.f32.partialorder %v2870, inf
        %v3092 = vsel %vm3091, %v2870, %v3090
        %vm3093 = vcmp.eq.f32.partialorder %v2870, 0.0
        %v3094 = vand.u32 %v2870, 2147483648
        %v3095 = vsel %vm3093, %v3094, %v3092
        %v3096 = vrsqrt.pop %v2871
        %v3097 = vmul.f32 %v2871, %v3096
        %vm3098 = vcmp.eq.f32.partialorder %v2871, inf
        %v3099 = vsel %vm3098, %v2871, %v3097
        %vm3100 = vcmp.eq.f32.partialorder %v2871, 0.0
        %v3101 = vand.u32 %v2871, 2147483648
        %v3102 = vsel %vm3100, %v3101, %v3099
        %v3103 = vrsqrt.pop %v2872
        %v3104 = vmul.f32 %v2872, %v3103
        %vm3105 = vcmp.eq.f32.partialorder %v2872, inf
        %v3106 = vsel %vm3105, %v2872, %v3104
        %vm3107 = vcmp.eq.f32.partialorder %v2872, 0.0
        %v3108 = vand.u32 %v2872, 2147483648
        %v3109 = vsel %vm3107, %v3108, %v3106
        %v3110 = vrsqrt.pop %v2873
        %v3111 = vmul.f32 %v2873, %v3110
        %vm3112 = vcmp.eq.f32.partialorder %v2873, inf
        %v3113 = vsel %vm3112, %v2873, %v3111
        %vm3114 = vcmp.eq.f32.partialorder %v2873, 0.0
        %v3115 = vand.u32 %v2873, 2147483648
        %v3116 = vsel %vm3114, %v3115, %v3113
        %v3117 = vrsqrt.pop %v2874
        %v3118 = vmul.f32 %v2874, %v3117
        %vm3119 = vcmp.eq.f32.partialorder %v2874, inf
        %v3120 = vsel %vm3119, %v2874, %v3118
        %vm3121 = vcmp.eq.f32.partialorder %v2874, 0.0
        %v3122 = vand.u32 %v2874, 2147483648
        %v3123 = vsel %vm3121, %v3122, %v3120
        %v3124 = vrsqrt.pop %v2875
        %v3125 = vmul.f32 %v2875, %v3124
        %vm3126 = vcmp.eq.f32.partialorder %v2875, inf
        %v3127 = vsel %vm3126, %v2875, %v3125
        %vm3128 = vcmp.eq.f32.partialorder %v2875, 0.0
        %v3129 = vand.u32 %v2875, 2147483648
        %v3130 = vsel %vm3128, %v3129, %v3127
        %v3131 = vrsqrt.pop %v2876
        %v3132 = vmul.f32 %v2876, %v3131
        %vm3133 = vcmp.eq.f32.partialorder %v2876, inf
        %v3134 = vsel %vm3133, %v2876, %v3132
        %vm3135 = vcmp.eq.f32.partialorder %v2876, 0.0
        %v3136 = vand.u32 %v2876, 2147483648
        %v3137 = vsel %vm3135, %v3136, %v3134
        %v3138 = vrsqrt.pop %v2877
        %v3139 = vmul.f32 %v2877, %v3138
        %vm3140 = vcmp.eq.f32.partialorder %v2877, inf
        %v3141 = vsel %vm3140, %v2877, %v3139
        %vm3142 = vcmp.eq.f32.partialorder %v2877, 0.0
        %v3143 = vand.u32 %v2877, 2147483648
        %v3144 = vsel %vm3142, %v3143, %v3141
        %v3145 = vrsqrt.pop %v2878
        %v3146 = vmul.f32 %v2878, %v3145
        %vm3147 = vcmp.eq.f32.partialorder %v2878, inf
        %v3148 = vsel %vm3147, %v2878, %v3146
        %vm3149 = vcmp.eq.f32.partialorder %v2878, 0.0
        %v3150 = vand.u32 %v2878, 2147483648
        %v3151 = vsel %vm3149, %v3150, %v3148
        %v3152 = vrsqrt.pop %v2879
        %v3153 = vmul.f32 %v2879, %v3152
        %vm3154 = vcmp.eq.f32.partialorder %v2879, inf
        %v3155 = vsel %vm3154, %v2879, %v3153
        %vm3156 = vcmp.eq.f32.partialorder %v2879, 0.0
        %v3157 = vand.u32 %v2879, 2147483648
        %v3158 = vsel %vm3156, %v3157, %v3155
        %v3159 = vrsqrt.pop %v2880
        %v3160 = vmul.f32 %v2880, %v3159
        %vm3161 = vcmp.eq.f32.partialorder %v2880, inf
        %v3162 = vsel %vm3161, %v2880, %v3160
        %vm3163 = vcmp.eq.f32.partialorder %v2880, 0.0
        %v3164 = vand.u32 %v2880, 2147483648
        %v3165 = vsel %vm3163, %v3164, %v3162
        %v3166 = vrsqrt.pop %v2881
        %v3167 = vmul.f32 %v2881, %v3166
        %vm3168 = vcmp.eq.f32.partialorder %v2881, inf
        %v3169 = vsel %vm3168, %v2881, %v3167
        %vm3170 = vcmp.eq.f32.partialorder %v2881, 0.0
        %v3171 = vand.u32 %v2881, 2147483648
        %v3172 = vsel %vm3170, %v3171, %v3169
        %v3173 = vrsqrt.pop %v2882
        %v3174 = vmul.f32 %v2882, %v3173
        %vm3175 = vcmp.eq.f32.partialorder %v2882, inf
        %v3176 = vsel %vm3175, %v2882, %v3174
        %vm3177 = vcmp.eq.f32.partialorder %v2882, 0.0
        %v3178 = vand.u32 %v2882, 2147483648
        %v3179 = vsel %vm3177, %v3178, %v3176
        %v3180 = vrsqrt.pop %v2883
        %v3181 = vmul.f32 %v2883, %v3180
        %vm3182 = vcmp.eq.f32.partialorder %v2883, inf
        %v3183 = vsel %vm3182, %v2883, %v3181
        %vm3184 = vcmp.eq.f32.partialorder %v2883, 0.0
        %v3185 = vand.u32 %v2883, 2147483648
        %v3186 = vsel %vm3184, %v3185, %v3183
        %v3187 = vrsqrt.pop %v2884
        %v3188 = vmul.f32 %v2884, %v3187
        %vm3189 = vcmp.eq.f32.partialorder %v2884, inf
        %v3190 = vsel %vm3189, %v2884, %v3188
        %vm3191 = vcmp.eq.f32.partialorder %v2884, 0.0
        %v3192 = vand.u32 %v2884, 2147483648
        %v3193 = vsel %vm3191, %v3192, %v3190
        %v3194 = vrsqrt.pop %v2885
        %v3195 = vmul.f32 %v2885, %v3194
        %vm3196 = vcmp.eq.f32.partialorder %v2885, inf
        %v3197 = vsel %vm3196, %v2885, %v3195
        %vm3198 = vcmp.eq.f32.partialorder %v2885, 0.0
        %v3199 = vand.u32 %v2885, 2147483648
        %v3200 = vsel %vm3198, %v3199, %v3197
        %v3201 = vrsqrt.pop %v2886
        %v3202 = vmul.f32 %v2886, %v3201
        %vm3203 = vcmp.eq.f32.partialorder %v2886, inf
        %v3204 = vsel %vm3203, %v2886, %v3202
        %vm3205 = vcmp.eq.f32.partialorder %v2886, 0.0
        %v3206 = vand.u32 %v2886, 2147483648
        %v3207 = vsel %vm3205, %v3206, %v3204
        %v3208 = vrsqrt.pop %v2887
        %v3209 = vmul.f32 %v2887, %v3208
        %vm3210 = vcmp.eq.f32.partialorder %v2887, inf
        %v3211 = vsel %vm3210, %v2887, %v3209
        %vm3212 = vcmp.eq.f32.partialorder %v2887, 0.0
        %v3213 = vand.u32 %v2887, 2147483648
        %v3214 = vsel %vm3212, %v3213, %v3211
        %v3215 = vrsqrt.pop %v2888
        %v3216 = vmul.f32 %v2888, %v3215
        %vm3217 = vcmp.eq.f32.partialorder %v2888, inf
        %v3218 = vsel %vm3217, %v2888, %v3216
        %vm3219 = vcmp.eq.f32.partialorder %v2888, 0.0
        %v3220 = vand.u32 %v2888, 2147483648
        %v3221 = vsel %vm3219, %v3220, %v3218
        %v3222 = vrsqrt.pop %v2889
        %v3223 = vmul.f32 %v2889, %v3222
        %vm3224 = vcmp.eq.f32.partialorder %v2889, inf
        %v3225 = vsel %vm3224, %v2889, %v3223
        %vm3226 = vcmp.eq.f32.partialorder %v2889, 0.0
        %v3227 = vand.u32 %v2889, 2147483648
        %v3228 = vsel %vm3226, %v3227, %v3225
        %v3229 = vrsqrt.pop %v2890
        %v3230 = vmul.f32 %v2890, %v3229
        %vm3231 = vcmp.eq.f32.partialorder %v2890, inf
        %v3232 = vsel %vm3231, %v2890, %v3230
        %vm3233 = vcmp.eq.f32.partialorder %v2890, 0.0
        %v3234 = vand.u32 %v2890, 2147483648
        %v3235 = vsel %vm3233, %v3234, %v3232
        %v3236 = vrsqrt.pop %v2891
        %v3237 = vmul.f32 %v2891, %v3236
        %vm3238 = vcmp.eq.f32.partialorder %v2891, inf
        %v3239 = vsel %vm3238, %v2891, %v3237
        %vm3240 = vcmp.eq.f32.partialorder %v2891, 0.0
        %v3241 = vand.u32 %v2891, 2147483648
        %v3242 = vsel %vm3240, %v3241, %v3239
        %v3243 = vrsqrt.pop %v2892
        %v3244 = vmul.f32 %v2892, %v3243
        %vm3245 = vcmp.eq.f32.partialorder %v2892, inf
        %v3246 = vsel %vm3245, %v2892, %v3244
        %vm3247 = vcmp.eq.f32.partialorder %v2892, 0.0
        %v3248 = vand.u32 %v2892, 2147483648
        %v3249 = vsel %vm3247, %v3248, %v3246
        %v3250 = vrsqrt.pop %v2893
        %v3251 = vmul.f32 %v2893, %v3250
        %vm3252 = vcmp.eq.f32.partialorder %v2893, inf
        %v3253 = vsel %vm3252, %v2893, %v3251
        %vm3254 = vcmp.eq.f32.partialorder %v2893, 0.0
        %v3255 = vand.u32 %v2893, 2147483648
        %v3256 = vsel %vm3254, %v3255, %v3253
        %v3257 = vrsqrt.pop %v2894
        %v3258 = vmul.f32 %v2894, %v3257
        %vm3259 = vcmp.eq.f32.partialorder %v2894, inf
        %v3260 = vsel %vm3259, %v2894, %v3258
        %vm3261 = vcmp.eq.f32.partialorder %v2894, 0.0
        %v3262 = vand.u32 %v2894, 2147483648
        %v3263 = vsel %vm3261, %v3262, %v3260
        %v3264 = vrsqrt.pop %v2895
        %v3265 = vmul.f32 %v2895, %v3264
        %vm3266 = vcmp.eq.f32.partialorder %v2895, inf
        %v3267 = vsel %vm3266, %v2895, %v3265
        %vm3268 = vcmp.eq.f32.partialorder %v2895, 0.0
        %v3269 = vand.u32 %v2895, 2147483648
        %v3270 = vsel %vm3268, %v3269, %v3267
        %v3271 = vrsqrt.pop %v2896
        %v3272 = vmul.f32 %v2896, %v3271
        %vm3273 = vcmp.eq.f32.partialorder %v2896, inf
        %v3274 = vsel %vm3273, %v2896, %v3272
        %vm3275 = vcmp.eq.f32.partialorder %v2896, 0.0
        %v3276 = vand.u32 %v2896, 2147483648
        %v3277 = vsel %vm3275, %v3276, %v3274
        %v3278 = vrsqrt.pop %v2897
        %v3279 = vmul.f32 %v2897, %v3278
        %vm3280 = vcmp.eq.f32.partialorder %v2897, inf
        %v3281 = vsel %vm3280, %v2897, %v3279
        %vm3282 = vcmp.eq.f32.partialorder %v2897, 0.0
        %v3283 = vand.u32 %v2897, 2147483648
        %v3284 = vsel %vm3282, %v3283, %v3281
        %v3285 = vrsqrt.pop %v2898
        %v3286 = vmul.f32 %v2898, %v3285
        %vm3287 = vcmp.eq.f32.partialorder %v2898, inf
        %v3288 = vsel %vm3287, %v2898, %v3286
        %vm3289 = vcmp.eq.f32.partialorder %v2898, 0.0
        %v3290 = vand.u32 %v2898, 2147483648
        %v3291 = vsel %vm3289, %v3290, %v3288
        %v3292 = vrsqrt.pop %v2899
        %v3293 = vmul.f32 %v2899, %v3292
        %vm3294 = vcmp.eq.f32.partialorder %v2899, inf
        %v3295 = vsel %vm3294, %v2899, %v3293
        %vm3296 = vcmp.eq.f32.partialorder %v2899, 0.0
        %v3297 = vand.u32 %v2899, 2147483648
        %v3298 = vsel %vm3296, %v3297, %v3295
        %v3299 = vrsqrt.pop %v2900
        %v3300 = vmul.f32 %v2900, %v3299
        %vm3301 = vcmp.eq.f32.partialorder %v2900, inf
        %v3302 = vsel %vm3301, %v2900, %v3300
        %vm3303 = vcmp.eq.f32.partialorder %v2900, 0.0
        %v3304 = vand.u32 %v2900, 2147483648
        %v3305 = vsel %vm3303, %v3304, %v3302
        %v3306 = vrsqrt.pop %v2901
        %v3307 = vmul.f32 %v2901, %v3306
        %vm3308 = vcmp.eq.f32.partialorder %v2901, inf
        %v3309 = vsel %vm3308, %v2901, %v3307
        %vm3310 = vcmp.eq.f32.partialorder %v2901, 0.0
        %v3311 = vand.u32 %v2901, 2147483648
        %v3312 = vsel %vm3310, %v3311, %v3309
        %v3313 = vrsqrt.pop %v2902
        %v3314 = vmul.f32 %v2902, %v3313
        %vm3315 = vcmp.eq.f32.partialorder %v2902, inf
        %v3316 = vsel %vm3315, %v2902, %v3314
        %vm3317 = vcmp.eq.f32.partialorder %v2902, 0.0
        %v3318 = vand.u32 %v2902, 2147483648
        %v3319 = vsel %vm3317, %v3318, %v3316
        %v3320 = vrsqrt.pop %v2903
        %v3321 = vmul.f32 %v2903, %v3320
        %vm3322 = vcmp.eq.f32.partialorder %v2903, inf
        %v3323 = vsel %vm3322, %v2903, %v3321
        %vm3324 = vcmp.eq.f32.partialorder %v2903, 0.0
        %v3325 = vand.u32 %v2903, 2147483648
        %v3326 = vsel %vm3324, %v3325, %v3323
        %v3327 = vrsqrt.pop %v2904
        %v3328 = vmul.f32 %v2904, %v3327
        %vm3329 = vcmp.eq.f32.partialorder %v2904, inf
        %v3330 = vsel %vm3329, %v2904, %v3328
        %vm3331 = vcmp.eq.f32.partialorder %v2904, 0.0
        %v3332 = vand.u32 %v2904, 2147483648
        %v3333 = vsel %vm3331, %v3332, %v3330
        %v3334 = vrsqrt.pop %v2905
        %v3335 = vmul.f32 %v2905, %v3334
        %vm3336 = vcmp.eq.f32.partialorder %v2905, inf
        %v3337 = vsel %vm3336, %v2905, %v3335
        %vm3338 = vcmp.eq.f32.partialorder %v2905, 0.0
        %v3339 = vand.u32 %v2905, 2147483648
        %v3340 = vsel %vm3338, %v3339, %v3337
        %v3341 = vrsqrt.pop %v2906
        %v3342 = vmul.f32 %v2906, %v3341
        %vm3343 = vcmp.eq.f32.partialorder %v2906, inf
        %v3344 = vsel %vm3343, %v2906, %v3342
        %vm3345 = vcmp.eq.f32.partialorder %v2906, 0.0
        %v3346 = vand.u32 %v2906, 2147483648
        %v3347 = vsel %vm3345, %v3346, %v3344
        %v3348 = vrsqrt.pop %v2907
        %v3349 = vmul.f32 %v2907, %v3348
        %vm3350 = vcmp.eq.f32.partialorder %v2907, inf
        %v3351 = vsel %vm3350, %v2907, %v3349
        %vm3352 = vcmp.eq.f32.partialorder %v2907, 0.0
        %v3353 = vand.u32 %v2907, 2147483648
        %v3354 = vsel %vm3352, %v3353, %v3351
        %v3355 = vrsqrt.pop %v2908
        %v3356 = vmul.f32 %v2908, %v3355
        %vm3357 = vcmp.eq.f32.partialorder %v2908, inf
        %v3358 = vsel %vm3357, %v2908, %v3356
        %vm3359 = vcmp.eq.f32.partialorder %v2908, 0.0
        %v3360 = vand.u32 %v2908, 2147483648
        %v3361 = vsel %vm3359, %v3360, %v3358
        %v3362 = vrsqrt.pop %v2909
        %v3363 = vmul.f32 %v2909, %v3362
        %vm3364 = vcmp.eq.f32.partialorder %v2909, inf
        %v3365 = vsel %vm3364, %v2909, %v3363
        %vm3366 = vcmp.eq.f32.partialorder %v2909, 0.0
        %v3367 = vand.u32 %v2909, 2147483648
        %v3368 = vsel %vm3366, %v3367, %v3365
        %v3369 = vrsqrt.pop %v2910
        %v3370 = vmul.f32 %v2910, %v3369
        %vm3371 = vcmp.eq.f32.partialorder %v2910, inf
        %v3372 = vsel %vm3371, %v2910, %v3370
        %vm3373 = vcmp.eq.f32.partialorder %v2910, 0.0
        %v3374 = vand.u32 %v2910, 2147483648
        %v3375 = vsel %vm3373, %v3374, %v3372
        %v3376 = vrsqrt.pop %v2911
        %v3377 = vmul.f32 %v2911, %v3376
        %vm3378 = vcmp.eq.f32.partialorder %v2911, inf
        %v3379 = vsel %vm3378, %v2911, %v3377
        %vm3380 = vcmp.eq.f32.partialorder %v2911, 0.0
        %v3381 = vand.u32 %v2911, 2147483648
        %v3382 = vsel %vm3380, %v3381, %v3379
        %v3383 = vrsqrt.pop %v2912
        %v3384 = vmul.f32 %v2912, %v3383
        %vm3385 = vcmp.eq.f32.partialorder %v2912, inf
        %v3386 = vsel %vm3385, %v2912, %v3384
        %vm3387 = vcmp.eq.f32.partialorder %v2912, 0.0
        %v3388 = vand.u32 %v2912, 2147483648
        %v3389 = vsel %vm3387, %v3388, %v3386
        %v3390 = vrsqrt.pop %v2913
        %v3391 = vmul.f32 %v2913, %v3390
        %vm3392 = vcmp.eq.f32.partialorder %v2913, inf
        %v3393 = vsel %vm3392, %v2913, %v3391
        %vm3394 = vcmp.eq.f32.partialorder %v2913, 0.0
        %v3395 = vand.u32 %v2913, 2147483648
        %v3396 = vsel %vm3394, %v3395, %v3393
        %v3397 = vrsqrt.pop %v2914
        %v3398 = vmul.f32 %v2914, %v3397
        %vm3399 = vcmp.eq.f32.partialorder %v2914, inf
        %v3400 = vsel %vm3399, %v2914, %v3398
        %vm3401 = vcmp.eq.f32.partialorder %v2914, 0.0
        %v3402 = vand.u32 %v2914, 2147483648
        %v3403 = vsel %vm3401, %v3402, %v3400
        %v3404 = vrsqrt.pop %v2915
        %v3405 = vmul.f32 %v2915, %v3404
        %vm3406 = vcmp.eq.f32.partialorder %v2915, inf
        %v3407 = vsel %vm3406, %v2915, %v3405
        %vm3408 = vcmp.eq.f32.partialorder %v2915, 0.0
        %v3409 = vand.u32 %v2915, 2147483648
        %v3410 = vsel %vm3408, %v3409, %v3407
        %v3411 = vrsqrt.pop %v2916
        %v3412 = vmul.f32 %v2916, %v3411
        %vm3413 = vcmp.eq.f32.partialorder %v2916, inf
        %v3414 = vsel %vm3413, %v2916, %v3412
        %vm3415 = vcmp.eq.f32.partialorder %v2916, 0.0
        %v3416 = vand.u32 %v2916, 2147483648
        %v3417 = vsel %vm3415, %v3416, %v3414
        %v3418 = vrsqrt.pop %v2917
        %v3419 = vmul.f32 %v2917, %v3418
        %vm3420 = vcmp.eq.f32.partialorder %v2917, inf
        %v3421 = vsel %vm3420, %v2917, %v3419
        %vm3422 = vcmp.eq.f32.partialorder %v2917, 0.0
        %v3423 = vand.u32 %v2917, 2147483648
        %v3424 = vsel %vm3422, %v3423, %v3421
        %v3425 = vrsqrt.pop %v2918
        %v3426 = vmul.f32 %v2918, %v3425
        %vm3427 = vcmp.eq.f32.partialorder %v2918, inf
        %v3428 = vsel %vm3427, %v2918, %v3426
        %vm3429 = vcmp.eq.f32.partialorder %v2918, 0.0
        %v3430 = vand.u32 %v2918, 2147483648
        %v3431 = vsel %vm3429, %v3430, %v3428
        %v3432 = vrsqrt.pop %v2919
        %v3433 = vmul.f32 %v2919, %v3432
        %vm3434 = vcmp.eq.f32.partialorder %v2919, inf
        %v3435 = vsel %vm3434, %v2919, %v3433
        %vm3436 = vcmp.eq.f32.partialorder %v2919, 0.0
        %v3437 = vand.u32 %v2919, 2147483648
        %v3438 = vsel %vm3436, %v3437, %v3435
        %v3439 = vrsqrt.pop %v2920
        %v3440 = vmul.f32 %v2920, %v3439
        %vm3441 = vcmp.eq.f32.partialorder %v2920, inf
        %v3442 = vsel %vm3441, %v2920, %v3440
        %vm3443 = vcmp.eq.f32.partialorder %v2920, 0.0
        %v3444 = vand.u32 %v2920, 2147483648
        %v3445 = vsel %vm3443, %v3444, %v3442
        %v3446 = vrsqrt.pop %v2921
        %v3447 = vmul.f32 %v2921, %v3446
        %vm3448 = vcmp.eq.f32.partialorder %v2921, inf
        %v3449 = vsel %vm3448, %v2921, %v3447
        %vm3450 = vcmp.eq.f32.partialorder %v2921, 0.0
        %v3451 = vand.u32 %v2921, 2147483648
        %v3452 = vsel %vm3450, %v3451, %v3449
        %v3453 = vrsqrt.pop %v2922
        %v3454 = vmul.f32 %v2922, %v3453
        %vm3455 = vcmp.eq.f32.partialorder %v2922, inf
        %v3456 = vsel %vm3455, %v2922, %v3454
        %vm3457 = vcmp.eq.f32.partialorder %v2922, 0.0
        %v3458 = vand.u32 %v2922, 2147483648
        %v3459 = vsel %vm3457, %v3458, %v3456
        %v3460 = vrsqrt.pop %v2923
        %v3461 = vmul.f32 %v2923, %v3460
        %vm3462 = vcmp.eq.f32.partialorder %v2923, inf
        %v3463 = vsel %vm3462, %v2923, %v3461
        %vm3464 = vcmp.eq.f32.partialorder %v2923, 0.0
        %v3465 = vand.u32 %v2923, 2147483648
        %v3466 = vsel %vm3464, %v3465, %v3463
        %v3467 = vrsqrt.pop %v2924
        %v3468 = vmul.f32 %v2924, %v3467
        %vm3469 = vcmp.eq.f32.partialorder %v2924, inf
        %v3470 = vsel %vm3469, %v2924, %v3468
        %vm3471 = vcmp.eq.f32.partialorder %v2924, 0.0
        %v3472 = vand.u32 %v2924, 2147483648
        %v3473 = vsel %vm3471, %v3472, %v3470
        %v3474 = vrsqrt.pop %v2925
        %v3475 = vmul.f32 %v2925, %v3474
        %vm3476 = vcmp.eq.f32.partialorder %v2925, inf
        %v3477 = vsel %vm3476, %v2925, %v3475
        %vm3478 = vcmp.eq.f32.partialorder %v2925, 0.0
        %v3479 = vand.u32 %v2925, 2147483648
        %v3480 = vsel %vm3478, %v3479, %v3477
        %v3481 = vrsqrt.pop %v2926
        %v3482 = vmul.f32 %v2926, %v3481
        %vm3483 = vcmp.eq.f32.partialorder %v2926, inf
        %v3484 = vsel %vm3483, %v2926, %v3482
        %vm3485 = vcmp.eq.f32.partialorder %v2926, 0.0
        %v3486 = vand.u32 %v2926, 2147483648
        %v3487 = vsel %vm3485, %v3486, %v3484
        %v3488 = vrsqrt.pop %v2927
        %v3489 = vmul.f32 %v2927, %v3488
        %vm3490 = vcmp.eq.f32.partialorder %v2927, inf
        %v3491 = vsel %vm3490, %v2927, %v3489
        %vm3492 = vcmp.eq.f32.partialorder %v2927, 0.0
        %v3493 = vand.u32 %v2927, 2147483648
        %v3494 = vsel %vm3492, %v3493, %v3491
        %v3495 = vrsqrt.pop %v2928
        %v3496 = vmul.f32 %v2928, %v3495
        %vm3497 = vcmp.eq.f32.partialorder %v2928, inf
        %v3498 = vsel %vm3497, %v2928, %v3496
        %vm3499 = vcmp.eq.f32.partialorder %v2928, 0.0
        %v3500 = vand.u32 %v2928, 2147483648
        %v3501 = vsel %vm3499, %v3500, %v3498
        %v3502 = vrsqrt.pop %v2929
        %v3503 = vmul.f32 %v2929, %v3502
        %vm3504 = vcmp.eq.f32.partialorder %v2929, inf
        %v3505 = vsel %vm3504, %v2929, %v3503
        %vm3506 = vcmp.eq.f32.partialorder %v2929, 0.0
        %v3507 = vand.u32 %v2929, 2147483648
        %v3508 = vsel %vm3506, %v3507, %v3505
        %v3509 = vrsqrt.pop %v2930
        %v3510 = vmul.f32 %v2930, %v3509
        %vm3511 = vcmp.eq.f32.partialorder %v2930, inf
        %v3512 = vsel %vm3511, %v2930, %v3510
        %vm3513 = vcmp.eq.f32.partialorder %v2930, 0.0
        %v3514 = vand.u32 %v2930, 2147483648
        %v3515 = vsel %vm3513, %v3514, %v3512
        %v3644 = vand.u32 %v2548, 2147483648
        %v3645 = vand.u32 %v2550, 2147483648
        %v3646 = vand.u32 %v2661, 2147483648
        %v3647 = vand.u32 %v2663, 2147483648
        %v3648 = vand.u32 %v2552, 2147483648
        %v3649 = vand.u32 %v2554, 2147483648
        %v3650 = vand.u32 %v2665, 2147483648
        %v3651 = vand.u32 %v2667, 2147483648
        %v3652 = vand.u32 %v2558, 2147483648
        %v3653 = vand.u32 %v2560, 2147483648
        %v3654 = vand.u32 %v2671, 2147483648
        %v3655 = vand.u32 %v2673, 2147483648
        %v3656 = vand.u32 %v2562, 2147483648
        %v3657 = vand.u32 %v2564, 2147483648
        %v3658 = vand.u32 %v2675, 2147483648
        %v3659 = vand.u32 %v2677, 2147483648
        %v3660 = vand.u32 %v2568, 2147483648
        %v3661 = vand.u32 %v2570, 2147483648
        %v3662 = vand.u32 %v2681, 2147483648
        %v3663 = vand.u32 %v2683, 2147483648
        %v3664 = vand.u32 %v2572, 2147483648
        %v3665 = vand.u32 %v2574, 2147483648
        %v3666 = vand.u32 %v2685, 2147483648
        %v3667 = vand.u32 %v2687, 2147483648
        %v3668 = vand.u32 %v2578, 2147483648
        %v3669 = vand.u32 %v2580, 2147483648
        %v3670 = vand.u32 %v2691, 2147483648
        %v3671 = vand.u32 %v2693, 2147483648
        %v3672 = vand.u32 %v2582, 2147483648
        %v3673 = vand.u32 %v2584, 2147483648
        %v3674 = vand.u32 %v2695, 2147483648
        %v3675 = vand.u32 %v2697, 2147483648
        %v3676 = vand.u32 %v2588, 2147483648
        %v3677 = vand.u32 %v2590, 2147483648
        %v3678 = vand.u32 %v2701, 2147483648
        %v3679 = vand.u32 %v2703, 2147483648
        %v3680 = vand.u32 %v2592, 2147483648
        %v3681 = vand.u32 %v2594, 2147483648
        %v3682 = vand.u32 %v2705, 2147483648
        %v3683 = vand.u32 %v2707, 2147483648
        %v3684 = vand.u32 %v2598, 2147483648
        %v3685 = vand.u32 %v2600, 2147483648
        %v3686 = vand.u32 %v2711, 2147483648
        %v3687 = vand.u32 %v2713, 2147483648
        %v3688 = vand.u32 %v2602, 2147483648
        %v3689 = vand.u32 %v2604, 2147483648
        %v3690 = vand.u32 %v2715, 2147483648
        %v3691 = vand.u32 %v2717, 2147483648
        %v3692 = vand.u32 %v2608, 2147483648
        %v3693 = vand.u32 %v2610, 2147483648
        %v3694 = vand.u32 %v2721, 2147483648
        %v3695 = vand.u32 %v2723, 2147483648
        %v3696 = vand.u32 %v2612, 2147483648
        %v3697 = vand.u32 %v2614, 2147483648
        %v3698 = vand.u32 %v2725, 2147483648
        %v3699 = vand.u32 %v2727, 2147483648
        %v3700 = vand.u32 %v2618, 2147483648
        %v3701 = vand.u32 %v2620, 2147483648
        %v3702 = vand.u32 %v2731, 2147483648
        %v3703 = vand.u32 %v2733, 2147483648
        %v3704 = vand.u32 %v2622, 2147483648
        %v3705 = vand.u32 %v2624, 2147483648
        %v3706 = vand.u32 %v2735, 2147483648
        %v3707 = vand.u32 %v2737, 2147483648
        %v3708 = vor.u32 %v3074, %v3644
        %v3709 = vor.u32 %v3081, %v3645
        %v3710 = vor.u32 %v3088, %v3646
        %v3711 = vor.u32 %v3095, %v3647
        %v3712 = vor.u32 %v3102, %v3648
        %v3713 = vor.u32 %v3109, %v3649
        %v3714 = vor.u32 %v3116, %v3650
        %v3715 = vor.u32 %v3123, %v3651
        %v3716 = vor.u32 %v3130, %v3652
        %v3717 = vor.u32 %v3137, %v3653
        %v3718 = vor.u32 %v3144, %v3654
        %v3719 = vor.u32 %v3151, %v3655
        %v3720 = vor.u32 %v3158, %v3656
        %v3721 = vor.u32 %v3165, %v3657
        %v3722 = vor.u32 %v3172, %v3658
        %v3723 = vor.u32 %v3179, %v3659
        %v3724 = vor.u32 %v3186, %v3660
        %v3725 = vor.u32 %v3193, %v3661
        %v3726 = vor.u32 %v3200, %v3662
        %v3727 = vor.u32 %v3207, %v3663
        %v3728 = vor.u32 %v3214, %v3664
        %v3729 = vor.u32 %v3221, %v3665
        %v3730 = vor.u32 %v3228, %v3666
        %v3731 = vor.u32 %v3235, %v3667
        %v3732 = vor.u32 %v3242, %v3668
        %v3733 = vor.u32 %v3249, %v3669
        %v3734 = vor.u32 %v3256, %v3670
        %v3735 = vor.u32 %v3263, %v3671
        %v3736 = vor.u32 %v3270, %v3672
        %v3737 = vor.u32 %v3277, %v3673
        %v3738 = vor.u32 %v3284, %v3674
        %v3739 = vor.u32 %v3291, %v3675
        %v3740 = vor.u32 %v3298, %v3676
        %v3741 = vor.u32 %v3305, %v3677
        %v3742 = vor.u32 %v3312, %v3678
        %v3743 = vor.u32 %v3319, %v3679
        %v3744 = vor.u32 %v3326, %v3680
        %v3745 = vor.u32 %v3333, %v3681
        %v3746 = vor.u32 %v3340, %v3682
        %v3747 = vor.u32 %v3347, %v3683
        %v3748 = vor.u32 %v3354, %v3684
        %v3749 = vor.u32 %v3361, %v3685
        %v3750 = vor.u32 %v3368, %v3686
        %v3751 = vor.u32 %v3375, %v3687
        %v3752 = vor.u32 %v3382, %v3688
        %v3753 = vor.u32 %v3389, %v3689
        %v3754 = vor.u32 %v3396, %v3690
        %v3755 = vor.u32 %v3403, %v3691
        %v3756 = vor.u32 %v3410, %v3692
        %v3757 = vor.u32 %v3417, %v3693
        %v3758 = vor.u32 %v3424, %v3694
        %v3759 = vor.u32 %v3431, %v3695
        %v3760 = vor.u32 %v3438, %v3696
        %v3761 = vor.u32 %v3445, %v3697
        %v3762 = vor.u32 %v3452, %v3698
        %v3763 = vor.u32 %v3459, %v3699
        %v3764 = vor.u32 %v3466, %v3700
        %v3765 = vor.u32 %v3473, %v3701
        %v3766 = vor.u32 %v3480, %v3702
        %v3767 = vor.u32 %v3487, %v3703
        %v3768 = vor.u32 %v3494, %v3704
        %v3769 = vor.u32 %v3501, %v3705
        %v3770 = vor.u32 %v3508, %v3706
        %v3771 = vor.u32 %v3515, %v3707
        %v3836 = vsel %vm2739, 0.0, %v3708
        %v3837 = vsel %vm2740, 0.0, %v3709
        %v3838 = vsel %vm2741, 0.0, %v3710
        %v3839 = vsel %vm2742, 0.0, %v3711
        %v3840 = vsel %vm2743, 0.0, %v3712
        %v3841 = vsel %vm2744, 0.0, %v3713
        %v3842 = vsel %vm2745, 0.0, %v3714
        %v3843 = vsel %vm2746, 0.0, %v3715
        %v3844 = vsel %vm2747, 0.0, %v3716
        %v3845 = vsel %vm2748, 0.0, %v3717
        %v3846 = vsel %vm2749, 0.0, %v3718
        %v3847 = vsel %vm2750, 0.0, %v3719
        %v3848 = vsel %vm2751, 0.0, %v3720
        %v3849 = vsel %vm2752, 0.0, %v3721
        %v3850 = vsel %vm2753, 0.0, %v3722
        %v3851 = vsel %vm2754, 0.0, %v3723
        %v3852 = vsel %vm2755, 0.0, %v3724
        %v3853 = vsel %vm2756, 0.0, %v3725
        %v3854 = vsel %vm2757, 0.0, %v3726
        %v3855 = vsel %vm2758, 0.0, %v3727
        %v3856 = vsel %vm2759, 0.0, %v3728
        %v3857 = vsel %vm2760, 0.0, %v3729
        %v3858 = vsel %vm2761, 0.0, %v3730
        %v3859 = vsel %vm2762, 0.0, %v3731
        %v3860 = vsel %vm2763, 0.0, %v3732
        %v3861 = vsel %vm2764, 0.0, %v3733
        %v3862 = vsel %vm2765, 0.0, %v3734
        %v3863 = vsel %vm2766, 0.0, %v3735
        %v3864 = vsel %vm2767, 0.0, %v3736
        %v3865 = vsel %vm2768, 0.0, %v3737
        %v3866 = vsel %vm2769, 0.0, %v3738
        %v3867 = vsel %vm2770, 0.0, %v3739
        %v3868 = vsel %vm2771, 0.0, %v3740
        %v3869 = vsel %vm2772, 0.0, %v3741
        %v3870 = vsel %vm2773, 0.0, %v3742
        %v3871 = vsel %vm2774, 0.0, %v3743
        %v3872 = vsel %vm2775, 0.0, %v3744
        %v3873 = vsel %vm2776, 0.0, %v3745
        %v3874 = vsel %vm2777, 0.0, %v3746
        %v3875 = vsel %vm2778, 0.0, %v3747
        %v3876 = vsel %vm2779, 0.0, %v3748
        %v3877 = vsel %vm2780, 0.0, %v3749
        %v3878 = vsel %vm2781, 0.0, %v3750
        %v3879 = vsel %vm2782, 0.0, %v3751
        %v3880 = vsel %vm2783, 0.0, %v3752
        %v3881 = vsel %vm2784, 0.0, %v3753
        %v3882 = vsel %vm2785, 0.0, %v3754
        %v3883 = vsel %vm2786, 0.0, %v3755
        %v3884 = vsel %vm2787, 0.0, %v3756
        %v3885 = vsel %vm2788, 0.0, %v3757
        %v3886 = vsel %vm2789, 0.0, %v3758
        %v3887 = vsel %vm2790, 0.0, %v3759
        %v3888 = vsel %vm2791, 0.0, %v3760
        %v3889 = vsel %vm2792, 0.0, %v3761
        %v3890 = vsel %vm2793, 0.0, %v3762
        %v3891 = vsel %vm2794, 0.0, %v3763
        %v3892 = vsel %vm2795, 0.0, %v3764
        %v3893 = vsel %vm2796, 0.0, %v3765
        %v3894 = vsel %vm2797, 0.0, %v3766
        %v3895 = vsel %vm2798, 0.0, %v3767
        %v3896 = vsel %vm2799, 0.0, %v3768
        %v3897 = vsel %vm2800, 0.0, %v3769
        %v3898 = vsel %vm2801, 0.0, %v3770
        %v3899 = vsel %vm2802, 0.0, %v3771
        %v3900 = vld [vmem:[%s1 + $0x100] sm:$0xff]
        %v3901 = vld [vmem:[%s1 + $0x108] sm:$0xff]
        %v3902 = vld [vmem:[%s1 + $0x110] sm:$0xff]
        %v3903 = vld [vmem:[%s1 + $0x118] sm:$0xff]
        %v3904 = vld [vmem:[%s1 + $0x120] sm:$0xff]
        %v3905 = vld [vmem:[%s1 + $0x128] sm:$0xff]
        %v3906 = vld [vmem:[%s1 + $0x130] sm:$0xff]
        %v3907 = vld [vmem:[%s1 + $0x138] sm:$0xff]
        %v3908 = vld [vmem:[%s1 + $0x140] sm:$0xff]
        %v3909 = vld [vmem:[%s1 + $0x148] sm:$0xff]
        %v3910 = vld [vmem:[%s1 + $0x150] sm:$0xff]
        %v3911 = vld [vmem:[%s1 + $0x158] sm:$0xff]
        %v3912 = vld [vmem:[%s1 + $0x160] sm:$0xff]
        %v3913 = vld [vmem:[%s1 + $0x168] sm:$0xff]
        %v3914 = vld [vmem:[%s1 + $0x170] sm:$0xff]
        %v3915 = vld [vmem:[%s1 + $0x178] sm:$0xff]
        %v3916 = vld [vmem:[%s1 + $0x180] sm:$0xff]
        %v3917 = vld [vmem:[%s1 + $0x188] sm:$0xff]
        %v3918 = vld [vmem:[%s1 + $0x190] sm:$0xff]
        %v3919 = vld [vmem:[%s1 + $0x198] sm:$0xff]
        %v3920 = vld [vmem:[%s1 + $0x1a0] sm:$0xff]
        %v3921 = vld [vmem:[%s1 + $0x1a8] sm:$0xff]
        %v3922 = vld [vmem:[%s1 + $0x1b0] sm:$0xff]
        %v3923 = vld [vmem:[%s1 + $0x1b8] sm:$0xff]
        %v3924 = vld [vmem:[%s1 + $0x1c0] sm:$0xff]
        %v3925 = vld [vmem:[%s1 + $0x1c8] sm:$0xff]
        %v3926 = vld [vmem:[%s1 + $0x1d0] sm:$0xff]
        %v3927 = vld [vmem:[%s1 + $0x1d8] sm:$0xff]
        %v3928 = vld [vmem:[%s1 + $0x1e0] sm:$0xff]
        %v3929 = vld [vmem:[%s1 + $0x1e8] sm:$0xff]
        %v3930 = vld [vmem:[%s1 + $0x1f0] sm:$0xff]
        %v3931 = vld [vmem:[%s1 + $0x1f8] sm:$0xff]
        %v3932 = vunpack.c.l.bf16 %v3900
        %v3933 = vunpack.c.h.bf16 %v3900
        %v3934 = vunpack.c.l.bf16 %v3901
        %v3935 = vunpack.c.h.bf16 %v3901
        %v3936 = vunpack.c.l.bf16 %v3902
        %v3937 = vunpack.c.h.bf16 %v3902
        %v3938 = vunpack.c.l.bf16 %v3903
        %v3939 = vunpack.c.h.bf16 %v3903
        %v3940 = vunpack.c.l.bf16 %v3904
        %v3941 = vunpack.c.h.bf16 %v3904
        %v3942 = vunpack.c.l.bf16 %v3905
        %v3943 = vunpack.c.h.bf16 %v3905
        %v3944 = vunpack.c.l.bf16 %v3906
        %v3945 = vunpack.c.h.bf16 %v3906
        %v3946 = vunpack.c.l.bf16 %v3907
        %v3947 = vunpack.c.h.bf16 %v3907
        %v3948 = vunpack.c.l.bf16 %v3908
        %v3949 = vunpack.c.h.bf16 %v3908
        %v3950 = vunpack.c.l.bf16 %v3909
        %v3951 = vunpack.c.h.bf16 %v3909
        %v3952 = vunpack.c.l.bf16 %v3910
        %v3953 = vunpack.c.h.bf16 %v3910
        %v3954 = vunpack.c.l.bf16 %v3911
        %v3955 = vunpack.c.h.bf16 %v3911
        %v3956 = vunpack.c.l.bf16 %v3912
        %v3957 = vunpack.c.h.bf16 %v3912
        %v3958 = vunpack.c.l.bf16 %v3913
        %v3959 = vunpack.c.h.bf16 %v3913
        %v3960 = vunpack.c.l.bf16 %v3914
        %v3961 = vunpack.c.h.bf16 %v3914
        %v3962 = vunpack.c.l.bf16 %v3915
        %v3963 = vunpack.c.h.bf16 %v3915
        %v3964 = vunpack.c.l.bf16 %v3916
        %v3965 = vunpack.c.h.bf16 %v3916
        %v3966 = vunpack.c.l.bf16 %v3917
        %v3967 = vunpack.c.h.bf16 %v3917
        %v3968 = vunpack.c.l.bf16 %v3918
        %v3969 = vunpack.c.h.bf16 %v3918
        %v3970 = vunpack.c.l.bf16 %v3919
        %v3971 = vunpack.c.h.bf16 %v3919
        %v3972 = vunpack.c.l.bf16 %v3920
        %v3973 = vunpack.c.h.bf16 %v3920
        %v3974 = vunpack.c.l.bf16 %v3921
        %v3975 = vunpack.c.h.bf16 %v3921
        %v3976 = vunpack.c.l.bf16 %v3922
        %v3977 = vunpack.c.h.bf16 %v3922
        %v3978 = vunpack.c.l.bf16 %v3923
        %v3979 = vunpack.c.h.bf16 %v3923
        %v3980 = vunpack.c.l.bf16 %v3924
        %v3981 = vunpack.c.h.bf16 %v3924
        %v3982 = vunpack.c.l.bf16 %v3925
        %v3983 = vunpack.c.h.bf16 %v3925
        %v3984 = vunpack.c.l.bf16 %v3926
        %v3985 = vunpack.c.h.bf16 %v3926
        %v3986 = vunpack.c.l.bf16 %v3927
        %v3987 = vunpack.c.h.bf16 %v3927
        %v3988 = vunpack.c.l.bf16 %v3928
        %v3989 = vunpack.c.h.bf16 %v3928
        %v3990 = vunpack.c.l.bf16 %v3929
        %v3991 = vunpack.c.h.bf16 %v3929
        %v3992 = vunpack.c.l.bf16 %v3930
        %v3993 = vunpack.c.h.bf16 %v3930
        %v3994 = vunpack.c.l.bf16 %v3931
        %v3995 = vunpack.c.h.bf16 %v3931
        %v3996 = vmul.f32 %v3836, %v3932
        %v3997 = vmul.f32 %v3837, %v3933
        %v3998 = vmul.f32 %v3838, %v3934
        %v3999 = vmul.f32 %v3839, %v3935
        %v4000 = vmul.f32 %v3840, %v3936
        %v4001 = vmul.f32 %v3841, %v3937
        %v4002 = vmul.f32 %v3842, %v3938
        %v4003 = vmul.f32 %v3843, %v3939
        %v4004 = vmul.f32 %v3844, %v3940
        %v4005 = vmul.f32 %v3845, %v3941
        %v4006 = vmul.f32 %v3846, %v3942
        %v4007 = vmul.f32 %v3847, %v3943
        %v4008 = vmul.f32 %v3848, %v3944
        %v4009 = vmul.f32 %v3849, %v3945
        %v4010 = vmul.f32 %v3850, %v3946
        %v4011 = vmul.f32 %v3851, %v3947
        %v4012 = vmul.f32 %v3852, %v3948
        %v4013 = vmul.f32 %v3853, %v3949
        %v4014 = vmul.f32 %v3854, %v3950
        %v4015 = vmul.f32 %v3855, %v3951
        %v4016 = vmul.f32 %v3856, %v3952
        %v4017 = vmul.f32 %v3857, %v3953
        %v4018 = vmul.f32 %v3858, %v3954
        %v4019 = vmul.f32 %v3859, %v3955
        %v4020 = vmul.f32 %v3860, %v3956
        %v4021 = vmul.f32 %v3861, %v3957
        %v4022 = vmul.f32 %v3862, %v3958
        %v4023 = vmul.f32 %v3863, %v3959
        %v4024 = vmul.f32 %v3864, %v3960
        %v4025 = vmul.f32 %v3865, %v3961
        %v4026 = vmul.f32 %v3866, %v3962
        %v4027 = vmul.f32 %v3867, %v3963
        %v4028 = vmul.f32 %v3868, %v3964
        %v4029 = vmul.f32 %v3869, %v3965
        %v4030 = vmul.f32 %v3870, %v3966
        %v4031 = vmul.f32 %v3871, %v3967
        %v4032 = vmul.f32 %v3872, %v3968
        %v4033 = vmul.f32 %v3873, %v3969
        %v4034 = vmul.f32 %v3874, %v3970
        %v4035 = vmul.f32 %v3875, %v3971
        %v4036 = vmul.f32 %v3876, %v3972
        %v4037 = vmul.f32 %v3877, %v3973
        %v4038 = vmul.f32 %v3878, %v3974
        %v4039 = vmul.f32 %v3879, %v3975
        %v4040 = vmul.f32 %v3880, %v3976
        %v4041 = vmul.f32 %v3881, %v3977
        %v4042 = vmul.f32 %v3882, %v3978
        %v4043 = vmul.f32 %v3883, %v3979
        %v4044 = vmul.f32 %v3884, %v3980
        %v4045 = vmul.f32 %v3885, %v3981
        %v4046 = vmul.f32 %v3886, %v3982
        %v4047 = vmul.f32 %v3887, %v3983
        %v4048 = vmul.f32 %v3888, %v3984
        %v4049 = vmul.f32 %v3889, %v3985
        %v4050 = vmul.f32 %v3890, %v3986
        %v4051 = vmul.f32 %v3891, %v3987
        %v4052 = vmul.f32 %v3892, %v3988
        %v4053 = vmul.f32 %v3893, %v3989
        %v4054 = vmul.f32 %v3894, %v3990
        %v4055 = vmul.f32 %v3895, %v3991
        %v4056 = vmul.f32 %v3896, %v3992
        %v4057 = vmul.f32 %v3897, %v3993
        %v4058 = vmul.f32 %v3898, %v3994
        %v4059 = vmul.f32 %v3899, %v3995
        %v4060 = vadd.f32 %v3996, %v3997
        %v4061 = vadd.f32 %v4060, %v3998
        %v4062 = vadd.f32 %v4061, %v3999
        %v4063 = vadd.f32 %v4062, %v4000
        %v4064 = vadd.f32 %v4063, %v4001
        %v4065 = vadd.f32 %v4064, %v4002
        %v4066 = vadd.f32 %v4065, %v4003
        %v4067 = vadd.f32 %v4066, %v4004
        %v4068 = vadd.f32 %v4067, %v4005
        %v4069 = vadd.f32 %v4068, %v4006
        %v4070 = vadd.f32 %v4069, %v4007
        %v4071 = vadd.f32 %v4070, %v4008
        %v4072 = vadd.f32 %v4071, %v4009
        %v4073 = vadd.f32 %v4072, %v4010
        %v4074 = vadd.f32 %v4073, %v4011
        %v4075 = vadd.f32 %v4074, %v4012
        %v4076 = vadd.f32 %v4075, %v4013
        %v4077 = vadd.f32 %v4076, %v4014
        %v4078 = vadd.f32 %v4077, %v4015
        %v4079 = vadd.f32 %v4078, %v4016
        %v4080 = vadd.f32 %v4079, %v4017
        %v4081 = vadd.f32 %v4080, %v4018
        %v4082 = vadd.f32 %v4081, %v4019
        %v4083 = vadd.f32 %v4082, %v4020
        %v4084 = vadd.f32 %v4083, %v4021
        %v4085 = vadd.f32 %v4084, %v4022
        %v4086 = vadd.f32 %v4085, %v4023
        %v4087 = vadd.f32 %v4086, %v4024
        %v4088 = vadd.f32 %v4087, %v4025
        %v4089 = vadd.f32 %v4088, %v4026
        %v4090 = vadd.f32 %v4089, %v4027
        %v4091 = vadd.f32 %v4090, %v4028
        %v4092 = vadd.f32 %v4091, %v4029
        %v4093 = vadd.f32 %v4092, %v4030
        %v4094 = vadd.f32 %v4093, %v4031
        %v4095 = vadd.f32 %v4094, %v4032
        %v4096 = vadd.f32 %v4095, %v4033
        %v4097 = vadd.f32 %v4096, %v4034
        %v4098 = vadd.f32 %v4097, %v4035
        %v4099 = vadd.f32 %v4098, %v4036
        %v4100 = vadd.f32 %v4099, %v4037
        %v4101 = vadd.f32 %v4100, %v4038
        %v4102 = vadd.f32 %v4101, %v4039
        %v4103 = vadd.f32 %v4102, %v4040
        %v4104 = vadd.f32 %v4103, %v4041
        %v4105 = vadd.f32 %v4104, %v4042
        %v4106 = vadd.f32 %v4105, %v4043
        %v4107 = vadd.f32 %v4106, %v4044
        %v4108 = vadd.f32 %v4107, %v4045
        %v4109 = vadd.f32 %v4108, %v4046
        %v4110 = vadd.f32 %v4109, %v4047
        %v4111 = vadd.f32 %v4110, %v4048
        %v4112 = vadd.f32 %v4111, %v4049
        %v4113 = vadd.f32 %v4112, %v4050
        %v4114 = vadd.f32 %v4113, %v4051
        %v4115 = vadd.f32 %v4114, %v4052
        %v4116 = vadd.f32 %v4115, %v4053
        %v4117 = vadd.f32 %v4116, %v4054
        %v4118 = vadd.f32 %v4117, %v4055
        %v4119 = vadd.f32 %v4118, %v4056
        %v4120 = vadd.f32 %v4119, %v4057
        %v4121 = vadd.f32 %v4120, %v4058
        %v4122 = vadd.f32 %v4121, %v4059
        %4123 = vadd.xlane.f32.xlu0 %v4122
        %v4124 = vpop.xlane.xlu0 %4123
        %v4125 = vrot.slane %v4124, 4
        %v4126 = vadd.f32 %v4124, %v4125
        %v4127 = vrot.slane %v4126, 2
        %v4128 = vadd.f32 %v4126, %v4127
        %v4129 = vrot.slane %v4128, 1
        %v4130 = vadd.f32 %v4128, %v4129
        %s4131 = vtos %v4130
        %s4132 = sadd.f32 %s2044, %s4131
        %v4133 = vld [vmem:[%s2045 + $0x100] sm:$0xff]
        %v4134 = vld [vmem:[%s2045 + $0x108] sm:$0xff]
        %v4135 = vld [vmem:[%s2045 + $0x110] sm:$0xff]
        %v4136 = vld [vmem:[%s2045 + $0x118] sm:$0xff]
        %v4137 = vld [vmem:[%s2045 + $0x120] sm:$0xff]
        %v4138 = vld [vmem:[%s2045 + $0x128] sm:$0xff]
        %v4139 = vld [vmem:[%s2045 + $0x130] sm:$0xff]
        %v4140 = vld [vmem:[%s2045 + $0x138] sm:$0xff]
        %v4141 = vld [vmem:[%s2045 + $0x140] sm:$0xff]
        %v4142 = vld [vmem:[%s2045 + $0x148] sm:$0xff]
        %v4143 = vld [vmem:[%s2045 + $0x150] sm:$0xff]
        %v4144 = vld [vmem:[%s2045 + $0x158] sm:$0xff]
        %v4145 = vld [vmem:[%s2045 + $0x160] sm:$0xff]
        %v4146 = vld [vmem:[%s2045 + $0x168] sm:$0xff]
        %v4147 = vld [vmem:[%s2045 + $0x170] sm:$0xff]
        %v4148 = vld [vmem:[%s2045 + $0x178] sm:$0xff]
        %v4149 = vld [vmem:[%s2045 + $0x180] sm:$0xff]
        %v4150 = vld [vmem:[%s2045 + $0x188] sm:$0xff]
        %v4151 = vld [vmem:[%s2045 + $0x190] sm:$0xff]
        %v4152 = vld [vmem:[%s2045 + $0x198] sm:$0xff]
        %v4153 = vld [vmem:[%s2045 + $0x1a0] sm:$0xff]
        %v4154 = vld [vmem:[%s2045 + $0x1a8] sm:$0xff]
        %v4155 = vld [vmem:[%s2045 + $0x1b0] sm:$0xff]
        %v4156 = vld [vmem:[%s2045 + $0x1b8] sm:$0xff]
        %v4157 = vld [vmem:[%s2045 + $0x1c0] sm:$0xff]
        %v4158 = vld [vmem:[%s2045 + $0x1c8] sm:$0xff]
        %v4159 = vld [vmem:[%s2045 + $0x1d0] sm:$0xff]
        %v4160 = vld [vmem:[%s2045 + $0x1d8] sm:$0xff]
        %v4161 = vld [vmem:[%s2045 + $0x1e0] sm:$0xff]
        %v4162 = vld [vmem:[%s2045 + $0x1e8] sm:$0xff]
        %v4163 = vld [vmem:[%s2045 + $0x1f0] sm:$0xff]
        %v4164 = vld [vmem:[%s2045 + $0x1f8] sm:$0xff]
        %v4165 = vunpack.c.l.bf16 %v4133
        %v4166 = vunpack.c.h.bf16 %v4133
        %v4167 = vunpack.c.l.bf16 %v4134
        %v4168 = vunpack.c.h.bf16 %v4134
        %v4169 = vunpack.c.l.bf16 %v4135
        %v4170 = vunpack.c.h.bf16 %v4135
        %v4171 = vunpack.c.l.bf16 %v4136
        %v4172 = vunpack.c.h.bf16 %v4136
        %v4173 = vunpack.c.l.bf16 %v4137
        %v4174 = vunpack.c.h.bf16 %v4137
        %v4175 = vunpack.c.l.bf16 %v4138
        %v4176 = vunpack.c.h.bf16 %v4138
        %v4177 = vunpack.c.l.bf16 %v4139
        %v4178 = vunpack.c.h.bf16 %v4139
        %v4179 = vunpack.c.l.bf16 %v4140
        %v4180 = vunpack.c.h.bf16 %v4140
        %v4181 = vunpack.c.l.bf16 %v4141
        %v4182 = vunpack.c.h.bf16 %v4141
        %v4183 = vunpack.c.l.bf16 %v4142
        %v4184 = vunpack.c.h.bf16 %v4142
        %v4185 = vunpack.c.l.bf16 %v4143
        %v4186 = vunpack.c.h.bf16 %v4143
        %v4187 = vunpack.c.l.bf16 %v4144
        %v4188 = vunpack.c.h.bf16 %v4144
        %v4189 = vunpack.c.l.bf16 %v4145
        %v4190 = vunpack.c.h.bf16 %v4145
        %v4191 = vunpack.c.l.bf16 %v4146
        %v4192 = vunpack.c.h.bf16 %v4146
        %v4193 = vunpack.c.l.bf16 %v4147
        %v4194 = vunpack.c.h.bf16 %v4147
        %v4195 = vunpack.c.l.bf16 %v4148
        %v4196 = vunpack.c.h.bf16 %v4148
        %v4197 = vunpack.c.l.bf16 %v4149
        %v4198 = vunpack.c.h.bf16 %v4149
        %v4199 = vunpack.c.l.bf16 %v4150
        %v4200 = vunpack.c.h.bf16 %v4150
        %v4201 = vunpack.c.l.bf16 %v4151
        %v4202 = vunpack.c.h.bf16 %v4151
        %v4203 = vunpack.c.l.bf16 %v4152
        %v4204 = vunpack.c.h.bf16 %v4152
        %v4205 = vunpack.c.l.bf16 %v4153
        %v4206 = vunpack.c.h.bf16 %v4153
        %v4207 = vunpack.c.l.bf16 %v4154
        %v4208 = vunpack.c.h.bf16 %v4154
        %v4209 = vunpack.c.l.bf16 %v4155
        %v4210 = vunpack.c.h.bf16 %v4155
        %v4211 = vunpack.c.l.bf16 %v4156
        %v4212 = vunpack.c.h.bf16 %v4156
        %v4213 = vunpack.c.l.bf16 %v4157
        %v4214 = vunpack.c.h.bf16 %v4157
        %v4215 = vunpack.c.l.bf16 %v4158
        %v4216 = vunpack.c.h.bf16 %v4158
        %v4217 = vunpack.c.l.bf16 %v4159
        %v4218 = vunpack.c.h.bf16 %v4159
        %v4219 = vunpack.c.l.bf16 %v4160
        %v4220 = vunpack.c.h.bf16 %v4160
        %v4221 = vunpack.c.l.bf16 %v4161
        %v4222 = vunpack.c.h.bf16 %v4161
        %v4223 = vunpack.c.l.bf16 %v4162
        %v4224 = vunpack.c.h.bf16 %v4162
        %v4225 = vunpack.c.l.bf16 %v4163
        %v4226 = vunpack.c.h.bf16 %v4163
        %v4227 = vunpack.c.l.bf16 %v4164
        %v4228 = vunpack.c.h.bf16 %v4164
        %v4229 = vmul.f32 %v3836, %v4165
        %v4230 = vmul.f32 %v3837, %v4166
        %v4231 = vmul.f32 %v3838, %v4167
        %v4232 = vmul.f32 %v3839, %v4168
        %v4233 = vmul.f32 %v3840, %v4169
        %v4234 = vmul.f32 %v3841, %v4170
        %v4235 = vmul.f32 %v3842, %v4171
        %v4236 = vmul.f32 %v3843, %v4172
        %v4237 = vmul.f32 %v3844, %v4173
        %v4238 = vmul.f32 %v3845, %v4174
        %v4239 = vmul.f32 %v3846, %v4175
        %v4240 = vmul.f32 %v3847, %v4176
        %v4241 = vmul.f32 %v3848, %v4177
        %v4242 = vmul.f32 %v3849, %v4178
        %v4243 = vmul.f32 %v3850, %v4179
        %v4244 = vmul.f32 %v3851, %v4180
        %v4245 = vmul.f32 %v3852, %v4181
        %v4246 = vmul.f32 %v3853, %v4182
        %v4247 = vmul.f32 %v3854, %v4183
        %v4248 = vmul.f32 %v3855, %v4184
        %v4249 = vmul.f32 %v3856, %v4185
        %v4250 = vmul.f32 %v3857, %v4186
        %v4251 = vmul.f32 %v3858, %v4187
        %v4252 = vmul.f32 %v3859, %v4188
        %v4253 = vmul.f32 %v3860, %v4189
        %v4254 = vmul.f32 %v3861, %v4190
        %v4255 = vmul.f32 %v3862, %v4191
        %v4256 = vmul.f32 %v3863, %v4192
        %v4257 = vmul.f32 %v3864, %v4193
        %v4258 = vmul.f32 %v3865, %v4194
        %v4259 = vmul.f32 %v3866, %v4195
        %v4260 = vmul.f32 %v3867, %v4196
        %v4261 = vmul.f32 %v3868, %v4197
        %v4262 = vmul.f32 %v3869, %v4198
        %v4263 = vmul.f32 %v3870, %v4199
        %v4264 = vmul.f32 %v3871, %v4200
        %v4265 = vmul.f32 %v3872, %v4201
        %v4266 = vmul.f32 %v3873, %v4202
        %v4267 = vmul.f32 %v3874, %v4203
        %v4268 = vmul.f32 %v3875, %v4204
        %v4269 = vmul.f32 %v3876, %v4205
        %v4270 = vmul.f32 %v3877, %v4206
        %v4271 = vmul.f32 %v3878, %v4207
        %v4272 = vmul.f32 %v3879, %v4208
        %v4273 = vmul.f32 %v3880, %v4209
        %v4274 = vmul.f32 %v3881, %v4210
        %v4275 = vmul.f32 %v3882, %v4211
        %v4276 = vmul.f32 %v3883, %v4212
        %v4277 = vmul.f32 %v3884, %v4213
        %v4278 = vmul.f32 %v3885, %v4214
        %v4279 = vmul.f32 %v3886, %v4215
        %v4280 = vmul.f32 %v3887, %v4216
        %v4281 = vmul.f32 %v3888, %v4217
        %v4282 = vmul.f32 %v3889, %v4218
        %v4283 = vmul.f32 %v3890, %v4219
        %v4284 = vmul.f32 %v3891, %v4220
        %v4285 = vmul.f32 %v3892, %v4221
        %v4286 = vmul.f32 %v3893, %v4222
        %v4287 = vmul.f32 %v3894, %v4223
        %v4288 = vmul.f32 %v3895, %v4224
        %v4289 = vmul.f32 %v3896, %v4225
        %v4290 = vmul.f32 %v3897, %v4226
        %v4291 = vmul.f32 %v3898, %v4227
        %v4292 = vmul.f32 %v3899, %v4228
        %v4293 = vadd.f32 %v4229, %v4230
        %v4294 = vadd.f32 %v4293, %v4231
        %v4295 = vadd.f32 %v4294, %v4232
        %v4296 = vadd.f32 %v4295, %v4233
        %v4297 = vadd.f32 %v4296, %v4234
        %v4298 = vadd.f32 %v4297, %v4235
        %v4299 = vadd.f32 %v4298, %v4236
        %v4300 = vadd.f32 %v4299, %v4237
        %v4301 = vadd.f32 %v4300, %v4238
        %v4302 = vadd.f32 %v4301, %v4239
        %v4303 = vadd.f32 %v4302, %v4240
        %v4304 = vadd.f32 %v4303, %v4241
        %v4305 = vadd.f32 %v4304, %v4242
        %v4306 = vadd.f32 %v4305, %v4243
        %v4307 = vadd.f32 %v4306, %v4244
        %v4308 = vadd.f32 %v4307, %v4245
        %v4309 = vadd.f32 %v4308, %v4246
        %v4310 = vadd.f32 %v4309, %v4247
        %v4311 = vadd.f32 %v4310, %v4248
        %v4312 = vadd.f32 %v4311, %v4249
        %v4313 = vadd.f32 %v4312, %v4250
        %v4314 = vadd.f32 %v4313, %v4251
        %v4315 = vadd.f32 %v4314, %v4252
        %v4316 = vadd.f32 %v4315, %v4253
        %v4317 = vadd.f32 %v4316, %v4254
        %v4318 = vadd.f32 %v4317, %v4255
        %v4319 = vadd.f32 %v4318, %v4256
        %v4320 = vadd.f32 %v4319, %v4257
        %v4321 = vadd.f32 %v4320, %v4258
        %v4322 = vadd.f32 %v4321, %v4259
        %v4323 = vadd.f32 %v4322, %v4260
        %v4324 = vadd.f32 %v4323, %v4261
        %v4325 = vadd.f32 %v4324, %v4262
        %v4326 = vadd.f32 %v4325, %v4263
        %v4327 = vadd.f32 %v4326, %v4264
        %v4328 = vadd.f32 %v4327, %v4265
        %v4329 = vadd.f32 %v4328, %v4266
        %v4330 = vadd.f32 %v4329, %v4267
        %v4331 = vadd.f32 %v4330, %v4268
        %v4332 = vadd.f32 %v4331, %v4269
        %v4333 = vadd.f32 %v4332, %v4270
        %v4334 = vadd.f32 %v4333, %v4271
        %v4335 = vadd.f32 %v4334, %v4272
        %v4336 = vadd.f32 %v4335, %v4273
        %v4337 = vadd.f32 %v4336, %v4274
        %v4338 = vadd.f32 %v4337, %v4275
        %v4339 = vadd.f32 %v4338, %v4276
        %v4340 = vadd.f32 %v4339, %v4277
        %v4341 = vadd.f32 %v4340, %v4278
        %v4342 = vadd.f32 %v4341, %v4279
        %v4343 = vadd.f32 %v4342, %v4280
        %v4344 = vadd.f32 %v4343, %v4281
        %v4345 = vadd.f32 %v4344, %v4282
        %v4346 = vadd.f32 %v4345, %v4283
        %v4347 = vadd.f32 %v4346, %v4284
        %v4348 = vadd.f32 %v4347, %v4285
        %v4349 = vadd.f32 %v4348, %v4286
        %v4350 = vadd.f32 %v4349, %v4287
        %v4351 = vadd.f32 %v4350, %v4288
        %v4352 = vadd.f32 %v4351, %v4289
        %v4353 = vadd.f32 %v4352, %v4290
        %v4354 = vadd.f32 %v4353, %v4291
        %v4355 = vadd.f32 %v4354, %v4292
        %4356 = vadd.xlane.f32.xlu0 %v4355
        %v4357 = vpop.xlane.xlu0 %4356
        %v4358 = vrot.slane %v4357, 4
        %v4359 = vadd.f32 %v4357, %v4358
        %v4360 = vrot.slane %v4359, 2
        %v4361 = vadd.f32 %v4359, %v4360
        %v4362 = vrot.slane %v4361, 1
        %v4363 = vadd.f32 %v4361, %v4362
        %s4364 = vtos %v4363
        %s4365 = sadd.f32 %s2278, %s4364
        %v4366 = vld [vmem:[%s2279 + $0x100] sm:$0xff]
        %v4367 = vld [vmem:[%s2279 + $0x108] sm:$0xff]
        %v4368 = vld [vmem:[%s2279 + $0x110] sm:$0xff]
        %v4369 = vld [vmem:[%s2279 + $0x118] sm:$0xff]
        %v4370 = vld [vmem:[%s2279 + $0x120] sm:$0xff]
        %v4371 = vld [vmem:[%s2279 + $0x128] sm:$0xff]
        %v4372 = vld [vmem:[%s2279 + $0x130] sm:$0xff]
        %v4373 = vld [vmem:[%s2279 + $0x138] sm:$0xff]
        %v4374 = vld [vmem:[%s2279 + $0x140] sm:$0xff]
        %v4375 = vld [vmem:[%s2279 + $0x148] sm:$0xff]
        %v4376 = vld [vmem:[%s2279 + $0x150] sm:$0xff]
        %v4377 = vld [vmem:[%s2279 + $0x158] sm:$0xff]
        %v4378 = vld [vmem:[%s2279 + $0x160] sm:$0xff]
        %v4379 = vld [vmem:[%s2279 + $0x168] sm:$0xff]
        %v4380 = vld [vmem:[%s2279 + $0x170] sm:$0xff]
        %v4381 = vld [vmem:[%s2279 + $0x178] sm:$0xff]
        %v4382 = vld [vmem:[%s2279 + $0x180] sm:$0xff]
        %v4383 = vld [vmem:[%s2279 + $0x188] sm:$0xff]
        %v4384 = vld [vmem:[%s2279 + $0x190] sm:$0xff]
        %v4385 = vld [vmem:[%s2279 + $0x198] sm:$0xff]
        %v4386 = vld [vmem:[%s2279 + $0x1a0] sm:$0xff]
        %v4387 = vld [vmem:[%s2279 + $0x1a8] sm:$0xff]
        %v4388 = vld [vmem:[%s2279 + $0x1b0] sm:$0xff]
        %v4389 = vld [vmem:[%s2279 + $0x1b8] sm:$0xff]
        %v4390 = vld [vmem:[%s2279 + $0x1c0] sm:$0xff]
        %v4391 = vld [vmem:[%s2279 + $0x1c8] sm:$0xff]
        %v4392 = vld [vmem:[%s2279 + $0x1d0] sm:$0xff]
        %v4393 = vld [vmem:[%s2279 + $0x1d8] sm:$0xff]
        %v4394 = vld [vmem:[%s2279 + $0x1e0] sm:$0xff]
        %v4395 = vld [vmem:[%s2279 + $0x1e8] sm:$0xff]
        %v4396 = vld [vmem:[%s2279 + $0x1f0] sm:$0xff]
        %v4397 = vld [vmem:[%s2279 + $0x1f8] sm:$0xff]
        %v4398 = vunpack.c.l.bf16 %v4366
        %v4399 = vunpack.c.h.bf16 %v4366
        %v4400 = vunpack.c.l.bf16 %v4367
        %v4401 = vunpack.c.h.bf16 %v4367
        %v4402 = vunpack.c.l.bf16 %v4368
        %v4403 = vunpack.c.h.bf16 %v4368
        %v4404 = vunpack.c.l.bf16 %v4369
        %v4405 = vunpack.c.h.bf16 %v4369
        %v4406 = vunpack.c.l.bf16 %v4370
        %v4407 = vunpack.c.h.bf16 %v4370
        %v4408 = vunpack.c.l.bf16 %v4371
        %v4409 = vunpack.c.h.bf16 %v4371
        %v4410 = vunpack.c.l.bf16 %v4372
        %v4411 = vunpack.c.h.bf16 %v4372
        %v4412 = vunpack.c.l.bf16 %v4373
        %v4413 = vunpack.c.h.bf16 %v4373
        %v4414 = vunpack.c.l.bf16 %v4374
        %v4415 = vunpack.c.h.bf16 %v4374
        %v4416 = vunpack.c.l.bf16 %v4375
        %v4417 = vunpack.c.h.bf16 %v4375
        %v4418 = vunpack.c.l.bf16 %v4376
        %v4419 = vunpack.c.h.bf16 %v4376
        %v4420 = vunpack.c.l.bf16 %v4377
        %v4421 = vunpack.c.h.bf16 %v4377
        %v4422 = vunpack.c.l.bf16 %v4378
        %v4423 = vunpack.c.h.bf16 %v4378
        %v4424 = vunpack.c.l.bf16 %v4379
        %v4425 = vunpack.c.h.bf16 %v4379
        %v4426 = vunpack.c.l.bf16 %v4380
        %v4427 = vunpack.c.h.bf16 %v4380
        %v4428 = vunpack.c.l.bf16 %v4381
        %v4429 = vunpack.c.h.bf16 %v4381
        %v4430 = vunpack.c.l.bf16 %v4382
        %v4431 = vunpack.c.h.bf16 %v4382
        %v4432 = vunpack.c.l.bf16 %v4383
        %v4433 = vunpack.c.h.bf16 %v4383
        %v4434 = vunpack.c.l.bf16 %v4384
        %v4435 = vunpack.c.h.bf16 %v4384
        %v4436 = vunpack.c.l.bf16 %v4385
        %v4437 = vunpack.c.h.bf16 %v4385
        %v4438 = vunpack.c.l.bf16 %v4386
        %v4439 = vunpack.c.h.bf16 %v4386
        %v4440 = vunpack.c.l.bf16 %v4387
        %v4441 = vunpack.c.h.bf16 %v4387
        %v4442 = vunpack.c.l.bf16 %v4388
        %v4443 = vunpack.c.h.bf16 %v4388
        %v4444 = vunpack.c.l.bf16 %v4389
        %v4445 = vunpack.c.h.bf16 %v4389
        %v4446 = vunpack.c.l.bf16 %v4390
        %v4447 = vunpack.c.h.bf16 %v4390
        %v4448 = vunpack.c.l.bf16 %v4391
        %v4449 = vunpack.c.h.bf16 %v4391
        %v4450 = vunpack.c.l.bf16 %v4392
        %v4451 = vunpack.c.h.bf16 %v4392
        %v4452 = vunpack.c.l.bf16 %v4393
        %v4453 = vunpack.c.h.bf16 %v4393
        %v4454 = vunpack.c.l.bf16 %v4394
        %v4455 = vunpack.c.h.bf16 %v4394
        %v4456 = vunpack.c.l.bf16 %v4395
        %v4457 = vunpack.c.h.bf16 %v4395
        %v4458 = vunpack.c.l.bf16 %v4396
        %v4459 = vunpack.c.h.bf16 %v4396
        %v4460 = vunpack.c.l.bf16 %v4397
        %v4461 = vunpack.c.h.bf16 %v4397
        %v4462 = vmul.f32 %v3836, %v4398
        %v4463 = vmul.f32 %v3837, %v4399
        %v4464 = vmul.f32 %v3838, %v4400
        %v4465 = vmul.f32 %v3839, %v4401
        %v4466 = vmul.f32 %v3840, %v4402
        %v4467 = vmul.f32 %v3841, %v4403
        %v4468 = vmul.f32 %v3842, %v4404
        %v4469 = vmul.f32 %v3843, %v4405
        %v4470 = vmul.f32 %v3844, %v4406
        %v4471 = vmul.f32 %v3845, %v4407
        %v4472 = vmul.f32 %v3846, %v4408
        %v4473 = vmul.f32 %v3847, %v4409
        %v4474 = vmul.f32 %v3848, %v4410
        %v4475 = vmul.f32 %v3849, %v4411
        %v4476 = vmul.f32 %v3850, %v4412
        %v4477 = vmul.f32 %v3851, %v4413
        %v4478 = vmul.f32 %v3852, %v4414
        %v4479 = vmul.f32 %v3853, %v4415
        %v4480 = vmul.f32 %v3854, %v4416
        %v4481 = vmul.f32 %v3855, %v4417
        %v4482 = vmul.f32 %v3856, %v4418
        %v4483 = vmul.f32 %v3857, %v4419
        %v4484 = vmul.f32 %v3858, %v4420
        %v4485 = vmul.f32 %v3859, %v4421
        %v4486 = vmul.f32 %v3860, %v4422
        %v4487 = vmul.f32 %v3861, %v4423
        %v4488 = vmul.f32 %v3862, %v4424
        %v4489 = vmul.f32 %v3863, %v4425
        %v4490 = vmul.f32 %v3864, %v4426
        %v4491 = vmul.f32 %v3865, %v4427
        %v4492 = vmul.f32 %v3866, %v4428
        %v4493 = vmul.f32 %v3867, %v4429
        %v4494 = vmul.f32 %v3868, %v4430
        %v4495 = vmul.f32 %v3869, %v4431
        %v4496 = vmul.f32 %v3870, %v4432
        %v4497 = vmul.f32 %v3871, %v4433
        %v4498 = vmul.f32 %v3872, %v4434
        %v4499 = vmul.f32 %v3873, %v4435
        %v4500 = vmul.f32 %v3874, %v4436
        %v4501 = vmul.f32 %v3875, %v4437
        %v4502 = vmul.f32 %v3876, %v4438
        %v4503 = vmul.f32 %v3877, %v4439
        %v4504 = vmul.f32 %v3878, %v4440
        %v4505 = vmul.f32 %v3879, %v4441
        %v4506 = vmul.f32 %v3880, %v4442
        %v4507 = vmul.f32 %v3881, %v4443
        %v4508 = vmul.f32 %v3882, %v4444
        %v4509 = vmul.f32 %v3883, %v4445
        %v4510 = vmul.f32 %v3884, %v4446
        %v4511 = vmul.f32 %v3885, %v4447
        %v4512 = vmul.f32 %v3886, %v4448
        %v4513 = vmul.f32 %v3887, %v4449
        %v4514 = vmul.f32 %v3888, %v4450
        %v4515 = vmul.f32 %v3889, %v4451
        %v4516 = vmul.f32 %v3890, %v4452
        %v4517 = vmul.f32 %v3891, %v4453
        %v4518 = vmul.f32 %v3892, %v4454
        %v4519 = vmul.f32 %v3893, %v4455
        %v4520 = vmul.f32 %v3894, %v4456
        %v4521 = vmul.f32 %v3895, %v4457
        %v4522 = vmul.f32 %v3896, %v4458
        %v4523 = vmul.f32 %v3897, %v4459
        %v4524 = vmul.f32 %v3898, %v4460
        %v4525 = vmul.f32 %v3899, %v4461
        %v4526 = vadd.f32 %v4462, %v4463
        %v4527 = vadd.f32 %v4526, %v4464
        %v4528 = vadd.f32 %v4527, %v4465
        %v4529 = vadd.f32 %v4528, %v4466
        %v4530 = vadd.f32 %v4529, %v4467
        %v4531 = vadd.f32 %v4530, %v4468
        %v4532 = vadd.f32 %v4531, %v4469
        %v4533 = vadd.f32 %v4532, %v4470
        %v4534 = vadd.f32 %v4533, %v4471
        %v4535 = vadd.f32 %v4534, %v4472
        %v4536 = vadd.f32 %v4535, %v4473
        %v4537 = vadd.f32 %v4536, %v4474
        %v4538 = vadd.f32 %v4537, %v4475
        %v4539 = vadd.f32 %v4538, %v4476
        %v4540 = vadd.f32 %v4539, %v4477
        %v4541 = vadd.f32 %v4540, %v4478
        %v4542 = vadd.f32 %v4541, %v4479
        %v4543 = vadd.f32 %v4542, %v4480
        %v4544 = vadd.f32 %v4543, %v4481
        %v4545 = vadd.f32 %v4544, %v4482
        %v4546 = vadd.f32 %v4545, %v4483
        %v4547 = vadd.f32 %v4546, %v4484
        %v4548 = vadd.f32 %v4547, %v4485
        %v4549 = vadd.f32 %v4548, %v4486
        %v4550 = vadd.f32 %v4549, %v4487
        %v4551 = vadd.f32 %v4550, %v4488
        %v4552 = vadd.f32 %v4551, %v4489
        %v4553 = vadd.f32 %v4552, %v4490
        %v4554 = vadd.f32 %v4553, %v4491
        %v4555 = vadd.f32 %v4554, %v4492
        %v4556 = vadd.f32 %v4555, %v4493
        %v4557 = vadd.f32 %v4556, %v4494
        %v4558 = vadd.f32 %v4557, %v4495
        %v4559 = vadd.f32 %v4558, %v4496
        %v4560 = vadd.f32 %v4559, %v4497
        %v4561 = vadd.f32 %v4560, %v4498
        %v4562 = vadd.f32 %v4561, %v4499
        %v4563 = vadd.f32 %v4562, %v4500
        %v4564 = vadd.f32 %v4563, %v4501
        %v4565 = vadd.f32 %v4564, %v4502
        %v4566 = vadd.f32 %v4565, %v4503
        %v4567 = vadd.f32 %v4566, %v4504
        %v4568 = vadd.f32 %v4567, %v4505
        %v4569 = vadd.f32 %v4568, %v4506
        %v4570 = vadd.f32 %v4569, %v4507
        %v4571 = vadd.f32 %v4570, %v4508
        %v4572 = vadd.f32 %v4571, %v4509
        %v4573 = vadd.f32 %v4572, %v4510
        %v4574 = vadd.f32 %v4573, %v4511
        %v4575 = vadd.f32 %v4574, %v4512
        %v4576 = vadd.f32 %v4575, %v4513
        %v4577 = vadd.f32 %v4576, %v4514
        %v4578 = vadd.f32 %v4577, %v4515
        %v4579 = vadd.f32 %v4578, %v4516
        %v4580 = vadd.f32 %v4579, %v4517
        %v4581 = vadd.f32 %v4580, %v4518
        %v4582 = vadd.f32 %v4581, %v4519
        %v4583 = vadd.f32 %v4582, %v4520
        %v4584 = vadd.f32 %v4583, %v4521
        %v4585 = vadd.f32 %v4584, %v4522
        %v4586 = vadd.f32 %v4585, %v4523
        %v4587 = vadd.f32 %v4586, %v4524
        %v4588 = vadd.f32 %v4587, %v4525
        %4589 = vadd.xlane.f32.xlu0 %v4588
        %v4590 = vpop.xlane.xlu0 %4589
        %v4591 = vrot.slane %v4590, 4
        %v4592 = vadd.f32 %v4590, %v4591
        %v4593 = vrot.slane %v4592, 2
        %v4594 = vadd.f32 %v4592, %v4593
        %v4595 = vrot.slane %v4594, 1
        %v4596 = vadd.f32 %v4594, %v4595
        %s4597 = vtos %v4596
        %s4598 = sadd.f32 %s2512, %s4597
        %4599 = vmatprep.subr.bf16.mxu0 0
        %4600 = vmatpush1.bf16.xpose.msra.mxu0 %v272
        %4601 = vmatprep.subr.bf16.mxu0 0
        %4602 = vmatpush1.bf16.xpose.msra.mxu0 %v271
        %4603 = vmatprep.subr.bf16.mxu0 0
        %4604 = vmatpush1.bf16.xpose.msra.mxu0 %v270
        %4605 = vmatprep.subr.bf16.mxu0 0
        %4606 = vmatpush1.bf16.xpose.msra.mxu0 %v269
        %4607 = vmatprep.subr.bf16.mxu0 0
        %4608 = vmatpush1.bf16.xpose.msra.mxu0 %v268
        %4609 = vmatprep.subr.bf16.mxu0 0
        %4610 = vmatpush1.bf16.xpose.msra.mxu0 %v267
        %4611 = vmatprep.subr.bf16.mxu0 0
        %4612 = vmatpush1.bf16.xpose.msra.mxu0 %v266
        %4613 = vmatprep.subr.bf16.mxu0 0
        %4614 = vmatpush1.bf16.xpose.msra.mxu0 %v265
        %4615 = vmatprep.subr.bf16.mxu0 0
        %4616 = vmatpush2.bf16.xpose.msra.mxu0 %v384
        %4617 = vmatprep.subr.bf16.mxu0 0
        %4618 = vmatpush2.bf16.xpose.msra.mxu0 %v383
        %4619 = vmatprep.subr.bf16.mxu0 0
        %4620 = vmatpush2.bf16.xpose.msra.mxu0 %v382
        %4621 = vmatprep.subr.bf16.mxu0 0
        %4622 = vmatpush2.bf16.xpose.msra.mxu0 %v381
        %4623 = vmatprep.subr.bf16.mxu0 0
        %4624 = vmatpush2.bf16.xpose.msra.mxu0 %v380
        %4625 = vmatprep.subr.bf16.mxu0 0
        %4626 = vmatpush2.bf16.xpose.msra.mxu0 %v379
        %4627 = vmatprep.subr.bf16.mxu0 0
        %4628 = vmatpush2.bf16.xpose.msra.mxu0 %v378
        %4629 = vmatprep.subr.bf16.mxu0 0
        %4630 = vmatpush2.bf16.xpose.msra.mxu0 %v377
        %4631 = vmatprep.mubr.bf16.mxu0 0
        %4632 = vmatmul.mubr.bf16.gmra.mxu0 %v385
        %v4633 = vpop.f32.mrf.mxu0
        %v4634 = vadd.f32 0.0, %v4633
        %v4635 = vpop.f32.mrf.mxu0
        %v4636 = vadd.f32 0.0, %v4635
        %v4637 = vpop.f32.mrf.mxu0
        %v4638 = vadd.f32 0.0, %v4637
        %v4639 = vpop.f32.mrf.mxu0
        %v4640 = vadd.f32 0.0, %v4639
        %4641 = vmatprep.mubr.bf16.mxu0 0
        %4642 = vmatmul.mubr.bf16.gmra.mxu0 %v386
        %v4643 = vpop.f32.mrf.mxu0
        %v4644 = vadd.f32 0.0, %v4643
        %v4645 = vpop.f32.mrf.mxu0
        %v4646 = vadd.f32 0.0, %v4645
        %v4647 = vpop.f32.mrf.mxu0
        %v4648 = vadd.f32 0.0, %v4647
        %v4649 = vpop.f32.mrf.mxu0
        %v4650 = vadd.f32 0.0, %v4649
        %4651 = vmatprep.mubr.bf16.mxu0 0
        %4652 = vmatmul.mubr.bf16.gmra.mxu0 %v387
        %v4653 = vpop.f32.mrf.mxu0
        %v4654 = vadd.f32 0.0, %v4653
        %v4655 = vpop.f32.mrf.mxu0
        %v4656 = vadd.f32 0.0, %v4655
        %v4657 = vpop.f32.mrf.mxu0
        %v4658 = vadd.f32 0.0, %v4657
        %v4659 = vpop.f32.mrf.mxu0
        %v4660 = vadd.f32 0.0, %v4659
        %4661 = vmatprep.mubr.bf16.mxu0 0
        %4662 = vmatmul.mubr.bf16.gmra.mxu0 %v388
        %v4663 = vpop.f32.mrf.mxu0
        %v4664 = vadd.f32 0.0, %v4663
        %v4665 = vpop.f32.mrf.mxu0
        %v4666 = vadd.f32 0.0, %v4665
        %v4667 = vpop.f32.mrf.mxu0
        %v4668 = vadd.f32 0.0, %v4667
        %v4669 = vpop.f32.mrf.mxu0
        %v4670 = vadd.f32 0.0, %v4669
        %4671 = vmatprep.mubr.bf16.mxu0 0
        %4672 = vmatmul.mubr.bf16.gmra.mxu0 %v389
        %v4673 = vpop.f32.mrf.mxu0
        %v4674 = vadd.f32 0.0, %v4673
        %v4675 = vpop.f32.mrf.mxu0
        %v4676 = vadd.f32 0.0, %v4675
        %v4677 = vpop.f32.mrf.mxu0
        %v4678 = vadd.f32 0.0, %v4677
        %v4679 = vpop.f32.mrf.mxu0
        %v4680 = vadd.f32 0.0, %v4679
        %4681 = vmatprep.mubr.bf16.mxu0 0
        %4682 = vmatmul.mubr.bf16.gmra.mxu0 %v390
        %v4683 = vpop.f32.mrf.mxu0
        %v4684 = vadd.f32 0.0, %v4683
        %v4685 = vpop.f32.mrf.mxu0
        %v4686 = vadd.f32 0.0, %v4685
        %v4687 = vpop.f32.mrf.mxu0
        %v4688 = vadd.f32 0.0, %v4687
        %v4689 = vpop.f32.mrf.mxu0
        %v4690 = vadd.f32 0.0, %v4689
        %4691 = vmatprep.mubr.bf16.mxu0 0
        %4692 = vmatmul.mubr.bf16.gmra.mxu0 %v391
        %v4693 = vpop.f32.mrf.mxu0
        %v4694 = vadd.f32 0.0, %v4693
        %v4695 = vpop.f32.mrf.mxu0
        %v4696 = vadd.f32 0.0, %v4695
        %v4697 = vpop.f32.mrf.mxu0
        %v4698 = vadd.f32 0.0, %v4697
        %v4699 = vpop.f32.mrf.mxu0
        %v4700 = vadd.f32 0.0, %v4699
        %4701 = vmatprep.mubr.bf16.mxu0 0
        %4702 = vmatmul.mubr.bf16.gmra.mxu0 %v392
        %v4703 = vpop.f32.mrf.mxu0
        %v4704 = vadd.f32 0.0, %v4703
        %v4705 = vpop.f32.mrf.mxu0
        %v4706 = vadd.f32 0.0, %v4705
        %v4707 = vpop.f32.mrf.mxu0
        %v4708 = vadd.f32 0.0, %v4707
        %v4709 = vpop.f32.mrf.mxu0
        %v4710 = vadd.f32 0.0, %v4709
        %4711 = vdwg.mxu0
        %4712 = vmatprep.subr.bf16.mxu0 0
        %4713 = vmatpush1.bf16.xpose.msra.mxu0 %v392
        %4714 = vmatprep.subr.bf16.mxu0 0
        %4715 = vmatpush1.bf16.xpose.msra.mxu0 %v391
        %4716 = vmatprep.subr.bf16.mxu0 0
        %4717 = vmatpush1.bf16.xpose.msra.mxu0 %v390
        %4718 = vmatprep.subr.bf16.mxu0 0
        %4719 = vmatpush1.bf16.xpose.msra.mxu0 %v389
        %4720 = vmatprep.subr.bf16.mxu0 0
        %4721 = vmatpush1.bf16.xpose.msra.mxu0 %v388
        %4722 = vmatprep.subr.bf16.mxu0 0
        %4723 = vmatpush1.bf16.xpose.msra.mxu0 %v387
        %4724 = vmatprep.subr.bf16.mxu0 0
        %4725 = vmatpush1.bf16.xpose.msra.mxu0 %v386
        %4726 = vmatprep.subr.bf16.mxu0 0
        %4727 = vmatpush1.bf16.xpose.msra.mxu0 %v385
        %4728 = vmatprep.subr.bf16.mxu0 0
        %4729 = vmatpush2.bf16.xpose.msra.mxu0 %v400
        %4730 = vmatprep.subr.bf16.mxu0 0
        %4731 = vmatpush2.bf16.xpose.msra.mxu0 %v399
        %4732 = vmatprep.subr.bf16.mxu0 0
        %4733 = vmatpush2.bf16.xpose.msra.mxu0 %v398
        %4734 = vmatprep.subr.bf16.mxu0 0
        %4735 = vmatpush2.bf16.xpose.msra.mxu0 %v397
        %4736 = vmatprep.subr.bf16.mxu0 0
        %4737 = vmatpush2.bf16.xpose.msra.mxu0 %v396
        %4738 = vmatprep.subr.bf16.mxu0 0
        %4739 = vmatpush2.bf16.xpose.msra.mxu0 %v395
        %4740 = vmatprep.subr.bf16.mxu0 0
        %4741 = vmatpush2.bf16.xpose.msra.mxu0 %v394
        %4742 = vmatprep.subr.bf16.mxu0 0
        %4743 = vmatpush2.bf16.xpose.msra.mxu0 %v393
        %4744 = vmatprep.mubr.bf16.mxu0 0
        %4745 = vmatmul.mubr.bf16.gmra.mxu0 %v385
        %v4746 = vpop.f32.mrf.mxu0
        %v4747 = vadd.f32 0.0, %v4746
        %v4748 = vpop.f32.mrf.mxu0
        %v4749 = vadd.f32 0.0, %v4748
        %v4750 = vpop.f32.mrf.mxu0
        %v4751 = vadd.f32 0.0, %v4750
        %v4752 = vpop.f32.mrf.mxu0
        %v4753 = vadd.f32 0.0, %v4752
        %4754 = vmatprep.mubr.bf16.mxu0 0
        %4755 = vmatmul.mubr.bf16.gmra.mxu0 %v386
        %v4756 = vpop.f32.mrf.mxu0
        %v4757 = vadd.f32 0.0, %v4756
        %v4758 = vpop.f32.mrf.mxu0
        %v4759 = vadd.f32 0.0, %v4758
        %v4760 = vpop.f32.mrf.mxu0
        %v4761 = vadd.f32 0.0, %v4760
        %v4762 = vpop.f32.mrf.mxu0
        %v4763 = vadd.f32 0.0, %v4762
        %4764 = vmatprep.mubr.bf16.mxu0 0
        %4765 = vmatmul.mubr.bf16.gmra.mxu0 %v387
        %v4766 = vpop.f32.mrf.mxu0
        %v4767 = vadd.f32 0.0, %v4766
        %v4768 = vpop.f32.mrf.mxu0
        %v4769 = vadd.f32 0.0, %v4768
        %v4770 = vpop.f32.mrf.mxu0
        %v4771 = vadd.f32 0.0, %v4770
        %v4772 = vpop.f32.mrf.mxu0
        %v4773 = vadd.f32 0.0, %v4772
        %4774 = vmatprep.mubr.bf16.mxu0 0
        %4775 = vmatmul.mubr.bf16.gmra.mxu0 %v388
        %v4776 = vpop.f32.mrf.mxu0
        %v4777 = vadd.f32 0.0, %v4776
        %v4778 = vpop.f32.mrf.mxu0
        %v4779 = vadd.f32 0.0, %v4778
        %v4780 = vpop.f32.mrf.mxu0
        %v4781 = vadd.f32 0.0, %v4780
        %v4782 = vpop.f32.mrf.mxu0
        %v4783 = vadd.f32 0.0, %v4782
        %4784 = vmatprep.mubr.bf16.mxu0 0
        %4785 = vmatmul.mubr.bf16.gmra.mxu0 %v389
        %v4786 = vpop.f32.mrf.mxu0
        %v4787 = vadd.f32 0.0, %v4786
        %v4788 = vpop.f32.mrf.mxu0
        %v4789 = vadd.f32 0.0, %v4788
        %v4790 = vpop.f32.mrf.mxu0
        %v4791 = vadd.f32 0.0, %v4790
        %v4792 = vpop.f32.mrf.mxu0
        %v4793 = vadd.f32 0.0, %v4792
        %4794 = vmatprep.mubr.bf16.mxu0 0
        %4795 = vmatmul.mubr.bf16.gmra.mxu0 %v390
        %v4796 = vpop.f32.mrf.mxu0
        %v4797 = vadd.f32 0.0, %v4796
        %v4798 = vpop.f32.mrf.mxu0
        %v4799 = vadd.f32 0.0, %v4798
        %v4800 = vpop.f32.mrf.mxu0
        %v4801 = vadd.f32 0.0, %v4800
        %v4802 = vpop.f32.mrf.mxu0
        %v4803 = vadd.f32 0.0, %v4802
        %4804 = vmatprep.mubr.bf16.mxu0 0
        %4805 = vmatmul.mubr.bf16.gmra.mxu0 %v391
        %v4806 = vpop.f32.mrf.mxu0
        %v4807 = vadd.f32 0.0, %v4806
        %v4808 = vpop.f32.mrf.mxu0
        %v4809 = vadd.f32 0.0, %v4808
        %v4810 = vpop.f32.mrf.mxu0
        %v4811 = vadd.f32 0.0, %v4810
        %v4812 = vpop.f32.mrf.mxu0
        %v4813 = vadd.f32 0.0, %v4812
        %4814 = vmatprep.mubr.bf16.mxu0 0
        %4815 = vmatmul.mubr.bf16.gmra.mxu0 %v392
        %v4816 = vpop.f32.mrf.mxu0
        %v4817 = vadd.f32 0.0, %v4816
        %v4818 = vpop.f32.mrf.mxu0
        %v4819 = vadd.f32 0.0, %v4818
        %v4820 = vpop.f32.mrf.mxu0
        %v4821 = vadd.f32 0.0, %v4820
        %v4822 = vpop.f32.mrf.mxu0
        %v4823 = vadd.f32 0.0, %v4822
        %4824 = vdwg.mxu0
        %vm4825 = vcmp.eq.f32.partialorder %v4634, 0.0
        %vm4826 = vcmp.eq.f32.partialorder %v4636, 0.0
        %vm4827 = vcmp.eq.f32.partialorder %v4747, 0.0
        %vm4828 = vcmp.eq.f32.partialorder %v4749, 0.0
        %vm4829 = vcmp.eq.f32.partialorder %v4638, 0.0
        %vm4830 = vcmp.eq.f32.partialorder %v4640, 0.0
        %vm4831 = vcmp.eq.f32.partialorder %v4751, 0.0
        %vm4832 = vcmp.eq.f32.partialorder %v4753, 0.0
        %vm4833 = vcmp.eq.f32.partialorder %v4644, 0.0
        %vm4834 = vcmp.eq.f32.partialorder %v4646, 0.0
        %vm4835 = vcmp.eq.f32.partialorder %v4757, 0.0
        %vm4836 = vcmp.eq.f32.partialorder %v4759, 0.0
        %vm4837 = vcmp.eq.f32.partialorder %v4648, 0.0
        %vm4838 = vcmp.eq.f32.partialorder %v4650, 0.0
        %vm4839 = vcmp.eq.f32.partialorder %v4761, 0.0
        %vm4840 = vcmp.eq.f32.partialorder %v4763, 0.0
        %vm4841 = vcmp.eq.f32.partialorder %v4654, 0.0
        %vm4842 = vcmp.eq.f32.partialorder %v4656, 0.0
        %vm4843 = vcmp.eq.f32.partialorder %v4767, 0.0
        %vm4844 = vcmp.eq.f32.partialorder %v4769, 0.0
        %vm4845 = vcmp.eq.f32.partialorder %v4658, 0.0
        %vm4846 = vcmp.eq.f32.partialorder %v4660, 0.0
        %vm4847 = vcmp.eq.f32.partialorder %v4771, 0.0
        %vm4848 = vcmp.eq.f32.partialorder %v4773, 0.0
        %vm4849 = vcmp.eq.f32.partialorder %v4664, 0.0
        %vm4850 = vcmp.eq.f32.partialorder %v4666, 0.0
        %vm4851 = vcmp.eq.f32.partialorder %v4777, 0.0
        %vm4852 = vcmp.eq.f32.partialorder %v4779, 0.0
        %vm4853 = vcmp.eq.f32.partialorder %v4668, 0.0
        %vm4854 = vcmp.eq.f32.partialorder %v4670, 0.0
        %vm4855 = vcmp.eq.f32.partialorder %v4781, 0.0
        %vm4856 = vcmp.eq.f32.partialorder %v4783, 0.0
        %vm4857 = vcmp.eq.f32.partialorder %v4674, 0.0
        %vm4858 = vcmp.eq.f32.partialorder %v4676, 0.0
        %vm4859 = vcmp.eq.f32.partialorder %v4787, 0.0
        %vm4860 = vcmp.eq.f32.partialorder %v4789, 0.0
        %vm4861 = vcmp.eq.f32.partialorder %v4678, 0.0
        %vm4862 = vcmp.eq.f32.partialorder %v4680, 0.0
        %vm4863 = vcmp.eq.f32.partialorder %v4791, 0.0
        %vm4864 = vcmp.eq.f32.partialorder %v4793, 0.0
        %vm4865 = vcmp.eq.f32.partialorder %v4684, 0.0
        %vm4866 = vcmp.eq.f32.partialorder %v4686, 0.0
        %vm4867 = vcmp.eq.f32.partialorder %v4797, 0.0
        %vm4868 = vcmp.eq.f32.partialorder %v4799, 0.0
        %vm4869 = vcmp.eq.f32.partialorder %v4688, 0.0
        %vm4870 = vcmp.eq.f32.partialorder %v4690, 0.0
        %vm4871 = vcmp.eq.f32.partialorder %v4801, 0.0
        %vm4872 = vcmp.eq.f32.partialorder %v4803, 0.0
        %vm4873 = vcmp.eq.f32.partialorder %v4694, 0.0
        %vm4874 = vcmp.eq.f32.partialorder %v4696, 0.0
        %vm4875 = vcmp.eq.f32.partialorder %v4807, 0.0
        %vm4876 = vcmp.eq.f32.partialorder %v4809, 0.0
        %vm4877 = vcmp.eq.f32.partialorder %v4698, 0.0
        %vm4878 = vcmp.eq.f32.partialorder %v4700, 0.0
        %vm4879 = vcmp.eq.f32.partialorder %v4811, 0.0
        %vm4880 = vcmp.eq.f32.partialorder %v4813, 0.0
        %vm4881 = vcmp.eq.f32.partialorder %v4704, 0.0
        %vm4882 = vcmp.eq.f32.partialorder %v4706, 0.0
        %vm4883 = vcmp.eq.f32.partialorder %v4817, 0.0
        %vm4884 = vcmp.eq.f32.partialorder %v4819, 0.0
        %vm4885 = vcmp.eq.f32.partialorder %v4708, 0.0
        %vm4886 = vcmp.eq.f32.partialorder %v4710, 0.0
        %vm4887 = vcmp.eq.f32.partialorder %v4821, 0.0
        %vm4888 = vcmp.eq.f32.partialorder %v4823, 0.0
        %v4889 = vand.u32 2147483647, %v4634
        %v4890 = vand.u32 2147483647, %v4636
        %v4891 = vand.u32 2147483647, %v4747
        %v4892 = vand.u32 2147483647, %v4749
        %v4893 = vand.u32 2147483647, %v4638
        %v4894 = vand.u32 2147483647, %v4640
        %v4895 = vand.u32 2147483647, %v4751
        %v4896 = vand.u32 2147483647, %v4753
        %v4897 = vand.u32 2147483647, %v4644
        %v4898 = vand.u32 2147483647, %v4646
        %v4899 = vand.u32 2147483647, %v4757
        %v4900 = vand.u32 2147483647, %v4759
        %v4901 = vand.u32 2147483647, %v4648
        %v4902 = vand.u32 2147483647, %v4650
        %v4903 = vand.u32 2147483647, %v4761
        %v4904 = vand.u32 2147483647, %v4763
        %v4905 = vand.u32 2147483647, %v4654
        %v4906 = vand.u32 2147483647, %v4656
        %v4907 = vand.u32 2147483647, %v4767
        %v4908 = vand.u32 2147483647, %v4769
        %v4909 = vand.u32 2147483647, %v4658
        %v4910 = vand.u32 2147483647, %v4660
        %v4911 = vand.u32 2147483647, %v4771
        %v4912 = vand.u32 2147483647, %v4773
        %v4913 = vand.u32 2147483647, %v4664
        %v4914 = vand.u32 2147483647, %v4666
        %v4915 = vand.u32 2147483647, %v4777
        %v4916 = vand.u32 2147483647, %v4779
        %v4917 = vand.u32 2147483647, %v4668
        %v4918 = vand.u32 2147483647, %v4670
        %v4919 = vand.u32 2147483647, %v4781
        %v4920 = vand.u32 2147483647, %v4783
        %v4921 = vand.u32 2147483647, %v4674
        %v4922 = vand.u32 2147483647, %v4676
        %v4923 = vand.u32 2147483647, %v4787
        %v4924 = vand.u32 2147483647, %v4789
        %v4925 = vand.u32 2147483647, %v4678
        %v4926 = vand.u32 2147483647, %v4680
        %v4927 = vand.u32 2147483647, %v4791
        %v4928 = vand.u32 2147483647, %v4793
        %v4929 = vand.u32 2147483647, %v4684
        %v4930 = vand.u32 2147483647, %v4686
        %v4931 = vand.u32 2147483647, %v4797
        %v4932 = vand.u32 2147483647, %v4799
        %v4933 = vand.u32 2147483647, %v4688
        %v4934 = vand.u32 2147483647, %v4690
        %v4935 = vand.u32 2147483647, %v4801
        %v4936 = vand.u32 2147483647, %v4803
        %v4937 = vand.u32 2147483647, %v4694
        %v4938 = vand.u32 2147483647, %v4696
        %v4939 = vand.u32 2147483647, %v4807
        %v4940 = vand.u32 2147483647, %v4809
        %v4941 = vand.u32 2147483647, %v4698
        %v4942 = vand.u32 2147483647, %v4700
        %v4943 = vand.u32 2147483647, %v4811
        %v4944 = vand.u32 2147483647, %v4813
        %v4945 = vand.u32 2147483647, %v4704
        %v4946 = vand.u32 2147483647, %v4706
        %v4947 = vand.u32 2147483647, %v4817
        %v4948 = vand.u32 2147483647, %v4819
        %v4949 = vand.u32 2147483647, %v4708
        %v4950 = vand.u32 2147483647, %v4710
        %v4951 = vand.u32 2147483647, %v4821
        %v4952 = vand.u32 2147483647, %v4823
        %v4953 = vadd.f32 %v4889, 7.84e-08
        %v4954 = vadd.f32 %v4890, 7.84e-08
        %v4955 = vadd.f32 %v4891, 7.84e-08
        %v4956 = vadd.f32 %v4892, 7.84e-08
        %v4957 = vadd.f32 %v4893, 7.84e-08
        %v4958 = vadd.f32 %v4894, 7.84e-08
        %v4959 = vadd.f32 %v4895, 7.84e-08
        %v4960 = vadd.f32 %v4896, 7.84e-08
        %v4961 = vadd.f32 %v4897, 7.84e-08
        %v4962 = vadd.f32 %v4898, 7.84e-08
        %v4963 = vadd.f32 %v4899, 7.84e-08
        %v4964 = vadd.f32 %v4900, 7.84e-08
        %v4965 = vadd.f32 %v4901, 7.84e-08
        %v4966 = vadd.f32 %v4902, 7.84e-08
        %v4967 = vadd.f32 %v4903, 7.84e-08
        %v4968 = vadd.f32 %v4904, 7.84e-08
        %v4969 = vadd.f32 %v4905, 7.84e-08
        %v4970 = vadd.f32 %v4906, 7.84e-08
        %v4971 = vadd.f32 %v4907, 7.84e-08
        %v4972 = vadd.f32 %v4908, 7.84e-08
        %v4973 = vadd.f32 %v4909, 7.84e-08
        %v4974 = vadd.f32 %v4910, 7.84e-08
        %v4975 = vadd.f32 %v4911, 7.84e-08
        %v4976 = vadd.f32 %v4912, 7.84e-08
        %v4977 = vadd.f32 %v4913, 7.84e-08
        %v4978 = vadd.f32 %v4914, 7.84e-08
        %v4979 = vadd.f32 %v4915, 7.84e-08
        %v4980 = vadd.f32 %v4916, 7.84e-08
        %v4981 = vadd.f32 %v4917, 7.84e-08
        %v4982 = vadd.f32 %v4918, 7.84e-08
        %v4983 = vadd.f32 %v4919, 7.84e-08
        %v4984 = vadd.f32 %v4920, 7.84e-08
        %v4985 = vadd.f32 %v4921, 7.84e-08
        %v4986 = vadd.f32 %v4922, 7.84e-08
        %v4987 = vadd.f32 %v4923, 7.84e-08
        %v4988 = vadd.f32 %v4924, 7.84e-08
        %v4989 = vadd.f32 %v4925, 7.84e-08
        %v4990 = vadd.f32 %v4926, 7.84e-08
        %v4991 = vadd.f32 %v4927, 7.84e-08
        %v4992 = vadd.f32 %v4928, 7.84e-08
        %v4993 = vadd.f32 %v4929, 7.84e-08
        %v4994 = vadd.f32 %v4930, 7.84e-08
        %v4995 = vadd.f32 %v4931, 7.84e-08
        %v4996 = vadd.f32 %v4932, 7.84e-08
        %v4997 = vadd.f32 %v4933, 7.84e-08
        %v4998 = vadd.f32 %v4934, 7.84e-08
        %v4999 = vadd.f32 %v4935, 7.84e-08
        %v5000 = vadd.f32 %v4936, 7.84e-08
        %v5001 = vadd.f32 %v4937, 7.84e-08
        %v5002 = vadd.f32 %v4938, 7.84e-08
        %v5003 = vadd.f32 %v4939, 7.84e-08
        %v5004 = vadd.f32 %v4940, 7.84e-08
        %v5005 = vadd.f32 %v4941, 7.84e-08
        %v5006 = vadd.f32 %v4942, 7.84e-08
        %v5007 = vadd.f32 %v4943, 7.84e-08
        %v5008 = vadd.f32 %v4944, 7.84e-08
        %v5009 = vadd.f32 %v4945, 7.84e-08
        %v5010 = vadd.f32 %v4946, 7.84e-08
        %v5011 = vadd.f32 %v4947, 7.84e-08
        %v5012 = vadd.f32 %v4948, 7.84e-08
        %v5013 = vadd.f32 %v4949, 7.84e-08
        %v5014 = vadd.f32 %v4950, 7.84e-08
        %v5015 = vadd.f32 %v4951, 7.84e-08
        %v5016 = vadd.f32 %v4952, 7.84e-08
        %v5017 = vsel %vm4825, 0.0, %v4953
        %v5018 = vsel %vm4826, 0.0, %v4954
        %v5019 = vsel %vm4827, 0.0, %v4955
        %v5020 = vsel %vm4828, 0.0, %v4956
        %v5021 = vsel %vm4829, 0.0, %v4957
        %v5022 = vsel %vm4830, 0.0, %v4958
        %v5023 = vsel %vm4831, 0.0, %v4959
        %v5024 = vsel %vm4832, 0.0, %v4960
        %v5025 = vsel %vm4833, 0.0, %v4961
        %v5026 = vsel %vm4834, 0.0, %v4962
        %v5027 = vsel %vm4835, 0.0, %v4963
        %v5028 = vsel %vm4836, 0.0, %v4964
        %v5029 = vsel %vm4837, 0.0, %v4965
        %v5030 = vsel %vm4838, 0.0, %v4966
        %v5031 = vsel %vm4839, 0.0, %v4967
        %v5032 = vsel %vm4840, 0.0, %v4968
        %v5033 = vsel %vm4841, 0.0, %v4969
        %v5034 = vsel %vm4842, 0.0, %v4970
        %v5035 = vsel %vm4843, 0.0, %v4971
        %v5036 = vsel %vm4844, 0.0, %v4972
        %v5037 = vsel %vm4845, 0.0, %v4973
        %v5038 = vsel %vm4846, 0.0, %v4974
        %v5039 = vsel %vm4847, 0.0, %v4975
        %v5040 = vsel %vm4848, 0.0, %v4976
        %v5041 = vsel %vm4849, 0.0, %v4977
        %v5042 = vsel %vm4850, 0.0, %v4978
        %v5043 = vsel %vm4851, 0.0, %v4979
        %v5044 = vsel %vm4852, 0.0, %v4980
        %v5045 = vsel %vm4853, 0.0, %v4981
        %v5046 = vsel %vm4854, 0.0, %v4982
        %v5047 = vsel %vm4855, 0.0, %v4983
        %v5048 = vsel %vm4856, 0.0, %v4984
        %v5049 = vsel %vm4857, 0.0, %v4985
        %v5050 = vsel %vm4858, 0.0, %v4986
        %v5051 = vsel %vm4859, 0.0, %v4987
        %v5052 = vsel %vm4860, 0.0, %v4988
        %v5053 = vsel %vm4861, 0.0, %v4989
        %v5054 = vsel %vm4862, 0.0, %v4990
        %v5055 = vsel %vm4863, 0.0, %v4991
        %v5056 = vsel %vm4864, 0.0, %v4992
        %v5057 = vsel %vm4865, 0.0, %v4993
        %v5058 = vsel %vm4866, 0.0, %v4994
        %v5059 = vsel %vm4867, 0.0, %v4995
        %v5060 = vsel %vm4868, 0.0, %v4996
        %v5061 = vsel %vm4869, 0.0, %v4997
        %v5062 = vsel %vm4870, 0.0, %v4998
        %v5063 = vsel %vm4871, 0.0, %v4999
        %v5064 = vsel %vm4872, 0.0, %v5000
        %v5065 = vsel %vm4873, 0.0, %v5001
        %v5066 = vsel %vm4874, 0.0, %v5002
        %v5067 = vsel %vm4875, 0.0, %v5003
        %v5068 = vsel %vm4876, 0.0, %v5004
        %v5069 = vsel %vm4877, 0.0, %v5005
        %v5070 = vsel %vm4878, 0.0, %v5006
        %v5071 = vsel %vm4879, 0.0, %v5007
        %v5072 = vsel %vm4880, 0.0, %v5008
        %v5073 = vsel %vm4881, 0.0, %v5009
        %v5074 = vsel %vm4882, 0.0, %v5010
        %v5075 = vsel %vm4883, 0.0, %v5011
        %v5076 = vsel %vm4884, 0.0, %v5012
        %v5077 = vsel %vm4885, 0.0, %v5013
        %v5078 = vsel %vm4886, 0.0, %v5014
        %v5079 = vsel %vm4887, 0.0, %v5015
        %v5080 = vsel %vm4888, 0.0, %v5016
        %v5081 = vadd.f32 %v5017, %v5018
        %v5082 = vadd.f32 %v5081, %v5019
        %v5083 = vadd.f32 %v5082, %v5020
        %v5084 = vadd.f32 %v5083, %v5021
        %v5085 = vadd.f32 %v5084, %v5022
        %v5086 = vadd.f32 %v5085, %v5023
        %v5087 = vadd.f32 %v5086, %v5024
        %v5088 = vadd.f32 %v5087, %v5025
        %v5089 = vadd.f32 %v5088, %v5026
        %v5090 = vadd.f32 %v5089, %v5027
        %v5091 = vadd.f32 %v5090, %v5028
        %v5092 = vadd.f32 %v5091, %v5029
        %v5093 = vadd.f32 %v5092, %v5030
        %v5094 = vadd.f32 %v5093, %v5031
        %v5095 = vadd.f32 %v5094, %v5032
        %v5096 = vadd.f32 %v5095, %v5033
        %v5097 = vadd.f32 %v5096, %v5034
        %v5098 = vadd.f32 %v5097, %v5035
        %v5099 = vadd.f32 %v5098, %v5036
        %v5100 = vadd.f32 %v5099, %v5037
        %v5101 = vadd.f32 %v5100, %v5038
        %v5102 = vadd.f32 %v5101, %v5039
        %v5103 = vadd.f32 %v5102, %v5040
        %v5104 = vadd.f32 %v5103, %v5041
        %v5105 = vadd.f32 %v5104, %v5042
        %v5106 = vadd.f32 %v5105, %v5043
        %v5107 = vadd.f32 %v5106, %v5044
        %v5108 = vadd.f32 %v5107, %v5045
        %v5109 = vadd.f32 %v5108, %v5046
        %v5110 = vadd.f32 %v5109, %v5047
        %v5111 = vadd.f32 %v5110, %v5048
        %v5112 = vadd.f32 %v5111, %v5049
        %v5113 = vadd.f32 %v5112, %v5050
        %v5114 = vadd.f32 %v5113, %v5051
        %v5115 = vadd.f32 %v5114, %v5052
        %v5116 = vadd.f32 %v5115, %v5053
        %v5117 = vadd.f32 %v5116, %v5054
        %v5118 = vadd.f32 %v5117, %v5055
        %v5119 = vadd.f32 %v5118, %v5056
        %v5120 = vadd.f32 %v5119, %v5057
        %v5121 = vadd.f32 %v5120, %v5058
        %v5122 = vadd.f32 %v5121, %v5059
        %v5123 = vadd.f32 %v5122, %v5060
        %v5124 = vadd.f32 %v5123, %v5061
        %v5125 = vadd.f32 %v5124, %v5062
        %v5126 = vadd.f32 %v5125, %v5063
        %v5127 = vadd.f32 %v5126, %v5064
        %v5128 = vadd.f32 %v5127, %v5065
        %v5129 = vadd.f32 %v5128, %v5066
        %v5130 = vadd.f32 %v5129, %v5067
        %v5131 = vadd.f32 %v5130, %v5068
        %v5132 = vadd.f32 %v5131, %v5069
        %v5133 = vadd.f32 %v5132, %v5070
        %v5134 = vadd.f32 %v5133, %v5071
        %v5135 = vadd.f32 %v5134, %v5072
        %v5136 = vadd.f32 %v5135, %v5073
        %v5137 = vadd.f32 %v5136, %v5074
        %v5138 = vadd.f32 %v5137, %v5075
        %v5139 = vadd.f32 %v5138, %v5076
        %v5140 = vadd.f32 %v5139, %v5077
        %v5141 = vadd.f32 %v5140, %v5078
        %v5142 = vadd.f32 %v5141, %v5079
        %v5143 = vadd.f32 %v5142, %v5080
        %5144 = vadd.xlane.f32.xlu0 %v5143
        %v5145 = vpop.xlane.xlu0 %5144
        %v5146 = vrot.slane %v5145, 4
        %v5147 = vadd.f32 %v5145, %v5146
        %v5148 = vrot.slane %v5147, 2
        %v5149 = vadd.f32 %v5147, %v5148
        %v5150 = vrot.slane %v5149, 1
        %v5151 = vadd.f32 %v5149, %v5150
        %s5152 = vtos %v5151
        %s5153 = sadd.f32 %s3067, %s5152
        %v5154 = vrsqrt.pop %v4953
        %v5155 = vmul.f32 %v4953, %v5154
        %vm5156 = vcmp.eq.f32.partialorder %v4953, inf
        %v5157 = vsel %vm5156, %v4953, %v5155
        %vm5158 = vcmp.eq.f32.partialorder %v4953, 0.0
        %v5159 = vand.u32 %v4953, 2147483648
        %v5160 = vsel %vm5158, %v5159, %v5157
        %v5161 = vrsqrt.pop %v4954
        %v5162 = vmul.f32 %v4954, %v5161
        %vm5163 = vcmp.eq.f32.partialorder %v4954, inf
        %v5164 = vsel %vm5163, %v4954, %v5162
        %vm5165 = vcmp.eq.f32.partialorder %v4954, 0.0
        %v5166 = vand.u32 %v4954, 2147483648
        %v5167 = vsel %vm5165, %v5166, %v5164
        %v5168 = vrsqrt.pop %v4955
        %v5169 = vmul.f32 %v4955, %v5168
        %vm5170 = vcmp.eq.f32.partialorder %v4955, inf
        %v5171 = vsel %vm5170, %v4955, %v5169
        %vm5172 = vcmp.eq.f32.partialorder %v4955, 0.0
        %v5173 = vand.u32 %v4955, 2147483648
        %v5174 = vsel %vm5172, %v5173, %v5171
        %v5175 = vrsqrt.pop %v4956
        %v5176 = vmul.f32 %v4956, %v5175
        %vm5177 = vcmp.eq.f32.partialorder %v4956, inf
        %v5178 = vsel %vm5177, %v4956, %v5176
        %vm5179 = vcmp.eq.f32.partialorder %v4956, 0.0
        %v5180 = vand.u32 %v4956, 2147483648
        %v5181 = vsel %vm5179, %v5180, %v5178
        %v5182 = vrsqrt.pop %v4957
        %v5183 = vmul.f32 %v4957, %v5182
        %vm5184 = vcmp.eq.f32.partialorder %v4957, inf
        %v5185 = vsel %vm5184, %v4957, %v5183
        %vm5186 = vcmp.eq.f32.partialorder %v4957, 0.0
        %v5187 = vand.u32 %v4957, 2147483648
        %v5188 = vsel %vm5186, %v5187, %v5185
        %v5189 = vrsqrt.pop %v4958
        %v5190 = vmul.f32 %v4958, %v5189
        %vm5191 = vcmp.eq.f32.partialorder %v4958, inf
        %v5192 = vsel %vm5191, %v4958, %v5190
        %vm5193 = vcmp.eq.f32.partialorder %v4958, 0.0
        %v5194 = vand.u32 %v4958, 2147483648
        %v5195 = vsel %vm5193, %v5194, %v5192
        %v5196 = vrsqrt.pop %v4959
        %v5197 = vmul.f32 %v4959, %v5196
        %vm5198 = vcmp.eq.f32.partialorder %v4959, inf
        %v5199 = vsel %vm5198, %v4959, %v5197
        %vm5200 = vcmp.eq.f32.partialorder %v4959, 0.0
        %v5201 = vand.u32 %v4959, 2147483648
        %v5202 = vsel %vm5200, %v5201, %v5199
        %v5203 = vrsqrt.pop %v4960
        %v5204 = vmul.f32 %v4960, %v5203
        %vm5205 = vcmp.eq.f32.partialorder %v4960, inf
        %v5206 = vsel %vm5205, %v4960, %v5204
        %vm5207 = vcmp.eq.f32.partialorder %v4960, 0.0
        %v5208 = vand.u32 %v4960, 2147483648
        %v5209 = vsel %vm5207, %v5208, %v5206
        %v5210 = vrsqrt.pop %v4961
        %v5211 = vmul.f32 %v4961, %v5210
        %vm5212 = vcmp.eq.f32.partialorder %v4961, inf
        %v5213 = vsel %vm5212, %v4961, %v5211
        %vm5214 = vcmp.eq.f32.partialorder %v4961, 0.0
        %v5215 = vand.u32 %v4961, 2147483648
        %v5216 = vsel %vm5214, %v5215, %v5213
        %v5217 = vrsqrt.pop %v4962
        %v5218 = vmul.f32 %v4962, %v5217
        %vm5219 = vcmp.eq.f32.partialorder %v4962, inf
        %v5220 = vsel %vm5219, %v4962, %v5218
        %vm5221 = vcmp.eq.f32.partialorder %v4962, 0.0
        %v5222 = vand.u32 %v4962, 2147483648
        %v5223 = vsel %vm5221, %v5222, %v5220
        %v5224 = vrsqrt.pop %v4963
        %v5225 = vmul.f32 %v4963, %v5224
        %vm5226 = vcmp.eq.f32.partialorder %v4963, inf
        %v5227 = vsel %vm5226, %v4963, %v5225
        %vm5228 = vcmp.eq.f32.partialorder %v4963, 0.0
        %v5229 = vand.u32 %v4963, 2147483648
        %v5230 = vsel %vm5228, %v5229, %v5227
        %v5231 = vrsqrt.pop %v4964
        %v5232 = vmul.f32 %v4964, %v5231
        %vm5233 = vcmp.eq.f32.partialorder %v4964, inf
        %v5234 = vsel %vm5233, %v4964, %v5232
        %vm5235 = vcmp.eq.f32.partialorder %v4964, 0.0
        %v5236 = vand.u32 %v4964, 2147483648
        %v5237 = vsel %vm5235, %v5236, %v5234
        %v5238 = vrsqrt.pop %v4965
        %v5239 = vmul.f32 %v4965, %v5238
        %vm5240 = vcmp.eq.f32.partialorder %v4965, inf
        %v5241 = vsel %vm5240, %v4965, %v5239
        %vm5242 = vcmp.eq.f32.partialorder %v4965, 0.0
        %v5243 = vand.u32 %v4965, 2147483648
        %v5244 = vsel %vm5242, %v5243, %v5241
        %v5245 = vrsqrt.pop %v4966
        %v5246 = vmul.f32 %v4966, %v5245
        %vm5247 = vcmp.eq.f32.partialorder %v4966, inf
        %v5248 = vsel %vm5247, %v4966, %v5246
        %vm5249 = vcmp.eq.f32.partialorder %v4966, 0.0
        %v5250 = vand.u32 %v4966, 2147483648
        %v5251 = vsel %vm5249, %v5250, %v5248
        %v5252 = vrsqrt.pop %v4967
        %v5253 = vmul.f32 %v4967, %v5252
        %vm5254 = vcmp.eq.f32.partialorder %v4967, inf
        %v5255 = vsel %vm5254, %v4967, %v5253
        %vm5256 = vcmp.eq.f32.partialorder %v4967, 0.0
        %v5257 = vand.u32 %v4967, 2147483648
        %v5258 = vsel %vm5256, %v5257, %v5255
        %v5259 = vrsqrt.pop %v4968
        %v5260 = vmul.f32 %v4968, %v5259
        %vm5261 = vcmp.eq.f32.partialorder %v4968, inf
        %v5262 = vsel %vm5261, %v4968, %v5260
        %vm5263 = vcmp.eq.f32.partialorder %v4968, 0.0
        %v5264 = vand.u32 %v4968, 2147483648
        %v5265 = vsel %vm5263, %v5264, %v5262
        %v5266 = vrsqrt.pop %v4969
        %v5267 = vmul.f32 %v4969, %v5266
        %vm5268 = vcmp.eq.f32.partialorder %v4969, inf
        %v5269 = vsel %vm5268, %v4969, %v5267
        %vm5270 = vcmp.eq.f32.partialorder %v4969, 0.0
        %v5271 = vand.u32 %v4969, 2147483648
        %v5272 = vsel %vm5270, %v5271, %v5269
        %v5273 = vrsqrt.pop %v4970
        %v5274 = vmul.f32 %v4970, %v5273
        %vm5275 = vcmp.eq.f32.partialorder %v4970, inf
        %v5276 = vsel %vm5275, %v4970, %v5274
        %vm5277 = vcmp.eq.f32.partialorder %v4970, 0.0
        %v5278 = vand.u32 %v4970, 2147483648
        %v5279 = vsel %vm5277, %v5278, %v5276
        %v5280 = vrsqrt.pop %v4971
        %v5281 = vmul.f32 %v4971, %v5280
        %vm5282 = vcmp.eq.f32.partialorder %v4971, inf
        %v5283 = vsel %vm5282, %v4971, %v5281
        %vm5284 = vcmp.eq.f32.partialorder %v4971, 0.0
        %v5285 = vand.u32 %v4971, 2147483648
        %v5286 = vsel %vm5284, %v5285, %v5283
        %v5287 = vrsqrt.pop %v4972
        %v5288 = vmul.f32 %v4972, %v5287
        %vm5289 = vcmp.eq.f32.partialorder %v4972, inf
        %v5290 = vsel %vm5289, %v4972, %v5288
        %vm5291 = vcmp.eq.f32.partialorder %v4972, 0.0
        %v5292 = vand.u32 %v4972, 2147483648
        %v5293 = vsel %vm5291, %v5292, %v5290
        %v5294 = vrsqrt.pop %v4973
        %v5295 = vmul.f32 %v4973, %v5294
        %vm5296 = vcmp.eq.f32.partialorder %v4973, inf
        %v5297 = vsel %vm5296, %v4973, %v5295
        %vm5298 = vcmp.eq.f32.partialorder %v4973, 0.0
        %v5299 = vand.u32 %v4973, 2147483648
        %v5300 = vsel %vm5298, %v5299, %v5297
        %v5301 = vrsqrt.pop %v4974
        %v5302 = vmul.f32 %v4974, %v5301
        %vm5303 = vcmp.eq.f32.partialorder %v4974, inf
        %v5304 = vsel %vm5303, %v4974, %v5302
        %vm5305 = vcmp.eq.f32.partialorder %v4974, 0.0
        %v5306 = vand.u32 %v4974, 2147483648
        %v5307 = vsel %vm5305, %v5306, %v5304
        %v5308 = vrsqrt.pop %v4975
        %v5309 = vmul.f32 %v4975, %v5308
        %vm5310 = vcmp.eq.f32.partialorder %v4975, inf
        %v5311 = vsel %vm5310, %v4975, %v5309
        %vm5312 = vcmp.eq.f32.partialorder %v4975, 0.0
        %v5313 = vand.u32 %v4975, 2147483648
        %v5314 = vsel %vm5312, %v5313, %v5311
        %v5315 = vrsqrt.pop %v4976
        %v5316 = vmul.f32 %v4976, %v5315
        %vm5317 = vcmp.eq.f32.partialorder %v4976, inf
        %v5318 = vsel %vm5317, %v4976, %v5316
        %vm5319 = vcmp.eq.f32.partialorder %v4976, 0.0
        %v5320 = vand.u32 %v4976, 2147483648
        %v5321 = vsel %vm5319, %v5320, %v5318
        %v5322 = vrsqrt.pop %v4977
        %v5323 = vmul.f32 %v4977, %v5322
        %vm5324 = vcmp.eq.f32.partialorder %v4977, inf
        %v5325 = vsel %vm5324, %v4977, %v5323
        %vm5326 = vcmp.eq.f32.partialorder %v4977, 0.0
        %v5327 = vand.u32 %v4977, 2147483648
        %v5328 = vsel %vm5326, %v5327, %v5325
        %v5329 = vrsqrt.pop %v4978
        %v5330 = vmul.f32 %v4978, %v5329
        %vm5331 = vcmp.eq.f32.partialorder %v4978, inf
        %v5332 = vsel %vm5331, %v4978, %v5330
        %vm5333 = vcmp.eq.f32.partialorder %v4978, 0.0
        %v5334 = vand.u32 %v4978, 2147483648
        %v5335 = vsel %vm5333, %v5334, %v5332
        %v5336 = vrsqrt.pop %v4979
        %v5337 = vmul.f32 %v4979, %v5336
        %vm5338 = vcmp.eq.f32.partialorder %v4979, inf
        %v5339 = vsel %vm5338, %v4979, %v5337
        %vm5340 = vcmp.eq.f32.partialorder %v4979, 0.0
        %v5341 = vand.u32 %v4979, 2147483648
        %v5342 = vsel %vm5340, %v5341, %v5339
        %v5343 = vrsqrt.pop %v4980
        %v5344 = vmul.f32 %v4980, %v5343
        %vm5345 = vcmp.eq.f32.partialorder %v4980, inf
        %v5346 = vsel %vm5345, %v4980, %v5344
        %vm5347 = vcmp.eq.f32.partialorder %v4980, 0.0
        %v5348 = vand.u32 %v4980, 2147483648
        %v5349 = vsel %vm5347, %v5348, %v5346
        %v5350 = vrsqrt.pop %v4981
        %v5351 = vmul.f32 %v4981, %v5350
        %vm5352 = vcmp.eq.f32.partialorder %v4981, inf
        %v5353 = vsel %vm5352, %v4981, %v5351
        %vm5354 = vcmp.eq.f32.partialorder %v4981, 0.0
        %v5355 = vand.u32 %v4981, 2147483648
        %v5356 = vsel %vm5354, %v5355, %v5353
        %v5357 = vrsqrt.pop %v4982
        %v5358 = vmul.f32 %v4982, %v5357
        %vm5359 = vcmp.eq.f32.partialorder %v4982, inf
        %v5360 = vsel %vm5359, %v4982, %v5358
        %vm5361 = vcmp.eq.f32.partialorder %v4982, 0.0
        %v5362 = vand.u32 %v4982, 2147483648
        %v5363 = vsel %vm5361, %v5362, %v5360
        %v5364 = vrsqrt.pop %v4983
        %v5365 = vmul.f32 %v4983, %v5364
        %vm5366 = vcmp.eq.f32.partialorder %v4983, inf
        %v5367 = vsel %vm5366, %v4983, %v5365
        %vm5368 = vcmp.eq.f32.partialorder %v4983, 0.0
        %v5369 = vand.u32 %v4983, 2147483648
        %v5370 = vsel %vm5368, %v5369, %v5367
        %v5371 = vrsqrt.pop %v4984
        %v5372 = vmul.f32 %v4984, %v5371
        %vm5373 = vcmp.eq.f32.partialorder %v4984, inf
        %v5374 = vsel %vm5373, %v4984, %v5372
        %vm5375 = vcmp.eq.f32.partialorder %v4984, 0.0
        %v5376 = vand.u32 %v4984, 2147483648
        %v5377 = vsel %vm5375, %v5376, %v5374
        %v5378 = vrsqrt.pop %v4985
        %v5379 = vmul.f32 %v4985, %v5378
        %vm5380 = vcmp.eq.f32.partialorder %v4985, inf
        %v5381 = vsel %vm5380, %v4985, %v5379
        %vm5382 = vcmp.eq.f32.partialorder %v4985, 0.0
        %v5383 = vand.u32 %v4985, 2147483648
        %v5384 = vsel %vm5382, %v5383, %v5381
        %v5385 = vrsqrt.pop %v4986
        %v5386 = vmul.f32 %v4986, %v5385
        %vm5387 = vcmp.eq.f32.partialorder %v4986, inf
        %v5388 = vsel %vm5387, %v4986, %v5386
        %vm5389 = vcmp.eq.f32.partialorder %v4986, 0.0
        %v5390 = vand.u32 %v4986, 2147483648
        %v5391 = vsel %vm5389, %v5390, %v5388
        %v5392 = vrsqrt.pop %v4987
        %v5393 = vmul.f32 %v4987, %v5392
        %vm5394 = vcmp.eq.f32.partialorder %v4987, inf
        %v5395 = vsel %vm5394, %v4987, %v5393
        %vm5396 = vcmp.eq.f32.partialorder %v4987, 0.0
        %v5397 = vand.u32 %v4987, 2147483648
        %v5398 = vsel %vm5396, %v5397, %v5395
        %v5399 = vrsqrt.pop %v4988
        %v5400 = vmul.f32 %v4988, %v5399
        %vm5401 = vcmp.eq.f32.partialorder %v4988, inf
        %v5402 = vsel %vm5401, %v4988, %v5400
        %vm5403 = vcmp.eq.f32.partialorder %v4988, 0.0
        %v5404 = vand.u32 %v4988, 2147483648
        %v5405 = vsel %vm5403, %v5404, %v5402
        %v5406 = vrsqrt.pop %v4989
        %v5407 = vmul.f32 %v4989, %v5406
        %vm5408 = vcmp.eq.f32.partialorder %v4989, inf
        %v5409 = vsel %vm5408, %v4989, %v5407
        %vm5410 = vcmp.eq.f32.partialorder %v4989, 0.0
        %v5411 = vand.u32 %v4989, 2147483648
        %v5412 = vsel %vm5410, %v5411, %v5409
        %v5413 = vrsqrt.pop %v4990
        %v5414 = vmul.f32 %v4990, %v5413
        %vm5415 = vcmp.eq.f32.partialorder %v4990, inf
        %v5416 = vsel %vm5415, %v4990, %v5414
        %vm5417 = vcmp.eq.f32.partialorder %v4990, 0.0
        %v5418 = vand.u32 %v4990, 2147483648
        %v5419 = vsel %vm5417, %v5418, %v5416
        %v5420 = vrsqrt.pop %v4991
        %v5421 = vmul.f32 %v4991, %v5420
        %vm5422 = vcmp.eq.f32.partialorder %v4991, inf
        %v5423 = vsel %vm5422, %v4991, %v5421
        %vm5424 = vcmp.eq.f32.partialorder %v4991, 0.0
        %v5425 = vand.u32 %v4991, 2147483648
        %v5426 = vsel %vm5424, %v5425, %v5423
        %v5427 = vrsqrt.pop %v4992
        %v5428 = vmul.f32 %v4992, %v5427
        %vm5429 = vcmp.eq.f32.partialorder %v4992, inf
        %v5430 = vsel %vm5429, %v4992, %v5428
        %vm5431 = vcmp.eq.f32.partialorder %v4992, 0.0
        %v5432 = vand.u32 %v4992, 2147483648
        %v5433 = vsel %vm5431, %v5432, %v5430
        %v5434 = vrsqrt.pop %v4993
        %v5435 = vmul.f32 %v4993, %v5434
        %vm5436 = vcmp.eq.f32.partialorder %v4993, inf
        %v5437 = vsel %vm5436, %v4993, %v5435
        %vm5438 = vcmp.eq.f32.partialorder %v4993, 0.0
        %v5439 = vand.u32 %v4993, 2147483648
        %v5440 = vsel %vm5438, %v5439, %v5437
        %v5441 = vrsqrt.pop %v4994
        %v5442 = vmul.f32 %v4994, %v5441
        %vm5443 = vcmp.eq.f32.partialorder %v4994, inf
        %v5444 = vsel %vm5443, %v4994, %v5442
        %vm5445 = vcmp.eq.f32.partialorder %v4994, 0.0
        %v5446 = vand.u32 %v4994, 2147483648
        %v5447 = vsel %vm5445, %v5446, %v5444
        %v5448 = vrsqrt.pop %v4995
        %v5449 = vmul.f32 %v4995, %v5448
        %vm5450 = vcmp.eq.f32.partialorder %v4995, inf
        %v5451 = vsel %vm5450, %v4995, %v5449
        %vm5452 = vcmp.eq.f32.partialorder %v4995, 0.0
        %v5453 = vand.u32 %v4995, 2147483648
        %v5454 = vsel %vm5452, %v5453, %v5451
        %v5455 = vrsqrt.pop %v4996
        %v5456 = vmul.f32 %v4996, %v5455
        %vm5457 = vcmp.eq.f32.partialorder %v4996, inf
        %v5458 = vsel %vm5457, %v4996, %v5456
        %vm5459 = vcmp.eq.f32.partialorder %v4996, 0.0
        %v5460 = vand.u32 %v4996, 2147483648
        %v5461 = vsel %vm5459, %v5460, %v5458
        %v5462 = vrsqrt.pop %v4997
        %v5463 = vmul.f32 %v4997, %v5462
        %vm5464 = vcmp.eq.f32.partialorder %v4997, inf
        %v5465 = vsel %vm5464, %v4997, %v5463
        %vm5466 = vcmp.eq.f32.partialorder %v4997, 0.0
        %v5467 = vand.u32 %v4997, 2147483648
        %v5468 = vsel %vm5466, %v5467, %v5465
        %v5469 = vrsqrt.pop %v4998
        %v5470 = vmul.f32 %v4998, %v5469
        %vm5471 = vcmp.eq.f32.partialorder %v4998, inf
        %v5472 = vsel %vm5471, %v4998, %v5470
        %vm5473 = vcmp.eq.f32.partialorder %v4998, 0.0
        %v5474 = vand.u32 %v4998, 2147483648
        %v5475 = vsel %vm5473, %v5474, %v5472
        %v5476 = vrsqrt.pop %v4999
        %v5477 = vmul.f32 %v4999, %v5476
        %vm5478 = vcmp.eq.f32.partialorder %v4999, inf
        %v5479 = vsel %vm5478, %v4999, %v5477
        %vm5480 = vcmp.eq.f32.partialorder %v4999, 0.0
        %v5481 = vand.u32 %v4999, 2147483648
        %v5482 = vsel %vm5480, %v5481, %v5479
        %v5483 = vrsqrt.pop %v5000
        %v5484 = vmul.f32 %v5000, %v5483
        %vm5485 = vcmp.eq.f32.partialorder %v5000, inf
        %v5486 = vsel %vm5485, %v5000, %v5484
        %vm5487 = vcmp.eq.f32.partialorder %v5000, 0.0
        %v5488 = vand.u32 %v5000, 2147483648
        %v5489 = vsel %vm5487, %v5488, %v5486
        %v5490 = vrsqrt.pop %v5001
        %v5491 = vmul.f32 %v5001, %v5490
        %vm5492 = vcmp.eq.f32.partialorder %v5001, inf
        %v5493 = vsel %vm5492, %v5001, %v5491
        %vm5494 = vcmp.eq.f32.partialorder %v5001, 0.0
        %v5495 = vand.u32 %v5001, 2147483648
        %v5496 = vsel %vm5494, %v5495, %v5493
        %v5497 = vrsqrt.pop %v5002
        %v5498 = vmul.f32 %v5002, %v5497
        %vm5499 = vcmp.eq.f32.partialorder %v5002, inf
        %v5500 = vsel %vm5499, %v5002, %v5498
        %vm5501 = vcmp.eq.f32.partialorder %v5002, 0.0
        %v5502 = vand.u32 %v5002, 2147483648
        %v5503 = vsel %vm5501, %v5502, %v5500
        %v5504 = vrsqrt.pop %v5003
        %v5505 = vmul.f32 %v5003, %v5504
        %vm5506 = vcmp.eq.f32.partialorder %v5003, inf
        %v5507 = vsel %vm5506, %v5003, %v5505
        %vm5508 = vcmp.eq.f32.partialorder %v5003, 0.0
        %v5509 = vand.u32 %v5003, 2147483648
        %v5510 = vsel %vm5508, %v5509, %v5507
        %v5511 = vrsqrt.pop %v5004
        %v5512 = vmul.f32 %v5004, %v5511
        %vm5513 = vcmp.eq.f32.partialorder %v5004, inf
        %v5514 = vsel %vm5513, %v5004, %v5512
        %vm5515 = vcmp.eq.f32.partialorder %v5004, 0.0
        %v5516 = vand.u32 %v5004, 2147483648
        %v5517 = vsel %vm5515, %v5516, %v5514
        %v5518 = vrsqrt.pop %v5005
        %v5519 = vmul.f32 %v5005, %v5518
        %vm5520 = vcmp.eq.f32.partialorder %v5005, inf
        %v5521 = vsel %vm5520, %v5005, %v5519
        %vm5522 = vcmp.eq.f32.partialorder %v5005, 0.0
        %v5523 = vand.u32 %v5005, 2147483648
        %v5524 = vsel %vm5522, %v5523, %v5521
        %v5525 = vrsqrt.pop %v5006
        %v5526 = vmul.f32 %v5006, %v5525
        %vm5527 = vcmp.eq.f32.partialorder %v5006, inf
        %v5528 = vsel %vm5527, %v5006, %v5526
        %vm5529 = vcmp.eq.f32.partialorder %v5006, 0.0
        %v5530 = vand.u32 %v5006, 2147483648
        %v5531 = vsel %vm5529, %v5530, %v5528
        %v5532 = vrsqrt.pop %v5007
        %v5533 = vmul.f32 %v5007, %v5532
        %vm5534 = vcmp.eq.f32.partialorder %v5007, inf
        %v5535 = vsel %vm5534, %v5007, %v5533
        %vm5536 = vcmp.eq.f32.partialorder %v5007, 0.0
        %v5537 = vand.u32 %v5007, 2147483648
        %v5538 = vsel %vm5536, %v5537, %v5535
        %v5539 = vrsqrt.pop %v5008
        %v5540 = vmul.f32 %v5008, %v5539
        %vm5541 = vcmp.eq.f32.partialorder %v5008, inf
        %v5542 = vsel %vm5541, %v5008, %v5540
        %vm5543 = vcmp.eq.f32.partialorder %v5008, 0.0
        %v5544 = vand.u32 %v5008, 2147483648
        %v5545 = vsel %vm5543, %v5544, %v5542
        %v5546 = vrsqrt.pop %v5009
        %v5547 = vmul.f32 %v5009, %v5546
        %vm5548 = vcmp.eq.f32.partialorder %v5009, inf
        %v5549 = vsel %vm5548, %v5009, %v5547
        %vm5550 = vcmp.eq.f32.partialorder %v5009, 0.0
        %v5551 = vand.u32 %v5009, 2147483648
        %v5552 = vsel %vm5550, %v5551, %v5549
        %v5553 = vrsqrt.pop %v5010
        %v5554 = vmul.f32 %v5010, %v5553
        %vm5555 = vcmp.eq.f32.partialorder %v5010, inf
        %v5556 = vsel %vm5555, %v5010, %v5554
        %vm5557 = vcmp.eq.f32.partialorder %v5010, 0.0
        %v5558 = vand.u32 %v5010, 2147483648
        %v5559 = vsel %vm5557, %v5558, %v5556
        %v5560 = vrsqrt.pop %v5011
        %v5561 = vmul.f32 %v5011, %v5560
        %vm5562 = vcmp.eq.f32.partialorder %v5011, inf
        %v5563 = vsel %vm5562, %v5011, %v5561
        %vm5564 = vcmp.eq.f32.partialorder %v5011, 0.0
        %v5565 = vand.u32 %v5011, 2147483648
        %v5566 = vsel %vm5564, %v5565, %v5563
        %v5567 = vrsqrt.pop %v5012
        %v5568 = vmul.f32 %v5012, %v5567
        %vm5569 = vcmp.eq.f32.partialorder %v5012, inf
        %v5570 = vsel %vm5569, %v5012, %v5568
        %vm5571 = vcmp.eq.f32.partialorder %v5012, 0.0
        %v5572 = vand.u32 %v5012, 2147483648
        %v5573 = vsel %vm5571, %v5572, %v5570
        %v5574 = vrsqrt.pop %v5013
        %v5575 = vmul.f32 %v5013, %v5574
        %vm5576 = vcmp.eq.f32.partialorder %v5013, inf
        %v5577 = vsel %vm5576, %v5013, %v5575
        %vm5578 = vcmp.eq.f32.partialorder %v5013, 0.0
        %v5579 = vand.u32 %v5013, 2147483648
        %v5580 = vsel %vm5578, %v5579, %v5577
        %v5581 = vrsqrt.pop %v5014
        %v5582 = vmul.f32 %v5014, %v5581
        %vm5583 = vcmp.eq.f32.partialorder %v5014, inf
        %v5584 = vsel %vm5583, %v5014, %v5582
        %vm5585 = vcmp.eq.f32.partialorder %v5014, 0.0
        %v5586 = vand.u32 %v5014, 2147483648
        %v5587 = vsel %vm5585, %v5586, %v5584
        %v5588 = vrsqrt.pop %v5015
        %v5589 = vmul.f32 %v5015, %v5588
        %vm5590 = vcmp.eq.f32.partialorder %v5015, inf
        %v5591 = vsel %vm5590, %v5015, %v5589
        %vm5592 = vcmp.eq.f32.partialorder %v5015, 0.0
        %v5593 = vand.u32 %v5015, 2147483648
        %v5594 = vsel %vm5592, %v5593, %v5591
        %v5595 = vrsqrt.pop %v5016
        %v5596 = vmul.f32 %v5016, %v5595
        %vm5597 = vcmp.eq.f32.partialorder %v5016, inf
        %v5598 = vsel %vm5597, %v5016, %v5596
        %vm5599 = vcmp.eq.f32.partialorder %v5016, 0.0
        %v5600 = vand.u32 %v5016, 2147483648
        %v5601 = vsel %vm5599, %v5600, %v5598
        %v5730 = vand.u32 %v4634, 2147483648
        %v5731 = vand.u32 %v4636, 2147483648
        %v5732 = vand.u32 %v4747, 2147483648
        %v5733 = vand.u32 %v4749, 2147483648
        %v5734 = vand.u32 %v4638, 2147483648
        %v5735 = vand.u32 %v4640, 2147483648
        %v5736 = vand.u32 %v4751, 2147483648
        %v5737 = vand.u32 %v4753, 2147483648
        %v5738 = vand.u32 %v4644, 2147483648
        %v5739 = vand.u32 %v4646, 2147483648
        %v5740 = vand.u32 %v4757, 2147483648
        %v5741 = vand.u32 %v4759, 2147483648
        %v5742 = vand.u32 %v4648, 2147483648
        %v5743 = vand.u32 %v4650, 2147483648
        %v5744 = vand.u32 %v4761, 2147483648
        %v5745 = vand.u32 %v4763, 2147483648
        %v5746 = vand.u32 %v4654, 2147483648
        %v5747 = vand.u32 %v4656, 2147483648
        %v5748 = vand.u32 %v4767, 2147483648
        %v5749 = vand.u32 %v4769, 2147483648
        %v5750 = vand.u32 %v4658, 2147483648
        %v5751 = vand.u32 %v4660, 2147483648
        %v5752 = vand.u32 %v4771, 2147483648
        %v5753 = vand.u32 %v4773, 2147483648
        %v5754 = vand.u32 %v4664, 2147483648
        %v5755 = vand.u32 %v4666, 2147483648
        %v5756 = vand.u32 %v4777, 2147483648
        %v5757 = vand.u32 %v4779, 2147483648
        %v5758 = vand.u32 %v4668, 2147483648
        %v5759 = vand.u32 %v4670, 2147483648
        %v5760 = vand.u32 %v4781, 2147483648
        %v5761 = vand.u32 %v4783, 2147483648
        %v5762 = vand.u32 %v4674, 2147483648
        %v5763 = vand.u32 %v4676, 2147483648
        %v5764 = vand.u32 %v4787, 2147483648
        %v5765 = vand.u32 %v4789, 2147483648
        %v5766 = vand.u32 %v4678, 2147483648
        %v5767 = vand.u32 %v4680, 2147483648
        %v5768 = vand.u32 %v4791, 2147483648
        %v5769 = vand.u32 %v4793, 2147483648
        %v5770 = vand.u32 %v4684, 2147483648
        %v5771 = vand.u32 %v4686, 2147483648
        %v5772 = vand.u32 %v4797, 2147483648
        %v5773 = vand.u32 %v4799, 2147483648
        %v5774 = vand.u32 %v4688, 2147483648
        %v5775 = vand.u32 %v4690, 2147483648
        %v5776 = vand.u32 %v4801, 2147483648
        %v5777 = vand.u32 %v4803, 2147483648
        %v5778 = vand.u32 %v4694, 2147483648
        %v5779 = vand.u32 %v4696, 2147483648
        %v5780 = vand.u32 %v4807, 2147483648
        %v5781 = vand.u32 %v4809, 2147483648
        %v5782 = vand.u32 %v4698, 2147483648
        %v5783 = vand.u32 %v4700, 2147483648
        %v5784 = vand.u32 %v4811, 2147483648
        %v5785 = vand.u32 %v4813, 2147483648
        %v5786 = vand.u32 %v4704, 2147483648
        %v5787 = vand.u32 %v4706, 2147483648
        %v5788 = vand.u32 %v4817, 2147483648
        %v5789 = vand.u32 %v4819, 2147483648
        %v5790 = vand.u32 %v4708, 2147483648
        %v5791 = vand.u32 %v4710, 2147483648
        %v5792 = vand.u32 %v4821, 2147483648
        %v5793 = vand.u32 %v4823, 2147483648
        %v5794 = vor.u32 %v5160, %v5730
        %v5795 = vor.u32 %v5167, %v5731
        %v5796 = vor.u32 %v5174, %v5732
        %v5797 = vor.u32 %v5181, %v5733
        %v5798 = vor.u32 %v5188, %v5734
        %v5799 = vor.u32 %v5195, %v5735
        %v5800 = vor.u32 %v5202, %v5736
        %v5801 = vor.u32 %v5209, %v5737
        %v5802 = vor.u32 %v5216, %v5738
        %v5803 = vor.u32 %v5223, %v5739
        %v5804 = vor.u32 %v5230, %v5740
        %v5805 = vor.u32 %v5237, %v5741
        %v5806 = vor.u32 %v5244, %v5742
        %v5807 = vor.u32 %v5251, %v5743
        %v5808 = vor.u32 %v5258, %v5744
        %v5809 = vor.u32 %v5265, %v5745
        %v5810 = vor.u32 %v5272, %v5746
        %v5811 = vor.u32 %v5279, %v5747
        %v5812 = vor.u32 %v5286, %v5748
        %v5813 = vor.u32 %v5293, %v5749
        %v5814 = vor.u32 %v5300, %v5750
        %v5815 = vor.u32 %v5307, %v5751
        %v5816 = vor.u32 %v5314, %v5752
        %v5817 = vor.u32 %v5321, %v5753
        %v5818 = vor.u32 %v5328, %v5754
        %v5819 = vor.u32 %v5335, %v5755
        %v5820 = vor.u32 %v5342, %v5756
        %v5821 = vor.u32 %v5349, %v5757
        %v5822 = vor.u32 %v5356, %v5758
        %v5823 = vor.u32 %v5363, %v5759
        %v5824 = vor.u32 %v5370, %v5760
        %v5825 = vor.u32 %v5377, %v5761
        %v5826 = vor.u32 %v5384, %v5762
        %v5827 = vor.u32 %v5391, %v5763
        %v5828 = vor.u32 %v5398, %v5764
        %v5829 = vor.u32 %v5405, %v5765
        %v5830 = vor.u32 %v5412, %v5766
        %v5831 = vor.u32 %v5419, %v5767
        %v5832 = vor.u32 %v5426, %v5768
        %v5833 = vor.u32 %v5433, %v5769
        %v5834 = vor.u32 %v5440, %v5770
        %v5835 = vor.u32 %v5447, %v5771
        %v5836 = vor.u32 %v5454, %v5772
        %v5837 = vor.u32 %v5461, %v5773
        %v5838 = vor.u32 %v5468, %v5774
        %v5839 = vor.u32 %v5475, %v5775
        %v5840 = vor.u32 %v5482, %v5776
        %v5841 = vor.u32 %v5489, %v5777
        %v5842 = vor.u32 %v5496, %v5778
        %v5843 = vor.u32 %v5503, %v5779
        %v5844 = vor.u32 %v5510, %v5780
        %v5845 = vor.u32 %v5517, %v5781
        %v5846 = vor.u32 %v5524, %v5782
        %v5847 = vor.u32 %v5531, %v5783
        %v5848 = vor.u32 %v5538, %v5784
        %v5849 = vor.u32 %v5545, %v5785
        %v5850 = vor.u32 %v5552, %v5786
        %v5851 = vor.u32 %v5559, %v5787
        %v5852 = vor.u32 %v5566, %v5788
        %v5853 = vor.u32 %v5573, %v5789
        %v5854 = vor.u32 %v5580, %v5790
        %v5855 = vor.u32 %v5587, %v5791
        %v5856 = vor.u32 %v5594, %v5792
        %v5857 = vor.u32 %v5601, %v5793
        %v5922 = vsel %vm4825, 0.0, %v5794
        %v5923 = vsel %vm4826, 0.0, %v5795
        %v5924 = vsel %vm4827, 0.0, %v5796
        %v5925 = vsel %vm4828, 0.0, %v5797
        %v5926 = vsel %vm4829, 0.0, %v5798
        %v5927 = vsel %vm4830, 0.0, %v5799
        %v5928 = vsel %vm4831, 0.0, %v5800
        %v5929 = vsel %vm4832, 0.0, %v5801
        %v5930 = vsel %vm4833, 0.0, %v5802
        %v5931 = vsel %vm4834, 0.0, %v5803
        %v5932 = vsel %vm4835, 0.0, %v5804
        %v5933 = vsel %vm4836, 0.0, %v5805
        %v5934 = vsel %vm4837, 0.0, %v5806
        %v5935 = vsel %vm4838, 0.0, %v5807
        %v5936 = vsel %vm4839, 0.0, %v5808
        %v5937 = vsel %vm4840, 0.0, %v5809
        %v5938 = vsel %vm4841, 0.0, %v5810
        %v5939 = vsel %vm4842, 0.0, %v5811
        %v5940 = vsel %vm4843, 0.0, %v5812
        %v5941 = vsel %vm4844, 0.0, %v5813
        %v5942 = vsel %vm4845, 0.0, %v5814
        %v5943 = vsel %vm4846, 0.0, %v5815
        %v5944 = vsel %vm4847, 0.0, %v5816
        %v5945 = vsel %vm4848, 0.0, %v5817
        %v5946 = vsel %vm4849, 0.0, %v5818
        %v5947 = vsel %vm4850, 0.0, %v5819
        %v5948 = vsel %vm4851, 0.0, %v5820
        %v5949 = vsel %vm4852, 0.0, %v5821
        %v5950 = vsel %vm4853, 0.0, %v5822
        %v5951 = vsel %vm4854, 0.0, %v5823
        %v5952 = vsel %vm4855, 0.0, %v5824
        %v5953 = vsel %vm4856, 0.0, %v5825
        %v5954 = vsel %vm4857, 0.0, %v5826
        %v5955 = vsel %vm4858, 0.0, %v5827
        %v5956 = vsel %vm4859, 0.0, %v5828
        %v5957 = vsel %vm4860, 0.0, %v5829
        %v5958 = vsel %vm4861, 0.0, %v5830
        %v5959 = vsel %vm4862, 0.0, %v5831
        %v5960 = vsel %vm4863, 0.0, %v5832
        %v5961 = vsel %vm4864, 0.0, %v5833
        %v5962 = vsel %vm4865, 0.0, %v5834
        %v5963 = vsel %vm4866, 0.0, %v5835
        %v5964 = vsel %vm4867, 0.0, %v5836
        %v5965 = vsel %vm4868, 0.0, %v5837
        %v5966 = vsel %vm4869, 0.0, %v5838
        %v5967 = vsel %vm4870, 0.0, %v5839
        %v5968 = vsel %vm4871, 0.0, %v5840
        %v5969 = vsel %vm4872, 0.0, %v5841
        %v5970 = vsel %vm4873, 0.0, %v5842
        %v5971 = vsel %vm4874, 0.0, %v5843
        %v5972 = vsel %vm4875, 0.0, %v5844
        %v5973 = vsel %vm4876, 0.0, %v5845
        %v5974 = vsel %vm4877, 0.0, %v5846
        %v5975 = vsel %vm4878, 0.0, %v5847
        %v5976 = vsel %vm4879, 0.0, %v5848
        %v5977 = vsel %vm4880, 0.0, %v5849
        %v5978 = vsel %vm4881, 0.0, %v5850
        %v5979 = vsel %vm4882, 0.0, %v5851
        %v5980 = vsel %vm4883, 0.0, %v5852
        %v5981 = vsel %vm4884, 0.0, %v5853
        %v5982 = vsel %vm4885, 0.0, %v5854
        %v5983 = vsel %vm4886, 0.0, %v5855
        %v5984 = vsel %vm4887, 0.0, %v5856
        %v5985 = vsel %vm4888, 0.0, %v5857
        %v5986 = vld [vmem:[%s1 + $0x200] sm:$0xff]
        %v5987 = vld [vmem:[%s1 + $0x208] sm:$0xff]
        %v5988 = vld [vmem:[%s1 + $0x210] sm:$0xff]
        %v5989 = vld [vmem:[%s1 + $0x218] sm:$0xff]
        %v5990 = vld [vmem:[%s1 + $0x220] sm:$0xff]
        %v5991 = vld [vmem:[%s1 + $0x228] sm:$0xff]
        %v5992 = vld [vmem:[%s1 + $0x230] sm:$0xff]
        %v5993 = vld [vmem:[%s1 + $0x238] sm:$0xff]
        %v5994 = vld [vmem:[%s1 + $0x240] sm:$0xff]
        %v5995 = vld [vmem:[%s1 + $0x248] sm:$0xff]
        %v5996 = vld [vmem:[%s1 + $0x250] sm:$0xff]
        %v5997 = vld [vmem:[%s1 + $0x258] sm:$0xff]
        %v5998 = vld [vmem:[%s1 + $0x260] sm:$0xff]
        %v5999 = vld [vmem:[%s1 + $0x268] sm:$0xff]
        %v6000 = vld [vmem:[%s1 + $0x270] sm:$0xff]
        %v6001 = vld [vmem:[%s1 + $0x278] sm:$0xff]
        %v6002 = vld [vmem:[%s1 + $0x280] sm:$0xff]
        %v6003 = vld [vmem:[%s1 + $0x288] sm:$0xff]
        %v6004 = vld [vmem:[%s1 + $0x290] sm:$0xff]
        %v6005 = vld [vmem:[%s1 + $0x298] sm:$0xff]
        %v6006 = vld [vmem:[%s1 + $0x2a0] sm:$0xff]
        %v6007 = vld [vmem:[%s1 + $0x2a8] sm:$0xff]
        %v6008 = vld [vmem:[%s1 + $0x2b0] sm:$0xff]
        %v6009 = vld [vmem:[%s1 + $0x2b8] sm:$0xff]
        %v6010 = vld [vmem:[%s1 + $0x2c0] sm:$0xff]
        %v6011 = vld [vmem:[%s1 + $0x2c8] sm:$0xff]
        %v6012 = vld [vmem:[%s1 + $0x2d0] sm:$0xff]
        %v6013 = vld [vmem:[%s1 + $0x2d8] sm:$0xff]
        %v6014 = vld [vmem:[%s1 + $0x2e0] sm:$0xff]
        %v6015 = vld [vmem:[%s1 + $0x2e8] sm:$0xff]
        %v6016 = vld [vmem:[%s1 + $0x2f0] sm:$0xff]
        %v6017 = vld [vmem:[%s1 + $0x2f8] sm:$0xff]
        %v6018 = vunpack.c.l.bf16 %v5986
        %v6019 = vunpack.c.h.bf16 %v5986
        %v6020 = vunpack.c.l.bf16 %v5987
        %v6021 = vunpack.c.h.bf16 %v5987
        %v6022 = vunpack.c.l.bf16 %v5988
        %v6023 = vunpack.c.h.bf16 %v5988
        %v6024 = vunpack.c.l.bf16 %v5989
        %v6025 = vunpack.c.h.bf16 %v5989
        %v6026 = vunpack.c.l.bf16 %v5990
        %v6027 = vunpack.c.h.bf16 %v5990
        %v6028 = vunpack.c.l.bf16 %v5991
        %v6029 = vunpack.c.h.bf16 %v5991
        %v6030 = vunpack.c.l.bf16 %v5992
        %v6031 = vunpack.c.h.bf16 %v5992
        %v6032 = vunpack.c.l.bf16 %v5993
        %v6033 = vunpack.c.h.bf16 %v5993
        %v6034 = vunpack.c.l.bf16 %v5994
        %v6035 = vunpack.c.h.bf16 %v5994
        %v6036 = vunpack.c.l.bf16 %v5995
        %v6037 = vunpack.c.h.bf16 %v5995
        %v6038 = vunpack.c.l.bf16 %v5996
        %v6039 = vunpack.c.h.bf16 %v5996
        %v6040 = vunpack.c.l.bf16 %v5997
        %v6041 = vunpack.c.h.bf16 %v5997
        %v6042 = vunpack.c.l.bf16 %v5998
        %v6043 = vunpack.c.h.bf16 %v5998
        %v6044 = vunpack.c.l.bf16 %v5999
        %v6045 = vunpack.c.h.bf16 %v5999
        %v6046 = vunpack.c.l.bf16 %v6000
        %v6047 = vunpack.c.h.bf16 %v6000
        %v6048 = vunpack.c.l.bf16 %v6001
        %v6049 = vunpack.c.h.bf16 %v6001
        %v6050 = vunpack.c.l.bf16 %v6002
        %v6051 = vunpack.c.h.bf16 %v6002
        %v6052 = vunpack.c.l.bf16 %v6003
        %v6053 = vunpack.c.h.bf16 %v6003
        %v6054 = vunpack.c.l.bf16 %v6004
        %v6055 = vunpack.c.h.bf16 %v6004
        %v6056 = vunpack.c.l.bf16 %v6005
        %v6057 = vunpack.c.h.bf16 %v6005
        %v6058 = vunpack.c.l.bf16 %v6006
        %v6059 = vunpack.c.h.bf16 %v6006
        %v6060 = vunpack.c.l.bf16 %v6007
        %v6061 = vunpack.c.h.bf16 %v6007
        %v6062 = vunpack.c.l.bf16 %v6008
        %v6063 = vunpack.c.h.bf16 %v6008
        %v6064 = vunpack.c.l.bf16 %v6009
        %v6065 = vunpack.c.h.bf16 %v6009
        %v6066 = vunpack.c.l.bf16 %v6010
        %v6067 = vunpack.c.h.bf16 %v6010
        %v6068 = vunpack.c.l.bf16 %v6011
        %v6069 = vunpack.c.h.bf16 %v6011
        %v6070 = vunpack.c.l.bf16 %v6012
        %v6071 = vunpack.c.h.bf16 %v6012
        %v6072 = vunpack.c.l.bf16 %v6013
        %v6073 = vunpack.c.h.bf16 %v6013
        %v6074 = vunpack.c.l.bf16 %v6014
        %v6075 = vunpack.c.h.bf16 %v6014
        %v6076 = vunpack.c.l.bf16 %v6015
        %v6077 = vunpack.c.h.bf16 %v6015
        %v6078 = vunpack.c.l.bf16 %v6016
        %v6079 = vunpack.c.h.bf16 %v6016
        %v6080 = vunpack.c.l.bf16 %v6017
        %v6081 = vunpack.c.h.bf16 %v6017
        %v6082 = vmul.f32 %v5922, %v6018
        %v6083 = vmul.f32 %v5923, %v6019
        %v6084 = vmul.f32 %v5924, %v6020
        %v6085 = vmul.f32 %v5925, %v6021
        %v6086 = vmul.f32 %v5926, %v6022
        %v6087 = vmul.f32 %v5927, %v6023
        %v6088 = vmul.f32 %v5928, %v6024
        %v6089 = vmul.f32 %v5929, %v6025
        %v6090 = vmul.f32 %v5930, %v6026
        %v6091 = vmul.f32 %v5931, %v6027
        %v6092 = vmul.f32 %v5932, %v6028
        %v6093 = vmul.f32 %v5933, %v6029
        %v6094 = vmul.f32 %v5934, %v6030
        %v6095 = vmul.f32 %v5935, %v6031
        %v6096 = vmul.f32 %v5936, %v6032
        %v6097 = vmul.f32 %v5937, %v6033
        %v6098 = vmul.f32 %v5938, %v6034
        %v6099 = vmul.f32 %v5939, %v6035
        %v6100 = vmul.f32 %v5940, %v6036
        %v6101 = vmul.f32 %v5941, %v6037
        %v6102 = vmul.f32 %v5942, %v6038
        %v6103 = vmul.f32 %v5943, %v6039
        %v6104 = vmul.f32 %v5944, %v6040
        %v6105 = vmul.f32 %v5945, %v6041
        %v6106 = vmul.f32 %v5946, %v6042
        %v6107 = vmul.f32 %v5947, %v6043
        %v6108 = vmul.f32 %v5948, %v6044
        %v6109 = vmul.f32 %v5949, %v6045
        %v6110 = vmul.f32 %v5950, %v6046
        %v6111 = vmul.f32 %v5951, %v6047
        %v6112 = vmul.f32 %v5952, %v6048
        %v6113 = vmul.f32 %v5953, %v6049
        %v6114 = vmul.f32 %v5954, %v6050
        %v6115 = vmul.f32 %v5955, %v6051
        %v6116 = vmul.f32 %v5956, %v6052
        %v6117 = vmul.f32 %v5957, %v6053
        %v6118 = vmul.f32 %v5958, %v6054
        %v6119 = vmul.f32 %v5959, %v6055
        %v6120 = vmul.f32 %v5960, %v6056
        %v6121 = vmul.f32 %v5961, %v6057
        %v6122 = vmul.f32 %v5962, %v6058
        %v6123 = vmul.f32 %v5963, %v6059
        %v6124 = vmul.f32 %v5964, %v6060
        %v6125 = vmul.f32 %v5965, %v6061
        %v6126 = vmul.f32 %v5966, %v6062
        %v6127 = vmul.f32 %v5967, %v6063
        %v6128 = vmul.f32 %v5968, %v6064
        %v6129 = vmul.f32 %v5969, %v6065
        %v6130 = vmul.f32 %v5970, %v6066
        %v6131 = vmul.f32 %v5971, %v6067
        %v6132 = vmul.f32 %v5972, %v6068
        %v6133 = vmul.f32 %v5973, %v6069
        %v6134 = vmul.f32 %v5974, %v6070
        %v6135 = vmul.f32 %v5975, %v6071
        %v6136 = vmul.f32 %v5976, %v6072
        %v6137 = vmul.f32 %v5977, %v6073
        %v6138 = vmul.f32 %v5978, %v6074
        %v6139 = vmul.f32 %v5979, %v6075
        %v6140 = vmul.f32 %v5980, %v6076
        %v6141 = vmul.f32 %v5981, %v6077
        %v6142 = vmul.f32 %v5982, %v6078
        %v6143 = vmul.f32 %v5983, %v6079
        %v6144 = vmul.f32 %v5984, %v6080
        %v6145 = vmul.f32 %v5985, %v6081
        %v6146 = vadd.f32 %v6082, %v6083
        %v6147 = vadd.f32 %v6146, %v6084
        %v6148 = vadd.f32 %v6147, %v6085
        %v6149 = vadd.f32 %v6148, %v6086
        %v6150 = vadd.f32 %v6149, %v6087
        %v6151 = vadd.f32 %v6150, %v6088
        %v6152 = vadd.f32 %v6151, %v6089
        %v6153 = vadd.f32 %v6152, %v6090
        %v6154 = vadd.f32 %v6153, %v6091
        %v6155 = vadd.f32 %v6154, %v6092
        %v6156 = vadd.f32 %v6155, %v6093
        %v6157 = vadd.f32 %v6156, %v6094
        %v6158 = vadd.f32 %v6157, %v6095
        %v6159 = vadd.f32 %v6158, %v6096
        %v6160 = vadd.f32 %v6159, %v6097
        %v6161 = vadd.f32 %v6160, %v6098
        %v6162 = vadd.f32 %v6161, %v6099
        %v6163 = vadd.f32 %v6162, %v6100
        %v6164 = vadd.f32 %v6163, %v6101
        %v6165 = vadd.f32 %v6164, %v6102
        %v6166 = vadd.f32 %v6165, %v6103
        %v6167 = vadd.f32 %v6166, %v6104
        %v6168 = vadd.f32 %v6167, %v6105
        %v6169 = vadd.f32 %v6168, %v6106
        %v6170 = vadd.f32 %v6169, %v6107
        %v6171 = vadd.f32 %v6170, %v6108
        %v6172 = vadd.f32 %v6171, %v6109
        %v6173 = vadd.f32 %v6172, %v6110
        %v6174 = vadd.f32 %v6173, %v6111
        %v6175 = vadd.f32 %v6174, %v6112
        %v6176 = vadd.f32 %v6175, %v6113
        %v6177 = vadd.f32 %v6176, %v6114
        %v6178 = vadd.f32 %v6177, %v6115
        %v6179 = vadd.f32 %v6178, %v6116
        %v6180 = vadd.f32 %v6179, %v6117
        %v6181 = vadd.f32 %v6180, %v6118
        %v6182 = vadd.f32 %v6181, %v6119
        %v6183 = vadd.f32 %v6182, %v6120
        %v6184 = vadd.f32 %v6183, %v6121
        %v6185 = vadd.f32 %v6184, %v6122
        %v6186 = vadd.f32 %v6185, %v6123
        %v6187 = vadd.f32 %v6186, %v6124
        %v6188 = vadd.f32 %v6187, %v6125
        %v6189 = vadd.f32 %v6188, %v6126
        %v6190 = vadd.f32 %v6189, %v6127
        %v6191 = vadd.f32 %v6190, %v6128
        %v6192 = vadd.f32 %v6191, %v6129
        %v6193 = vadd.f32 %v6192, %v6130
        %v6194 = vadd.f32 %v6193, %v6131
        %v6195 = vadd.f32 %v6194, %v6132
        %v6196 = vadd.f32 %v6195, %v6133
        %v6197 = vadd.f32 %v6196, %v6134
        %v6198 = vadd.f32 %v6197, %v6135
        %v6199 = vadd.f32 %v6198, %v6136
        %v6200 = vadd.f32 %v6199, %v6137
        %v6201 = vadd.f32 %v6200, %v6138
        %v6202 = vadd.f32 %v6201, %v6139
        %v6203 = vadd.f32 %v6202, %v6140
        %v6204 = vadd.f32 %v6203, %v6141
        %v6205 = vadd.f32 %v6204, %v6142
        %v6206 = vadd.f32 %v6205, %v6143
        %v6207 = vadd.f32 %v6206, %v6144
        %v6208 = vadd.f32 %v6207, %v6145
        %6209 = vadd.xlane.f32.xlu0 %v6208
        %v6210 = vpop.xlane.xlu0 %6209
        %v6211 = vrot.slane %v6210, 4
        %v6212 = vadd.f32 %v6210, %v6211
        %v6213 = vrot.slane %v6212, 2
        %v6214 = vadd.f32 %v6212, %v6213
        %v6215 = vrot.slane %v6214, 1
        %v6216 = vadd.f32 %v6214, %v6215
        %s6217 = vtos %v6216
        %s6218 = sadd.f32 %s4132, %s6217
        %v6219 = vld [vmem:[%s2045 + $0x200] sm:$0xff]
        %v6220 = vld [vmem:[%s2045 + $0x208] sm:$0xff]
        %v6221 = vld [vmem:[%s2045 + $0x210] sm:$0xff]
        %v6222 = vld [vmem:[%s2045 + $0x218] sm:$0xff]
        %v6223 = vld [vmem:[%s2045 + $0x220] sm:$0xff]
        %v6224 = vld [vmem:[%s2045 + $0x228] sm:$0xff]
        %v6225 = vld [vmem:[%s2045 + $0x230] sm:$0xff]
        %v6226 = vld [vmem:[%s2045 + $0x238] sm:$0xff]
        %v6227 = vld [vmem:[%s2045 + $0x240] sm:$0xff]
        %v6228 = vld [vmem:[%s2045 + $0x248] sm:$0xff]
        %v6229 = vld [vmem:[%s2045 + $0x250] sm:$0xff]
        %v6230 = vld [vmem:[%s2045 + $0x258] sm:$0xff]
        %v6231 = vld [vmem:[%s2045 + $0x260] sm:$0xff]
        %v6232 = vld [vmem:[%s2045 + $0x268] sm:$0xff]
        %v6233 = vld [vmem:[%s2045 + $0x270] sm:$0xff]
        %v6234 = vld [vmem:[%s2045 + $0x278] sm:$0xff]
        %v6235 = vld [vmem:[%s2045 + $0x280] sm:$0xff]
        %v6236 = vld [vmem:[%s2045 + $0x288] sm:$0xff]
        %v6237 = vld [vmem:[%s2045 + $0x290] sm:$0xff]
        %v6238 = vld [vmem:[%s2045 + $0x298] sm:$0xff]
        %v6239 = vld [vmem:[%s2045 + $0x2a0] sm:$0xff]
        %v6240 = vld [vmem:[%s2045 + $0x2a8] sm:$0xff]
        %v6241 = vld [vmem:[%s2045 + $0x2b0] sm:$0xff]
        %v6242 = vld [vmem:[%s2045 + $0x2b8] sm:$0xff]
        %v6243 = vld [vmem:[%s2045 + $0x2c0] sm:$0xff]
        %v6244 = vld [vmem:[%s2045 + $0x2c8] sm:$0xff]
        %v6245 = vld [vmem:[%s2045 + $0x2d0] sm:$0xff]
        %v6246 = vld [vmem:[%s2045 + $0x2d8] sm:$0xff]
        %v6247 = vld [vmem:[%s2045 + $0x2e0] sm:$0xff]
        %v6248 = vld [vmem:[%s2045 + $0x2e8] sm:$0xff]
        %v6249 = vld [vmem:[%s2045 + $0x2f0] sm:$0xff]
        %v6250 = vld [vmem:[%s2045 + $0x2f8] sm:$0xff]
        %v6251 = vunpack.c.l.bf16 %v6219
        %v6252 = vunpack.c.h.bf16 %v6219
        %v6253 = vunpack.c.l.bf16 %v6220
        %v6254 = vunpack.c.h.bf16 %v6220
        %v6255 = vunpack.c.l.bf16 %v6221
        %v6256 = vunpack.c.h.bf16 %v6221
        %v6257 = vunpack.c.l.bf16 %v6222
        %v6258 = vunpack.c.h.bf16 %v6222
        %v6259 = vunpack.c.l.bf16 %v6223
        %v6260 = vunpack.c.h.bf16 %v6223
        %v6261 = vunpack.c.l.bf16 %v6224
        %v6262 = vunpack.c.h.bf16 %v6224
        %v6263 = vunpack.c.l.bf16 %v6225
        %v6264 = vunpack.c.h.bf16 %v6225
        %v6265 = vunpack.c.l.bf16 %v6226
        %v6266 = vunpack.c.h.bf16 %v6226
        %v6267 = vunpack.c.l.bf16 %v6227
        %v6268 = vunpack.c.h.bf16 %v6227
        %v6269 = vunpack.c.l.bf16 %v6228
        %v6270 = vunpack.c.h.bf16 %v6228
        %v6271 = vunpack.c.l.bf16 %v6229
        %v6272 = vunpack.c.h.bf16 %v6229
        %v6273 = vunpack.c.l.bf16 %v6230
        %v6274 = vunpack.c.h.bf16 %v6230
        %v6275 = vunpack.c.l.bf16 %v6231
        %v6276 = vunpack.c.h.bf16 %v6231
        %v6277 = vunpack.c.l.bf16 %v6232
        %v6278 = vunpack.c.h.bf16 %v6232
        %v6279 = vunpack.c.l.bf16 %v6233
        %v6280 = vunpack.c.h.bf16 %v6233
        %v6281 = vunpack.c.l.bf16 %v6234
        %v6282 = vunpack.c.h.bf16 %v6234
        %v6283 = vunpack.c.l.bf16 %v6235
        %v6284 = vunpack.c.h.bf16 %v6235
        %v6285 = vunpack.c.l.bf16 %v6236
        %v6286 = vunpack.c.h.bf16 %v6236
        %v6287 = vunpack.c.l.bf16 %v6237
        %v6288 = vunpack.c.h.bf16 %v6237
        %v6289 = vunpack.c.l.bf16 %v6238
        %v6290 = vunpack.c.h.bf16 %v6238
        %v6291 = vunpack.c.l.bf16 %v6239
        %v6292 = vunpack.c.h.bf16 %v6239
        %v6293 = vunpack.c.l.bf16 %v6240
        %v6294 = vunpack.c.h.bf16 %v6240
        %v6295 = vunpack.c.l.bf16 %v6241
        %v6296 = vunpack.c.h.bf16 %v6241
        %v6297 = vunpack.c.l.bf16 %v6242
        %v6298 = vunpack.c.h.bf16 %v6242
        %v6299 = vunpack.c.l.bf16 %v6243
        %v6300 = vunpack.c.h.bf16 %v6243
        %v6301 = vunpack.c.l.bf16 %v6244
        %v6302 = vunpack.c.h.bf16 %v6244
        %v6303 = vunpack.c.l.bf16 %v6245
        %v6304 = vunpack.c.h.bf16 %v6245
        %v6305 = vunpack.c.l.bf16 %v6246
        %v6306 = vunpack.c.h.bf16 %v6246
        %v6307 = vunpack.c.l.bf16 %v6247
        %v6308 = vunpack.c.h.bf16 %v6247
        %v6309 = vunpack.c.l.bf16 %v6248
        %v6310 = vunpack.c.h.bf16 %v6248
        %v6311 = vunpack.c.l.bf16 %v6249
        %v6312 = vunpack.c.h.bf16 %v6249
        %v6313 = vunpack.c.l.bf16 %v6250
        %v6314 = vunpack.c.h.bf16 %v6250
        %v6315 = vmul.f32 %v5922, %v6251
        %v6316 = vmul.f32 %v5923, %v6252
        %v6317 = vmul.f32 %v5924, %v6253
        %v6318 = vmul.f32 %v5925, %v6254
        %v6319 = vmul.f32 %v5926, %v6255
        %v6320 = vmul.f32 %v5927, %v6256
        %v6321 = vmul.f32 %v5928, %v6257
        %v6322 = vmul.f32 %v5929, %v6258
        %v6323 = vmul.f32 %v5930, %v6259
        %v6324 = vmul.f32 %v5931, %v6260
        %v6325 = vmul.f32 %v5932, %v6261
        %v6326 = vmul.f32 %v5933, %v6262
        %v6327 = vmul.f32 %v5934, %v6263
        %v6328 = vmul.f32 %v5935, %v6264
        %v6329 = vmul.f32 %v5936, %v6265
        %v6330 = vmul.f32 %v5937, %v6266
        %v6331 = vmul.f32 %v5938, %v6267
        %v6332 = vmul.f32 %v5939, %v6268
        %v6333 = vmul.f32 %v5940, %v6269
        %v6334 = vmul.f32 %v5941, %v6270
        %v6335 = vmul.f32 %v5942, %v6271
        %v6336 = vmul.f32 %v5943, %v6272
        %v6337 = vmul.f32 %v5944, %v6273
        %v6338 = vmul.f32 %v5945, %v6274
        %v6339 = vmul.f32 %v5946, %v6275
        %v6340 = vmul.f32 %v5947, %v6276
        %v6341 = vmul.f32 %v5948, %v6277
        %v6342 = vmul.f32 %v5949, %v6278
        %v6343 = vmul.f32 %v5950, %v6279
        %v6344 = vmul.f32 %v5951, %v6280
        %v6345 = vmul.f32 %v5952, %v6281
        %v6346 = vmul.f32 %v5953, %v6282
        %v6347 = vmul.f32 %v5954, %v6283
        %v6348 = vmul.f32 %v5955, %v6284
        %v6349 = vmul.f32 %v5956, %v6285
        %v6350 = vmul.f32 %v5957, %v6286
        %v6351 = vmul.f32 %v5958, %v6287
        %v6352 = vmul.f32 %v5959, %v6288
        %v6353 = vmul.f32 %v5960, %v6289
        %v6354 = vmul.f32 %v5961, %v6290
        %v6355 = vmul.f32 %v5962, %v6291
        %v6356 = vmul.f32 %v5963, %v6292
        %v6357 = vmul.f32 %v5964, %v6293
        %v6358 = vmul.f32 %v5965, %v6294
        %v6359 = vmul.f32 %v5966, %v6295
        %v6360 = vmul.f32 %v5967, %v6296
        %v6361 = vmul.f32 %v5968, %v6297
        %v6362 = vmul.f32 %v5969, %v6298
        %v6363 = vmul.f32 %v5970, %v6299
        %v6364 = vmul.f32 %v5971, %v6300
        %v6365 = vmul.f32 %v5972, %v6301
        %v6366 = vmul.f32 %v5973, %v6302
        %v6367 = vmul.f32 %v5974, %v6303
        %v6368 = vmul.f32 %v5975, %v6304
        %v6369 = vmul.f32 %v5976, %v6305
        %v6370 = vmul.f32 %v5977, %v6306
        %v6371 = vmul.f32 %v5978, %v6307
        %v6372 = vmul.f32 %v5979, %v6308
        %v6373 = vmul.f32 %v5980, %v6309
        %v6374 = vmul.f32 %v5981, %v6310
        %v6375 = vmul.f32 %v5982, %v6311
        %v6376 = vmul.f32 %v5983, %v6312
        %v6377 = vmul.f32 %v5984, %v6313
        %v6378 = vmul.f32 %v5985, %v6314
        %v6379 = vadd.f32 %v6315, %v6316
        %v6380 = vadd.f32 %v6379, %v6317
        %v6381 = vadd.f32 %v6380, %v6318
        %v6382 = vadd.f32 %v6381, %v6319
        %v6383 = vadd.f32 %v6382, %v6320
        %v6384 = vadd.f32 %v6383, %v6321
        %v6385 = vadd.f32 %v6384, %v6322
        %v6386 = vadd.f32 %v6385, %v6323
        %v6387 = vadd.f32 %v6386, %v6324
        %v6388 = vadd.f32 %v6387, %v6325
        %v6389 = vadd.f32 %v6388, %v6326
        %v6390 = vadd.f32 %v6389, %v6327
        %v6391 = vadd.f32 %v6390, %v6328
        %v6392 = vadd.f32 %v6391, %v6329
        %v6393 = vadd.f32 %v6392, %v6330
        %v6394 = vadd.f32 %v6393, %v6331
        %v6395 = vadd.f32 %v6394, %v6332
        %v6396 = vadd.f32 %v6395, %v6333
        %v6397 = vadd.f32 %v6396, %v6334
        %v6398 = vadd.f32 %v6397, %v6335
        %v6399 = vadd.f32 %v6398, %v6336
        %v6400 = vadd.f32 %v6399, %v6337
        %v6401 = vadd.f32 %v6400, %v6338
        %v6402 = vadd.f32 %v6401, %v6339
        %v6403 = vadd.f32 %v6402, %v6340
        %v6404 = vadd.f32 %v6403, %v6341
        %v6405 = vadd.f32 %v6404, %v6342
        %v6406 = vadd.f32 %v6405, %v6343
        %v6407 = vadd.f32 %v6406, %v6344
        %v6408 = vadd.f32 %v6407, %v6345
        %v6409 = vadd.f32 %v6408, %v6346
        %v6410 = vadd.f32 %v6409, %v6347
        %v6411 = vadd.f32 %v6410, %v6348
        %v6412 = vadd.f32 %v6411, %v6349
        %v6413 = vadd.f32 %v6412, %v6350
        %v6414 = vadd.f32 %v6413, %v6351
        %v6415 = vadd.f32 %v6414, %v6352
        %v6416 = vadd.f32 %v6415, %v6353
        %v6417 = vadd.f32 %v6416, %v6354
        %v6418 = vadd.f32 %v6417, %v6355
        %v6419 = vadd.f32 %v6418, %v6356
        %v6420 = vadd.f32 %v6419, %v6357
        %v6421 = vadd.f32 %v6420, %v6358
        %v6422 = vadd.f32 %v6421, %v6359
        %v6423 = vadd.f32 %v6422, %v6360
        %v6424 = vadd.f32 %v6423, %v6361
        %v6425 = vadd.f32 %v6424, %v6362
        %v6426 = vadd.f32 %v6425, %v6363
        %v6427 = vadd.f32 %v6426, %v6364
        %v6428 = vadd.f32 %v6427, %v6365
        %v6429 = vadd.f32 %v6428, %v6366
        %v6430 = vadd.f32 %v6429, %v6367
        %v6431 = vadd.f32 %v6430, %v6368
        %v6432 = vadd.f32 %v6431, %v6369
        %v6433 = vadd.f32 %v6432, %v6370
        %v6434 = vadd.f32 %v6433, %v6371
        %v6435 = vadd.f32 %v6434, %v6372
        %v6436 = vadd.f32 %v6435, %v6373
        %v6437 = vadd.f32 %v6436, %v6374
        %v6438 = vadd.f32 %v6437, %v6375
        %v6439 = vadd.f32 %v6438, %v6376
        %v6440 = vadd.f32 %v6439, %v6377
        %v6441 = vadd.f32 %v6440, %v6378
        %6442 = vadd.xlane.f32.xlu0 %v6441
        %v6443 = vpop.xlane.xlu0 %6442
        %v6444 = vrot.slane %v6443, 4
        %v6445 = vadd.f32 %v6443, %v6444
        %v6446 = vrot.slane %v6445, 2
        %v6447 = vadd.f32 %v6445, %v6446
        %v6448 = vrot.slane %v6447, 1
        %v6449 = vadd.f32 %v6447, %v6448
        %s6450 = vtos %v6449
        %s6451 = sadd.f32 %s4365, %s6450
        %v6452 = vld [vmem:[%s2279 + $0x200] sm:$0xff]
        %v6453 = vld [vmem:[%s2279 + $0x208] sm:$0xff]
        %v6454 = vld [vmem:[%s2279 + $0x210] sm:$0xff]
        %v6455 = vld [vmem:[%s2279 + $0x218] sm:$0xff]
        %v6456 = vld [vmem:[%s2279 + $0x220] sm:$0xff]
        %v6457 = vld [vmem:[%s2279 + $0x228] sm:$0xff]
        %v6458 = vld [vmem:[%s2279 + $0x230] sm:$0xff]
        %v6459 = vld [vmem:[%s2279 + $0x238] sm:$0xff]
        %v6460 = vld [vmem:[%s2279 + $0x240] sm:$0xff]
        %v6461 = vld [vmem:[%s2279 + $0x248] sm:$0xff]
        %v6462 = vld [vmem:[%s2279 + $0x250] sm:$0xff]
        %v6463 = vld [vmem:[%s2279 + $0x258] sm:$0xff]
        %v6464 = vld [vmem:[%s2279 + $0x260] sm:$0xff]
        %v6465 = vld [vmem:[%s2279 + $0x268] sm:$0xff]
        %v6466 = vld [vmem:[%s2279 + $0x270] sm:$0xff]
        %v6467 = vld [vmem:[%s2279 + $0x278] sm:$0xff]
        %v6468 = vld [vmem:[%s2279 + $0x280] sm:$0xff]
        %v6469 = vld [vmem:[%s2279 + $0x288] sm:$0xff]
        %v6470 = vld [vmem:[%s2279 + $0x290] sm:$0xff]
        %v6471 = vld [vmem:[%s2279 + $0x298] sm:$0xff]
        %v6472 = vld [vmem:[%s2279 + $0x2a0] sm:$0xff]
        %v6473 = vld [vmem:[%s2279 + $0x2a8] sm:$0xff]
        %v6474 = vld [vmem:[%s2279 + $0x2b0] sm:$0xff]
        %v6475 = vld [vmem:[%s2279 + $0x2b8] sm:$0xff]
        %v6476 = vld [vmem:[%s2279 + $0x2c0] sm:$0xff]
        %v6477 = vld [vmem:[%s2279 + $0x2c8] sm:$0xff]
        %v6478 = vld [vmem:[%s2279 + $0x2d0] sm:$0xff]
        %v6479 = vld [vmem:[%s2279 + $0x2d8] sm:$0xff]
        %v6480 = vld [vmem:[%s2279 + $0x2e0] sm:$0xff]
        %v6481 = vld [vmem:[%s2279 + $0x2e8] sm:$0xff]
        %v6482 = vld [vmem:[%s2279 + $0x2f0] sm:$0xff]
        %v6483 = vld [vmem:[%s2279 + $0x2f8] sm:$0xff]
        %v6484 = vunpack.c.l.bf16 %v6452
        %v6485 = vunpack.c.h.bf16 %v6452
        %v6486 = vunpack.c.l.bf16 %v6453
        %v6487 = vunpack.c.h.bf16 %v6453
        %v6488 = vunpack.c.l.bf16 %v6454
        %v6489 = vunpack.c.h.bf16 %v6454
        %v6490 = vunpack.c.l.bf16 %v6455
        %v6491 = vunpack.c.h.bf16 %v6455
        %v6492 = vunpack.c.l.bf16 %v6456
        %v6493 = vunpack.c.h.bf16 %v6456
        %v6494 = vunpack.c.l.bf16 %v6457
        %v6495 = vunpack.c.h.bf16 %v6457
        %v6496 = vunpack.c.l.bf16 %v6458
        %v6497 = vunpack.c.h.bf16 %v6458
        %v6498 = vunpack.c.l.bf16 %v6459
        %v6499 = vunpack.c.h.bf16 %v6459
        %v6500 = vunpack.c.l.bf16 %v6460
        %v6501 = vunpack.c.h.bf16 %v6460
        %v6502 = vunpack.c.l.bf16 %v6461
        %v6503 = vunpack.c.h.bf16 %v6461
        %v6504 = vunpack.c.l.bf16 %v6462
        %v6505 = vunpack.c.h.bf16 %v6462
        %v6506 = vunpack.c.l.bf16 %v6463
        %v6507 = vunpack.c.h.bf16 %v6463
        %v6508 = vunpack.c.l.bf16 %v6464
        %v6509 = vunpack.c.h.bf16 %v6464
        %v6510 = vunpack.c.l.bf16 %v6465
        %v6511 = vunpack.c.h.bf16 %v6465
        %v6512 = vunpack.c.l.bf16 %v6466
        %v6513 = vunpack.c.h.bf16 %v6466
        %v6514 = vunpack.c.l.bf16 %v6467
        %v6515 = vunpack.c.h.bf16 %v6467
        %v6516 = vunpack.c.l.bf16 %v6468
        %v6517 = vunpack.c.h.bf16 %v6468
        %v6518 = vunpack.c.l.bf16 %v6469
        %v6519 = vunpack.c.h.bf16 %v6469
        %v6520 = vunpack.c.l.bf16 %v6470
        %v6521 = vunpack.c.h.bf16 %v6470
        %v6522 = vunpack.c.l.bf16 %v6471
        %v6523 = vunpack.c.h.bf16 %v6471
        %v6524 = vunpack.c.l.bf16 %v6472
        %v6525 = vunpack.c.h.bf16 %v6472
        %v6526 = vunpack.c.l.bf16 %v6473
        %v6527 = vunpack.c.h.bf16 %v6473
        %v6528 = vunpack.c.l.bf16 %v6474
        %v6529 = vunpack.c.h.bf16 %v6474
        %v6530 = vunpack.c.l.bf16 %v6475
        %v6531 = vunpack.c.h.bf16 %v6475
        %v6532 = vunpack.c.l.bf16 %v6476
        %v6533 = vunpack.c.h.bf16 %v6476
        %v6534 = vunpack.c.l.bf16 %v6477
        %v6535 = vunpack.c.h.bf16 %v6477
        %v6536 = vunpack.c.l.bf16 %v6478
        %v6537 = vunpack.c.h.bf16 %v6478
        %v6538 = vunpack.c.l.bf16 %v6479
        %v6539 = vunpack.c.h.bf16 %v6479
        %v6540 = vunpack.c.l.bf16 %v6480
        %v6541 = vunpack.c.h.bf16 %v6480
        %v6542 = vunpack.c.l.bf16 %v6481
        %v6543 = vunpack.c.h.bf16 %v6481
        %v6544 = vunpack.c.l.bf16 %v6482
        %v6545 = vunpack.c.h.bf16 %v6482
        %v6546 = vunpack.c.l.bf16 %v6483
        %v6547 = vunpack.c.h.bf16 %v6483
        %v6548 = vmul.f32 %v5922, %v6484
        %v6549 = vmul.f32 %v5923, %v6485
        %v6550 = vmul.f32 %v5924, %v6486
        %v6551 = vmul.f32 %v5925, %v6487
        %v6552 = vmul.f32 %v5926, %v6488
        %v6553 = vmul.f32 %v5927, %v6489
        %v6554 = vmul.f32 %v5928, %v6490
        %v6555 = vmul.f32 %v5929, %v6491
        %v6556 = vmul.f32 %v5930, %v6492
        %v6557 = vmul.f32 %v5931, %v6493
        %v6558 = vmul.f32 %v5932, %v6494
        %v6559 = vmul.f32 %v5933, %v6495
        %v6560 = vmul.f32 %v5934, %v6496
        %v6561 = vmul.f32 %v5935, %v6497
        %v6562 = vmul.f32 %v5936, %v6498
        %v6563 = vmul.f32 %v5937, %v6499
        %v6564 = vmul.f32 %v5938, %v6500
        %v6565 = vmul.f32 %v5939, %v6501
        %v6566 = vmul.f32 %v5940, %v6502
        %v6567 = vmul.f32 %v5941, %v6503
        %v6568 = vmul.f32 %v5942, %v6504
        %v6569 = vmul.f32 %v5943, %v6505
        %v6570 = vmul.f32 %v5944, %v6506
        %v6571 = vmul.f32 %v5945, %v6507
        %v6572 = vmul.f32 %v5946, %v6508
        %v6573 = vmul.f32 %v5947, %v6509
        %v6574 = vmul.f32 %v5948, %v6510
        %v6575 = vmul.f32 %v5949, %v6511
        %v6576 = vmul.f32 %v5950, %v6512
        %v6577 = vmul.f32 %v5951, %v6513
        %v6578 = vmul.f32 %v5952, %v6514
        %v6579 = vmul.f32 %v5953, %v6515
        %v6580 = vmul.f32 %v5954, %v6516
        %v6581 = vmul.f32 %v5955, %v6517
        %v6582 = vmul.f32 %v5956, %v6518
        %v6583 = vmul.f32 %v5957, %v6519
        %v6584 = vmul.f32 %v5958, %v6520
        %v6585 = vmul.f32 %v5959, %v6521
        %v6586 = vmul.f32 %v5960, %v6522
        %v6587 = vmul.f32 %v5961, %v6523
        %v6588 = vmul.f32 %v5962, %v6524
        %v6589 = vmul.f32 %v5963, %v6525
        %v6590 = vmul.f32 %v5964, %v6526
        %v6591 = vmul.f32 %v5965, %v6527
        %v6592 = vmul.f32 %v5966, %v6528
        %v6593 = vmul.f32 %v5967, %v6529
        %v6594 = vmul.f32 %v5968, %v6530
        %v6595 = vmul.f32 %v5969, %v6531
        %v6596 = vmul.f32 %v5970, %v6532
        %v6597 = vmul.f32 %v5971, %v6533
        %v6598 = vmul.f32 %v5972, %v6534
        %v6599 = vmul.f32 %v5973, %v6535
        %v6600 = vmul.f32 %v5974, %v6536
        %v6601 = vmul.f32 %v5975, %v6537
        %v6602 = vmul.f32 %v5976, %v6538
        %v6603 = vmul.f32 %v5977, %v6539
        %v6604 = vmul.f32 %v5978, %v6540
        %v6605 = vmul.f32 %v5979, %v6541
        %v6606 = vmul.f32 %v5980, %v6542
        %v6607 = vmul.f32 %v5981, %v6543
        %v6608 = vmul.f32 %v5982, %v6544
        %v6609 = vmul.f32 %v5983, %v6545
        %v6610 = vmul.f32 %v5984, %v6546
        %v6611 = vmul.f32 %v5985, %v6547
        %v6612 = vadd.f32 %v6548, %v6549
        %v6613 = vadd.f32 %v6612, %v6550
        %v6614 = vadd.f32 %v6613, %v6551
        %v6615 = vadd.f32 %v6614, %v6552
        %v6616 = vadd.f32 %v6615, %v6553
        %v6617 = vadd.f32 %v6616, %v6554
        %v6618 = vadd.f32 %v6617, %v6555
        %v6619 = vadd.f32 %v6618, %v6556
        %v6620 = vadd.f32 %v6619, %v6557
        %v6621 = vadd.f32 %v6620, %v6558
        %v6622 = vadd.f32 %v6621, %v6559
        %v6623 = vadd.f32 %v6622, %v6560
        %v6624 = vadd.f32 %v6623, %v6561
        %v6625 = vadd.f32 %v6624, %v6562
        %v6626 = vadd.f32 %v6625, %v6563
        %v6627 = vadd.f32 %v6626, %v6564
        %v6628 = vadd.f32 %v6627, %v6565
        %v6629 = vadd.f32 %v6628, %v6566
        %v6630 = vadd.f32 %v6629, %v6567
        %v6631 = vadd.f32 %v6630, %v6568
        %v6632 = vadd.f32 %v6631, %v6569
        %v6633 = vadd.f32 %v6632, %v6570
        %v6634 = vadd.f32 %v6633, %v6571
        %v6635 = vadd.f32 %v6634, %v6572
        %v6636 = vadd.f32 %v6635, %v6573
        %v6637 = vadd.f32 %v6636, %v6574
        %v6638 = vadd.f32 %v6637, %v6575
        %v6639 = vadd.f32 %v6638, %v6576
        %v6640 = vadd.f32 %v6639, %v6577
        %v6641 = vadd.f32 %v6640, %v6578
        %v6642 = vadd.f32 %v6641, %v6579
        %v6643 = vadd.f32 %v6642, %v6580
        %v6644 = vadd.f32 %v6643, %v6581
        %v6645 = vadd.f32 %v6644, %v6582
        %v6646 = vadd.f32 %v6645, %v6583
        %v6647 = vadd.f32 %v6646, %v6584
        %v6648 = vadd.f32 %v6647, %v6585
        %v6649 = vadd.f32 %v6648, %v6586
        %v6650 = vadd.f32 %v6649, %v6587
        %v6651 = vadd.f32 %v6650, %v6588
        %v6652 = vadd.f32 %v6651, %v6589
        %v6653 = vadd.f32 %v6652, %v6590
        %v6654 = vadd.f32 %v6653, %v6591
        %v6655 = vadd.f32 %v6654, %v6592
        %v6656 = vadd.f32 %v6655, %v6593
        %v6657 = vadd.f32 %v6656, %v6594
        %v6658 = vadd.f32 %v6657, %v6595
        %v6659 = vadd.f32 %v6658, %v6596
        %v6660 = vadd.f32 %v6659, %v6597
        %v6661 = vadd.f32 %v6660, %v6598
        %v6662 = vadd.f32 %v6661, %v6599
        %v6663 = vadd.f32 %v6662, %v6600
        %v6664 = vadd.f32 %v6663, %v6601
        %v6665 = vadd.f32 %v6664, %v6602
        %v6666 = vadd.f32 %v6665, %v6603
        %v6667 = vadd.f32 %v6666, %v6604
        %v6668 = vadd.f32 %v6667, %v6605
        %v6669 = vadd.f32 %v6668, %v6606
        %v6670 = vadd.f32 %v6669, %v6607
        %v6671 = vadd.f32 %v6670, %v6608
        %v6672 = vadd.f32 %v6671, %v6609
        %v6673 = vadd.f32 %v6672, %v6610
        %v6674 = vadd.f32 %v6673, %v6611
        %6675 = vadd.xlane.f32.xlu0 %v6674
        %v6676 = vpop.xlane.xlu0 %6675
        %v6677 = vrot.slane %v6676, 4
        %v6678 = vadd.f32 %v6676, %v6677
        %v6679 = vrot.slane %v6678, 2
        %v6680 = vadd.f32 %v6678, %v6679
        %v6681 = vrot.slane %v6680, 1
        %v6682 = vadd.f32 %v6680, %v6681
        %s6683 = vtos %v6682
        %s6684 = sadd.f32 %s4598, %s6683
        %6685 = vmatprep.subr.bf16.mxu0 0
        %6686 = vmatpush1.bf16.xpose.msra.mxu0 %v272
        %6687 = vmatprep.subr.bf16.mxu0 0
        %6688 = vmatpush1.bf16.xpose.msra.mxu0 %v271
        %6689 = vmatprep.subr.bf16.mxu0 0
        %6690 = vmatpush1.bf16.xpose.msra.mxu0 %v270
        %6691 = vmatprep.subr.bf16.mxu0 0
        %6692 = vmatpush1.bf16.xpose.msra.mxu0 %v269
        %6693 = vmatprep.subr.bf16.mxu0 0
        %6694 = vmatpush1.bf16.xpose.msra.mxu0 %v268
        %6695 = vmatprep.subr.bf16.mxu0 0
        %6696 = vmatpush1.bf16.xpose.msra.mxu0 %v267
        %6697 = vmatprep.subr.bf16.mxu0 0
        %6698 = vmatpush1.bf16.xpose.msra.mxu0 %v266
        %6699 = vmatprep.subr.bf16.mxu0 0
        %6700 = vmatpush1.bf16.xpose.msra.mxu0 %v265
        %6701 = vmatprep.subr.bf16.mxu0 0
        %6702 = vmatpush2.bf16.xpose.msra.mxu0 %v384
        %6703 = vmatprep.subr.bf16.mxu0 0
        %6704 = vmatpush2.bf16.xpose.msra.mxu0 %v383
        %6705 = vmatprep.subr.bf16.mxu0 0
        %6706 = vmatpush2.bf16.xpose.msra.mxu0 %v382
        %6707 = vmatprep.subr.bf16.mxu0 0
        %6708 = vmatpush2.bf16.xpose.msra.mxu0 %v381
        %6709 = vmatprep.subr.bf16.mxu0 0
        %6710 = vmatpush2.bf16.xpose.msra.mxu0 %v380
        %6711 = vmatprep.subr.bf16.mxu0 0
        %6712 = vmatpush2.bf16.xpose.msra.mxu0 %v379
        %6713 = vmatprep.subr.bf16.mxu0 0
        %6714 = vmatpush2.bf16.xpose.msra.mxu0 %v378
        %6715 = vmatprep.subr.bf16.mxu0 0
        %6716 = vmatpush2.bf16.xpose.msra.mxu0 %v377
        %6717 = vmatprep.mubr.bf16.mxu0 0
        %6718 = vmatmul.mubr.bf16.gmra.mxu0 %v393
        %v6719 = vpop.f32.mrf.mxu0
        %v6720 = vadd.f32 0.0, %v6719
        %v6721 = vpop.f32.mrf.mxu0
        %v6722 = vadd.f32 0.0, %v6721
        %v6723 = vpop.f32.mrf.mxu0
        %v6724 = vadd.f32 0.0, %v6723
        %v6725 = vpop.f32.mrf.mxu0
        %v6726 = vadd.f32 0.0, %v6725
        %6727 = vmatprep.mubr.bf16.mxu0 0
        %6728 = vmatmul.mubr.bf16.gmra.mxu0 %v394
        %v6729 = vpop.f32.mrf.mxu0
        %v6730 = vadd.f32 0.0, %v6729
        %v6731 = vpop.f32.mrf.mxu0
        %v6732 = vadd.f32 0.0, %v6731
        %v6733 = vpop.f32.mrf.mxu0
        %v6734 = vadd.f32 0.0, %v6733
        %v6735 = vpop.f32.mrf.mxu0
        %v6736 = vadd.f32 0.0, %v6735
        %6737 = vmatprep.mubr.bf16.mxu0 0
        %6738 = vmatmul.mubr.bf16.gmra.mxu0 %v395
        %v6739 = vpop.f32.mrf.mxu0
        %v6740 = vadd.f32 0.0, %v6739
        %v6741 = vpop.f32.mrf.mxu0
        %v6742 = vadd.f32 0.0, %v6741
        %v6743 = vpop.f32.mrf.mxu0
        %v6744 = vadd.f32 0.0, %v6743
        %v6745 = vpop.f32.mrf.mxu0
        %v6746 = vadd.f32 0.0, %v6745
        %6747 = vmatprep.mubr.bf16.mxu0 0
        %6748 = vmatmul.mubr.bf16.gmra.mxu0 %v396
        %v6749 = vpop.f32.mrf.mxu0
        %v6750 = vadd.f32 0.0, %v6749
        %v6751 = vpop.f32.mrf.mxu0
        %v6752 = vadd.f32 0.0, %v6751
        %v6753 = vpop.f32.mrf.mxu0
        %v6754 = vadd.f32 0.0, %v6753
        %v6755 = vpop.f32.mrf.mxu0
        %v6756 = vadd.f32 0.0, %v6755
        %6757 = vmatprep.mubr.bf16.mxu0 0
        %6758 = vmatmul.mubr.bf16.gmra.mxu0 %v397
        %v6759 = vpop.f32.mrf.mxu0
        %v6760 = vadd.f32 0.0, %v6759
        %v6761 = vpop.f32.mrf.mxu0
        %v6762 = vadd.f32 0.0, %v6761
        %v6763 = vpop.f32.mrf.mxu0
        %v6764 = vadd.f32 0.0, %v6763
        %v6765 = vpop.f32.mrf.mxu0
        %v6766 = vadd.f32 0.0, %v6765
        %6767 = vmatprep.mubr.bf16.mxu0 0
        %6768 = vmatmul.mubr.bf16.gmra.mxu0 %v398
        %v6769 = vpop.f32.mrf.mxu0
        %v6770 = vadd.f32 0.0, %v6769
        %v6771 = vpop.f32.mrf.mxu0
        %v6772 = vadd.f32 0.0, %v6771
        %v6773 = vpop.f32.mrf.mxu0
        %v6774 = vadd.f32 0.0, %v6773
        %v6775 = vpop.f32.mrf.mxu0
        %v6776 = vadd.f32 0.0, %v6775
        %6777 = vmatprep.mubr.bf16.mxu0 0
        %6778 = vmatmul.mubr.bf16.gmra.mxu0 %v399
        %v6779 = vpop.f32.mrf.mxu0
        %v6780 = vadd.f32 0.0, %v6779
        %v6781 = vpop.f32.mrf.mxu0
        %v6782 = vadd.f32 0.0, %v6781
        %v6783 = vpop.f32.mrf.mxu0
        %v6784 = vadd.f32 0.0, %v6783
        %v6785 = vpop.f32.mrf.mxu0
        %v6786 = vadd.f32 0.0, %v6785
        %6787 = vmatprep.mubr.bf16.mxu0 0
        %6788 = vmatmul.mubr.bf16.gmra.mxu0 %v400
        %v6789 = vpop.f32.mrf.mxu0
        %v6790 = vadd.f32 0.0, %v6789
        %v6791 = vpop.f32.mrf.mxu0
        %v6792 = vadd.f32 0.0, %v6791
        %v6793 = vpop.f32.mrf.mxu0
        %v6794 = vadd.f32 0.0, %v6793
        %v6795 = vpop.f32.mrf.mxu0
        %v6796 = vadd.f32 0.0, %v6795
        %6797 = vdwg.mxu0
        %6798 = vmatprep.subr.bf16.mxu0 0
        %6799 = vmatpush1.bf16.xpose.msra.mxu0 %v392
        %6800 = vmatprep.subr.bf16.mxu0 0
        %6801 = vmatpush1.bf16.xpose.msra.mxu0 %v391
        %6802 = vmatprep.subr.bf16.mxu0 0
        %6803 = vmatpush1.bf16.xpose.msra.mxu0 %v390
        %6804 = vmatprep.subr.bf16.mxu0 0
        %6805 = vmatpush1.bf16.xpose.msra.mxu0 %v389
        %6806 = vmatprep.subr.bf16.mxu0 0
        %6807 = vmatpush1.bf16.xpose.msra.mxu0 %v388
        %6808 = vmatprep.subr.bf16.mxu0 0
        %6809 = vmatpush1.bf16.xpose.msra.mxu0 %v387
        %6810 = vmatprep.subr.bf16.mxu0 0
        %6811 = vmatpush1.bf16.xpose.msra.mxu0 %v386
        %6812 = vmatprep.subr.bf16.mxu0 0
        %6813 = vmatpush1.bf16.xpose.msra.mxu0 %v385
        %6814 = vmatprep.subr.bf16.mxu0 0
        %6815 = vmatpush2.bf16.xpose.msra.mxu0 %v400
        %6816 = vmatprep.subr.bf16.mxu0 0
        %6817 = vmatpush2.bf16.xpose.msra.mxu0 %v399
        %6818 = vmatprep.subr.bf16.mxu0 0
        %6819 = vmatpush2.bf16.xpose.msra.mxu0 %v398
        %6820 = vmatprep.subr.bf16.mxu0 0
        %6821 = vmatpush2.bf16.xpose.msra.mxu0 %v397
        %6822 = vmatprep.subr.bf16.mxu0 0
        %6823 = vmatpush2.bf16.xpose.msra.mxu0 %v396
        %6824 = vmatprep.subr.bf16.mxu0 0
        %6825 = vmatpush2.bf16.xpose.msra.mxu0 %v395
        %6826 = vmatprep.subr.bf16.mxu0 0
        %6827 = vmatpush2.bf16.xpose.msra.mxu0 %v394
        %6828 = vmatprep.subr.bf16.mxu0 0
        %6829 = vmatpush2.bf16.xpose.msra.mxu0 %v393
        %6830 = vmatprep.mubr.bf16.mxu0 0
        %6831 = vmatmul.mubr.bf16.gmra.mxu0 %v393
        %v6832 = vpop.f32.mrf.mxu0
        %v6833 = vadd.f32 0.0, %v6832
        %v6834 = vpop.f32.mrf.mxu0
        %v6835 = vadd.f32 0.0, %v6834
        %v6836 = vpop.f32.mrf.mxu0
        %v6837 = vadd.f32 0.0, %v6836
        %v6838 = vpop.f32.mrf.mxu0
        %v6839 = vadd.f32 0.0, %v6838
        %6840 = vmatprep.mubr.bf16.mxu0 0
        %6841 = vmatmul.mubr.bf16.gmra.mxu0 %v394
        %v6842 = vpop.f32.mrf.mxu0
        %v6843 = vadd.f32 0.0, %v6842
        %v6844 = vpop.f32.mrf.mxu0
        %v6845 = vadd.f32 0.0, %v6844
        %v6846 = vpop.f32.mrf.mxu0
        %v6847 = vadd.f32 0.0, %v6846
        %v6848 = vpop.f32.mrf.mxu0
        %v6849 = vadd.f32 0.0, %v6848
        %6850 = vmatprep.mubr.bf16.mxu0 0
        %6851 = vmatmul.mubr.bf16.gmra.mxu0 %v395
        %v6852 = vpop.f32.mrf.mxu0
        %v6853 = vadd.f32 0.0, %v6852
        %v6854 = vpop.f32.mrf.mxu0
        %v6855 = vadd.f32 0.0, %v6854
        %v6856 = vpop.f32.mrf.mxu0
        %v6857 = vadd.f32 0.0, %v6856
        %v6858 = vpop.f32.mrf.mxu0
        %v6859 = vadd.f32 0.0, %v6858
        %6860 = vmatprep.mubr.bf16.mxu0 0
        %6861 = vmatmul.mubr.bf16.gmra.mxu0 %v396
        %v6862 = vpop.f32.mrf.mxu0
        %v6863 = vadd.f32 0.0, %v6862
        %v6864 = vpop.f32.mrf.mxu0
        %v6865 = vadd.f32 0.0, %v6864
        %v6866 = vpop.f32.mrf.mxu0
        %v6867 = vadd.f32 0.0, %v6866
        %v6868 = vpop.f32.mrf.mxu0
        %v6869 = vadd.f32 0.0, %v6868
        %6870 = vmatprep.mubr.bf16.mxu0 0
        %6871 = vmatmul.mubr.bf16.gmra.mxu0 %v397
        %v6872 = vpop.f32.mrf.mxu0
        %v6873 = vadd.f32 0.0, %v6872
        %v6874 = vpop.f32.mrf.mxu0
        %v6875 = vadd.f32 0.0, %v6874
        %v6876 = vpop.f32.mrf.mxu0
        %v6877 = vadd.f32 0.0, %v6876
        %v6878 = vpop.f32.mrf.mxu0
        %v6879 = vadd.f32 0.0, %v6878
        %6880 = vmatprep.mubr.bf16.mxu0 0
        %6881 = vmatmul.mubr.bf16.gmra.mxu0 %v398
        %v6882 = vpop.f32.mrf.mxu0
        %v6883 = vadd.f32 0.0, %v6882
        %v6884 = vpop.f32.mrf.mxu0
        %v6885 = vadd.f32 0.0, %v6884
        %v6886 = vpop.f32.mrf.mxu0
        %v6887 = vadd.f32 0.0, %v6886
        %v6888 = vpop.f32.mrf.mxu0
        %v6889 = vadd.f32 0.0, %v6888
        %6890 = vmatprep.mubr.bf16.mxu0 0
        %6891 = vmatmul.mubr.bf16.gmra.mxu0 %v399
        %v6892 = vpop.f32.mrf.mxu0
        %v6893 = vadd.f32 0.0, %v6892
        %v6894 = vpop.f32.mrf.mxu0
        %v6895 = vadd.f32 0.0, %v6894
        %v6896 = vpop.f32.mrf.mxu0
        %v6897 = vadd.f32 0.0, %v6896
        %v6898 = vpop.f32.mrf.mxu0
        %v6899 = vadd.f32 0.0, %v6898
        %6900 = vmatprep.mubr.bf16.mxu0 0
        %6901 = vmatmul.mubr.bf16.gmra.mxu0 %v400
        %v6902 = vpop.f32.mrf.mxu0
        %v6903 = vadd.f32 0.0, %v6902
        %v6904 = vpop.f32.mrf.mxu0
        %v6905 = vadd.f32 0.0, %v6904
        %v6906 = vpop.f32.mrf.mxu0
        %v6907 = vadd.f32 0.0, %v6906
        %v6908 = vpop.f32.mrf.mxu0
        %v6909 = vadd.f32 0.0, %v6908
        %6910 = vdwg.mxu0
        %vm6911 = vcmp.eq.f32.partialorder %v6720, 0.0
        %vm6912 = vcmp.eq.f32.partialorder %v6722, 0.0
        %vm6913 = vcmp.eq.f32.partialorder %v6833, 0.0
        %vm6914 = vcmp.eq.f32.partialorder %v6835, 0.0
        %vm6915 = vcmp.eq.f32.partialorder %v6724, 0.0
        %vm6916 = vcmp.eq.f32.partialorder %v6726, 0.0
        %vm6917 = vcmp.eq.f32.partialorder %v6837, 0.0
        %vm6918 = vcmp.eq.f32.partialorder %v6839, 0.0
        %vm6919 = vcmp.eq.f32.partialorder %v6730, 0.0
        %vm6920 = vcmp.eq.f32.partialorder %v6732, 0.0
        %vm6921 = vcmp.eq.f32.partialorder %v6843, 0.0
        %vm6922 = vcmp.eq.f32.partialorder %v6845, 0.0
        %vm6923 = vcmp.eq.f32.partialorder %v6734, 0.0
        %vm6924 = vcmp.eq.f32.partialorder %v6736, 0.0
        %vm6925 = vcmp.eq.f32.partialorder %v6847, 0.0
        %vm6926 = vcmp.eq.f32.partialorder %v6849, 0.0
        %vm6927 = vcmp.eq.f32.partialorder %v6740, 0.0
        %vm6928 = vcmp.eq.f32.partialorder %v6742, 0.0
        %vm6929 = vcmp.eq.f32.partialorder %v6853, 0.0
        %vm6930 = vcmp.eq.f32.partialorder %v6855, 0.0
        %vm6931 = vcmp.eq.f32.partialorder %v6744, 0.0
        %vm6932 = vcmp.eq.f32.partialorder %v6746, 0.0
        %vm6933 = vcmp.eq.f32.partialorder %v6857, 0.0
        %vm6934 = vcmp.eq.f32.partialorder %v6859, 0.0
        %vm6935 = vcmp.eq.f32.partialorder %v6750, 0.0
        %vm6936 = vcmp.eq.f32.partialorder %v6752, 0.0
        %vm6937 = vcmp.eq.f32.partialorder %v6863, 0.0
        %vm6938 = vcmp.eq.f32.partialorder %v6865, 0.0
        %vm6939 = vcmp.eq.f32.partialorder %v6754, 0.0
        %vm6940 = vcmp.eq.f32.partialorder %v6756, 0.0
        %vm6941 = vcmp.eq.f32.partialorder %v6867, 0.0
        %vm6942 = vcmp.eq.f32.partialorder %v6869, 0.0
        %vm6943 = vcmp.eq.f32.partialorder %v6760, 0.0
        %vm6944 = vcmp.eq.f32.partialorder %v6762, 0.0
        %vm6945 = vcmp.eq.f32.partialorder %v6873, 0.0
        %vm6946 = vcmp.eq.f32.partialorder %v6875, 0.0
        %vm6947 = vcmp.eq.f32.partialorder %v6764, 0.0
        %vm6948 = vcmp.eq.f32.partialorder %v6766, 0.0
        %vm6949 = vcmp.eq.f32.partialorder %v6877, 0.0
        %vm6950 = vcmp.eq.f32.partialorder %v6879, 0.0
        %vm6951 = vcmp.eq.f32.partialorder %v6770, 0.0
        %vm6952 = vcmp.eq.f32.partialorder %v6772, 0.0
        %vm6953 = vcmp.eq.f32.partialorder %v6883, 0.0
        %vm6954 = vcmp.eq.f32.partialorder %v6885, 0.0
        %vm6955 = vcmp.eq.f32.partialorder %v6774, 0.0
        %vm6956 = vcmp.eq.f32.partialorder %v6776, 0.0
        %vm6957 = vcmp.eq.f32.partialorder %v6887, 0.0
        %vm6958 = vcmp.eq.f32.partialorder %v6889, 0.0
        %vm6959 = vcmp.eq.f32.partialorder %v6780, 0.0
        %vm6960 = vcmp.eq.f32.partialorder %v6782, 0.0
        %vm6961 = vcmp.eq.f32.partialorder %v6893, 0.0
        %vm6962 = vcmp.eq.f32.partialorder %v6895, 0.0
        %vm6963 = vcmp.eq.f32.partialorder %v6784, 0.0
        %vm6964 = vcmp.eq.f32.partialorder %v6786, 0.0
        %vm6965 = vcmp.eq.f32.partialorder %v6897, 0.0
        %vm6966 = vcmp.eq.f32.partialorder %v6899, 0.0
        %vm6967 = vcmp.eq.f32.partialorder %v6790, 0.0
        %vm6968 = vcmp.eq.f32.partialorder %v6792, 0.0
        %vm6969 = vcmp.eq.f32.partialorder %v6903, 0.0
        %vm6970 = vcmp.eq.f32.partialorder %v6905, 0.0
        %vm6971 = vcmp.eq.f32.partialorder %v6794, 0.0
        %vm6972 = vcmp.eq.f32.partialorder %v6796, 0.0
        %vm6973 = vcmp.eq.f32.partialorder %v6907, 0.0
        %vm6974 = vcmp.eq.f32.partialorder %v6909, 0.0
        %v6975 = vand.u32 2147483647, %v6720
        %v6976 = vand.u32 2147483647, %v6722
        %v6977 = vand.u32 2147483647, %v6833
        %v6978 = vand.u32 2147483647, %v6835
        %v6979 = vand.u32 2147483647, %v6724
        %v6980 = vand.u32 2147483647, %v6726
        %v6981 = vand.u32 2147483647, %v6837
        %v6982 = vand.u32 2147483647, %v6839
        %v6983 = vand.u32 2147483647, %v6730
        %v6984 = vand.u32 2147483647, %v6732
        %v6985 = vand.u32 2147483647, %v6843
        %v6986 = vand.u32 2147483647, %v6845
        %v6987 = vand.u32 2147483647, %v6734
        %v6988 = vand.u32 2147483647, %v6736
        %v6989 = vand.u32 2147483647, %v6847
        %v6990 = vand.u32 2147483647, %v6849
        %v6991 = vand.u32 2147483647, %v6740
        %v6992 = vand.u32 2147483647, %v6742
        %v6993 = vand.u32 2147483647, %v6853
        %v6994 = vand.u32 2147483647, %v6855
        %v6995 = vand.u32 2147483647, %v6744
        %v6996 = vand.u32 2147483647, %v6746
        %v6997 = vand.u32 2147483647, %v6857
        %v6998 = vand.u32 2147483647, %v6859
        %v6999 = vand.u32 2147483647, %v6750
        %v7000 = vand.u32 2147483647, %v6752
        %v7001 = vand.u32 2147483647, %v6863
        %v7002 = vand.u32 2147483647, %v6865
        %v7003 = vand.u32 2147483647, %v6754
        %v7004 = vand.u32 2147483647, %v6756
        %v7005 = vand.u32 2147483647, %v6867
        %v7006 = vand.u32 2147483647, %v6869
        %v7007 = vand.u32 2147483647, %v6760
        %v7008 = vand.u32 2147483647, %v6762
        %v7009 = vand.u32 2147483647, %v6873
        %v7010 = vand.u32 2147483647, %v6875
        %v7011 = vand.u32 2147483647, %v6764
        %v7012 = vand.u32 2147483647, %v6766
        %v7013 = vand.u32 2147483647, %v6877
        %v7014 = vand.u32 2147483647, %v6879
        %v7015 = vand.u32 2147483647, %v6770
        %v7016 = vand.u32 2147483647, %v6772
        %v7017 = vand.u32 2147483647, %v6883
        %v7018 = vand.u32 2147483647, %v6885
        %v7019 = vand.u32 2147483647, %v6774
        %v7020 = vand.u32 2147483647, %v6776
        %v7021 = vand.u32 2147483647, %v6887
        %v7022 = vand.u32 2147483647, %v6889
        %v7023 = vand.u32 2147483647, %v6780
        %v7024 = vand.u32 2147483647, %v6782
        %v7025 = vand.u32 2147483647, %v6893
        %v7026 = vand.u32 2147483647, %v6895
        %v7027 = vand.u32 2147483647, %v6784
        %v7028 = vand.u32 2147483647, %v6786
        %v7029 = vand.u32 2147483647, %v6897
        %v7030 = vand.u32 2147483647, %v6899
        %v7031 = vand.u32 2147483647, %v6790
        %v7032 = vand.u32 2147483647, %v6792
        %v7033 = vand.u32 2147483647, %v6903
        %v7034 = vand.u32 2147483647, %v6905
        %v7035 = vand.u32 2147483647, %v6794
        %v7036 = vand.u32 2147483647, %v6796
        %v7037 = vand.u32 2147483647, %v6907
        %v7038 = vand.u32 2147483647, %v6909
        %v7039 = vadd.f32 %v6975, 7.84e-08
        %v7040 = vadd.f32 %v6976, 7.84e-08
        %v7041 = vadd.f32 %v6977, 7.84e-08
        %v7042 = vadd.f32 %v6978, 7.84e-08
        %v7043 = vadd.f32 %v6979, 7.84e-08
        %v7044 = vadd.f32 %v6980, 7.84e-08
        %v7045 = vadd.f32 %v6981, 7.84e-08
        %v7046 = vadd.f32 %v6982, 7.84e-08
        %v7047 = vadd.f32 %v6983, 7.84e-08
        %v7048 = vadd.f32 %v6984, 7.84e-08
        %v7049 = vadd.f32 %v6985, 7.84e-08
        %v7050 = vadd.f32 %v6986, 7.84e-08
        %v7051 = vadd.f32 %v6987, 7.84e-08
        %v7052 = vadd.f32 %v6988, 7.84e-08
        %v7053 = vadd.f32 %v6989, 7.84e-08
        %v7054 = vadd.f32 %v6990, 7.84e-08
        %v7055 = vadd.f32 %v6991, 7.84e-08
        %v7056 = vadd.f32 %v6992, 7.84e-08
        %v7057 = vadd.f32 %v6993, 7.84e-08
        %v7058 = vadd.f32 %v6994, 7.84e-08
        %v7059 = vadd.f32 %v6995, 7.84e-08
        %v7060 = vadd.f32 %v6996, 7.84e-08
        %v7061 = vadd.f32 %v6997, 7.84e-08
        %v7062 = vadd.f32 %v6998, 7.84e-08
        %v7063 = vadd.f32 %v6999, 7.84e-08
        %v7064 = vadd.f32 %v7000, 7.84e-08
        %v7065 = vadd.f32 %v7001, 7.84e-08
        %v7066 = vadd.f32 %v7002, 7.84e-08
        %v7067 = vadd.f32 %v7003, 7.84e-08
        %v7068 = vadd.f32 %v7004, 7.84e-08
        %v7069 = vadd.f32 %v7005, 7.84e-08
        %v7070 = vadd.f32 %v7006, 7.84e-08
        %v7071 = vadd.f32 %v7007, 7.84e-08
        %v7072 = vadd.f32 %v7008, 7.84e-08
        %v7073 = vadd.f32 %v7009, 7.84e-08
        %v7074 = vadd.f32 %v7010, 7.84e-08
        %v7075 = vadd.f32 %v7011, 7.84e-08
        %v7076 = vadd.f32 %v7012, 7.84e-08
        %v7077 = vadd.f32 %v7013, 7.84e-08
        %v7078 = vadd.f32 %v7014, 7.84e-08
        %v7079 = vadd.f32 %v7015, 7.84e-08
        %v7080 = vadd.f32 %v7016, 7.84e-08
        %v7081 = vadd.f32 %v7017, 7.84e-08
        %v7082 = vadd.f32 %v7018, 7.84e-08
        %v7083 = vadd.f32 %v7019, 7.84e-08
        %v7084 = vadd.f32 %v7020, 7.84e-08
        %v7085 = vadd.f32 %v7021, 7.84e-08
        %v7086 = vadd.f32 %v7022, 7.84e-08
        %v7087 = vadd.f32 %v7023, 7.84e-08
        %v7088 = vadd.f32 %v7024, 7.84e-08
        %v7089 = vadd.f32 %v7025, 7.84e-08
        %v7090 = vadd.f32 %v7026, 7.84e-08
        %v7091 = vadd.f32 %v7027, 7.84e-08
        %v7092 = vadd.f32 %v7028, 7.84e-08
        %v7093 = vadd.f32 %v7029, 7.84e-08
        %v7094 = vadd.f32 %v7030, 7.84e-08
        %v7095 = vadd.f32 %v7031, 7.84e-08
        %v7096 = vadd.f32 %v7032, 7.84e-08
        %v7097 = vadd.f32 %v7033, 7.84e-08
        %v7098 = vadd.f32 %v7034, 7.84e-08
        %v7099 = vadd.f32 %v7035, 7.84e-08
        %v7100 = vadd.f32 %v7036, 7.84e-08
        %v7101 = vadd.f32 %v7037, 7.84e-08
        %v7102 = vadd.f32 %v7038, 7.84e-08
        %v7103 = vsel %vm6911, 0.0, %v7039
        %v7104 = vsel %vm6912, 0.0, %v7040
        %v7105 = vsel %vm6913, 0.0, %v7041
        %v7106 = vsel %vm6914, 0.0, %v7042
        %v7107 = vsel %vm6915, 0.0, %v7043
        %v7108 = vsel %vm6916, 0.0, %v7044
        %v7109 = vsel %vm6917, 0.0, %v7045
        %v7110 = vsel %vm6918, 0.0, %v7046
        %v7111 = vsel %vm6919, 0.0, %v7047
        %v7112 = vsel %vm6920, 0.0, %v7048
        %v7113 = vsel %vm6921, 0.0, %v7049
        %v7114 = vsel %vm6922, 0.0, %v7050
        %v7115 = vsel %vm6923, 0.0, %v7051
        %v7116 = vsel %vm6924, 0.0, %v7052
        %v7117 = vsel %vm6925, 0.0, %v7053
        %v7118 = vsel %vm6926, 0.0, %v7054
        %v7119 = vsel %vm6927, 0.0, %v7055
        %v7120 = vsel %vm6928, 0.0, %v7056
        %v7121 = vsel %vm6929, 0.0, %v7057
        %v7122 = vsel %vm6930, 0.0, %v7058
        %v7123 = vsel %vm6931, 0.0, %v7059
        %v7124 = vsel %vm6932, 0.0, %v7060
        %v7125 = vsel %vm6933, 0.0, %v7061
        %v7126 = vsel %vm6934, 0.0, %v7062
        %v7127 = vsel %vm6935, 0.0, %v7063
        %v7128 = vsel %vm6936, 0.0, %v7064
        %v7129 = vsel %vm6937, 0.0, %v7065
        %v7130 = vsel %vm6938, 0.0, %v7066
        %v7131 = vsel %vm6939, 0.0, %v7067
        %v7132 = vsel %vm6940, 0.0, %v7068
        %v7133 = vsel %vm6941, 0.0, %v7069
        %v7134 = vsel %vm6942, 0.0, %v7070
        %v7135 = vsel %vm6943, 0.0, %v7071
        %v7136 = vsel %vm6944, 0.0, %v7072
        %v7137 = vsel %vm6945, 0.0, %v7073
        %v7138 = vsel %vm6946, 0.0, %v7074
        %v7139 = vsel %vm6947, 0.0, %v7075
        %v7140 = vsel %vm6948, 0.0, %v7076
        %v7141 = vsel %vm6949, 0.0, %v7077
        %v7142 = vsel %vm6950, 0.0, %v7078
        %v7143 = vsel %vm6951, 0.0, %v7079
        %v7144 = vsel %vm6952, 0.0, %v7080
        %v7145 = vsel %vm6953, 0.0, %v7081
        %v7146 = vsel %vm6954, 0.0, %v7082
        %v7147 = vsel %vm6955, 0.0, %v7083
        %v7148 = vsel %vm6956, 0.0, %v7084
        %v7149 = vsel %vm6957, 0.0, %v7085
        %v7150 = vsel %vm6958, 0.0, %v7086
        %v7151 = vsel %vm6959, 0.0, %v7087
        %v7152 = vsel %vm6960, 0.0, %v7088
        %v7153 = vsel %vm6961, 0.0, %v7089
        %v7154 = vsel %vm6962, 0.0, %v7090
        %v7155 = vsel %vm6963, 0.0, %v7091
        %v7156 = vsel %vm6964, 0.0, %v7092
        %v7157 = vsel %vm6965, 0.0, %v7093
        %v7158 = vsel %vm6966, 0.0, %v7094
        %v7159 = vsel %vm6967, 0.0, %v7095
        %v7160 = vsel %vm6968, 0.0, %v7096
        %v7161 = vsel %vm6969, 0.0, %v7097
        %v7162 = vsel %vm6970, 0.0, %v7098
        %v7163 = vsel %vm6971, 0.0, %v7099
        %v7164 = vsel %vm6972, 0.0, %v7100
        %v7165 = vsel %vm6973, 0.0, %v7101
        %v7166 = vsel %vm6974, 0.0, %v7102
        %v7167 = vadd.f32 %v7103, %v7104
        %v7168 = vadd.f32 %v7167, %v7105
        %v7169 = vadd.f32 %v7168, %v7106
        %v7170 = vadd.f32 %v7169, %v7107
        %v7171 = vadd.f32 %v7170, %v7108
        %v7172 = vadd.f32 %v7171, %v7109
        %v7173 = vadd.f32 %v7172, %v7110
        %v7174 = vadd.f32 %v7173, %v7111
        %v7175 = vadd.f32 %v7174, %v7112
        %v7176 = vadd.f32 %v7175, %v7113
        %v7177 = vadd.f32 %v7176, %v7114
        %v7178 = vadd.f32 %v7177, %v7115
        %v7179 = vadd.f32 %v7178, %v7116
        %v7180 = vadd.f32 %v7179, %v7117
        %v7181 = vadd.f32 %v7180, %v7118
        %v7182 = vadd.f32 %v7181, %v7119
        %v7183 = vadd.f32 %v7182, %v7120
        %v7184 = vadd.f32 %v7183, %v7121
        %v7185 = vadd.f32 %v7184, %v7122
        %v7186 = vadd.f32 %v7185, %v7123
        %v7187 = vadd.f32 %v7186, %v7124
        %v7188 = vadd.f32 %v7187, %v7125
        %v7189 = vadd.f32 %v7188, %v7126
        %v7190 = vadd.f32 %v7189, %v7127
        %v7191 = vadd.f32 %v7190, %v7128
        %v7192 = vadd.f32 %v7191, %v7129
        %v7193 = vadd.f32 %v7192, %v7130
        %v7194 = vadd.f32 %v7193, %v7131
        %v7195 = vadd.f32 %v7194, %v7132
        %v7196 = vadd.f32 %v7195, %v7133
        %v7197 = vadd.f32 %v7196, %v7134
        %v7198 = vadd.f32 %v7197, %v7135
        %v7199 = vadd.f32 %v7198, %v7136
        %v7200 = vadd.f32 %v7199, %v7137
        %v7201 = vadd.f32 %v7200, %v7138
        %v7202 = vadd.f32 %v7201, %v7139
        %v7203 = vadd.f32 %v7202, %v7140
        %v7204 = vadd.f32 %v7203, %v7141
        %v7205 = vadd.f32 %v7204, %v7142
        %v7206 = vadd.f32 %v7205, %v7143
        %v7207 = vadd.f32 %v7206, %v7144
        %v7208 = vadd.f32 %v7207, %v7145
        %v7209 = vadd.f32 %v7208, %v7146
        %v7210 = vadd.f32 %v7209, %v7147
        %v7211 = vadd.f32 %v7210, %v7148
        %v7212 = vadd.f32 %v7211, %v7149
        %v7213 = vadd.f32 %v7212, %v7150
        %v7214 = vadd.f32 %v7213, %v7151
        %v7215 = vadd.f32 %v7214, %v7152
        %v7216 = vadd.f32 %v7215, %v7153
        %v7217 = vadd.f32 %v7216, %v7154
        %v7218 = vadd.f32 %v7217, %v7155
        %v7219 = vadd.f32 %v7218, %v7156
        %v7220 = vadd.f32 %v7219, %v7157
        %v7221 = vadd.f32 %v7220, %v7158
        %v7222 = vadd.f32 %v7221, %v7159
        %v7223 = vadd.f32 %v7222, %v7160
        %v7224 = vadd.f32 %v7223, %v7161
        %v7225 = vadd.f32 %v7224, %v7162
        %v7226 = vadd.f32 %v7225, %v7163
        %v7227 = vadd.f32 %v7226, %v7164
        %v7228 = vadd.f32 %v7227, %v7165
        %v7229 = vadd.f32 %v7228, %v7166
        %7230 = vadd.xlane.f32.xlu0 %v7229
        %v7231 = vpop.xlane.xlu0 %7230
        %v7232 = vrot.slane %v7231, 4
        %v7233 = vadd.f32 %v7231, %v7232
        %v7234 = vrot.slane %v7233, 2
        %v7235 = vadd.f32 %v7233, %v7234
        %v7236 = vrot.slane %v7235, 1
        %v7237 = vadd.f32 %v7235, %v7236
        %s7238 = vtos %v7237
        %s7239 = sadd.f32 %s5153, %s7238
        %v7240 = vrsqrt.pop %v7039
        %v7241 = vmul.f32 %v7039, %v7240
        %vm7242 = vcmp.eq.f32.partialorder %v7039, inf
        %v7243 = vsel %vm7242, %v7039, %v7241
        %vm7244 = vcmp.eq.f32.partialorder %v7039, 0.0
        %v7245 = vand.u32 %v7039, 2147483648
        %v7246 = vsel %vm7244, %v7245, %v7243
        %v7247 = vrsqrt.pop %v7040
        %v7248 = vmul.f32 %v7040, %v7247
        %vm7249 = vcmp.eq.f32.partialorder %v7040, inf
        %v7250 = vsel %vm7249, %v7040, %v7248
        %vm7251 = vcmp.eq.f32.partialorder %v7040, 0.0
        %v7252 = vand.u32 %v7040, 2147483648
        %v7253 = vsel %vm7251, %v7252, %v7250
        %v7254 = vrsqrt.pop %v7041
        %v7255 = vmul.f32 %v7041, %v7254
        %vm7256 = vcmp.eq.f32.partialorder %v7041, inf
        %v7257 = vsel %vm7256, %v7041, %v7255
        %vm7258 = vcmp.eq.f32.partialorder %v7041, 0.0
        %v7259 = vand.u32 %v7041, 2147483648
        %v7260 = vsel %vm7258, %v7259, %v7257
        %v7261 = vrsqrt.pop %v7042
        %v7262 = vmul.f32 %v7042, %v7261
        %vm7263 = vcmp.eq.f32.partialorder %v7042, inf
        %v7264 = vsel %vm7263, %v7042, %v7262
        %vm7265 = vcmp.eq.f32.partialorder %v7042, 0.0
        %v7266 = vand.u32 %v7042, 2147483648
        %v7267 = vsel %vm7265, %v7266, %v7264
        %v7268 = vrsqrt.pop %v7043
        %v7269 = vmul.f32 %v7043, %v7268
        %vm7270 = vcmp.eq.f32.partialorder %v7043, inf
        %v7271 = vsel %vm7270, %v7043, %v7269
        %vm7272 = vcmp.eq.f32.partialorder %v7043, 0.0
        %v7273 = vand.u32 %v7043, 2147483648
        %v7274 = vsel %vm7272, %v7273, %v7271
        %v7275 = vrsqrt.pop %v7044
        %v7276 = vmul.f32 %v7044, %v7275
        %vm7277 = vcmp.eq.f32.partialorder %v7044, inf
        %v7278 = vsel %vm7277, %v7044, %v7276
        %vm7279 = vcmp.eq.f32.partialorder %v7044, 0.0
        %v7280 = vand.u32 %v7044, 2147483648
        %v7281 = vsel %vm7279, %v7280, %v7278
        %v7282 = vrsqrt.pop %v7045
        %v7283 = vmul.f32 %v7045, %v7282
        %vm7284 = vcmp.eq.f32.partialorder %v7045, inf
        %v7285 = vsel %vm7284, %v7045, %v7283
        %vm7286 = vcmp.eq.f32.partialorder %v7045, 0.0
        %v7287 = vand.u32 %v7045, 2147483648
        %v7288 = vsel %vm7286, %v7287, %v7285
        %v7289 = vrsqrt.pop %v7046
        %v7290 = vmul.f32 %v7046, %v7289
        %vm7291 = vcmp.eq.f32.partialorder %v7046, inf
        %v7292 = vsel %vm7291, %v7046, %v7290
        %vm7293 = vcmp.eq.f32.partialorder %v7046, 0.0
        %v7294 = vand.u32 %v7046, 2147483648
        %v7295 = vsel %vm7293, %v7294, %v7292
        %v7296 = vrsqrt.pop %v7047
        %v7297 = vmul.f32 %v7047, %v7296
        %vm7298 = vcmp.eq.f32.partialorder %v7047, inf
        %v7299 = vsel %vm7298, %v7047, %v7297
        %vm7300 = vcmp.eq.f32.partialorder %v7047, 0.0
        %v7301 = vand.u32 %v7047, 2147483648
        %v7302 = vsel %vm7300, %v7301, %v7299
        %v7303 = vrsqrt.pop %v7048
        %v7304 = vmul.f32 %v7048, %v7303
        %vm7305 = vcmp.eq.f32.partialorder %v7048, inf
        %v7306 = vsel %vm7305, %v7048, %v7304
        %vm7307 = vcmp.eq.f32.partialorder %v7048, 0.0
        %v7308 = vand.u32 %v7048, 2147483648
        %v7309 = vsel %vm7307, %v7308, %v7306
        %v7310 = vrsqrt.pop %v7049
        %v7311 = vmul.f32 %v7049, %v7310
        %vm7312 = vcmp.eq.f32.partialorder %v7049, inf
        %v7313 = vsel %vm7312, %v7049, %v7311
        %vm7314 = vcmp.eq.f32.partialorder %v7049, 0.0
        %v7315 = vand.u32 %v7049, 2147483648
        %v7316 = vsel %vm7314, %v7315, %v7313
        %v7317 = vrsqrt.pop %v7050
        %v7318 = vmul.f32 %v7050, %v7317
        %vm7319 = vcmp.eq.f32.partialorder %v7050, inf
        %v7320 = vsel %vm7319, %v7050, %v7318
        %vm7321 = vcmp.eq.f32.partialorder %v7050, 0.0
        %v7322 = vand.u32 %v7050, 2147483648
        %v7323 = vsel %vm7321, %v7322, %v7320
        %v7324 = vrsqrt.pop %v7051
        %v7325 = vmul.f32 %v7051, %v7324
        %vm7326 = vcmp.eq.f32.partialorder %v7051, inf
        %v7327 = vsel %vm7326, %v7051, %v7325
        %vm7328 = vcmp.eq.f32.partialorder %v7051, 0.0
        %v7329 = vand.u32 %v7051, 2147483648
        %v7330 = vsel %vm7328, %v7329, %v7327
        %v7331 = vrsqrt.pop %v7052
        %v7332 = vmul.f32 %v7052, %v7331
        %vm7333 = vcmp.eq.f32.partialorder %v7052, inf
        %v7334 = vsel %vm7333, %v7052, %v7332
        %vm7335 = vcmp.eq.f32.partialorder %v7052, 0.0
        %v7336 = vand.u32 %v7052, 2147483648
        %v7337 = vsel %vm7335, %v7336, %v7334
        %v7338 = vrsqrt.pop %v7053
        %v7339 = vmul.f32 %v7053, %v7338
        %vm7340 = vcmp.eq.f32.partialorder %v7053, inf
        %v7341 = vsel %vm7340, %v7053, %v7339
        %vm7342 = vcmp.eq.f32.partialorder %v7053, 0.0
        %v7343 = vand.u32 %v7053, 2147483648
        %v7344 = vsel %vm7342, %v7343, %v7341
        %v7345 = vrsqrt.pop %v7054
        %v7346 = vmul.f32 %v7054, %v7345
        %vm7347 = vcmp.eq.f32.partialorder %v7054, inf
        %v7348 = vsel %vm7347, %v7054, %v7346
        %vm7349 = vcmp.eq.f32.partialorder %v7054, 0.0
        %v7350 = vand.u32 %v7054, 2147483648
        %v7351 = vsel %vm7349, %v7350, %v7348
        %v7352 = vrsqrt.pop %v7055
        %v7353 = vmul.f32 %v7055, %v7352
        %vm7354 = vcmp.eq.f32.partialorder %v7055, inf
        %v7355 = vsel %vm7354, %v7055, %v7353
        %vm7356 = vcmp.eq.f32.partialorder %v7055, 0.0
        %v7357 = vand.u32 %v7055, 2147483648
        %v7358 = vsel %vm7356, %v7357, %v7355
        %v7359 = vrsqrt.pop %v7056
        %v7360 = vmul.f32 %v7056, %v7359
        %vm7361 = vcmp.eq.f32.partialorder %v7056, inf
        %v7362 = vsel %vm7361, %v7056, %v7360
        %vm7363 = vcmp.eq.f32.partialorder %v7056, 0.0
        %v7364 = vand.u32 %v7056, 2147483648
        %v7365 = vsel %vm7363, %v7364, %v7362
        %v7366 = vrsqrt.pop %v7057
        %v7367 = vmul.f32 %v7057, %v7366
        %vm7368 = vcmp.eq.f32.partialorder %v7057, inf
        %v7369 = vsel %vm7368, %v7057, %v7367
        %vm7370 = vcmp.eq.f32.partialorder %v7057, 0.0
        %v7371 = vand.u32 %v7057, 2147483648
        %v7372 = vsel %vm7370, %v7371, %v7369
        %v7373 = vrsqrt.pop %v7058
        %v7374 = vmul.f32 %v7058, %v7373
        %vm7375 = vcmp.eq.f32.partialorder %v7058, inf
        %v7376 = vsel %vm7375, %v7058, %v7374
        %vm7377 = vcmp.eq.f32.partialorder %v7058, 0.0
        %v7378 = vand.u32 %v7058, 2147483648
        %v7379 = vsel %vm7377, %v7378, %v7376
        %v7380 = vrsqrt.pop %v7059
        %v7381 = vmul.f32 %v7059, %v7380
        %vm7382 = vcmp.eq.f32.partialorder %v7059, inf
        %v7383 = vsel %vm7382, %v7059, %v7381
        %vm7384 = vcmp.eq.f32.partialorder %v7059, 0.0
        %v7385 = vand.u32 %v7059, 2147483648
        %v7386 = vsel %vm7384, %v7385, %v7383
        %v7387 = vrsqrt.pop %v7060
        %v7388 = vmul.f32 %v7060, %v7387
        %vm7389 = vcmp.eq.f32.partialorder %v7060, inf
        %v7390 = vsel %vm7389, %v7060, %v7388
        %vm7391 = vcmp.eq.f32.partialorder %v7060, 0.0
        %v7392 = vand.u32 %v7060, 2147483648
        %v7393 = vsel %vm7391, %v7392, %v7390
        %v7394 = vrsqrt.pop %v7061
        %v7395 = vmul.f32 %v7061, %v7394
        %vm7396 = vcmp.eq.f32.partialorder %v7061, inf
        %v7397 = vsel %vm7396, %v7061, %v7395
        %vm7398 = vcmp.eq.f32.partialorder %v7061, 0.0
        %v7399 = vand.u32 %v7061, 2147483648
        %v7400 = vsel %vm7398, %v7399, %v7397
        %v7401 = vrsqrt.pop %v7062
        %v7402 = vmul.f32 %v7062, %v7401
        %vm7403 = vcmp.eq.f32.partialorder %v7062, inf
        %v7404 = vsel %vm7403, %v7062, %v7402
        %vm7405 = vcmp.eq.f32.partialorder %v7062, 0.0
        %v7406 = vand.u32 %v7062, 2147483648
        %v7407 = vsel %vm7405, %v7406, %v7404
        %v7408 = vrsqrt.pop %v7063
        %v7409 = vmul.f32 %v7063, %v7408
        %vm7410 = vcmp.eq.f32.partialorder %v7063, inf
        %v7411 = vsel %vm7410, %v7063, %v7409
        %vm7412 = vcmp.eq.f32.partialorder %v7063, 0.0
        %v7413 = vand.u32 %v7063, 2147483648
        %v7414 = vsel %vm7412, %v7413, %v7411
        %v7415 = vrsqrt.pop %v7064
        %v7416 = vmul.f32 %v7064, %v7415
        %vm7417 = vcmp.eq.f32.partialorder %v7064, inf
        %v7418 = vsel %vm7417, %v7064, %v7416
        %vm7419 = vcmp.eq.f32.partialorder %v7064, 0.0
        %v7420 = vand.u32 %v7064, 2147483648
        %v7421 = vsel %vm7419, %v7420, %v7418
        %v7422 = vrsqrt.pop %v7065
        %v7423 = vmul.f32 %v7065, %v7422
        %vm7424 = vcmp.eq.f32.partialorder %v7065, inf
        %v7425 = vsel %vm7424, %v7065, %v7423
        %vm7426 = vcmp.eq.f32.partialorder %v7065, 0.0
        %v7427 = vand.u32 %v7065, 2147483648
        %v7428 = vsel %vm7426, %v7427, %v7425
        %v7429 = vrsqrt.pop %v7066
        %v7430 = vmul.f32 %v7066, %v7429
        %vm7431 = vcmp.eq.f32.partialorder %v7066, inf
        %v7432 = vsel %vm7431, %v7066, %v7430
        %vm7433 = vcmp.eq.f32.partialorder %v7066, 0.0
        %v7434 = vand.u32 %v7066, 2147483648
        %v7435 = vsel %vm7433, %v7434, %v7432
        %v7436 = vrsqrt.pop %v7067
        %v7437 = vmul.f32 %v7067, %v7436
        %vm7438 = vcmp.eq.f32.partialorder %v7067, inf
        %v7439 = vsel %vm7438, %v7067, %v7437
        %vm7440 = vcmp.eq.f32.partialorder %v7067, 0.0
        %v7441 = vand.u32 %v7067, 2147483648
        %v7442 = vsel %vm7440, %v7441, %v7439
        %v7443 = vrsqrt.pop %v7068
        %v7444 = vmul.f32 %v7068, %v7443
        %vm7445 = vcmp.eq.f32.partialorder %v7068, inf
        %v7446 = vsel %vm7445, %v7068, %v7444
        %vm7447 = vcmp.eq.f32.partialorder %v7068, 0.0
        %v7448 = vand.u32 %v7068, 2147483648
        %v7449 = vsel %vm7447, %v7448, %v7446
        %v7450 = vrsqrt.pop %v7069
        %v7451 = vmul.f32 %v7069, %v7450
        %vm7452 = vcmp.eq.f32.partialorder %v7069, inf
        %v7453 = vsel %vm7452, %v7069, %v7451
        %vm7454 = vcmp.eq.f32.partialorder %v7069, 0.0
        %v7455 = vand.u32 %v7069, 2147483648
        %v7456 = vsel %vm7454, %v7455, %v7453
        %v7457 = vrsqrt.pop %v7070
        %v7458 = vmul.f32 %v7070, %v7457
        %vm7459 = vcmp.eq.f32.partialorder %v7070, inf
        %v7460 = vsel %vm7459, %v7070, %v7458
        %vm7461 = vcmp.eq.f32.partialorder %v7070, 0.0
        %v7462 = vand.u32 %v7070, 2147483648
        %v7463 = vsel %vm7461, %v7462, %v7460
        %v7464 = vrsqrt.pop %v7071
        %v7465 = vmul.f32 %v7071, %v7464
        %vm7466 = vcmp.eq.f32.partialorder %v7071, inf
        %v7467 = vsel %vm7466, %v7071, %v7465
        %vm7468 = vcmp.eq.f32.partialorder %v7071, 0.0
        %v7469 = vand.u32 %v7071, 2147483648
        %v7470 = vsel %vm7468, %v7469, %v7467
        %v7471 = vrsqrt.pop %v7072
        %v7472 = vmul.f32 %v7072, %v7471
        %vm7473 = vcmp.eq.f32.partialorder %v7072, inf
        %v7474 = vsel %vm7473, %v7072, %v7472
        %vm7475 = vcmp.eq.f32.partialorder %v7072, 0.0
        %v7476 = vand.u32 %v7072, 2147483648
        %v7477 = vsel %vm7475, %v7476, %v7474
        %v7478 = vrsqrt.pop %v7073
        %v7479 = vmul.f32 %v7073, %v7478
        %vm7480 = vcmp.eq.f32.partialorder %v7073, inf
        %v7481 = vsel %vm7480, %v7073, %v7479
        %vm7482 = vcmp.eq.f32.partialorder %v7073, 0.0
        %v7483 = vand.u32 %v7073, 2147483648
        %v7484 = vsel %vm7482, %v7483, %v7481
        %v7485 = vrsqrt.pop %v7074
        %v7486 = vmul.f32 %v7074, %v7485
        %vm7487 = vcmp.eq.f32.partialorder %v7074, inf
        %v7488 = vsel %vm7487, %v7074, %v7486
        %vm7489 = vcmp.eq.f32.partialorder %v7074, 0.0
        %v7490 = vand.u32 %v7074, 2147483648
        %v7491 = vsel %vm7489, %v7490, %v7488
        %v7492 = vrsqrt.pop %v7075
        %v7493 = vmul.f32 %v7075, %v7492
        %vm7494 = vcmp.eq.f32.partialorder %v7075, inf
        %v7495 = vsel %vm7494, %v7075, %v7493
        %vm7496 = vcmp.eq.f32.partialorder %v7075, 0.0
        %v7497 = vand.u32 %v7075, 2147483648
        %v7498 = vsel %vm7496, %v7497, %v7495
        %v7499 = vrsqrt.pop %v7076
        %v7500 = vmul.f32 %v7076, %v7499
        %vm7501 = vcmp.eq.f32.partialorder %v7076, inf
        %v7502 = vsel %vm7501, %v7076, %v7500
        %vm7503 = vcmp.eq.f32.partialorder %v7076, 0.0
        %v7504 = vand.u32 %v7076, 2147483648
        %v7505 = vsel %vm7503, %v7504, %v7502
        %v7506 = vrsqrt.pop %v7077
        %v7507 = vmul.f32 %v7077, %v7506
        %vm7508 = vcmp.eq.f32.partialorder %v7077, inf
        %v7509 = vsel %vm7508, %v7077, %v7507
        %vm7510 = vcmp.eq.f32.partialorder %v7077, 0.0
        %v7511 = vand.u32 %v7077, 2147483648
        %v7512 = vsel %vm7510, %v7511, %v7509
        %v7513 = vrsqrt.pop %v7078
        %v7514 = vmul.f32 %v7078, %v7513
        %vm7515 = vcmp.eq.f32.partialorder %v7078, inf
        %v7516 = vsel %vm7515, %v7078, %v7514
        %vm7517 = vcmp.eq.f32.partialorder %v7078, 0.0
        %v7518 = vand.u32 %v7078, 2147483648
        %v7519 = vsel %vm7517, %v7518, %v7516
        %v7520 = vrsqrt.pop %v7079
        %v7521 = vmul.f32 %v7079, %v7520
        %vm7522 = vcmp.eq.f32.partialorder %v7079, inf
        %v7523 = vsel %vm7522, %v7079, %v7521
        %vm7524 = vcmp.eq.f32.partialorder %v7079, 0.0
        %v7525 = vand.u32 %v7079, 2147483648
        %v7526 = vsel %vm7524, %v7525, %v7523
        %v7527 = vrsqrt.pop %v7080
        %v7528 = vmul.f32 %v7080, %v7527
        %vm7529 = vcmp.eq.f32.partialorder %v7080, inf
        %v7530 = vsel %vm7529, %v7080, %v7528
        %vm7531 = vcmp.eq.f32.partialorder %v7080, 0.0
        %v7532 = vand.u32 %v7080, 2147483648
        %v7533 = vsel %vm7531, %v7532, %v7530
        %v7534 = vrsqrt.pop %v7081
        %v7535 = vmul.f32 %v7081, %v7534
        %vm7536 = vcmp.eq.f32.partialorder %v7081, inf
        %v7537 = vsel %vm7536, %v7081, %v7535
        %vm7538 = vcmp.eq.f32.partialorder %v7081, 0.0
        %v7539 = vand.u32 %v7081, 2147483648
        %v7540 = vsel %vm7538, %v7539, %v7537
        %v7541 = vrsqrt.pop %v7082
        %v7542 = vmul.f32 %v7082, %v7541
        %vm7543 = vcmp.eq.f32.partialorder %v7082, inf
        %v7544 = vsel %vm7543, %v7082, %v7542
        %vm7545 = vcmp.eq.f32.partialorder %v7082, 0.0
        %v7546 = vand.u32 %v7082, 2147483648
        %v7547 = vsel %vm7545, %v7546, %v7544
        %v7548 = vrsqrt.pop %v7083
        %v7549 = vmul.f32 %v7083, %v7548
        %vm7550 = vcmp.eq.f32.partialorder %v7083, inf
        %v7551 = vsel %vm7550, %v7083, %v7549
        %vm7552 = vcmp.eq.f32.partialorder %v7083, 0.0
        %v7553 = vand.u32 %v7083, 2147483648
        %v7554 = vsel %vm7552, %v7553, %v7551
        %v7555 = vrsqrt.pop %v7084
        %v7556 = vmul.f32 %v7084, %v7555
        %vm7557 = vcmp.eq.f32.partialorder %v7084, inf
        %v7558 = vsel %vm7557, %v7084, %v7556
        %vm7559 = vcmp.eq.f32.partialorder %v7084, 0.0
        %v7560 = vand.u32 %v7084, 2147483648
        %v7561 = vsel %vm7559, %v7560, %v7558
        %v7562 = vrsqrt.pop %v7085
        %v7563 = vmul.f32 %v7085, %v7562
        %vm7564 = vcmp.eq.f32.partialorder %v7085, inf
        %v7565 = vsel %vm7564, %v7085, %v7563
        %vm7566 = vcmp.eq.f32.partialorder %v7085, 0.0
        %v7567 = vand.u32 %v7085, 2147483648
        %v7568 = vsel %vm7566, %v7567, %v7565
        %v7569 = vrsqrt.pop %v7086
        %v7570 = vmul.f32 %v7086, %v7569
        %vm7571 = vcmp.eq.f32.partialorder %v7086, inf
        %v7572 = vsel %vm7571, %v7086, %v7570
        %vm7573 = vcmp.eq.f32.partialorder %v7086, 0.0
        %v7574 = vand.u32 %v7086, 2147483648
        %v7575 = vsel %vm7573, %v7574, %v7572
        %v7576 = vrsqrt.pop %v7087
        %v7577 = vmul.f32 %v7087, %v7576
        %vm7578 = vcmp.eq.f32.partialorder %v7087, inf
        %v7579 = vsel %vm7578, %v7087, %v7577
        %vm7580 = vcmp.eq.f32.partialorder %v7087, 0.0
        %v7581 = vand.u32 %v7087, 2147483648
        %v7582 = vsel %vm7580, %v7581, %v7579
        %v7583 = vrsqrt.pop %v7088
        %v7584 = vmul.f32 %v7088, %v7583
        %vm7585 = vcmp.eq.f32.partialorder %v7088, inf
        %v7586 = vsel %vm7585, %v7088, %v7584
        %vm7587 = vcmp.eq.f32.partialorder %v7088, 0.0
        %v7588 = vand.u32 %v7088, 2147483648
        %v7589 = vsel %vm7587, %v7588, %v7586
        %v7590 = vrsqrt.pop %v7089
        %v7591 = vmul.f32 %v7089, %v7590
        %vm7592 = vcmp.eq.f32.partialorder %v7089, inf
        %v7593 = vsel %vm7592, %v7089, %v7591
        %vm7594 = vcmp.eq.f32.partialorder %v7089, 0.0
        %v7595 = vand.u32 %v7089, 2147483648
        %v7596 = vsel %vm7594, %v7595, %v7593
        %v7597 = vrsqrt.pop %v7090
        %v7598 = vmul.f32 %v7090, %v7597
        %vm7599 = vcmp.eq.f32.partialorder %v7090, inf
        %v7600 = vsel %vm7599, %v7090, %v7598
        %vm7601 = vcmp.eq.f32.partialorder %v7090, 0.0
        %v7602 = vand.u32 %v7090, 2147483648
        %v7603 = vsel %vm7601, %v7602, %v7600
        %v7604 = vrsqrt.pop %v7091
        %v7605 = vmul.f32 %v7091, %v7604
        %vm7606 = vcmp.eq.f32.partialorder %v7091, inf
        %v7607 = vsel %vm7606, %v7091, %v7605
        %vm7608 = vcmp.eq.f32.partialorder %v7091, 0.0
        %v7609 = vand.u32 %v7091, 2147483648
        %v7610 = vsel %vm7608, %v7609, %v7607
        %v7611 = vrsqrt.pop %v7092
        %v7612 = vmul.f32 %v7092, %v7611
        %vm7613 = vcmp.eq.f32.partialorder %v7092, inf
        %v7614 = vsel %vm7613, %v7092, %v7612
        %vm7615 = vcmp.eq.f32.partialorder %v7092, 0.0
        %v7616 = vand.u32 %v7092, 2147483648
        %v7617 = vsel %vm7615, %v7616, %v7614
        %v7618 = vrsqrt.pop %v7093
        %v7619 = vmul.f32 %v7093, %v7618
        %vm7620 = vcmp.eq.f32.partialorder %v7093, inf
        %v7621 = vsel %vm7620, %v7093, %v7619
        %vm7622 = vcmp.eq.f32.partialorder %v7093, 0.0
        %v7623 = vand.u32 %v7093, 2147483648
        %v7624 = vsel %vm7622, %v7623, %v7621
        %v7625 = vrsqrt.pop %v7094
        %v7626 = vmul.f32 %v7094, %v7625
        %vm7627 = vcmp.eq.f32.partialorder %v7094, inf
        %v7628 = vsel %vm7627, %v7094, %v7626
        %vm7629 = vcmp.eq.f32.partialorder %v7094, 0.0
        %v7630 = vand.u32 %v7094, 2147483648
        %v7631 = vsel %vm7629, %v7630, %v7628
        %v7632 = vrsqrt.pop %v7095
        %v7633 = vmul.f32 %v7095, %v7632
        %vm7634 = vcmp.eq.f32.partialorder %v7095, inf
        %v7635 = vsel %vm7634, %v7095, %v7633
        %vm7636 = vcmp.eq.f32.partialorder %v7095, 0.0
        %v7637 = vand.u32 %v7095, 2147483648
        %v7638 = vsel %vm7636, %v7637, %v7635
        %v7639 = vrsqrt.pop %v7096
        %v7640 = vmul.f32 %v7096, %v7639
        %vm7641 = vcmp.eq.f32.partialorder %v7096, inf
        %v7642 = vsel %vm7641, %v7096, %v7640
        %vm7643 = vcmp.eq.f32.partialorder %v7096, 0.0
        %v7644 = vand.u32 %v7096, 2147483648
        %v7645 = vsel %vm7643, %v7644, %v7642
        %v7646 = vrsqrt.pop %v7097
        %v7647 = vmul.f32 %v7097, %v7646
        %vm7648 = vcmp.eq.f32.partialorder %v7097, inf
        %v7649 = vsel %vm7648, %v7097, %v7647
        %vm7650 = vcmp.eq.f32.partialorder %v7097, 0.0
        %v7651 = vand.u32 %v7097, 2147483648
        %v7652 = vsel %vm7650, %v7651, %v7649
        %v7653 = vrsqrt.pop %v7098
        %v7654 = vmul.f32 %v7098, %v7653
        %vm7655 = vcmp.eq.f32.partialorder %v7098, inf
        %v7656 = vsel %vm7655, %v7098, %v7654
        %vm7657 = vcmp.eq.f32.partialorder %v7098, 0.0
        %v7658 = vand.u32 %v7098, 2147483648
        %v7659 = vsel %vm7657, %v7658, %v7656
        %v7660 = vrsqrt.pop %v7099
        %v7661 = vmul.f32 %v7099, %v7660
        %vm7662 = vcmp.eq.f32.partialorder %v7099, inf
        %v7663 = vsel %vm7662, %v7099, %v7661
        %vm7664 = vcmp.eq.f32.partialorder %v7099, 0.0
        %v7665 = vand.u32 %v7099, 2147483648
        %v7666 = vsel %vm7664, %v7665, %v7663
        %v7667 = vrsqrt.pop %v7100
        %v7668 = vmul.f32 %v7100, %v7667
        %vm7669 = vcmp.eq.f32.partialorder %v7100, inf
        %v7670 = vsel %vm7669, %v7100, %v7668
        %vm7671 = vcmp.eq.f32.partialorder %v7100, 0.0
        %v7672 = vand.u32 %v7100, 2147483648
        %v7673 = vsel %vm7671, %v7672, %v7670
        %v7674 = vrsqrt.pop %v7101
        %v7675 = vmul.f32 %v7101, %v7674
        %vm7676 = vcmp.eq.f32.partialorder %v7101, inf
        %v7677 = vsel %vm7676, %v7101, %v7675
        %vm7678 = vcmp.eq.f32.partialorder %v7101, 0.0
        %v7679 = vand.u32 %v7101, 2147483648
        %v7680 = vsel %vm7678, %v7679, %v7677
        %v7681 = vrsqrt.pop %v7102
        %v7682 = vmul.f32 %v7102, %v7681
        %vm7683 = vcmp.eq.f32.partialorder %v7102, inf
        %v7684 = vsel %vm7683, %v7102, %v7682
        %vm7685 = vcmp.eq.f32.partialorder %v7102, 0.0
        %v7686 = vand.u32 %v7102, 2147483648
        %v7687 = vsel %vm7685, %v7686, %v7684
        %v7816 = vand.u32 %v6720, 2147483648
        %v7817 = vand.u32 %v6722, 2147483648
        %v7818 = vand.u32 %v6833, 2147483648
        %v7819 = vand.u32 %v6835, 2147483648
        %v7820 = vand.u32 %v6724, 2147483648
        %v7821 = vand.u32 %v6726, 2147483648
        %v7822 = vand.u32 %v6837, 2147483648
        %v7823 = vand.u32 %v6839, 2147483648
        %v7824 = vand.u32 %v6730, 2147483648
        %v7825 = vand.u32 %v6732, 2147483648
        %v7826 = vand.u32 %v6843, 2147483648
        %v7827 = vand.u32 %v6845, 2147483648
        %v7828 = vand.u32 %v6734, 2147483648
        %v7829 = vand.u32 %v6736, 2147483648
        %v7830 = vand.u32 %v6847, 2147483648
        %v7831 = vand.u32 %v6849, 2147483648
        %v7832 = vand.u32 %v6740, 2147483648
        %v7833 = vand.u32 %v6742, 2147483648
        %v7834 = vand.u32 %v6853, 2147483648
        %v7835 = vand.u32 %v6855, 2147483648
        %v7836 = vand.u32 %v6744, 2147483648
        %v7837 = vand.u32 %v6746, 2147483648
        %v7838 = vand.u32 %v6857, 2147483648
        %v7839 = vand.u32 %v6859, 2147483648
        %v7840 = vand.u32 %v6750, 2147483648
        %v7841 = vand.u32 %v6752, 2147483648
        %v7842 = vand.u32 %v6863, 2147483648
        %v7843 = vand.u32 %v6865, 2147483648
        %v7844 = vand.u32 %v6754, 2147483648
        %v7845 = vand.u32 %v6756, 2147483648
        %v7846 = vand.u32 %v6867, 2147483648
        %v7847 = vand.u32 %v6869, 2147483648
        %v7848 = vand.u32 %v6760, 2147483648
        %v7849 = vand.u32 %v6762, 2147483648
        %v7850 = vand.u32 %v6873, 2147483648
        %v7851 = vand.u32 %v6875, 2147483648
        %v7852 = vand.u32 %v6764, 2147483648
        %v7853 = vand.u32 %v6766, 2147483648
        %v7854 = vand.u32 %v6877, 2147483648
        %v7855 = vand.u32 %v6879, 2147483648
        %v7856 = vand.u32 %v6770, 2147483648
        %v7857 = vand.u32 %v6772, 2147483648
        %v7858 = vand.u32 %v6883, 2147483648
        %v7859 = vand.u32 %v6885, 2147483648
        %v7860 = vand.u32 %v6774, 2147483648
        %v7861 = vand.u32 %v6776, 2147483648
        %v7862 = vand.u32 %v6887, 2147483648
        %v7863 = vand.u32 %v6889, 2147483648
        %v7864 = vand.u32 %v6780, 2147483648
        %v7865 = vand.u32 %v6782, 2147483648
        %v7866 = vand.u32 %v6893, 2147483648
        %v7867 = vand.u32 %v6895, 2147483648
        %v7868 = vand.u32 %v6784, 2147483648
        %v7869 = vand.u32 %v6786, 2147483648
        %v7870 = vand.u32 %v6897, 2147483648
        %v7871 = vand.u32 %v6899, 2147483648
        %v7872 = vand.u32 %v6790, 2147483648
        %v7873 = vand.u32 %v6792, 2147483648
        %v7874 = vand.u32 %v6903, 2147483648
        %v7875 = vand.u32 %v6905, 2147483648
        %v7876 = vand.u32 %v6794, 2147483648
        %v7877 = vand.u32 %v6796, 2147483648
        %v7878 = vand.u32 %v6907, 2147483648
        %v7879 = vand.u32 %v6909, 2147483648
        %v7880 = vor.u32 %v7246, %v7816
        %v7881 = vor.u32 %v7253, %v7817
        %v7882 = vor.u32 %v7260, %v7818
        %v7883 = vor.u32 %v7267, %v7819
        %v7884 = vor.u32 %v7274, %v7820
        %v7885 = vor.u32 %v7281, %v7821
        %v7886 = vor.u32 %v7288, %v7822
        %v7887 = vor.u32 %v7295, %v7823
        %v7888 = vor.u32 %v7302, %v7824
        %v7889 = vor.u32 %v7309, %v7825
        %v7890 = vor.u32 %v7316, %v7826
        %v7891 = vor.u32 %v7323, %v7827
        %v7892 = vor.u32 %v7330, %v7828
        %v7893 = vor.u32 %v7337, %v7829
        %v7894 = vor.u32 %v7344, %v7830
        %v7895 = vor.u32 %v7351, %v7831
        %v7896 = vor.u32 %v7358, %v7832
        %v7897 = vor.u32 %v7365, %v7833
        %v7898 = vor.u32 %v7372, %v7834
        %v7899 = vor.u32 %v7379, %v7835
        %v7900 = vor.u32 %v7386, %v7836
        %v7901 = vor.u32 %v7393, %v7837
        %v7902 = vor.u32 %v7400, %v7838
        %v7903 = vor.u32 %v7407, %v7839
        %v7904 = vor.u32 %v7414, %v7840
        %v7905 = vor.u32 %v7421, %v7841
        %v7906 = vor.u32 %v7428, %v7842
        %v7907 = vor.u32 %v7435, %v7843
        %v7908 = vor.u32 %v7442, %v7844
        %v7909 = vor.u32 %v7449, %v7845
        %v7910 = vor.u32 %v7456, %v7846
        %v7911 = vor.u32 %v7463, %v7847
        %v7912 = vor.u32 %v7470, %v7848
        %v7913 = vor.u32 %v7477, %v7849
        %v7914 = vor.u32 %v7484, %v7850
        %v7915 = vor.u32 %v7491, %v7851
        %v7916 = vor.u32 %v7498, %v7852
        %v7917 = vor.u32 %v7505, %v7853
        %v7918 = vor.u32 %v7512, %v7854
        %v7919 = vor.u32 %v7519, %v7855
        %v7920 = vor.u32 %v7526, %v7856
        %v7921 = vor.u32 %v7533, %v7857
        %v7922 = vor.u32 %v7540, %v7858
        %v7923 = vor.u32 %v7547, %v7859
        %v7924 = vor.u32 %v7554, %v7860
        %v7925 = vor.u32 %v7561, %v7861
        %v7926 = vor.u32 %v7568, %v7862
        %v7927 = vor.u32 %v7575, %v7863
        %v7928 = vor.u32 %v7582, %v7864
        %v7929 = vor.u32 %v7589, %v7865
        %v7930 = vor.u32 %v7596, %v7866
        %v7931 = vor.u32 %v7603, %v7867
        %v7932 = vor.u32 %v7610, %v7868
        %v7933 = vor.u32 %v7617, %v7869
        %v7934 = vor.u32 %v7624, %v7870
        %v7935 = vor.u32 %v7631, %v7871
        %v7936 = vor.u32 %v7638, %v7872
        %v7937 = vor.u32 %v7645, %v7873
        %v7938 = vor.u32 %v7652, %v7874
        %v7939 = vor.u32 %v7659, %v7875
        %v7940 = vor.u32 %v7666, %v7876
        %v7941 = vor.u32 %v7673, %v7877
        %v7942 = vor.u32 %v7680, %v7878
        %v7943 = vor.u32 %v7687, %v7879
        %v8008 = vsel %vm6911, 0.0, %v7880
        %v8009 = vsel %vm6912, 0.0, %v7881
        %v8010 = vsel %vm6913, 0.0, %v7882
        %v8011 = vsel %vm6914, 0.0, %v7883
        %v8012 = vsel %vm6915, 0.0, %v7884
        %v8013 = vsel %vm6916, 0.0, %v7885
        %v8014 = vsel %vm6917, 0.0, %v7886
        %v8015 = vsel %vm6918, 0.0, %v7887
        %v8016 = vsel %vm6919, 0.0, %v7888
        %v8017 = vsel %vm6920, 0.0, %v7889
        %v8018 = vsel %vm6921, 0.0, %v7890
        %v8019 = vsel %vm6922, 0.0, %v7891
        %v8020 = vsel %vm6923, 0.0, %v7892
        %v8021 = vsel %vm6924, 0.0, %v7893
        %v8022 = vsel %vm6925, 0.0, %v7894
        %v8023 = vsel %vm6926, 0.0, %v7895
        %v8024 = vsel %vm6927, 0.0, %v7896
        %v8025 = vsel %vm6928, 0.0, %v7897
        %v8026 = vsel %vm6929, 0.0, %v7898
        %v8027 = vsel %vm6930, 0.0, %v7899
        %v8028 = vsel %vm6931, 0.0, %v7900
        %v8029 = vsel %vm6932, 0.0, %v7901
        %v8030 = vsel %vm6933, 0.0, %v7902
        %v8031 = vsel %vm6934, 0.0, %v7903
        %v8032 = vsel %vm6935, 0.0, %v7904
        %v8033 = vsel %vm6936, 0.0, %v7905
        %v8034 = vsel %vm6937, 0.0, %v7906
        %v8035 = vsel %vm6938, 0.0, %v7907
        %v8036 = vsel %vm6939, 0.0, %v7908
        %v8037 = vsel %vm6940, 0.0, %v7909
        %v8038 = vsel %vm6941, 0.0, %v7910
        %v8039 = vsel %vm6942, 0.0, %v7911
        %v8040 = vsel %vm6943, 0.0, %v7912
        %v8041 = vsel %vm6944, 0.0, %v7913
        %v8042 = vsel %vm6945, 0.0, %v7914
        %v8043 = vsel %vm6946, 0.0, %v7915
        %v8044 = vsel %vm6947, 0.0, %v7916
        %v8045 = vsel %vm6948, 0.0, %v7917
        %v8046 = vsel %vm6949, 0.0, %v7918
        %v8047 = vsel %vm6950, 0.0, %v7919
        %v8048 = vsel %vm6951, 0.0, %v7920
        %v8049 = vsel %vm6952, 0.0, %v7921
        %v8050 = vsel %vm6953, 0.0, %v7922
        %v8051 = vsel %vm6954, 0.0, %v7923
        %v8052 = vsel %vm6955, 0.0, %v7924
        %v8053 = vsel %vm6956, 0.0, %v7925
        %v8054 = vsel %vm6957, 0.0, %v7926
        %v8055 = vsel %vm6958, 0.0, %v7927
        %v8056 = vsel %vm6959, 0.0, %v7928
        %v8057 = vsel %vm6960, 0.0, %v7929
        %v8058 = vsel %vm6961, 0.0, %v7930
        %v8059 = vsel %vm6962, 0.0, %v7931
        %v8060 = vsel %vm6963, 0.0, %v7932
        %v8061 = vsel %vm6964, 0.0, %v7933
        %v8062 = vsel %vm6965, 0.0, %v7934
        %v8063 = vsel %vm6966, 0.0, %v7935
        %v8064 = vsel %vm6967, 0.0, %v7936
        %v8065 = vsel %vm6968, 0.0, %v7937
        %v8066 = vsel %vm6969, 0.0, %v7938
        %v8067 = vsel %vm6970, 0.0, %v7939
        %v8068 = vsel %vm6971, 0.0, %v7940
        %v8069 = vsel %vm6972, 0.0, %v7941
        %v8070 = vsel %vm6973, 0.0, %v7942
        %v8071 = vsel %vm6974, 0.0, %v7943
        %v8072 = vld [vmem:[%s1 + $0x300] sm:$0xff]
        %v8073 = vld [vmem:[%s1 + $0x308] sm:$0xff]
        %v8074 = vld [vmem:[%s1 + $0x310] sm:$0xff]
        %v8075 = vld [vmem:[%s1 + $0x318] sm:$0xff]
        %v8076 = vld [vmem:[%s1 + $0x320] sm:$0xff]
        %v8077 = vld [vmem:[%s1 + $0x328] sm:$0xff]
        %v8078 = vld [vmem:[%s1 + $0x330] sm:$0xff]
        %v8079 = vld [vmem:[%s1 + $0x338] sm:$0xff]
        %v8080 = vld [vmem:[%s1 + $0x340] sm:$0xff]
        %v8081 = vld [vmem:[%s1 + $0x348] sm:$0xff]
        %v8082 = vld [vmem:[%s1 + $0x350] sm:$0xff]
        %v8083 = vld [vmem:[%s1 + $0x358] sm:$0xff]
        %v8084 = vld [vmem:[%s1 + $0x360] sm:$0xff]
        %v8085 = vld [vmem:[%s1 + $0x368] sm:$0xff]
        %v8086 = vld [vmem:[%s1 + $0x370] sm:$0xff]
        %v8087 = vld [vmem:[%s1 + $0x378] sm:$0xff]
        %v8088 = vld [vmem:[%s1 + $0x380] sm:$0xff]
        %v8089 = vld [vmem:[%s1 + $0x388] sm:$0xff]
        %v8090 = vld [vmem:[%s1 + $0x390] sm:$0xff]
        %v8091 = vld [vmem:[%s1 + $0x398] sm:$0xff]
        %v8092 = vld [vmem:[%s1 + $0x3a0] sm:$0xff]
        %v8093 = vld [vmem:[%s1 + $0x3a8] sm:$0xff]
        %v8094 = vld [vmem:[%s1 + $0x3b0] sm:$0xff]
        %v8095 = vld [vmem:[%s1 + $0x3b8] sm:$0xff]
        %v8096 = vld [vmem:[%s1 + $0x3c0] sm:$0xff]
        %v8097 = vld [vmem:[%s1 + $0x3c8] sm:$0xff]
        %v8098 = vld [vmem:[%s1 + $0x3d0] sm:$0xff]
        %v8099 = vld [vmem:[%s1 + $0x3d8] sm:$0xff]
        %v8100 = vld [vmem:[%s1 + $0x3e0] sm:$0xff]
        %v8101 = vld [vmem:[%s1 + $0x3e8] sm:$0xff]
        %v8102 = vld [vmem:[%s1 + $0x3f0] sm:$0xff]
        %v8103 = vld [vmem:[%s1 + $0x3f8] sm:$0xff]
        %v8104 = vunpack.c.l.bf16 %v8072
        %v8105 = vunpack.c.h.bf16 %v8072
        %v8106 = vunpack.c.l.bf16 %v8073
        %v8107 = vunpack.c.h.bf16 %v8073
        %v8108 = vunpack.c.l.bf16 %v8074
        %v8109 = vunpack.c.h.bf16 %v8074
        %v8110 = vunpack.c.l.bf16 %v8075
        %v8111 = vunpack.c.h.bf16 %v8075
        %v8112 = vunpack.c.l.bf16 %v8076
        %v8113 = vunpack.c.h.bf16 %v8076
        %v8114 = vunpack.c.l.bf16 %v8077
        %v8115 = vunpack.c.h.bf16 %v8077
        %v8116 = vunpack.c.l.bf16 %v8078
        %v8117 = vunpack.c.h.bf16 %v8078
        %v8118 = vunpack.c.l.bf16 %v8079
        %v8119 = vunpack.c.h.bf16 %v8079
        %v8120 = vunpack.c.l.bf16 %v8080
        %v8121 = vunpack.c.h.bf16 %v8080
        %v8122 = vunpack.c.l.bf16 %v8081
        %v8123 = vunpack.c.h.bf16 %v8081
        %v8124 = vunpack.c.l.bf16 %v8082
        %v8125 = vunpack.c.h.bf16 %v8082
        %v8126 = vunpack.c.l.bf16 %v8083
        %v8127 = vunpack.c.h.bf16 %v8083
        %v8128 = vunpack.c.l.bf16 %v8084
        %v8129 = vunpack.c.h.bf16 %v8084
        %v8130 = vunpack.c.l.bf16 %v8085
        %v8131 = vunpack.c.h.bf16 %v8085
        %v8132 = vunpack.c.l.bf16 %v8086
        %v8133 = vunpack.c.h.bf16 %v8086
        %v8134 = vunpack.c.l.bf16 %v8087
        %v8135 = vunpack.c.h.bf16 %v8087
        %v8136 = vunpack.c.l.bf16 %v8088
        %v8137 = vunpack.c.h.bf16 %v8088
        %v8138 = vunpack.c.l.bf16 %v8089
        %v8139 = vunpack.c.h.bf16 %v8089
        %v8140 = vunpack.c.l.bf16 %v8090
        %v8141 = vunpack.c.h.bf16 %v8090
        %v8142 = vunpack.c.l.bf16 %v8091
        %v8143 = vunpack.c.h.bf16 %v8091
        %v8144 = vunpack.c.l.bf16 %v8092
        %v8145 = vunpack.c.h.bf16 %v8092
        %v8146 = vunpack.c.l.bf16 %v8093
        %v8147 = vunpack.c.h.bf16 %v8093
        %v8148 = vunpack.c.l.bf16 %v8094
        %v8149 = vunpack.c.h.bf16 %v8094
        %v8150 = vunpack.c.l.bf16 %v8095
        %v8151 = vunpack.c.h.bf16 %v8095
        %v8152 = vunpack.c.l.bf16 %v8096
        %v8153 = vunpack.c.h.bf16 %v8096
        %v8154 = vunpack.c.l.bf16 %v8097
        %v8155 = vunpack.c.h.bf16 %v8097
        %v8156 = vunpack.c.l.bf16 %v8098
        %v8157 = vunpack.c.h.bf16 %v8098
        %v8158 = vunpack.c.l.bf16 %v8099
        %v8159 = vunpack.c.h.bf16 %v8099
        %v8160 = vunpack.c.l.bf16 %v8100
        %v8161 = vunpack.c.h.bf16 %v8100
        %v8162 = vunpack.c.l.bf16 %v8101
        %v8163 = vunpack.c.h.bf16 %v8101
        %v8164 = vunpack.c.l.bf16 %v8102
        %v8165 = vunpack.c.h.bf16 %v8102
        %v8166 = vunpack.c.l.bf16 %v8103
        %v8167 = vunpack.c.h.bf16 %v8103
        %v8168 = vmul.f32 %v8008, %v8104
        %v8169 = vmul.f32 %v8009, %v8105
        %v8170 = vmul.f32 %v8010, %v8106
        %v8171 = vmul.f32 %v8011, %v8107
        %v8172 = vmul.f32 %v8012, %v8108
        %v8173 = vmul.f32 %v8013, %v8109
        %v8174 = vmul.f32 %v8014, %v8110
        %v8175 = vmul.f32 %v8015, %v8111
        %v8176 = vmul.f32 %v8016, %v8112
        %v8177 = vmul.f32 %v8017, %v8113
        %v8178 = vmul.f32 %v8018, %v8114
        %v8179 = vmul.f32 %v8019, %v8115
        %v8180 = vmul.f32 %v8020, %v8116
        %v8181 = vmul.f32 %v8021, %v8117
        %v8182 = vmul.f32 %v8022, %v8118
        %v8183 = vmul.f32 %v8023, %v8119
        %v8184 = vmul.f32 %v8024, %v8120
        %v8185 = vmul.f32 %v8025, %v8121
        %v8186 = vmul.f32 %v8026, %v8122
        %v8187 = vmul.f32 %v8027, %v8123
        %v8188 = vmul.f32 %v8028, %v8124
        %v8189 = vmul.f32 %v8029, %v8125
        %v8190 = vmul.f32 %v8030, %v8126
        %v8191 = vmul.f32 %v8031, %v8127
        %v8192 = vmul.f32 %v8032, %v8128
        %v8193 = vmul.f32 %v8033, %v8129
        %v8194 = vmul.f32 %v8034, %v8130
        %v8195 = vmul.f32 %v8035, %v8131
        %v8196 = vmul.f32 %v8036, %v8132
        %v8197 = vmul.f32 %v8037, %v8133
        %v8198 = vmul.f32 %v8038, %v8134
        %v8199 = vmul.f32 %v8039, %v8135
        %v8200 = vmul.f32 %v8040, %v8136
        %v8201 = vmul.f32 %v8041, %v8137
        %v8202 = vmul.f32 %v8042, %v8138
        %v8203 = vmul.f32 %v8043, %v8139
        %v8204 = vmul.f32 %v8044, %v8140
        %v8205 = vmul.f32 %v8045, %v8141
        %v8206 = vmul.f32 %v8046, %v8142
        %v8207 = vmul.f32 %v8047, %v8143
        %v8208 = vmul.f32 %v8048, %v8144
        %v8209 = vmul.f32 %v8049, %v8145
        %v8210 = vmul.f32 %v8050, %v8146
        %v8211 = vmul.f32 %v8051, %v8147
        %v8212 = vmul.f32 %v8052, %v8148
        %v8213 = vmul.f32 %v8053, %v8149
        %v8214 = vmul.f32 %v8054, %v8150
        %v8215 = vmul.f32 %v8055, %v8151
        %v8216 = vmul.f32 %v8056, %v8152
        %v8217 = vmul.f32 %v8057, %v8153
        %v8218 = vmul.f32 %v8058, %v8154
        %v8219 = vmul.f32 %v8059, %v8155
        %v8220 = vmul.f32 %v8060, %v8156
        %v8221 = vmul.f32 %v8061, %v8157
        %v8222 = vmul.f32 %v8062, %v8158
        %v8223 = vmul.f32 %v8063, %v8159
        %v8224 = vmul.f32 %v8064, %v8160
        %v8225 = vmul.f32 %v8065, %v8161
        %v8226 = vmul.f32 %v8066, %v8162
        %v8227 = vmul.f32 %v8067, %v8163
        %v8228 = vmul.f32 %v8068, %v8164
        %v8229 = vmul.f32 %v8069, %v8165
        %v8230 = vmul.f32 %v8070, %v8166
        %v8231 = vmul.f32 %v8071, %v8167
        %v8232 = vadd.f32 %v8168, %v8169
        %v8233 = vadd.f32 %v8232, %v8170
        %v8234 = vadd.f32 %v8233, %v8171
        %v8235 = vadd.f32 %v8234, %v8172
        %v8236 = vadd.f32 %v8235, %v8173
        %v8237 = vadd.f32 %v8236, %v8174
        %v8238 = vadd.f32 %v8237, %v8175
        %v8239 = vadd.f32 %v8238, %v8176
        %v8240 = vadd.f32 %v8239, %v8177
        %v8241 = vadd.f32 %v8240, %v8178
        %v8242 = vadd.f32 %v8241, %v8179
        %v8243 = vadd.f32 %v8242, %v8180
        %v8244 = vadd.f32 %v8243, %v8181
        %v8245 = vadd.f32 %v8244, %v8182
        %v8246 = vadd.f32 %v8245, %v8183
        %v8247 = vadd.f32 %v8246, %v8184
        %v8248 = vadd.f32 %v8247, %v8185
        %v8249 = vadd.f32 %v8248, %v8186
        %v8250 = vadd.f32 %v8249, %v8187
        %v8251 = vadd.f32 %v8250, %v8188
        %v8252 = vadd.f32 %v8251, %v8189
        %v8253 = vadd.f32 %v8252, %v8190
        %v8254 = vadd.f32 %v8253, %v8191
        %v8255 = vadd.f32 %v8254, %v8192
        %v8256 = vadd.f32 %v8255, %v8193
        %v8257 = vadd.f32 %v8256, %v8194
        %v8258 = vadd.f32 %v8257, %v8195
        %v8259 = vadd.f32 %v8258, %v8196
        %v8260 = vadd.f32 %v8259, %v8197
        %v8261 = vadd.f32 %v8260, %v8198
        %v8262 = vadd.f32 %v8261, %v8199
        %v8263 = vadd.f32 %v8262, %v8200
        %v8264 = vadd.f32 %v8263, %v8201
        %v8265 = vadd.f32 %v8264, %v8202
        %v8266 = vadd.f32 %v8265, %v8203
        %v8267 = vadd.f32 %v8266, %v8204
        %v8268 = vadd.f32 %v8267, %v8205
        %v8269 = vadd.f32 %v8268, %v8206
        %v8270 = vadd.f32 %v8269, %v8207
        %v8271 = vadd.f32 %v8270, %v8208
        %v8272 = vadd.f32 %v8271, %v8209
        %v8273 = vadd.f32 %v8272, %v8210
        %v8274 = vadd.f32 %v8273, %v8211
        %v8275 = vadd.f32 %v8274, %v8212
        %v8276 = vadd.f32 %v8275, %v8213
        %v8277 = vadd.f32 %v8276, %v8214
        %v8278 = vadd.f32 %v8277, %v8215
        %v8279 = vadd.f32 %v8278, %v8216
        %v8280 = vadd.f32 %v8279, %v8217
        %v8281 = vadd.f32 %v8280, %v8218
        %v8282 = vadd.f32 %v8281, %v8219
        %v8283 = vadd.f32 %v8282, %v8220
        %v8284 = vadd.f32 %v8283, %v8221
        %v8285 = vadd.f32 %v8284, %v8222
        %v8286 = vadd.f32 %v8285, %v8223
        %v8287 = vadd.f32 %v8286, %v8224
        %v8288 = vadd.f32 %v8287, %v8225
        %v8289 = vadd.f32 %v8288, %v8226
        %v8290 = vadd.f32 %v8289, %v8227
        %v8291 = vadd.f32 %v8290, %v8228
        %v8292 = vadd.f32 %v8291, %v8229
        %v8293 = vadd.f32 %v8292, %v8230
        %v8294 = vadd.f32 %v8293, %v8231
        %8295 = vadd.xlane.f32.xlu0 %v8294
        %v8296 = vpop.xlane.xlu0 %8295
        %v8297 = vrot.slane %v8296, 4
        %v8298 = vadd.f32 %v8296, %v8297
        %v8299 = vrot.slane %v8298, 2
        %v8300 = vadd.f32 %v8298, %v8299
        %v8301 = vrot.slane %v8300, 1
        %v8302 = vadd.f32 %v8300, %v8301
        %s8303 = vtos %v8302
        %s8304 = sadd.f32 %s6218, %s8303
        %v8305 = vld [vmem:[%s2045 + $0x300] sm:$0xff]
        %v8306 = vld [vmem:[%s2045 + $0x308] sm:$0xff]
        %v8307 = vld [vmem:[%s2045 + $0x310] sm:$0xff]
        %v8308 = vld [vmem:[%s2045 + $0x318] sm:$0xff]
        %v8309 = vld [vmem:[%s2045 + $0x320] sm:$0xff]
        %v8310 = vld [vmem:[%s2045 + $0x328] sm:$0xff]
        %v8311 = vld [vmem:[%s2045 + $0x330] sm:$0xff]
        %v8312 = vld [vmem:[%s2045 + $0x338] sm:$0xff]
        %v8313 = vld [vmem:[%s2045 + $0x340] sm:$0xff]
        %v8314 = vld [vmem:[%s2045 + $0x348] sm:$0xff]
        %v8315 = vld [vmem:[%s2045 + $0x350] sm:$0xff]
        %v8316 = vld [vmem:[%s2045 + $0x358] sm:$0xff]
        %v8317 = vld [vmem:[%s2045 + $0x360] sm:$0xff]
        %v8318 = vld [vmem:[%s2045 + $0x368] sm:$0xff]
        %v8319 = vld [vmem:[%s2045 + $0x370] sm:$0xff]
        %v8320 = vld [vmem:[%s2045 + $0x378] sm:$0xff]
        %v8321 = vld [vmem:[%s2045 + $0x380] sm:$0xff]
        %v8322 = vld [vmem:[%s2045 + $0x388] sm:$0xff]
        %v8323 = vld [vmem:[%s2045 + $0x390] sm:$0xff]
        %v8324 = vld [vmem:[%s2045 + $0x398] sm:$0xff]
        %v8325 = vld [vmem:[%s2045 + $0x3a0] sm:$0xff]
        %v8326 = vld [vmem:[%s2045 + $0x3a8] sm:$0xff]
        %v8327 = vld [vmem:[%s2045 + $0x3b0] sm:$0xff]
        %v8328 = vld [vmem:[%s2045 + $0x3b8] sm:$0xff]
        %v8329 = vld [vmem:[%s2045 + $0x3c0] sm:$0xff]
        %v8330 = vld [vmem:[%s2045 + $0x3c8] sm:$0xff]
        %v8331 = vld [vmem:[%s2045 + $0x3d0] sm:$0xff]
        %v8332 = vld [vmem:[%s2045 + $0x3d8] sm:$0xff]
        %v8333 = vld [vmem:[%s2045 + $0x3e0] sm:$0xff]
        %v8334 = vld [vmem:[%s2045 + $0x3e8] sm:$0xff]
        %v8335 = vld [vmem:[%s2045 + $0x3f0] sm:$0xff]
        %v8336 = vld [vmem:[%s2045 + $0x3f8] sm:$0xff]
        %v8337 = vunpack.c.l.bf16 %v8305
        %v8338 = vunpack.c.h.bf16 %v8305
        %v8339 = vunpack.c.l.bf16 %v8306
        %v8340 = vunpack.c.h.bf16 %v8306
        %v8341 = vunpack.c.l.bf16 %v8307
        %v8342 = vunpack.c.h.bf16 %v8307
        %v8343 = vunpack.c.l.bf16 %v8308
        %v8344 = vunpack.c.h.bf16 %v8308
        %v8345 = vunpack.c.l.bf16 %v8309
        %v8346 = vunpack.c.h.bf16 %v8309
        %v8347 = vunpack.c.l.bf16 %v8310
        %v8348 = vunpack.c.h.bf16 %v8310
        %v8349 = vunpack.c.l.bf16 %v8311
        %v8350 = vunpack.c.h.bf16 %v8311
        %v8351 = vunpack.c.l.bf16 %v8312
        %v8352 = vunpack.c.h.bf16 %v8312
        %v8353 = vunpack.c.l.bf16 %v8313
        %v8354 = vunpack.c.h.bf16 %v8313
        %v8355 = vunpack.c.l.bf16 %v8314
        %v8356 = vunpack.c.h.bf16 %v8314
        %v8357 = vunpack.c.l.bf16 %v8315
        %v8358 = vunpack.c.h.bf16 %v8315
        %v8359 = vunpack.c.l.bf16 %v8316
        %v8360 = vunpack.c.h.bf16 %v8316
        %v8361 = vunpack.c.l.bf16 %v8317
        %v8362 = vunpack.c.h.bf16 %v8317
        %v8363 = vunpack.c.l.bf16 %v8318
        %v8364 = vunpack.c.h.bf16 %v8318
        %v8365 = vunpack.c.l.bf16 %v8319
        %v8366 = vunpack.c.h.bf16 %v8319
        %v8367 = vunpack.c.l.bf16 %v8320
        %v8368 = vunpack.c.h.bf16 %v8320
        %v8369 = vunpack.c.l.bf16 %v8321
        %v8370 = vunpack.c.h.bf16 %v8321
        %v8371 = vunpack.c.l.bf16 %v8322
        %v8372 = vunpack.c.h.bf16 %v8322
        %v8373 = vunpack.c.l.bf16 %v8323
        %v8374 = vunpack.c.h.bf16 %v8323
        %v8375 = vunpack.c.l.bf16 %v8324
        %v8376 = vunpack.c.h.bf16 %v8324
        %v8377 = vunpack.c.l.bf16 %v8325
        %v8378 = vunpack.c.h.bf16 %v8325
        %v8379 = vunpack.c.l.bf16 %v8326
        %v8380 = vunpack.c.h.bf16 %v8326
        %v8381 = vunpack.c.l.bf16 %v8327
        %v8382 = vunpack.c.h.bf16 %v8327
        %v8383 = vunpack.c.l.bf16 %v8328
        %v8384 = vunpack.c.h.bf16 %v8328
        %v8385 = vunpack.c.l.bf16 %v8329
        %v8386 = vunpack.c.h.bf16 %v8329
        %v8387 = vunpack.c.l.bf16 %v8330
        %v8388 = vunpack.c.h.bf16 %v8330
        %v8389 = vunpack.c.l.bf16 %v8331
        %v8390 = vunpack.c.h.bf16 %v8331
        %v8391 = vunpack.c.l.bf16 %v8332
        %v8392 = vunpack.c.h.bf16 %v8332
        %v8393 = vunpack.c.l.bf16 %v8333
        %v8394 = vunpack.c.h.bf16 %v8333
        %v8395 = vunpack.c.l.bf16 %v8334
        %v8396 = vunpack.c.h.bf16 %v8334
        %v8397 = vunpack.c.l.bf16 %v8335
        %v8398 = vunpack.c.h.bf16 %v8335
        %v8399 = vunpack.c.l.bf16 %v8336
        %v8400 = vunpack.c.h.bf16 %v8336
        %v8401 = vmul.f32 %v8008, %v8337
        %v8402 = vmul.f32 %v8009, %v8338
        %v8403 = vmul.f32 %v8010, %v8339
        %v8404 = vmul.f32 %v8011, %v8340
        %v8405 = vmul.f32 %v8012, %v8341
        %v8406 = vmul.f32 %v8013, %v8342
        %v8407 = vmul.f32 %v8014, %v8343
        %v8408 = vmul.f32 %v8015, %v8344
        %v8409 = vmul.f32 %v8016, %v8345
        %v8410 = vmul.f32 %v8017, %v8346
        %v8411 = vmul.f32 %v8018, %v8347
        %v8412 = vmul.f32 %v8019, %v8348
        %v8413 = vmul.f32 %v8020, %v8349
        %v8414 = vmul.f32 %v8021, %v8350
        %v8415 = vmul.f32 %v8022, %v8351
        %v8416 = vmul.f32 %v8023, %v8352
        %v8417 = vmul.f32 %v8024, %v8353
        %v8418 = vmul.f32 %v8025, %v8354
        %v8419 = vmul.f32 %v8026, %v8355
        %v8420 = vmul.f32 %v8027, %v8356
        %v8421 = vmul.f32 %v8028, %v8357
        %v8422 = vmul.f32 %v8029, %v8358
        %v8423 = vmul.f32 %v8030, %v8359
        %v8424 = vmul.f32 %v8031, %v8360
        %v8425 = vmul.f32 %v8032, %v8361
        %v8426 = vmul.f32 %v8033, %v8362
        %v8427 = vmul.f32 %v8034, %v8363
        %v8428 = vmul.f32 %v8035, %v8364
        %v8429 = vmul.f32 %v8036, %v8365
        %v8430 = vmul.f32 %v8037, %v8366
        %v8431 = vmul.f32 %v8038, %v8367
        %v8432 = vmul.f32 %v8039, %v8368
        %v8433 = vmul.f32 %v8040, %v8369
        %v8434 = vmul.f32 %v8041, %v8370
        %v8435 = vmul.f32 %v8042, %v8371
        %v8436 = vmul.f32 %v8043, %v8372
        %v8437 = vmul.f32 %v8044, %v8373
        %v8438 = vmul.f32 %v8045, %v8374
        %v8439 = vmul.f32 %v8046, %v8375
        %v8440 = vmul.f32 %v8047, %v8376
        %v8441 = vmul.f32 %v8048, %v8377
        %v8442 = vmul.f32 %v8049, %v8378
        %v8443 = vmul.f32 %v8050, %v8379
        %v8444 = vmul.f32 %v8051, %v8380
        %v8445 = vmul.f32 %v8052, %v8381
        %v8446 = vmul.f32 %v8053, %v8382
        %v8447 = vmul.f32 %v8054, %v8383
        %v8448 = vmul.f32 %v8055, %v8384
        %v8449 = vmul.f32 %v8056, %v8385
        %v8450 = vmul.f32 %v8057, %v8386
        %v8451 = vmul.f32 %v8058, %v8387
        %v8452 = vmul.f32 %v8059, %v8388
        %v8453 = vmul.f32 %v8060, %v8389
        %v8454 = vmul.f32 %v8061, %v8390
        %v8455 = vmul.f32 %v8062, %v8391
        %v8456 = vmul.f32 %v8063, %v8392
        %v8457 = vmul.f32 %v8064, %v8393
        %v8458 = vmul.f32 %v8065, %v8394
        %v8459 = vmul.f32 %v8066, %v8395
        %v8460 = vmul.f32 %v8067, %v8396
        %v8461 = vmul.f32 %v8068, %v8397
        %v8462 = vmul.f32 %v8069, %v8398
        %v8463 = vmul.f32 %v8070, %v8399
        %v8464 = vmul.f32 %v8071, %v8400
        %v8465 = vadd.f32 %v8401, %v8402
        %v8466 = vadd.f32 %v8465, %v8403
        %v8467 = vadd.f32 %v8466, %v8404
        %v8468 = vadd.f32 %v8467, %v8405
        %v8469 = vadd.f32 %v8468, %v8406
        %v8470 = vadd.f32 %v8469, %v8407
        %v8471 = vadd.f32 %v8470, %v8408
        %v8472 = vadd.f32 %v8471, %v8409
        %v8473 = vadd.f32 %v8472, %v8410
        %v8474 = vadd.f32 %v8473, %v8411
        %v8475 = vadd.f32 %v8474, %v8412
        %v8476 = vadd.f32 %v8475, %v8413
        %v8477 = vadd.f32 %v8476, %v8414
        %v8478 = vadd.f32 %v8477, %v8415
        %v8479 = vadd.f32 %v8478, %v8416
        %v8480 = vadd.f32 %v8479, %v8417
        %v8481 = vadd.f32 %v8480, %v8418
        %v8482 = vadd.f32 %v8481, %v8419
        %v8483 = vadd.f32 %v8482, %v8420
        %v8484 = vadd.f32 %v8483, %v8421
        %v8485 = vadd.f32 %v8484, %v8422
        %v8486 = vadd.f32 %v8485, %v8423
        %v8487 = vadd.f32 %v8486, %v8424
        %v8488 = vadd.f32 %v8487, %v8425
        %v8489 = vadd.f32 %v8488, %v8426
        %v8490 = vadd.f32 %v8489, %v8427
        %v8491 = vadd.f32 %v8490, %v8428
        %v8492 = vadd.f32 %v8491, %v8429
        %v8493 = vadd.f32 %v8492, %v8430
        %v8494 = vadd.f32 %v8493, %v8431
        %v8495 = vadd.f32 %v8494, %v8432
        %v8496 = vadd.f32 %v8495, %v8433
        %v8497 = vadd.f32 %v8496, %v8434
        %v8498 = vadd.f32 %v8497, %v8435
        %v8499 = vadd.f32 %v8498, %v8436
        %v8500 = vadd.f32 %v8499, %v8437
        %v8501 = vadd.f32 %v8500, %v8438
        %v8502 = vadd.f32 %v8501, %v8439
        %v8503 = vadd.f32 %v8502, %v8440
        %v8504 = vadd.f32 %v8503, %v8441
        %v8505 = vadd.f32 %v8504, %v8442
        %v8506 = vadd.f32 %v8505, %v8443
        %v8507 = vadd.f32 %v8506, %v8444
        %v8508 = vadd.f32 %v8507, %v8445
        %v8509 = vadd.f32 %v8508, %v8446
        %v8510 = vadd.f32 %v8509, %v8447
        %v8511 = vadd.f32 %v8510, %v8448
        %v8512 = vadd.f32 %v8511, %v8449
        %v8513 = vadd.f32 %v8512, %v8450
        %v8514 = vadd.f32 %v8513, %v8451
        %v8515 = vadd.f32 %v8514, %v8452
        %v8516 = vadd.f32 %v8515, %v8453
        %v8517 = vadd.f32 %v8516, %v8454
        %v8518 = vadd.f32 %v8517, %v8455
        %v8519 = vadd.f32 %v8518, %v8456
        %v8520 = vadd.f32 %v8519, %v8457
        %v8521 = vadd.f32 %v8520, %v8458
        %v8522 = vadd.f32 %v8521, %v8459
        %v8523 = vadd.f32 %v8522, %v8460
        %v8524 = vadd.f32 %v8523, %v8461
        %v8525 = vadd.f32 %v8524, %v8462
        %v8526 = vadd.f32 %v8525, %v8463
        %v8527 = vadd.f32 %v8526, %v8464
        %8528 = vadd.xlane.f32.xlu0 %v8527
        %v8529 = vpop.xlane.xlu0 %8528
        %v8530 = vrot.slane %v8529, 4
        %v8531 = vadd.f32 %v8529, %v8530
        %v8532 = vrot.slane %v8531, 2
        %v8533 = vadd.f32 %v8531, %v8532
        %v8534 = vrot.slane %v8533, 1
        %v8535 = vadd.f32 %v8533, %v8534
        %s8536 = vtos %v8535
        %s8537 = sadd.f32 %s6451, %s8536
        %v8538 = vld [vmem:[%s2279 + $0x300] sm:$0xff]
        %v8539 = vld [vmem:[%s2279 + $0x308] sm:$0xff]
        %v8540 = vld [vmem:[%s2279 + $0x310] sm:$0xff]
        %v8541 = vld [vmem:[%s2279 + $0x318] sm:$0xff]
        %v8542 = vld [vmem:[%s2279 + $0x320] sm:$0xff]
        %v8543 = vld [vmem:[%s2279 + $0x328] sm:$0xff]
        %v8544 = vld [vmem:[%s2279 + $0x330] sm:$0xff]
        %v8545 = vld [vmem:[%s2279 + $0x338] sm:$0xff]
        %v8546 = vld [vmem:[%s2279 + $0x340] sm:$0xff]
        %v8547 = vld [vmem:[%s2279 + $0x348] sm:$0xff]
        %v8548 = vld [vmem:[%s2279 + $0x350] sm:$0xff]
        %v8549 = vld [vmem:[%s2279 + $0x358] sm:$0xff]
        %v8550 = vld [vmem:[%s2279 + $0x360] sm:$0xff]
        %v8551 = vld [vmem:[%s2279 + $0x368] sm:$0xff]
        %v8552 = vld [vmem:[%s2279 + $0x370] sm:$0xff]
        %v8553 = vld [vmem:[%s2279 + $0x378] sm:$0xff]
        %v8554 = vld [vmem:[%s2279 + $0x380] sm:$0xff]
        %v8555 = vld [vmem:[%s2279 + $0x388] sm:$0xff]
        %v8556 = vld [vmem:[%s2279 + $0x390] sm:$0xff]
        %v8557 = vld [vmem:[%s2279 + $0x398] sm:$0xff]
        %v8558 = vld [vmem:[%s2279 + $0x3a0] sm:$0xff]
        %v8559 = vld [vmem:[%s2279 + $0x3a8] sm:$0xff]
        %v8560 = vld [vmem:[%s2279 + $0x3b0] sm:$0xff]
        %v8561 = vld [vmem:[%s2279 + $0x3b8] sm:$0xff]
        %v8562 = vld [vmem:[%s2279 + $0x3c0] sm:$0xff]
        %v8563 = vld [vmem:[%s2279 + $0x3c8] sm:$0xff]
        %v8564 = vld [vmem:[%s2279 + $0x3d0] sm:$0xff]
        %v8565 = vld [vmem:[%s2279 + $0x3d8] sm:$0xff]
        %v8566 = vld [vmem:[%s2279 + $0x3e0] sm:$0xff]
        %v8567 = vld [vmem:[%s2279 + $0x3e8] sm:$0xff]
        %v8568 = vld [vmem:[%s2279 + $0x3f0] sm:$0xff]
        %v8569 = vld [vmem:[%s2279 + $0x3f8] sm:$0xff]
        %v8570 = vunpack.c.l.bf16 %v8538
        %v8571 = vunpack.c.h.bf16 %v8538
        %v8572 = vunpack.c.l.bf16 %v8539
        %v8573 = vunpack.c.h.bf16 %v8539
        %v8574 = vunpack.c.l.bf16 %v8540
        %v8575 = vunpack.c.h.bf16 %v8540
        %v8576 = vunpack.c.l.bf16 %v8541
        %v8577 = vunpack.c.h.bf16 %v8541
        %v8578 = vunpack.c.l.bf16 %v8542
        %v8579 = vunpack.c.h.bf16 %v8542
        %v8580 = vunpack.c.l.bf16 %v8543
        %v8581 = vunpack.c.h.bf16 %v8543
        %v8582 = vunpack.c.l.bf16 %v8544
        %v8583 = vunpack.c.h.bf16 %v8544
        %v8584 = vunpack.c.l.bf16 %v8545
        %v8585 = vunpack.c.h.bf16 %v8545
        %v8586 = vunpack.c.l.bf16 %v8546
        %v8587 = vunpack.c.h.bf16 %v8546
        %v8588 = vunpack.c.l.bf16 %v8547
        %v8589 = vunpack.c.h.bf16 %v8547
        %v8590 = vunpack.c.l.bf16 %v8548
        %v8591 = vunpack.c.h.bf16 %v8548
        %v8592 = vunpack.c.l.bf16 %v8549
        %v8593 = vunpack.c.h.bf16 %v8549
        %v8594 = vunpack.c.l.bf16 %v8550
        %v8595 = vunpack.c.h.bf16 %v8550
        %v8596 = vunpack.c.l.bf16 %v8551
        %v8597 = vunpack.c.h.bf16 %v8551
        %v8598 = vunpack.c.l.bf16 %v8552
        %v8599 = vunpack.c.h.bf16 %v8552
        %v8600 = vunpack.c.l.bf16 %v8553
        %v8601 = vunpack.c.h.bf16 %v8553
        %v8602 = vunpack.c.l.bf16 %v8554
        %v8603 = vunpack.c.h.bf16 %v8554
        %v8604 = vunpack.c.l.bf16 %v8555
        %v8605 = vunpack.c.h.bf16 %v8555
        %v8606 = vunpack.c.l.bf16 %v8556
        %v8607 = vunpack.c.h.bf16 %v8556
        %v8608 = vunpack.c.l.bf16 %v8557
        %v8609 = vunpack.c.h.bf16 %v8557
        %v8610 = vunpack.c.l.bf16 %v8558
        %v8611 = vunpack.c.h.bf16 %v8558
        %v8612 = vunpack.c.l.bf16 %v8559
        %v8613 = vunpack.c.h.bf16 %v8559
        %v8614 = vunpack.c.l.bf16 %v8560
        %v8615 = vunpack.c.h.bf16 %v8560
        %v8616 = vunpack.c.l.bf16 %v8561
        %v8617 = vunpack.c.h.bf16 %v8561
        %v8618 = vunpack.c.l.bf16 %v8562
        %v8619 = vunpack.c.h.bf16 %v8562
        %v8620 = vunpack.c.l.bf16 %v8563
        %v8621 = vunpack.c.h.bf16 %v8563
        %v8622 = vunpack.c.l.bf16 %v8564
        %v8623 = vunpack.c.h.bf16 %v8564
        %v8624 = vunpack.c.l.bf16 %v8565
        %v8625 = vunpack.c.h.bf16 %v8565
        %v8626 = vunpack.c.l.bf16 %v8566
        %v8627 = vunpack.c.h.bf16 %v8566
        %v8628 = vunpack.c.l.bf16 %v8567
        %v8629 = vunpack.c.h.bf16 %v8567
        %v8630 = vunpack.c.l.bf16 %v8568
        %v8631 = vunpack.c.h.bf16 %v8568
        %v8632 = vunpack.c.l.bf16 %v8569
        %v8633 = vunpack.c.h.bf16 %v8569
        %v8634 = vmul.f32 %v8008, %v8570
        %v8635 = vmul.f32 %v8009, %v8571
        %v8636 = vmul.f32 %v8010, %v8572
        %v8637 = vmul.f32 %v8011, %v8573
        %v8638 = vmul.f32 %v8012, %v8574
        %v8639 = vmul.f32 %v8013, %v8575
        %v8640 = vmul.f32 %v8014, %v8576
        %v8641 = vmul.f32 %v8015, %v8577
        %v8642 = vmul.f32 %v8016, %v8578
        %v8643 = vmul.f32 %v8017, %v8579
        %v8644 = vmul.f32 %v8018, %v8580
        %v8645 = vmul.f32 %v8019, %v8581
        %v8646 = vmul.f32 %v8020, %v8582
        %v8647 = vmul.f32 %v8021, %v8583
        %v8648 = vmul.f32 %v8022, %v8584
        %v8649 = vmul.f32 %v8023, %v8585
        %v8650 = vmul.f32 %v8024, %v8586
        %v8651 = vmul.f32 %v8025, %v8587
        %v8652 = vmul.f32 %v8026, %v8588
        %v8653 = vmul.f32 %v8027, %v8589
        %v8654 = vmul.f32 %v8028, %v8590
        %v8655 = vmul.f32 %v8029, %v8591
        %v8656 = vmul.f32 %v8030, %v8592
        %v8657 = vmul.f32 %v8031, %v8593
        %v8658 = vmul.f32 %v8032, %v8594
        %v8659 = vmul.f32 %v8033, %v8595
        %v8660 = vmul.f32 %v8034, %v8596
        %v8661 = vmul.f32 %v8035, %v8597
        %v8662 = vmul.f32 %v8036, %v8598
        %v8663 = vmul.f32 %v8037, %v8599
        %v8664 = vmul.f32 %v8038, %v8600
        %v8665 = vmul.f32 %v8039, %v8601
        %v8666 = vmul.f32 %v8040, %v8602
        %v8667 = vmul.f32 %v8041, %v8603
        %v8668 = vmul.f32 %v8042, %v8604
        %v8669 = vmul.f32 %v8043, %v8605
        %v8670 = vmul.f32 %v8044, %v8606
        %v8671 = vmul.f32 %v8045, %v8607
        %v8672 = vmul.f32 %v8046, %v8608
        %v8673 = vmul.f32 %v8047, %v8609
        %v8674 = vmul.f32 %v8048, %v8610
        %v8675 = vmul.f32 %v8049, %v8611
        %v8676 = vmul.f32 %v8050, %v8612
        %v8677 = vmul.f32 %v8051, %v8613
        %v8678 = vmul.f32 %v8052, %v8614
        %v8679 = vmul.f32 %v8053, %v8615
        %v8680 = vmul.f32 %v8054, %v8616
        %v8681 = vmul.f32 %v8055, %v8617
        %v8682 = vmul.f32 %v8056, %v8618
        %v8683 = vmul.f32 %v8057, %v8619
        %v8684 = vmul.f32 %v8058, %v8620
        %v8685 = vmul.f32 %v8059, %v8621
        %v8686 = vmul.f32 %v8060, %v8622
        %v8687 = vmul.f32 %v8061, %v8623
        %v8688 = vmul.f32 %v8062, %v8624
        %v8689 = vmul.f32 %v8063, %v8625
        %v8690 = vmul.f32 %v8064, %v8626
        %v8691 = vmul.f32 %v8065, %v8627
        %v8692 = vmul.f32 %v8066, %v8628
        %v8693 = vmul.f32 %v8067, %v8629
        %v8694 = vmul.f32 %v8068, %v8630
        %v8695 = vmul.f32 %v8069, %v8631
        %v8696 = vmul.f32 %v8070, %v8632
        %v8697 = vmul.f32 %v8071, %v8633
        %v8698 = vadd.f32 %v8634, %v8635
        %v8699 = vadd.f32 %v8698, %v8636
        %v8700 = vadd.f32 %v8699, %v8637
        %v8701 = vadd.f32 %v8700, %v8638
        %v8702 = vadd.f32 %v8701, %v8639
        %v8703 = vadd.f32 %v8702, %v8640
        %v8704 = vadd.f32 %v8703, %v8641
        %v8705 = vadd.f32 %v8704, %v8642
        %v8706 = vadd.f32 %v8705, %v8643
        %v8707 = vadd.f32 %v8706, %v8644
        %v8708 = vadd.f32 %v8707, %v8645
        %v8709 = vadd.f32 %v8708, %v8646
        %v8710 = vadd.f32 %v8709, %v8647
        %v8711 = vadd.f32 %v8710, %v8648
        %v8712 = vadd.f32 %v8711, %v8649
        %v8713 = vadd.f32 %v8712, %v8650
        %v8714 = vadd.f32 %v8713, %v8651
        %v8715 = vadd.f32 %v8714, %v8652
        %v8716 = vadd.f32 %v8715, %v8653
        %v8717 = vadd.f32 %v8716, %v8654
        %v8718 = vadd.f32 %v8717, %v8655
        %v8719 = vadd.f32 %v8718, %v8656
        %v8720 = vadd.f32 %v8719, %v8657
        %v8721 = vadd.f32 %v8720, %v8658
        %v8722 = vadd.f32 %v8721, %v8659
        %v8723 = vadd.f32 %v8722, %v8660
        %v8724 = vadd.f32 %v8723, %v8661
        %v8725 = vadd.f32 %v8724, %v8662
        %v8726 = vadd.f32 %v8725, %v8663
        %v8727 = vadd.f32 %v8726, %v8664
        %v8728 = vadd.f32 %v8727, %v8665
        %v8729 = vadd.f32 %v8728, %v8666
        %v8730 = vadd.f32 %v8729, %v8667
        %v8731 = vadd.f32 %v8730, %v8668
        %v8732 = vadd.f32 %v8731, %v8669
        %v8733 = vadd.f32 %v8732, %v8670
        %v8734 = vadd.f32 %v8733, %v8671
        %v8735 = vadd.f32 %v8734, %v8672
        %v8736 = vadd.f32 %v8735, %v8673
        %v8737 = vadd.f32 %v8736, %v8674
        %v8738 = vadd.f32 %v8737, %v8675
        %v8739 = vadd.f32 %v8738, %v8676
        %v8740 = vadd.f32 %v8739, %v8677
        %v8741 = vadd.f32 %v8740, %v8678
        %v8742 = vadd.f32 %v8741, %v8679
        %v8743 = vadd.f32 %v8742, %v8680
        %v8744 = vadd.f32 %v8743, %v8681
        %v8745 = vadd.f32 %v8744, %v8682
        %v8746 = vadd.f32 %v8745, %v8683
        %v8747 = vadd.f32 %v8746, %v8684
        %v8748 = vadd.f32 %v8747, %v8685
        %v8749 = vadd.f32 %v8748, %v8686
        %v8750 = vadd.f32 %v8749, %v8687
        %v8751 = vadd.f32 %v8750, %v8688
        %v8752 = vadd.f32 %v8751, %v8689
        %v8753 = vadd.f32 %v8752, %v8690
        %v8754 = vadd.f32 %v8753, %v8691
        %v8755 = vadd.f32 %v8754, %v8692
        %v8756 = vadd.f32 %v8755, %v8693
        %v8757 = vadd.f32 %v8756, %v8694
        %v8758 = vadd.f32 %v8757, %v8695
        %v8759 = vadd.f32 %v8758, %v8696
        %v8760 = vadd.f32 %v8759, %v8697
        %8761 = vadd.xlane.f32.xlu0 %v8760
        %v8762 = vpop.xlane.xlu0 %8761
        %v8763 = vrot.slane %v8762, 4
        %v8764 = vadd.f32 %v8762, %v8763
        %v8765 = vrot.slane %v8764, 2
        %v8766 = vadd.f32 %v8764, %v8765
        %v8767 = vrot.slane %v8766, 1
        %v8768 = vadd.f32 %v8766, %v8767
        %s8769 = vtos %v8768
        %s8770 = sadd.f32 %s6684, %s8769
        %v8771 = vstv %s7239
        %v8772 = vrsqrt.pop %v8771
        %v8773 = vmul.f32 %v8771, %v8772
        %vm8774 = vcmp.eq.f32.partialorder %v8771, inf
        %v8775 = vsel %vm8774, %v8771, %v8773
        %vm8776 = vcmp.eq.f32.partialorder %v8771, 0.0
        %v8777 = vand.u32 %v8771, 2147483648
        %v8778 = vsel %vm8776, %v8777, %v8775
        %s8779 = vtos %v8778
        %s8780 = smax.f32 %s8779, 1e-12
        %v8781 = vstv %s8780
        %v8782 = vrcp.pop %v8781
        %s8783 = vtos %v8782
        %v8784 = vlaneseq
        %v8785 = vand.u32 %v8784, 127
        %vm8786 = vcmp.eq.s32.totalorder %v8785, 0
        %vm8787 = vcmp.eq.s32.totalorder %v8785, 1
        %vm8788 = vcmp.eq.s32.totalorder %v8785, 2
        %v8789 = vstv %s8770
        %v8790 = vsel %vm8788, %v8789, 0.0
        %v8791 = vstv %s8537
        %v8792 = vsel %vm8787, %v8791, %v8790
        %v8793 = vstv %s8304
        %v8794 = vsel %vm8786, %v8793, %v8792
        %v8795 = vstv %s8783
        %v8796 = vmul.f32 %v8794, %v8795
        %v8797 = vld [vmem:[%s2] sm:$0x1]
        %v8798 = vadd.f32 %v8796, %v8797
        %v8799 = vxor.u32 %v8798, 2147483648
        %v8800 = vmul.f32 %v8799, 1.442695
        %v8801 = vpow.pop %v8800
        %v8802 = vadd.f32 %v8801, 1.0
        %v8803 = vrcp.pop %v8802
        %v8804 = vmul.f32 1.0, %v8803
        %8805 = vst [vmem:[%s162] sm:$0x1] %v8804
        %s8806 = sand.u32 %s93, 1
        %s8807 = scalar_lea.sflag [#allocation3], %s8806
        %s8808 = sand.u32 %s93, 1
        %s8809 = scalar_lea.vmem [#allocation2], %s8808
        // Predicated region
        $region33: #{_lambda_.1} parent=31 // pred_check
          %p8810 = pneg %p103
        $region34: #{_lambda_.1} parent=31 // pred_check_branch
          %8812 = sbr.rel (%p8810) target = $region36
        $region35: #{_lambda_.1} parent=31 // pred_region
          %s8814 = ssub.s32 16, 16
          %8815 = vsyncadd %s8807, %s8814
          %s8816 = smul.addr %s17, 16
          %s8817 = scalar_lea.hbm %s3, %s8816
          %s8819 = sshll.u32 %s8809, 4
          %s8820 = int_to_ptr.vmem [resolvable:$true] %s8819
          %8822 = dma.vmem_to_hbm [thread:$0]  %s8820, 16, %s8817, %s8807
        $region36: #{_lambda_.1} parent=31 // pred_fallthru
          _
      $region32: #{_lambda_.1} parent=5 // pred_fallthru
        _
      %p8823 = scmp.le.s32.totalorder 2, %s12
      // Predicated region
      $region37: #{_lambda_.1} parent=5 // pred_check
        %p8824 = pneg %p8823
      $region38: #{_lambda_.1} parent=5 // pred_check_branch
        %8826 = sbr.rel (%p8824) target = $region40
      $region39: #{_lambda_.1} parent=5 // pred_region
        %s8827 = ssub.s32 %s12, 2
        // Predicated region
        $region41: #{_lambda_.1} parent=39 // pred_check
          %p8828 = pneg %p109
        $region42: #{_lambda_.1} parent=39 // pred_check_branch
          %8830 = sbr.rel (%p8828) target = $region44
        $region43: #{_lambda_.1} parent=39 // pred_region
          %s8831 = sand.u32 %s94, 1
          %s8832 = scalar_lea.sflag [#allocation3], %s8831
          %s8833 = sand.u32 %s94, 1
          %s8834 = scalar_lea.vmem [#allocation2], %s8833
          %8835 = dma.done %s8832, 16
        $region44: #{_lambda_.1} parent=39 // pred_fallthru
          _
      $region40: #{_lambda_.1} parent=5 // pred_fallthru
        _
    $region6: #{_lambda_.1} parent=1 // loop_footer
      %s16 = sadd.s32 1, %s12
    $region7: #{_lambda_.1} parent=1 // loop_footer_branch
      %11 = sbr.rel target = $region3
    $region8: #{_lambda_.1} parent=1 // loop_exit
      _
    %8836 = vsyncpa [#allocation3], 1
    %s8837 = scalar_lea.sflag [#allocation3], 1
    %8838 = vsyncpa %s8837, 1

</llo_original>
